<compile_context>
chip_gen: v6e
topology: v6e:2x2x1
jax: 0.10.0
libtpu: 0.0.40
codegen_flags: <defaults>
</compile_context>

<pallas_src>
import functools

import jax
import jax.numpy as jnp
from jax.experimental import pallas as pl
from jax.experimental.pallas import tpu as pltpu

LEAKY_SLOPE = 0.01   # nn.LeakyReLU() default negative_slope
BN_EPS = 1e-5
IN_EPS = 1e-5


def _round_up(x, m):
    return (x + m - 1) // m * m


def _divisor_tile(n, cap):
    t = min(n, cap)
    while n % t:
        t -= 1
    return t


# ---------------------------------------------------------------------------
# Pallas kernel 1: tiled bf16 matmul + bias + activation.
#   grid = (M/tm, N/tn, K/tk); K is a reduction axis accumulated in an f32
#   VMEM scratch; init on k==0, epilogue/writeback on the last k step.
# ---------------------------------------------------------------------------
def _mm_bias_act_kernel(x_ref, w_ref, b_ref, o_ref, acc_ref, *, act):
    @pl.when(pl.program_id(2) == 0)
    def _init():
        acc_ref[...] = jnp.zeros_like(acc_ref)

    acc_ref[...] += jnp.dot(x_ref[...], w_ref[...],
                            preferred_element_type=jnp.float32)

    @pl.when(pl.program_id(2) == pl.num_programs(2) - 1)
    def _epilogue():
        acc = acc_ref[...] + b_ref[...]                 # (tm, tn) + (1, tn), f32
        if act == "leaky":
            acc = jnp.where(acc >= 0, acc, LEAKY_SLOPE * acc)
        elif act == "relu":
            acc = jnp.maximum(acc, 0.0)
        elif act == "sigmoid":
            acc = pl.reciprocal(1.0 + jnp.exp(-acc))    # exp on EUP path
        o_ref[...] = acc.astype(o_ref.dtype)


def matmul_bias_act(x, w, b, act="none", out_dtype=jnp.bfloat16,
                    tm_max=256, tn_max=256, tk_max=512):
    """out = act(x @ w + b).  MXU operands in bf16, accumulation in f32."""
    M, K = x.shape
    N = w.shape[1]
    tm = min(tm_max, _round_up(M, 16))     # bf16 sublane packing = 16
    tn = min(tn_max, _round_up(N, 128))    # lane-dense output tiles
    tk = min(tk_max, _round_up(K, 128))
    Mp, Kp, Np = _round_up(M, tm), _round_up(K, tk), _round_up(N, tn)
    # Zero padding: padded K columns contribute nothing to the accumulation.
    xp = jnp.pad(x.astype(jnp.bfloat16), ((0, Mp - M), (0, Kp - K)))
    wp = jnp.pad(w.astype(jnp.bfloat16), ((0, Kp - K), (0, Np - N)))
    bp = jnp.pad(b.astype(jnp.float32).reshape(1, N), ((0, 0), (0, Np - N)))

    out = pl.pallas_call(
        functools.partial(_mm_bias_act_kernel, act=act),
        out_shape=jax.ShapeDtypeStruct((Mp, Np), out_dtype),
        grid=(Mp // tm, Np // tn, Kp // tk),
        in_specs=[
            pl.BlockSpec((tm, tk), lambda i, j, k: (i, k)),
            pl.BlockSpec((tk, tn), lambda i, j, k: (k, j)),
            pl.BlockSpec((1, tn), lambda i, j, k: (0, j)),
        ],
        out_specs=pl.BlockSpec((tm, tn), lambda i, j, k: (i, j)),
        scratch_shapes=[pltpu.VMEM((tm, tn), jnp.float32)],
        compiler_params=pltpu.CompilerParams(
            dimension_semantics=("parallel", "parallel", "arbitrary"),
            vmem_limit_bytes=32 * 1024 * 1024),
    )(xp, wp, bp)
    return out[:M, :N]


# ---------------------------------------------------------------------------
# Pallas kernel 2: ADAIN = instance-norm + (1+gamma)*x_hat + beta (+LeakyReLU).
#   Two-pass over H tiles: pass 0 accumulates per-channel sum / sum-of-squares
#   into f32 VMEM scratch, pass 1 normalizes and writes the output tiles.
# ---------------------------------------------------------------------------
def _adain_kernel(x_ref, g_ref, b_ref, o_ref, sum_ref, ssq_ref, *, act, inv_n):
    p = pl.program_id(1)          # 0 = stats pass, 1 = normalize pass
    h = pl.program_id(2)

    @pl.when(p == 0)
    def _stats():
        x = x_ref[...].astype(jnp.float32)           # (1, th, W, C)

        @pl.when(h == 0)
        def _zero():
            sum_ref[...] = jnp.zeros_like(sum_ref)
            ssq_ref[...] = jnp.zeros_like(ssq_ref)

        sum_ref[...] += jnp.sum(x, axis=(1, 2))      # (1, C)
        ssq_ref[...] += jnp.sum(x * x, axis=(1, 2))

    @pl.when(p == 1)
    def _normalize():
        x = x_ref[...].astype(jnp.float32)
        mean = sum_ref[...] * inv_n                                  # (1, C)
        var = jnp.maximum(ssq_ref[...] * inv_n - mean * mean, 0.0)
        inv_std = jax.lax.rsqrt(var + IN_EPS)
        y = (x - mean.reshape(1, 1, 1, -1)) * inv_std.reshape(1, 1, 1, -1)
        y = y * (1.0 + g_ref[...]) + b_ref[...]                      # (1,1,1,C)
        if act == "leaky":
            y = jnp.where(y >= 0, y, LEAKY_SLOPE * y)
        o_ref[...] = y.astype(o_ref.dtype)


def adain(x, gamma, beta, act="none", out_dtype=jnp.bfloat16, max_rows=128):
    B, H, W, C = x.shape
    th = _divisor_tile(H, max_rows)
    g4 = gamma.reshape(B, 1, 1, C).astype(jnp.float32)
    b4 = beta.reshape(B, 1, 1, C).astype(jnp.float32)
    return pl.pallas_call(
        functools.partial(_adain_kernel, act=act, inv_n=1.0 / float(H * W)),
        out_shape=jax.ShapeDtypeStruct((B, H, W, C), out_dtype),
        grid=(B, 2, H // th),
        in_specs=[
            pl.BlockSpec((1, th, W, C), lambda b, p, h: (b, h, 0, 0)),
            pl.BlockSpec((1, 1, 1, C), lambda b, p, h: (b, 0, 0, 0)),
            pl.BlockSpec((1, 1, 1, C), lambda b, p, h: (b, 0, 0, 0)),
        ],
        # Pass 0 parks the (write-only) output on block (b, 0) so nothing is
        # flushed mid-pass; pass 1 writes each (b, h) block exactly once.
        out_specs=pl.BlockSpec((1, th, W, C), lambda b, p, h: (b, h * p, 0, 0)),
        scratch_shapes=[pltpu.VMEM((1, C), jnp.float32),
                        pltpu.VMEM((1, C), jnp.float32)],
        compiler_params=pltpu.CompilerParams(
            dimension_semantics=("parallel", "arbitrary", "arbitrary")),
    )(x.astype(jnp.bfloat16), g4, b4)


# ---------------------------------------------------------------------------
# Pallas kernel 3: whole ADAIN MLP (shared->ReLU then fused gamma|beta heads)
# in a single launch.  Tiny shapes -> one full-array block, f32.
# ---------------------------------------------------------------------------
def _adain_mlp_kernel(z_ref, ws_ref, bs_ref, wgb_ref, bgb_ref, o_ref):
    h = jnp.dot(z_ref[...], ws_ref[...], preferred_element_type=jnp.float32)
    h = jnp.maximum(h + bs_ref[...], 0.0)
    gb = jnp.dot(h, wgb_ref[...], preferred_element_type=jnp.float32)
    o_ref[...] = (gb + bgb_ref[...]).astype(o_ref.dtype)


def adain_mlp(z, p):
    """Returns (gamma, beta) = heads(relu(z @ Ws + bs)) with one kernel launch."""
    B, F = z.shape
    nh = p["shared"]["w"].shape[1]
    C = p["gamma"]["w"].shape[1]
    wgb = jnp.concatenate([p["gamma"]["w"], p["beta"]["w"]], axis=1)
    bgb = jnp.concatenate([p["gamma"]["b"], p["beta"]["b"]], axis=0)
    out = pl.pallas_call(
        _adain_mlp_kernel,
        out_shape=jax.ShapeDtypeStruct((B, 2 * C), jnp.float32),
        grid=(1,),
        in_specs=[
            pl.BlockSpec((B, F), lambda i: (0, 0)),
            pl.BlockSpec((F, nh), lambda i: (0, 0)),
            pl.BlockSpec((1, nh), lambda i: (0, 0)),
            pl.BlockSpec((nh, 2 * C), lambda i: (0, 0)),
            pl.BlockSpec((1, 2 * C), lambda i: (0, 0)),
        ],
        out_specs=pl.BlockSpec((B, 2 * C), lambda i: (0, 0)),
    )(z.astype(jnp.float32),
      p["shared"]["w"].astype(jnp.float32),
      p["shared"]["b"].reshape(1, nh).astype(jnp.float32),
      wgb.astype(jnp.float32),
      bgb.reshape(1, 2 * C).astype(jnp.float32))
    return out[:, :C], out[:, C:]


# ---------------------------------------------------------------------------
# JAX glue: convolutions via bf16 im2col feeding the tiled matmul kernel.
# ---------------------------------------------------------------------------
def fold_bn(w, b, bn):
    """Fold eval-mode BatchNorm (per-channel scale/shift) into conv weight/bias."""
    return w * bn["scale"], b * bn["scale"] + bn["shift"]


def conv2d(x, w, b, *, k, pad, act="none", out_dtype=jnp.bfloat16):
    """k x k conv, stride 1 (cross-correlation, matching nn.Conv2d)."""
    if isinstance(pad, int):
        pad = ((pad, pad), (pad, pad))
    (pt, pb), (pleft, pright) = pad
    B, H, W, Cin = x.shape
    Cout = w.shape[-1]
    Hout = H + pt + pb - k + 1
    Wout = W + pleft + pright - k + 1
    xp = jnp.pad(x.astype(jnp.bfloat16),
                 ((0, 0), (pt, pb), (pleft, pright), (0, 0)))
    patches = jnp.concatenate(
        [xp[:, dy:dy + Hout, dx:dx + Wout, :] for dy in range(k) for dx in range(k)],
        axis=-1).reshape(B * Hout * Wout, k * k * Cin)
    wm = w.reshape(k * k * Cin, Cout)
    out = matmul_bias_act(patches, wm, b, act=act, out_dtype=out_dtype)
    return out.reshape(B, Hout, Wout, Cout)


def upconv2x(x, w, b, act="leaky", out_dtype=jnp.bfloat16):
    """Nearest-2x upsample followed by 3x3 'same' conv (+bias+act), computed as
    four 2x2 phase convolutions at the original resolution (exact equivalence:
    the nearest upsample duplicates pixels, so adjacent 3x3 taps collapse)."""
    B, H, W, Cin = x.shape
    Cout = w.shape[-1]
    # Combine the 3x3 taps along y per output-row phase.
    wy = {0: jnp.stack([w[0], w[1] + w[2]], axis=0),   # output rows 2y+0
          1: jnp.stack([w[0] + w[1], w[2]], axis=0)}   # output rows 2y+1
    phases = []
    for ry in (0, 1):
        wr = wy[ry]                                    # (2, 3, Cin, Cout)
        for rx in (0, 1):
            if rx == 0:
                weff = jnp.stack([wr[:, 0], wr[:, 1] + wr[:, 2]], axis=1)
            else:
                weff = jnp.stack([wr[:, 0] + wr[:, 1], wr[:, 2]], axis=1)
            pad = ((1, 0) if ry == 0 else (0, 1),
                   (1, 0) if rx == 0 else (0, 1))
            phases.append(conv2d(x, weff, b, k=2, pad=pad, act=act,
                                 out_dtype=out_dtype))
    ph = jnp.stack(phases, axis=0).reshape(2, 2, B, H, W, Cout)
    # Interleave: out[b, 2y+ry, 2x+rx, c] = phase[ry, rx][b, y, x, c]
    return ph.transpose(2, 3, 0, 4, 1, 5).reshape(B, 2 * H, 2 * W, Cout)


# ---------------------------------------------------------------------------
# Deterministic parameter initialization (synthetic weights).
# ---------------------------------------------------------------------------
def _init_conv(key, k, cin, cout):
    kw, kb = jax.random.split(key)
    fan_in = k * k * cin
    w = jax.random.normal(kw, (k, k, cin, cout), jnp.float32) / jnp.sqrt(float(fan_in))
    b = 0.01 * jax.random.normal(kb, (cout,), jnp.float32)
    return {"w": w, "b": b}


def _init_bn(key, c):
    k1, k2, k3, k4 = jax.random.split(key, 4)
    gamma = 1.0 + 0.1 * jax.random.normal(k1, (c,), jnp.float32)
    beta = 0.1 * jax.random.normal(k2, (c,), jnp.float32)
    mean = 0.1 * jax.random.normal(k3, (c,), jnp.float32)
    var = 1.0 + 0.1 * jax.random.uniform(k4, (c,), jnp.float32)
    scale = gamma * jax.lax.rsqrt(var + BN_EPS)
    shift = beta - mean * scale
    return {"scale": scale, "shift": shift}


def _init_linear(key, fin, fout):
    kw, kb = jax.random.split(key)
    w = jax.random.normal(kw, (fin, fout), jnp.float32) / jnp.sqrt(float(fin))
    b = jnp.zeros((fout,), jnp.float32)
    return {"w": w, "b": b}


def _init_adain(key, c, feature_nc, nhidden=16):
    k1, k2, k3 = jax.random.split(key, 3)
    return {"shared": _init_linear(k1, feature_nc, nhidden),
            "gamma": _init_linear(k2, nhidden, c),
            "beta": _init_linear(k3, nhidden, c)}


def init_decoder_params(key, image_nc, feature_nc, ngf, img_f, layers, num_block):
    params = {}
    out_channels = None
    for i in range(layers)[::-1]:
        if i == layers - 1:
            in_channels = ngf * 2 ** (i + 1) * 2
        else:
            in_channels = min(ngf * 2 ** (i + 1), img_f)
        out_channels = min(ngf * 2 ** i, img_f)

        key, kuc, kub, kjc, kjb = jax.random.split(key, 5)
        params[f"up{i}"] = {"conv": _init_conv(kuc, 3, in_channels, out_channels),
                            "bn": _init_bn(kub, out_channels)}
        params[f"jump{i}"] = {"conv": _init_conv(kjc, 3, out_channels, out_channels),
                              "bn": _init_bn(kjb, out_channels)}

        blocks = []
        for _ in range(num_block):
            key, kc1, kc2, ka1, ka2 = jax.random.split(key, 5)
            blocks.append({"conv1": _init_conv(kc1, 3, in_channels, in_channels),
                           "conv2": _init_conv(kc2, 3, in_channels, in_channels),
                           "adain1": _init_adain(ka1, in_channels, feature_nc),
                           "adain2": _init_adain(ka2, in_channels, feature_nc)})
        params[f"res{i}"] = blocks

    key, kf = jax.random.split(key)
    params["final"] = _init_conv(kf, 7, out_channels, image_nc)
    return params


# ---------------------------------------------------------------------------
# Forward pass (mirrors Decoder.forward).
# ---------------------------------------------------------------------------
def ffc_adain_resblock(x, z, p):
    # Local conv + ADAIN residual path (FFC global FFT branch omitted, see TODO).
    g1, b1 = adain_mlp(z, p["adain1"])
    dx = conv2d(x, p["conv1"]["w"], p["conv1"]["b"], k=3, pad=1)
    dx = adain(dx, g1, b1, act="leaky")
    g2, b2 = adain_mlp(z, p["adain2"])
    dx = conv2d(dx, p["conv2"]["w"], p["conv2"]["b"], k=3, pad=1)
    dx = adain(dx, g2, b2)
    return x + dx


def decoder_forward(params, x_list, z, layers, num_block):
    feats = [f.astype(jnp.bfloat16) for f in x_list]   # bf16 inter-kernel activations
    out = feats.pop()
    for i in range(layers)[::-1]:
        # res_i(out, z)
        for nb in range(num_block):
            out = ffc_adain_resblock(out, z, params[f"res{i}"][nb])
        # up_i(out): nearest 2x upsample -> conv3x3 -> BN(eval, folded) -> LeakyReLU
        pu = params[f"up{i}"]
        wu, bu = fold_bn(pu["conv"]["w"], pu["conv"]["b"], pu["bn"])
        out = upconv2x(out, wu, bu, act="leaky")
        # jump_i(x.pop()) + out : conv3x3 -> BN(eval, folded) -> LeakyReLU
        pj = params[f"jump{i}"]
        wj, bj = fold_bn(pj["conv"]["w"], pj["conv"]["b"], pj["bn"])
        skip = feats.pop()
        out = conv2d(skip, wj, bj, k=3, pad=1, act="leaky") + out
    # FinalBlock2d: conv7x7 -> sigmoid
    pf = params["final"]
    return conv2d(out, pf["w"], pf["b"], k=7, pad=3, act="sigmoid",
                  out_dtype=jnp.float32)


if __name__ == "__main__":
    # small synthetic config
    image_nc, feature_nc, ngf, img_f = 3, 8, 4, 64
    layers, num_block = 2, 1
    B, H0 = 2, 4

    key = jax.random.PRNGKey(0)
    kp, kz, kx0, kx1, kx2 = jax.random.split(key, 5)

    params = init_decoder_params(kp, image_nc, feature_nc, ngf, img_f, layers, num_block)

    # x is a list of encoder skip features (NHWC), popped from the end:
    #   x[-1]: deepest features (channels = ngf*2**layers*2 = 32) at 4x4
    #   x[-2]: skip for layer 1 (8 ch) at 8x8
    #   x[-3]: skip for layer 0 (4 ch) at 16x16
    x_list = [
        jax.random.normal(kx0, (B, H0 * 4, H0 * 4, min(ngf, img_f)), jnp.float32),
        jax.random.normal(kx1, (B, H0 * 2, H0 * 2, min(ngf * 2, img_f)), jnp.float32),
        jax.random.normal(kx2, (B, H0, H0, ngf * 2 ** layers * 2), jnp.float32),
    ]
    z = jax.random.normal(kz, (B, feature_nc), jnp.float32)

    fwd = jax.jit(functools.partial(decoder_forward, layers=layers, num_block=num_block))
    out = fwd(params, x_list, z)
    out = jax.block_until_ready(out)

    assert out.shape == (B, H0 * 4, H0 * 4, image_nc), out.shape
    assert bool(jnp.all(jnp.isfinite(out)))
    assert bool(jnp.all((out >= 0.0) & (out <= 1.0)))  # sigmoid output range
    print("KERNEL_OK")
</pallas_src>

<mosaic_0001>
module attributes {stable_mosaic.version = 11 : i64} {
  func.func @_adain_mlp_kernel(%arg0: i32, %arg1: memref<2x8xf32, #tpu.memory_space<vmem>>, %arg2: memref<8x16xf32, #tpu.memory_space<vmem>>, %arg3: memref<1x16xf32, #tpu.memory_space<vmem>>, %arg4: memref<16x64xf32, #tpu.memory_space<vmem>>, %arg5: memref<1x64xf32, #tpu.memory_space<vmem>>, %arg6: memref<2x64xf32, #tpu.memory_space<vmem>>) attributes {dimension_semantics = [#tpu.dimension_semantics<arbitrary>], iteration_bounds = array<i64: 1>, scalar_prefetch = 0 : i64, scratch_operands = 0 : i64, tpu.core_type = #tpu.core_type<tc>, window_params = [{pipeline_mode = #tpu.pipeline_mode<synchronous>, transform_indices = @transform_0, window_bounds = array<i64: 2, 8>}, {pipeline_mode = #tpu.pipeline_mode<synchronous>, transform_indices = @transform_1, window_bounds = array<i64: 8, 16>}, {pipeline_mode = #tpu.pipeline_mode<synchronous>, transform_indices = @transform_2, window_bounds = array<i64: 1, 16>}, {pipeline_mode = #tpu.pipeline_mode<synchronous>, transform_indices = @transform_3, window_bounds = array<i64: 16, 64>}, {pipeline_mode = #tpu.pipeline_mode<synchronous>, transform_indices = @transform_4, window_bounds = array<i64: 1, 64>}, {pipeline_mode = #tpu.pipeline_mode<synchronous>, transform_indices = @transform_5, window_bounds = array<i64: 2, 64>}]} {
    %c0 = arith.constant 0 : index
    %c0_0 = arith.constant 0 : index
    %0 = vector.load %arg1[%c0, %c0_0] : memref<2x8xf32, #tpu.memory_space<vmem>>, vector<2x8xf32>
    %c0_1 = arith.constant 0 : index
    %c0_2 = arith.constant 0 : index
    %1 = vector.load %arg2[%c0_1, %c0_2] : memref<8x16xf32, #tpu.memory_space<vmem>>, vector<8x16xf32>
    %cst = arith.constant dense<0.000000e+00> : vector<2x16xf32>
    %2 = tpu.matmul %0, %1, %cst {dimension_numbers = #tpu.dot_dimension_numbers<[1], [0], [0], [1], [0, 0, 1, 1], [], []>} : vector<2x8xf32>, vector<8x16xf32>, vector<2x16xf32> -> vector<2x16xf32>
    %c0_3 = arith.constant 0 : index
    %c0_4 = arith.constant 0 : index
    %3 = vector.load %arg3[%c0_3, %c0_4] : memref<1x16xf32, #tpu.memory_space<vmem>>, vector<1x16xf32>
    %4 = vector.broadcast %3 : vector<1x16xf32> to vector<2x16xf32>
    %5 = arith.addf %2, %4 : vector<2x16xf32>
    %cst_5 = arith.constant 0.000000e+00 : f32
    %6 = vector.broadcast %cst_5 : f32 to vector<2x16xf32>
    %7 = arith.maximumf %5, %6 : vector<2x16xf32>
    %c0_6 = arith.constant 0 : index
    %c0_7 = arith.constant 0 : index
    %8 = vector.load %arg4[%c0_6, %c0_7] : memref<16x64xf32, #tpu.memory_space<vmem>>, vector<16x64xf32>
    %cst_8 = arith.constant dense<0.000000e+00> : vector<2x64xf32>
    %9 = tpu.matmul %7, %8, %cst_8 {dimension_numbers = #tpu.dot_dimension_numbers<[1], [0], [0], [1], [0, 0, 1, 1], [], []>} : vector<2x16xf32>, vector<16x64xf32>, vector<2x64xf32> -> vector<2x64xf32>
    %c0_9 = arith.constant 0 : index
    %c0_10 = arith.constant 0 : index
    %10 = vector.load %arg5[%c0_9, %c0_10] : memref<1x64xf32, #tpu.memory_space<vmem>>, vector<1x64xf32>
    %11 = vector.broadcast %10 : vector<1x64xf32> to vector<2x64xf32>
    %12 = arith.addf %9, %11 : vector<2x64xf32>
    %c0_11 = arith.constant 0 : index
    %c0_12 = arith.constant 0 : index
    %13 = vector.load %arg6[%c0_11, %c0_12] : memref<2x64xf32, #tpu.memory_space<vmem>>, vector<2x64xf32>
    tpu.vector_store %arg6[%c0_11, %c0_12], %12 {strides = array<i32>} : memref<2x64xf32, #tpu.memory_space<vmem>>, vector<2x64xf32>,
    return
  }
  func.func @transform_0(%arg0: i32) -> (i32, i32) {
    %c0_i32 = arith.constant 0 : i32
    %c0_i32_0 = arith.constant 0 : i32
    %c0_i32_1 = arith.constant 0 : i32
    return %c0_i32, %c0_i32_0 : i32, i32
  }
  func.func @transform_1(%arg0: i32) -> (i32, i32) {
    %c0_i32 = arith.constant 0 : i32
    %c0_i32_0 = arith.constant 0 : i32
    %c0_i32_1 = arith.constant 0 : i32
    return %c0_i32, %c0_i32_0 : i32, i32
  }
  func.func @transform_2(%arg0: i32) -> (i32, i32) {
    %c0_i32 = arith.constant 0 : i32
    %c0_i32_0 = arith.constant 0 : i32
    %c0_i32_1 = arith.constant 0 : i32
    return %c0_i32, %c0_i32_0 : i32, i32
  }
  func.func @transform_3(%arg0: i32) -> (i32, i32) {
    %c0_i32 = arith.constant 0 : i32
    %c0_i32_0 = arith.constant 0 : i32
    %c0_i32_1 = arith.constant 0 : i32
    return %c0_i32, %c0_i32_0 : i32, i32
  }
  func.func @transform_4(%arg0: i32) -> (i32, i32) {
    %c0_i32 = arith.constant 0 : i32
    %c0_i32_0 = arith.constant 0 : i32
    %c0_i32_1 = arith.constant 0 : i32
    return %c0_i32, %c0_i32_0 : i32, i32
  }
  func.func @transform_5(%arg0: i32) -> (i32, i32) {
    %c0_i32 = arith.constant 0 : i32
    %c0_i32_0 = arith.constant 0 : i32
    %c0_i32_1 = arith.constant 0 : i32
    return %c0_i32, %c0_i32_0 : i32, i32
  }
}

module attributes {stable_mosaic.version = 11 : i64} {
  func.func @_mm_bias_act_kernel(%arg0: i32, %arg1: i32, %arg2: i32, %arg3: memref<32x384xbf16, #tpu.memory_space<vmem>>, %arg4: memref<384x128xbf16, #tpu.memory_space<vmem>>, %arg5: memref<1x128xf32, #tpu.memory_space<vmem>>, %arg6: memref<32x128xbf16, #tpu.memory_space<vmem>>, %arg7: memref<32x128xf32, #tpu.memory_space<vmem>>) attributes {dimension_semantics = [#tpu.dimension_semantics<parallel>, #tpu.dimension_semantics<parallel>, #tpu.dimension_semantics<arbitrary>], iteration_bounds = array<i64: 1, 1, 1>, scalar_prefetch = 0 : i64, scratch_operands = 1 : i64, tpu.core_type = #tpu.core_type<tc>, window_params = [{transform_indices = @transform_0, window_bounds = array<i64: 32, 384>}, {transform_indices = @transform_1, window_bounds = array<i64: 384, 128>}, {transform_indices = @transform_2, window_bounds = array<i64: 1, 128>}, {transform_indices = @transform_3, window_bounds = array<i64: 32, 128>}]} {
    %c0_i32 = arith.constant 0 : i32
    %0 = arith.cmpi eq, %arg2, %c0_i32 : i32
    %1 = arith.extui %0 : i1 to i32
    %c0_i32_0 = arith.constant 0 : i32
    %2 = arith.cmpi ne, %1, %c0_i32_0 : i32
    scf.if %2 {
      %cst_10 = arith.constant 0.000000e+00 : f32
      %12 = vector.broadcast %cst_10 : f32 to vector<32x128xf32>
      %c0_11 = arith.constant 0 : index
      %c0_12 = arith.constant 0 : index
      %13 = vector.load %arg7[%c0_11, %c0_12] : memref<32x128xf32, #tpu.memory_space<vmem>>, vector<32x128xf32>
      tpu.vector_store %arg7[%c0_11, %c0_12], %12 {strides = array<i32>} : memref<32x128xf32, #tpu.memory_space<vmem>>, vector<32x128xf32>,
    } else {
    }
    %c0 = arith.constant 0 : index
    %c0_1 = arith.constant 0 : index
    %3 = vector.load %arg7[%c0, %c0_1] : memref<32x128xf32, #tpu.memory_space<vmem>>, vector<32x128xf32>
    %c0_2 = arith.constant 0 : index
    %c0_3 = arith.constant 0 : index
    %4 = vector.load %arg3[%c0_2, %c0_3] : memref<32x384xbf16, #tpu.memory_space<vmem>>, vector<32x384xbf16>
    %c0_4 = arith.constant 0 : index
    %c0_5 = arith.constant 0 : index
    %5 = vector.load %arg4[%c0_4, %c0_5] : memref<384x128xbf16, #tpu.memory_space<vmem>>, vector<384x128xbf16>
    %cst = arith.constant dense<0.000000e+00> : vector<32x128xf32>
    %6 = tpu.matmul %4, %5, %cst {dimension_numbers = #tpu.dot_dimension_numbers<[1], [0], [0], [1], [0, 0, 1, 1], [], []>} : vector<32x384xbf16>, vector<384x128xbf16>, vector<32x128xf32> -> vector<32x128xf32>
    %7 = arith.addf %3, %6 : vector<32x128xf32>
    %c0_6 = arith.constant 0 : index
    %c0_7 = arith.constant 0 : index
    %8 = vector.load %arg7[%c0_6, %c0_7] : memref<32x128xf32, #tpu.memory_space<vmem>>, vector<32x128xf32>
    tpu.vector_store %arg7[%c0_6, %c0_7], %7 {strides = array<i32>} : memref<32x128xf32, #tpu.memory_space<vmem>>, vector<32x128xf32>,
    %c0_i32_8 = arith.constant 0 : i32
    %9 = arith.cmpi eq, %arg2, %c0_i32_8 : i32
    %10 = arith.extui %9 : i1 to i32
    %c0_i32_9 = arith.constant 0 : i32
    %11 = arith.cmpi ne, %10, %c0_i32_9 : i32
    scf.if %11 {
      %c0_10 = arith.constant 0 : index
      %c0_11 = arith.constant 0 : index
      %12 = vector.load %arg7[%c0_10, %c0_11] : memref<32x128xf32, #tpu.memory_space<vmem>>, vector<32x128xf32>
      %c0_12 = arith.constant 0 : index
      %c0_13 = arith.constant 0 : index
      %13 = vector.load %arg5[%c0_12, %c0_13] : memref<1x128xf32, #tpu.memory_space<vmem>>, vector<1x128xf32>
      %14 = vector.broadcast %13 : vector<1x128xf32> to vector<32x128xf32>
      %15 = arith.addf %12, %14 : vector<32x128xf32>
      %16 = arith.truncf %15 : vector<32x128xf32> to vector<32x128xbf16>
      %c0_14 = arith.constant 0 : index
      %c0_15 = arith.constant 0 : index
      %17 = vector.load %arg6[%c0_14, %c0_15] : memref<32x128xbf16, #tpu.memory_space<vmem>>, vector<32x128xbf16>
      tpu.vector_store %arg6[%c0_14, %c0_15], %16 {strides = array<i32>} : memref<32x128xbf16, #tpu.memory_space<vmem>>, vector<32x128xbf16>,
    } else {
    }
    return
  }
  func.func @transform_0(%arg0: i32, %arg1: i32, %arg2: i32) -> (i32, i32) {
    %c0_i32 = arith.constant 0 : i32
    return %arg0, %arg2 : i32, i32
  }
  func.func @transform_1(%arg0: i32, %arg1: i32, %arg2: i32) -> (i32, i32) {
    %c0_i32 = arith.constant 0 : i32
    return %arg2, %arg1 : i32, i32
  }
  func.func @transform_2(%arg0: i32, %arg1: i32, %arg2: i32) -> (i32, i32) {
    %c0_i32 = arith.constant 0 : i32
    %c0_i32_0 = arith.constant 0 : i32
    return %c0_i32, %arg1 : i32, i32
  }
  func.func @transform_3(%arg0: i32, %arg1: i32, %arg2: i32) -> (i32, i32) {
    %c0_i32 = arith.constant 0 : i32
    return %arg0, %arg1 : i32, i32
  }
}

module attributes {stable_mosaic.version = 11 : i64} {
  func.func @_adain_kernel(%arg0: i32, %arg1: i32, %arg2: i32, %arg3: memref<1x4x4x32xbf16, #tpu.memory_space<vmem>>, %arg4: memref<1x1x1x32xf32, #tpu.memory_space<vmem>>, %arg5: memref<1x1x1x32xf32, #tpu.memory_space<vmem>>, %arg6: memref<1x4x4x32xbf16, #tpu.memory_space<vmem>>, %arg7: memref<1x32xf32, #tpu.memory_space<vmem>>, %arg8: memref<1x32xf32, #tpu.memory_space<vmem>>) attributes {dimension_semantics = [#tpu.dimension_semantics<parallel>, #tpu.dimension_semantics<arbitrary>, #tpu.dimension_semantics<arbitrary>], iteration_bounds = array<i64: 2, 2, 1>, scalar_prefetch = 0 : i64, scratch_operands = 2 : i64, tpu.core_type = #tpu.core_type<tc>, window_params = [{transform_indices = @transform_0, window_bounds = array<i64: 1, 4, 4, 32>}, {transform_indices = @transform_1, window_bounds = array<i64: 1, 1, 1, 32>}, {transform_indices = @transform_2, window_bounds = array<i64: 1, 1, 1, 32>}, {transform_indices = @transform_3, window_bounds = array<i64: 1, 4, 4, 32>}]} {
    %c0_i32 = arith.constant 0 : i32
    %0 = arith.cmpi eq, %arg1, %c0_i32 : i32
    %1 = arith.extui %0 : i1 to i32
    %c0_i32_0 = arith.constant 0 : i32
    %2 = arith.cmpi ne, %1, %c0_i32_0 : i32
    scf.if %2 {
      %c0 = arith.constant 0 : index
      %c0_2 = arith.constant 0 : index
      %c0_3 = arith.constant 0 : index
      %c0_4 = arith.constant 0 : index
      %6 = vector.load %arg3[%c0, %c0_2, %c0_3, %c0_4] : memref<1x4x4x32xbf16, #tpu.memory_space<vmem>>, vector<1x4x4x32xbf16>
      %7 = arith.extf %6 : vector<1x4x4x32xbf16> to vector<1x4x4x32xf32>
      %c0_i32_5 = arith.constant 0 : i32
      %8 = arith.cmpi eq, %arg2, %c0_i32_5 : i32
      %9 = arith.extui %8 : i1 to i32
      %c0_i32_6 = arith.constant 0 : i32
      %10 = arith.cmpi ne, %9, %c0_i32_6 : i32
      scf.if %10 {
        %cst_16 = arith.constant 0.000000e+00 : f32
        %20 = vector.broadcast %cst_16 : f32 to vector<1x32xf32>
        %c0_17 = arith.constant 0 : index
        %c0_18 = arith.constant 0 : index
        %21 = vector.load %arg7[%c0_17, %c0_18] : memref<1x32xf32, #tpu.memory_space<vmem>>, vector<1x32xf32>
        tpu.vector_store %arg7[%c0_17, %c0_18], %20 {strides = array<i32>} : memref<1x32xf32, #tpu.memory_space<vmem>>, vector<1x32xf32>,
        %cst_19 = arith.constant 0.000000e+00 : f32
        %22 = vector.broadcast %cst_19 : f32 to vector<1x32xf32>
        %c0_20 = arith.constant 0 : index
        %c0_21 = arith.constant 0 : index
        %23 = vector.load %arg8[%c0_20, %c0_21] : memref<1x32xf32, #tpu.memory_space<vmem>>, vector<1x32xf32>
        tpu.vector_store %arg8[%c0_20, %c0_21], %22 {strides = array<i32>} : memref<1x32xf32, #tpu.memory_space<vmem>>, vector<1x32xf32>,
      } else {
      }
      %c0_7 = arith.constant 0 : index
      %c0_8 = arith.constant 0 : index
      %11 = vector.load %arg7[%c0_7, %c0_8] : memref<1x32xf32, #tpu.memory_space<vmem>>, vector<1x32xf32>
      %cst = arith.constant dense<0.000000e+00> : vector<1x32xf32>
      %12 = vector.multi_reduction <add>, %7, %cst [1, 2] : vector<1x4x4x32xf32> to vector<1x32xf32>
      %13 = arith.addf %11, %12 : vector<1x32xf32>
      %c0_9 = arith.constant 0 : index
      %c0_10 = arith.constant 0 : index
      %14 = vector.load %arg7[%c0_9, %c0_10] : memref<1x32xf32, #tpu.memory_space<vmem>>, vector<1x32xf32>
      tpu.vector_store %arg7[%c0_9, %c0_10], %13 {strides = array<i32>} : memref<1x32xf32, #tpu.memory_space<vmem>>, vector<1x32xf32>,
      %c0_11 = arith.constant 0 : index
      %c0_12 = arith.constant 0 : index
      %15 = vector.load %arg8[%c0_11, %c0_12] : memref<1x32xf32, #tpu.memory_space<vmem>>, vector<1x32xf32>
      %16 = arith.mulf %7, %7 : vector<1x4x4x32xf32>
      %cst_13 = arith.constant dense<0.000000e+00> : vector<1x32xf32>
      %17 = vector.multi_reduction <add>, %16, %cst_13 [1, 2] : vector<1x4x4x32xf32> to vector<1x32xf32>
      %18 = arith.addf %15, %17 : vector<1x32xf32>
      %c0_14 = arith.constant 0 : index
      %c0_15 = arith.constant 0 : index
      %19 = vector.load %arg8[%c0_14, %c0_15] : memref<1x32xf32, #tpu.memory_space<vmem>>, vector<1x32xf32>
      tpu.vector_store %arg8[%c0_14, %c0_15], %18 {strides = array<i32>} : memref<1x32xf32, #tpu.memory_space<vmem>>, vector<1x32xf32>,
    } else {
    }
    %c1_i32 = arith.constant 1 : i32
    %3 = arith.cmpi eq, %arg1, %c1_i32 : i32
    %4 = arith.extui %3 : i1 to i32
    %c0_i32_1 = arith.constant 0 : i32
    %5 = arith.cmpi ne, %4, %c0_i32_1 : i32
    scf.if %5 {
      %c0 = arith.constant 0 : index
      %c0_2 = arith.constant 0 : index
      %c0_3 = arith.constant 0 : index
      %c0_4 = arith.constant 0 : index
      %6 = vector.load %arg3[%c0, %c0_2, %c0_3, %c0_4] : memref<1x4x4x32xbf16, #tpu.memory_space<vmem>>, vector<1x4x4x32xbf16>
      %7 = arith.extf %6 : vector<1x4x4x32xbf16> to vector<1x4x4x32xf32>
      %c0_5 = arith.constant 0 : index
      %c0_6 = arith.constant 0 : index
      %8 = vector.load %arg7[%c0_5, %c0_6] : memref<1x32xf32, #tpu.memory_space<vmem>>, vector<1x32xf32>
      %cst = arith.constant 6.250000e-02 : f32
      %9 = vector.broadcast %cst : f32 to vector<1x32xf32>
      %10 = arith.mulf %8, %9 : vector<1x32xf32>
      %c0_7 = arith.constant 0 : index
      %c0_8 = arith.constant 0 : index
      %11 = vector.load %arg8[%c0_7, %c0_8] : memref<1x32xf32, #tpu.memory_space<vmem>>, vector<1x32xf32>
      %cst_9 = arith.constant 6.250000e-02 : f32
      %12 = vector.broadcast %cst_9 : f32 to vector<1x32xf32>
      %13 = arith.mulf %11, %12 : vector<1x32xf32>
      %14 = arith.mulf %10, %10 : vector<1x32xf32>
      %15 = arith.subf %13, %14 : vector<1x32xf32>
      %cst_10 = arith.constant 0.000000e+00 : f32
      %16 = vector.broadcast %cst_10 : f32 to vector<1x32xf32>
      %17 = arith.maximumf %15, %16 : vector<1x32xf32>
      %cst_11 = arith.constant 9.99999974E-6 : f32
      %18 = vector.broadcast %cst_11 : f32 to vector<1x32xf32>
      %19 = arith.addf %17, %18 : vector<1x32xf32>
      %20 = math.rsqrt %19 : vector<1x32xf32>
      %21 = vector.shape_cast %10 : vector<1x32xf32> to vector<1x1x1x32xf32>
      %22 = vector.broadcast %21 : vector<1x1x1x32xf32> to vector<1x4x4x32xf32>
      %23 = arith.subf %7, %22 : vector<1x4x4x32xf32>
      %24 = vector.shape_cast %20 : vector<1x32xf32> to vector<1x1x1x32xf32>
      %25 = vector.broadcast %24 : vector<1x1x1x32xf32> to vector<1x4x4x32xf32>
      %26 = arith.mulf %23, %25 : vector<1x4x4x32xf32>
      %c0_12 = arith.constant 0 : index
      %c0_13 = arith.constant 0 : index
      %c0_14 = arith.constant 0 : index
      %c0_15 = arith.constant 0 : index
      %27 = vector.load %arg4[%c0_12, %c0_13, %c0_14, %c0_15] : memref<1x1x1x32xf32, #tpu.memory_space<vmem>>, vector<1x1x1x32xf32>
      %cst_16 = arith.constant 1.000000e+00 : f32
      %28 = vector.broadcast %cst_16 : f32 to vector<1x1x1x32xf32>
      %29 = arith.addf %28, %27 : vector<1x1x1x32xf32>
      %30 = vector.broadcast %29 : vector<1x1x1x32xf32> to vector<1x4x4x32xf32>
      %31 = arith.mulf %26, %30 : vector<1x4x4x32xf32>
      %c0_17 = arith.constant 0 : index
      %c0_18 = arith.constant 0 : index
      %c0_19 = arith.constant 0 : index
      %c0_20 = arith.constant 0 : index
      %32 = vector.load %arg5[%c0_17, %c0_18, %c0_19, %c0_20] : memref<1x1x1x32xf32, #tpu.memory_space<vmem>>, vector<1x1x1x32xf32>
      %33 = vector.broadcast %32 : vector<1x1x1x32xf32> to vector<1x4x4x32xf32>
      %34 = arith.addf %31, %33 : vector<1x4x4x32xf32>
      %35 = arith.truncf %34 : vector<1x4x4x32xf32> to vector<1x4x4x32xbf16>
      %c0_21 = arith.constant 0 : index
      %c0_22 = arith.constant 0 : index
      %c0_23 = arith.constant 0 : index
      %c0_24 = arith.constant 0 : index
      %36 = vector.load %arg6[%c0_21, %c0_22, %c0_23, %c0_24] : memref<1x4x4x32xbf16, #tpu.memory_space<vmem>>, vector<1x4x4x32xbf16>
      tpu.vector_store %arg6[%c0_21, %c0_22, %c0_23, %c0_24], %35 {strides = array<i32>} : memref<1x4x4x32xbf16, #tpu.memory_space<vmem>>, vector<1x4x4x32xbf16>,
    } else {
    }
    return
  }
  func.func @transform_0(%arg0: i32, %arg1: i32, %arg2: i32) -> (i32, i32, i32, i32) {
    %c0_i32 = arith.constant 0 : i32
    %c0_i32_0 = arith.constant 0 : i32
    %c0_i32_1 = arith.constant 0 : i32
    return %arg0, %arg2, %c0_i32, %c0_i32_0 : i32, i32, i32, i32
  }
  func.func @transform_1(%arg0: i32, %arg1: i32, %arg2: i32) -> (i32, i32, i32, i32) {
    %c0_i32 = arith.constant 0 : i32
    %c0_i32_0 = arith.constant 0 : i32
    %c0_i32_1 = arith.constant 0 : i32
    %c0_i32_2 = arith.constant 0 : i32
    return %arg0, %c0_i32, %c0_i32_0, %c0_i32_1 : i32, i32, i32, i32
  }
  func.func @transform_2(%arg0: i32, %arg1: i32, %arg2: i32) -> (i32, i32, i32, i32) {
    %c0_i32 = arith.constant 0 : i32
    %c0_i32_0 = arith.constant 0 : i32
    %c0_i32_1 = arith.constant 0 : i32
    %c0_i32_2 = arith.constant 0 : i32
    return %arg0, %c0_i32, %c0_i32_0, %c0_i32_1 : i32, i32, i32, i32
  }
  func.func @transform_3(%arg0: i32, %arg1: i32, %arg2: i32) -> (i32, i32, i32, i32) {
    %0 = arith.muli %arg2, %arg1 : i32
    %c0_i32 = arith.constant 0 : i32
    %c0_i32_0 = arith.constant 0 : i32
    %c0_i32_1 = arith.constant 0 : i32
    return %arg0, %0, %c0_i32, %c0_i32_0 : i32, i32, i32, i32
  }
}

module attributes {stable_mosaic.version = 11 : i64} {
  func.func @_adain_kernel(%arg0: i32, %arg1: i32, %arg2: i32, %arg3: memref<1x4x4x32xbf16, #tpu.memory_space<vmem>>, %arg4: memref<1x1x1x32xf32, #tpu.memory_space<vmem>>, %arg5: memref<1x1x1x32xf32, #tpu.memory_space<vmem>>, %arg6: memref<1x4x4x32xbf16, #tpu.memory_space<vmem>>, %arg7: memref<1x32xf32, #tpu.memory_space<vmem>>, %arg8: memref<1x32xf32, #tpu.memory_space<vmem>>) attributes {dimension_semantics = [#tpu.dimension_semantics<parallel>, #tpu.dimension_semantics<arbitrary>, #tpu.dimension_semantics<arbitrary>], iteration_bounds = array<i64: 2, 2, 1>, scalar_prefetch = 0 : i64, scratch_operands = 2 : i64, tpu.core_type = #tpu.core_type<tc>, window_params = [{transform_indices = @transform_0, window_bounds = array<i64: 1, 4, 4, 32>}, {transform_indices = @transform_1, window_bounds = array<i64: 1, 1, 1, 32>}, {transform_indices = @transform_2, window_bounds = array<i64: 1, 1, 1, 32>}, {transform_indices = @transform_3, window_bounds = array<i64: 1, 4, 4, 32>}]} {
    %c0_i32 = arith.constant 0 : i32
    %0 = arith.cmpi eq, %arg1, %c0_i32 : i32
    %1 = arith.extui %0 : i1 to i32
    %c0_i32_0 = arith.constant 0 : i32
    %2 = arith.cmpi ne, %1, %c0_i32_0 : i32
    scf.if %2 {
      %c0 = arith.constant 0 : index
      %c0_2 = arith.constant 0 : index
      %c0_3 = arith.constant 0 : index
      %c0_4 = arith.constant 0 : index
      %6 = vector.load %arg3[%c0, %c0_2, %c0_3, %c0_4] : memref<1x4x4x32xbf16, #tpu.memory_space<vmem>>, vector<1x4x4x32xbf16>
      %7 = arith.extf %6 : vector<1x4x4x32xbf16> to vector<1x4x4x32xf32>
      %c0_i32_5 = arith.constant 0 : i32
      %8 = arith.cmpi eq, %arg2, %c0_i32_5 : i32
      %9 = arith.extui %8 : i1 to i32
      %c0_i32_6 = arith.constant 0 : i32
      %10 = arith.cmpi ne, %9, %c0_i32_6 : i32
      scf.if %10 {
        %cst_16 = arith.constant 0.000000e+00 : f32
        %20 = vector.broadcast %cst_16 : f32 to vector<1x32xf32>
        %c0_17 = arith.constant 0 : index
        %c0_18 = arith.constant 0 : index
        %21 = vector.load %arg7[%c0_17, %c0_18] : memref<1x32xf32, #tpu.memory_space<vmem>>, vector<1x32xf32>
        tpu.vector_store %arg7[%c0_17, %c0_18], %20 {strides = array<i32>} : memref<1x32xf32, #tpu.memory_space<vmem>>, vector<1x32xf32>,
        %cst_19 = arith.constant 0.000000e+00 : f32
        %22 = vector.broadcast %cst_19 : f32 to vector<1x32xf32>
        %c0_20 = arith.constant 0 : index
        %c0_21 = arith.constant 0 : index
        %23 = vector.load %arg8[%c0_20, %c0_21] : memref<1x32xf32, #tpu.memory_space<vmem>>, vector<1x32xf32>
        tpu.vector_store %arg8[%c0_20, %c0_21], %22 {strides = array<i32>} : memref<1x32xf32, #tpu.memory_space<vmem>>, vector<1x32xf32>,
      } else {
      }
      %c0_7 = arith.constant 0 : index
      %c0_8 = arith.constant 0 : index
      %11 = vector.load %arg7[%c0_7, %c0_8] : memref<1x32xf32, #tpu.memory_space<vmem>>, vector<1x32xf32>
      %cst = arith.constant dense<0.000000e+00> : vector<1x32xf32>
      %12 = vector.multi_reduction <add>, %7, %cst [1, 2] : vector<1x4x4x32xf32> to vector<1x32xf32>
      %13 = arith.addf %11, %12 : vector<1x32xf32>
      %c0_9 = arith.constant 0 : index
      %c0_10 = arith.constant 0 : index
      %14 = vector.load %arg7[%c0_9, %c0_10] : memref<1x32xf32, #tpu.memory_space<vmem>>, vector<1x32xf32>
      tpu.vector_store %arg7[%c0_9, %c0_10], %13 {strides = array<i32>} : memref<1x32xf32, #tpu.memory_space<vmem>>, vector<1x32xf32>,
      %c0_11 = arith.constant 0 : index
      %c0_12 = arith.constant 0 : index
      %15 = vector.load %arg8[%c0_11, %c0_12] : memref<1x32xf32, #tpu.memory_space<vmem>>, vector<1x32xf32>
      %16 = arith.mulf %7, %7 : vector<1x4x4x32xf32>
      %cst_13 = arith.constant dense<0.000000e+00> : vector<1x32xf32>
      %17 = vector.multi_reduction <add>, %16, %cst_13 [1, 2] : vector<1x4x4x32xf32> to vector<1x32xf32>
      %18 = arith.addf %15, %17 : vector<1x32xf32>
      %c0_14 = arith.constant 0 : index
      %c0_15 = arith.constant 0 : index
      %19 = vector.load %arg8[%c0_14, %c0_15] : memref<1x32xf32, #tpu.memory_space<vmem>>, vector<1x32xf32>
      tpu.vector_store %arg8[%c0_14, %c0_15], %18 {strides = array<i32>} : memref<1x32xf32, #tpu.memory_space<vmem>>, vector<1x32xf32>,
    } else {
    }
    %c1_i32 = arith.constant 1 : i32
    %3 = arith.cmpi eq, %arg1, %c1_i32 : i32
    %4 = arith.extui %3 : i1 to i32
    %c0_i32_1 = arith.constant 0 : i32
    %5 = arith.cmpi ne, %4, %c0_i32_1 : i32
    scf.if %5 {
      %c0 = arith.constant 0 : index
      %c0_2 = arith.constant 0 : index
      %c0_3 = arith.constant 0 : index
      %c0_4 = arith.constant 0 : index
      %6 = vector.load %arg3[%c0, %c0_2, %c0_3, %c0_4] : memref<1x4x4x32xbf16, #tpu.memory_space<vmem>>, vector<1x4x4x32xbf16>
      %7 = arith.extf %6 : vector<1x4x4x32xbf16> to vector<1x4x4x32xf32>
      %c0_5 = arith.constant 0 : index
      %c0_6 = arith.constant 0 : index
      %8 = vector.load %arg7[%c0_5, %c0_6] : memref<1x32xf32, #tpu.memory_space<vmem>>, vector<1x32xf32>
      %cst = arith.constant 6.250000e-02 : f32
      %9 = vector.broadcast %cst : f32 to vector<1x32xf32>
      %10 = arith.mulf %8, %9 : vector<1x32xf32>
      %c0_7 = arith.constant 0 : index
      %c0_8 = arith.constant 0 : index
      %11 = vector.load %arg8[%c0_7, %c0_8] : memref<1x32xf32, #tpu.memory_space<vmem>>, vector<1x32xf32>
      %cst_9 = arith.constant 6.250000e-02 : f32
      %12 = vector.broadcast %cst_9 : f32 to vector<1x32xf32>
      %13 = arith.mulf %11, %12 : vector<1x32xf32>
      %14 = arith.mulf %10, %10 : vector<1x32xf32>
      %15 = arith.subf %13, %14 : vector<1x32xf32>
      %cst_10 = arith.constant 0.000000e+00 : f32
      %16 = vector.broadcast %cst_10 : f32 to vector<1x32xf32>
      %17 = arith.maximumf %15, %16 : vector<1x32xf32>
      %cst_11 = arith.constant 9.99999974E-6 : f32
      %18 = vector.broadcast %cst_11 : f32 to vector<1x32xf32>
      %19 = arith.addf %17, %18 : vector<1x32xf32>
      %20 = math.rsqrt %19 : vector<1x32xf32>
      %21 = vector.shape_cast %10 : vector<1x32xf32> to vector<1x1x1x32xf32>
      %22 = vector.broadcast %21 : vector<1x1x1x32xf32> to vector<1x4x4x32xf32>
      %23 = arith.subf %7, %22 : vector<1x4x4x32xf32>
      %24 = vector.shape_cast %20 : vector<1x32xf32> to vector<1x1x1x32xf32>
      %25 = vector.broadcast %24 : vector<1x1x1x32xf32> to vector<1x4x4x32xf32>
      %26 = arith.mulf %23, %25 : vector<1x4x4x32xf32>
      %c0_12 = arith.constant 0 : index
      %c0_13 = arith.constant 0 : index
      %c0_14 = arith.constant 0 : index
      %c0_15 = arith.constant 0 : index
      %27 = vector.load %arg4[%c0_12, %c0_13, %c0_14, %c0_15] : memref<1x1x1x32xf32, #tpu.memory_space<vmem>>, vector<1x1x1x32xf32>
      %cst_16 = arith.constant 1.000000e+00 : f32
      %28 = vector.broadcast %cst_16 : f32 to vector<1x1x1x32xf32>
      %29 = arith.addf %28, %27 : vector<1x1x1x32xf32>
      %30 = vector.broadcast %29 : vector<1x1x1x32xf32> to vector<1x4x4x32xf32>
      %31 = arith.mulf %26, %30 : vector<1x4x4x32xf32>
      %c0_17 = arith.constant 0 : index
      %c0_18 = arith.constant 0 : index
      %c0_19 = arith.constant 0 : index
      %c0_20 = arith.constant 0 : index
      %32 = vector.load %arg5[%c0_17, %c0_18, %c0_19, %c0_20] : memref<1x1x1x32xf32, #tpu.memory_space<vmem>>, vector<1x1x1x32xf32>
      %33 = vector.broadcast %32 : vector<1x1x1x32xf32> to vector<1x4x4x32xf32>
      %34 = arith.addf %31, %33 : vector<1x4x4x32xf32>
      %cst_21 = arith.constant 0.000000e+00 : f32
      %35 = vector.broadcast %cst_21 : f32 to vector<1x4x4x32xf32>
      %36 = arith.cmpf oge, %34, %35 : vector<1x4x4x32xf32>
      %cst_22 = arith.constant 0.00999999977 : f32
      %37 = vector.broadcast %cst_22 : f32 to vector<1x4x4x32xf32>
      %38 = arith.mulf %37, %34 : vector<1x4x4x32xf32>
      %39 = arith.select %36, %34, %38 : vector<1x4x4x32xi1>, vector<1x4x4x32xf32>
      %40 = arith.truncf %39 : vector<1x4x4x32xf32> to vector<1x4x4x32xbf16>
      %c0_23 = arith.constant 0 : index
      %c0_24 = arith.constant 0 : index
      %c0_25 = arith.constant 0 : index
      %c0_26 = arith.constant 0 : index
      %41 = vector.load %arg6[%c0_23, %c0_24, %c0_25, %c0_26] : memref<1x4x4x32xbf16, #tpu.memory_space<vmem>>, vector<1x4x4x32xbf16>
      tpu.vector_store %arg6[%c0_23, %c0_24, %c0_25, %c0_26], %40 {strides = array<i32>} : memref<1x4x4x32xbf16, #tpu.memory_space<vmem>>, vector<1x4x4x32xbf16>,
    } else {
    }
    return
  }
  func.func @transform_0(%arg0: i32, %arg1: i32, %arg2: i32) -> (i32, i32, i32, i32) {
    %c0_i32 = arith.constant 0 : i32
    %c0_i32_0 = arith.constant 0 : i32
    %c0_i32_1 = arith.constant 0 : i32
    return %arg0, %arg2, %c0_i32, %c0_i32_0 : i32, i32, i32, i32
  }
  func.func @transform_1(%arg0: i32, %arg1: i32, %arg2: i32) -> (i32, i32, i32, i32) {
    %c0_i32 = arith.constant 0 : i32
    %c0_i32_0 = arith.constant 0 : i32
    %c0_i32_1 = arith.constant 0 : i32
    %c0_i32_2 = arith.constant 0 : i32
    return %arg0, %c0_i32, %c0_i32_0, %c0_i32_1 : i32, i32, i32, i32
  }
  func.func @transform_2(%arg0: i32, %arg1: i32, %arg2: i32) -> (i32, i32, i32, i32) {
    %c0_i32 = arith.constant 0 : i32
    %c0_i32_0 = arith.constant 0 : i32
    %c0_i32_1 = arith.constant 0 : i32
    %c0_i32_2 = arith.constant 0 : i32
    return %arg0, %c0_i32, %c0_i32_0, %c0_i32_1 : i32, i32, i32, i32
  }
  func.func @transform_3(%arg0: i32, %arg1: i32, %arg2: i32) -> (i32, i32, i32, i32) {
    %0 = arith.muli %arg2, %arg1 : i32
    %c0_i32 = arith.constant 0 : i32
    %c0_i32_0 = arith.constant 0 : i32
    %c0_i32_1 = arith.constant 0 : i32
    return %arg0, %0, %c0_i32, %c0_i32_0 : i32, i32, i32, i32
  }
}

module attributes {stable_mosaic.version = 11 : i64} {
  func.func @_mm_bias_act_kernel(%arg0: i32, %arg1: i32, %arg2: i32, %arg3: memref<32x128xbf16, #tpu.memory_space<vmem>>, %arg4: memref<128x128xbf16, #tpu.memory_space<vmem>>, %arg5: memref<1x128xf32, #tpu.memory_space<vmem>>, %arg6: memref<32x128xbf16, #tpu.memory_space<vmem>>, %arg7: memref<32x128xf32, #tpu.memory_space<vmem>>) attributes {dimension_semantics = [#tpu.dimension_semantics<parallel>, #tpu.dimension_semantics<parallel>, #tpu.dimension_semantics<arbitrary>], iteration_bounds = array<i64: 1, 1, 1>, scalar_prefetch = 0 : i64, scratch_operands = 1 : i64, tpu.core_type = #tpu.core_type<tc>, window_params = [{transform_indices = @transform_0, window_bounds = array<i64: 32, 128>}, {transform_indices = @transform_1, window_bounds = array<i64: 128, 128>}, {transform_indices = @transform_2, window_bounds = array<i64: 1, 128>}, {transform_indices = @transform_3, window_bounds = array<i64: 32, 128>}]} {
    %c0_i32 = arith.constant 0 : i32
    %0 = arith.cmpi eq, %arg2, %c0_i32 : i32
    %1 = arith.extui %0 : i1 to i32
    %c0_i32_0 = arith.constant 0 : i32
    %2 = arith.cmpi ne, %1, %c0_i32_0 : i32
    scf.if %2 {
      %cst_10 = arith.constant 0.000000e+00 : f32
      %12 = vector.broadcast %cst_10 : f32 to vector<32x128xf32>
      %c0_11 = arith.constant 0 : index
      %c0_12 = arith.constant 0 : index
      %13 = vector.load %arg7[%c0_11, %c0_12] : memref<32x128xf32, #tpu.memory_space<vmem>>, vector<32x128xf32>
      tpu.vector_store %arg7[%c0_11, %c0_12], %12 {strides = array<i32>} : memref<32x128xf32, #tpu.memory_space<vmem>>, vector<32x128xf32>,
    } else {
    }
    %c0 = arith.constant 0 : index
    %c0_1 = arith.constant 0 : index
    %3 = vector.load %arg7[%c0, %c0_1] : memref<32x128xf32, #tpu.memory_space<vmem>>, vector<32x128xf32>
    %c0_2 = arith.constant 0 : index
    %c0_3 = arith.constant 0 : index
    %4 = vector.load %arg3[%c0_2, %c0_3] : memref<32x128xbf16, #tpu.memory_space<vmem>>, vector<32x128xbf16>
    %c0_4 = arith.constant 0 : index
    %c0_5 = arith.constant 0 : index
    %5 = vector.load %arg4[%c0_4, %c0_5] : memref<128x128xbf16, #tpu.memory_space<vmem>>, vector<128x128xbf16>
    %cst = arith.constant dense<0.000000e+00> : vector<32x128xf32>
    %6 = tpu.matmul %4, %5, %cst {dimension_numbers = #tpu.dot_dimension_numbers<[1], [0], [0], [1], [0, 0, 1, 1], [], []>} : vector<32x128xbf16>, vector<128x128xbf16>, vector<32x128xf32> -> vector<32x128xf32>
    %7 = arith.addf %3, %6 : vector<32x128xf32>
    %c0_6 = arith.constant 0 : index
    %c0_7 = arith.constant 0 : index
    %8 = vector.load %arg7[%c0_6, %c0_7] : memref<32x128xf32, #tpu.memory_space<vmem>>, vector<32x128xf32>
    tpu.vector_store %arg7[%c0_6, %c0_7], %7 {strides = array<i32>} : memref<32x128xf32, #tpu.memory_space<vmem>>, vector<32x128xf32>,
    %c0_i32_8 = arith.constant 0 : i32
    %9 = arith.cmpi eq, %arg2, %c0_i32_8 : i32
    %10 = arith.extui %9 : i1 to i32
    %c0_i32_9 = arith.constant 0 : i32
    %11 = arith.cmpi ne, %10, %c0_i32_9 : i32
    scf.if %11 {
      %c0_10 = arith.constant 0 : index
      %c0_11 = arith.constant 0 : index
      %12 = vector.load %arg7[%c0_10, %c0_11] : memref<32x128xf32, #tpu.memory_space<vmem>>, vector<32x128xf32>
      %c0_12 = arith.constant 0 : index
      %c0_13 = arith.constant 0 : index
      %13 = vector.load %arg5[%c0_12, %c0_13] : memref<1x128xf32, #tpu.memory_space<vmem>>, vector<1x128xf32>
      %14 = vector.broadcast %13 : vector<1x128xf32> to vector<32x128xf32>
      %15 = arith.addf %12, %14 : vector<32x128xf32>
      %cst_14 = arith.constant 0.000000e+00 : f32
      %16 = vector.broadcast %cst_14 : f32 to vector<32x128xf32>
      %17 = arith.cmpf oge, %15, %16 : vector<32x128xf32>
      %cst_15 = arith.constant 0.00999999977 : f32
      %18 = vector.broadcast %cst_15 : f32 to vector<32x128xf32>
      %19 = arith.mulf %18, %15 : vector<32x128xf32>
      %20 = arith.select %17, %15, %19 : vector<32x128xi1>, vector<32x128xf32>
      %21 = arith.truncf %20 : vector<32x128xf32> to vector<32x128xbf16>
      %c0_16 = arith.constant 0 : index
      %c0_17 = arith.constant 0 : index
      %22 = vector.load %arg6[%c0_16, %c0_17] : memref<32x128xbf16, #tpu.memory_space<vmem>>, vector<32x128xbf16>
      tpu.vector_store %arg6[%c0_16, %c0_17], %21 {strides = array<i32>} : memref<32x128xbf16, #tpu.memory_space<vmem>>, vector<32x128xbf16>,
    } else {
    }
    return
  }
  func.func @transform_0(%arg0: i32, %arg1: i32, %arg2: i32) -> (i32, i32) {
    %c0_i32 = arith.constant 0 : i32
    return %arg0, %arg2 : i32, i32
  }
  func.func @transform_1(%arg0: i32, %arg1: i32, %arg2: i32) -> (i32, i32) {
    %c0_i32 = arith.constant 0 : i32
    return %arg2, %arg1 : i32, i32
  }
  func.func @transform_2(%arg0: i32, %arg1: i32, %arg2: i32) -> (i32, i32) {
    %c0_i32 = arith.constant 0 : i32
    %c0_i32_0 = arith.constant 0 : i32
    return %c0_i32, %arg1 : i32, i32
  }
  func.func @transform_3(%arg0: i32, %arg1: i32, %arg2: i32) -> (i32, i32) {
    %c0_i32 = arith.constant 0 : i32
    return %arg0, %arg1 : i32, i32
  }
}

module attributes {stable_mosaic.version = 11 : i64} {
  func.func @_mm_bias_act_kernel(%arg0: i32, %arg1: i32, %arg2: i32, %arg3: memref<128x128xbf16, #tpu.memory_space<vmem>>, %arg4: memref<128x128xbf16, #tpu.memory_space<vmem>>, %arg5: memref<1x128xf32, #tpu.memory_space<vmem>>, %arg6: memref<128x128xbf16, #tpu.memory_space<vmem>>, %arg7: memref<128x128xf32, #tpu.memory_space<vmem>>) attributes {dimension_semantics = [#tpu.dimension_semantics<parallel>, #tpu.dimension_semantics<parallel>, #tpu.dimension_semantics<arbitrary>], iteration_bounds = array<i64: 1, 1, 1>, scalar_prefetch = 0 : i64, scratch_operands = 1 : i64, tpu.core_type = #tpu.core_type<tc>, window_params = [{transform_indices = @transform_0, window_bounds = array<i64: 128, 128>}, {transform_indices = @transform_1, window_bounds = array<i64: 128, 128>}, {transform_indices = @transform_2, window_bounds = array<i64: 1, 128>}, {transform_indices = @transform_3, window_bounds = array<i64: 128, 128>}]} {
    %c0_i32 = arith.constant 0 : i32
    %0 = arith.cmpi eq, %arg2, %c0_i32 : i32
    %1 = arith.extui %0 : i1 to i32
    %c0_i32_0 = arith.constant 0 : i32
    %2 = arith.cmpi ne, %1, %c0_i32_0 : i32
    scf.if %2 {
      %cst_10 = arith.constant 0.000000e+00 : f32
      %12 = vector.broadcast %cst_10 : f32 to vector<128x128xf32>
      %c0_11 = arith.constant 0 : index
      %c0_12 = arith.constant 0 : index
      %13 = vector.load %arg7[%c0_11, %c0_12] : memref<128x128xf32, #tpu.memory_space<vmem>>, vector<128x128xf32>
      tpu.vector_store %arg7[%c0_11, %c0_12], %12 {strides = array<i32>} : memref<128x128xf32, #tpu.memory_space<vmem>>, vector<128x128xf32>,
    } else {
    }
    %c0 = arith.constant 0 : index
    %c0_1 = arith.constant 0 : index
    %3 = vector.load %arg7[%c0, %c0_1] : memref<128x128xf32, #tpu.memory_space<vmem>>, vector<128x128xf32>
    %c0_2 = arith.constant 0 : index
    %c0_3 = arith.constant 0 : index
    %4 = vector.load %arg3[%c0_2, %c0_3] : memref<128x128xbf16, #tpu.memory_space<vmem>>, vector<128x128xbf16>
    %c0_4 = arith.constant 0 : index
    %c0_5 = arith.constant 0 : index
    %5 = vector.load %arg4[%c0_4, %c0_5] : memref<128x128xbf16, #tpu.memory_space<vmem>>, vector<128x128xbf16>
    %cst = arith.constant dense<0.000000e+00> : vector<128x128xf32>
    %6 = tpu.matmul %4, %5, %cst {dimension_numbers = #tpu.dot_dimension_numbers<[1], [0], [0], [1], [0, 0, 1, 1], [], []>} : vector<128x128xbf16>, vector<128x128xbf16>, vector<128x128xf32> -> vector<128x128xf32>
    %7 = arith.addf %3, %6 : vector<128x128xf32>
    %c0_6 = arith.constant 0 : index
    %c0_7 = arith.constant 0 : index
    %8 = vector.load %arg7[%c0_6, %c0_7] : memref<128x128xf32, #tpu.memory_space<vmem>>, vector<128x128xf32>
    tpu.vector_store %arg7[%c0_6, %c0_7], %7 {strides = array<i32>} : memref<128x128xf32, #tpu.memory_space<vmem>>, vector<128x128xf32>,
    %c0_i32_8 = arith.constant 0 : i32
    %9 = arith.cmpi eq, %arg2, %c0_i32_8 : i32
    %10 = arith.extui %9 : i1 to i32
    %c0_i32_9 = arith.constant 0 : i32
    %11 = arith.cmpi ne, %10, %c0_i32_9 : i32
    scf.if %11 {
      %c0_10 = arith.constant 0 : index
      %c0_11 = arith.constant 0 : index
      %12 = vector.load %arg7[%c0_10, %c0_11] : memref<128x128xf32, #tpu.memory_space<vmem>>, vector<128x128xf32>
      %c0_12 = arith.constant 0 : index
      %c0_13 = arith.constant 0 : index
      %13 = vector.load %arg5[%c0_12, %c0_13] : memref<1x128xf32, #tpu.memory_space<vmem>>, vector<1x128xf32>
      %14 = vector.broadcast %13 : vector<1x128xf32> to vector<128x128xf32>
      %15 = arith.addf %12, %14 : vector<128x128xf32>
      %cst_14 = arith.constant 0.000000e+00 : f32
      %16 = vector.broadcast %cst_14 : f32 to vector<128x128xf32>
      %17 = arith.cmpf oge, %15, %16 : vector<128x128xf32>
      %cst_15 = arith.constant 0.00999999977 : f32
      %18 = vector.broadcast %cst_15 : f32 to vector<128x128xf32>
      %19 = arith.mulf %18, %15 : vector<128x128xf32>
      %20 = arith.select %17, %15, %19 : vector<128x128xi1>, vector<128x128xf32>
      %21 = arith.truncf %20 : vector<128x128xf32> to vector<128x128xbf16>
      %c0_16 = arith.constant 0 : index
      %c0_17 = arith.constant 0 : index
      %22 = vector.load %arg6[%c0_16, %c0_17] : memref<128x128xbf16, #tpu.memory_space<vmem>>, vector<128x128xbf16>
      tpu.vector_store %arg6[%c0_16, %c0_17], %21 {strides = array<i32>} : memref<128x128xbf16, #tpu.memory_space<vmem>>, vector<128x128xbf16>,
    } else {
    }
    return
  }
  func.func @transform_0(%arg0: i32, %arg1: i32, %arg2: i32) -> (i32, i32) {
    %c0_i32 = arith.constant 0 : i32
    return %arg0, %arg2 : i32, i32
  }
  func.func @transform_1(%arg0: i32, %arg1: i32, %arg2: i32) -> (i32, i32) {
    %c0_i32 = arith.constant 0 : i32
    return %arg2, %arg1 : i32, i32
  }
  func.func @transform_2(%arg0: i32, %arg1: i32, %arg2: i32) -> (i32, i32) {
    %c0_i32 = arith.constant 0 : i32
    %c0_i32_0 = arith.constant 0 : i32
    return %c0_i32, %arg1 : i32, i32
  }
  func.func @transform_3(%arg0: i32, %arg1: i32, %arg2: i32) -> (i32, i32) {
    %c0_i32 = arith.constant 0 : i32
    return %arg0, %arg1 : i32, i32
  }
}

module attributes {stable_mosaic.version = 11 : i64} {
  func.func @_mm_bias_act_kernel(%arg0: i32, %arg1: i32, %arg2: i32, %arg3: memref<128x128xbf16, #tpu.memory_space<vmem>>, %arg4: memref<128x128xbf16, #tpu.memory_space<vmem>>, %arg5: memref<1x128xf32, #tpu.memory_space<vmem>>, %arg6: memref<128x128xbf16, #tpu.memory_space<vmem>>, %arg7: memref<128x128xf32, #tpu.memory_space<vmem>>) attributes {dimension_semantics = [#tpu.dimension_semantics<parallel>, #tpu.dimension_semantics<parallel>, #tpu.dimension_semantics<arbitrary>], iteration_bounds = array<i64: 1, 1, 1>, scalar_prefetch = 0 : i64, scratch_operands = 1 : i64, tpu.core_type = #tpu.core_type<tc>, window_params = [{transform_indices = @transform_0, window_bounds = array<i64: 128, 128>}, {transform_indices = @transform_1, window_bounds = array<i64: 128, 128>}, {transform_indices = @transform_2, window_bounds = array<i64: 1, 128>}, {transform_indices = @transform_3, window_bounds = array<i64: 128, 128>}]} {
    %c0_i32 = arith.constant 0 : i32
    %0 = arith.cmpi eq, %arg2, %c0_i32 : i32
    %1 = arith.extui %0 : i1 to i32
    %c0_i32_0 = arith.constant 0 : i32
    %2 = arith.cmpi ne, %1, %c0_i32_0 : i32
    scf.if %2 {
      %cst_10 = arith.constant 0.000000e+00 : f32
      %12 = vector.broadcast %cst_10 : f32 to vector<128x128xf32>
      %c0_11 = arith.constant 0 : index
      %c0_12 = arith.constant 0 : index
      %13 = vector.load %arg7[%c0_11, %c0_12] : memref<128x128xf32, #tpu.memory_space<vmem>>, vector<128x128xf32>
      tpu.vector_store %arg7[%c0_11, %c0_12], %12 {strides = array<i32>} : memref<128x128xf32, #tpu.memory_space<vmem>>, vector<128x128xf32>,
    } else {
    }
    %c0 = arith.constant 0 : index
    %c0_1 = arith.constant 0 : index
    %3 = vector.load %arg7[%c0, %c0_1] : memref<128x128xf32, #tpu.memory_space<vmem>>, vector<128x128xf32>
    %c0_2 = arith.constant 0 : index
    %c0_3 = arith.constant 0 : index
    %4 = vector.load %arg3[%c0_2, %c0_3] : memref<128x128xbf16, #tpu.memory_space<vmem>>, vector<128x128xbf16>
    %c0_4 = arith.constant 0 : index
    %c0_5 = arith.constant 0 : index
    %5 = vector.load %arg4[%c0_4, %c0_5] : memref<128x128xbf16, #tpu.memory_space<vmem>>, vector<128x128xbf16>
    %cst = arith.constant dense<0.000000e+00> : vector<128x128xf32>
    %6 = tpu.matmul %4, %5, %cst {dimension_numbers = #tpu.dot_dimension_numbers<[1], [0], [0], [1], [0, 0, 1, 1], [], []>} : vector<128x128xbf16>, vector<128x128xbf16>, vector<128x128xf32> -> vector<128x128xf32>
    %7 = arith.addf %3, %6 : vector<128x128xf32>
    %c0_6 = arith.constant 0 : index
    %c0_7 = arith.constant 0 : index
    %8 = vector.load %arg7[%c0_6, %c0_7] : memref<128x128xf32, #tpu.memory_space<vmem>>, vector<128x128xf32>
    tpu.vector_store %arg7[%c0_6, %c0_7], %7 {strides = array<i32>} : memref<128x128xf32, #tpu.memory_space<vmem>>, vector<128x128xf32>,
    %c0_i32_8 = arith.constant 0 : i32
    %9 = arith.cmpi eq, %arg2, %c0_i32_8 : i32
    %10 = arith.extui %9 : i1 to i32
    %c0_i32_9 = arith.constant 0 : i32
    %11 = arith.cmpi ne, %10, %c0_i32_9 : i32
    scf.if %11 {
      %c0_10 = arith.constant 0 : index
      %c0_11 = arith.constant 0 : index
      %12 = vector.load %arg7[%c0_10, %c0_11] : memref<128x128xf32, #tpu.memory_space<vmem>>, vector<128x128xf32>
      %c0_12 = arith.constant 0 : index
      %c0_13 = arith.constant 0 : index
      %13 = vector.load %arg5[%c0_12, %c0_13] : memref<1x128xf32, #tpu.memory_space<vmem>>, vector<1x128xf32>
      %14 = vector.broadcast %13 : vector<1x128xf32> to vector<128x128xf32>
      %15 = arith.addf %12, %14 : vector<128x128xf32>
      %16 = arith.truncf %15 : vector<128x128xf32> to vector<128x128xbf16>
      %c0_14 = arith.constant 0 : index
      %c0_15 = arith.constant 0 : index
      %17 = vector.load %arg6[%c0_14, %c0_15] : memref<128x128xbf16, #tpu.memory_space<vmem>>, vector<128x128xbf16>
      tpu.vector_store %arg6[%c0_14, %c0_15], %16 {strides = array<i32>} : memref<128x128xbf16, #tpu.memory_space<vmem>>, vector<128x128xbf16>,
    } else {
    }
    return
  }
  func.func @transform_0(%arg0: i32, %arg1: i32, %arg2: i32) -> (i32, i32) {
    %c0_i32 = arith.constant 0 : i32
    return %arg0, %arg2 : i32, i32
  }
  func.func @transform_1(%arg0: i32, %arg1: i32, %arg2: i32) -> (i32, i32) {
    %c0_i32 = arith.constant 0 : i32
    return %arg2, %arg1 : i32, i32
  }
  func.func @transform_2(%arg0: i32, %arg1: i32, %arg2: i32) -> (i32, i32) {
    %c0_i32 = arith.constant 0 : i32
    %c0_i32_0 = arith.constant 0 : i32
    return %c0_i32, %arg1 : i32, i32
  }
  func.func @transform_3(%arg0: i32, %arg1: i32, %arg2: i32) -> (i32, i32) {
    %c0_i32 = arith.constant 0 : i32
    return %arg0, %arg1 : i32, i32
  }
}

module attributes {stable_mosaic.version = 11 : i64} {
  func.func @_adain_mlp_kernel(%arg0: i32, %arg1: memref<2x8xf32, #tpu.memory_space<vmem>>, %arg2: memref<8x16xf32, #tpu.memory_space<vmem>>, %arg3: memref<1x16xf32, #tpu.memory_space<vmem>>, %arg4: memref<16x16xf32, #tpu.memory_space<vmem>>, %arg5: memref<1x16xf32, #tpu.memory_space<vmem>>, %arg6: memref<2x16xf32, #tpu.memory_space<vmem>>) attributes {dimension_semantics = [#tpu.dimension_semantics<arbitrary>], iteration_bounds = array<i64: 1>, scalar_prefetch = 0 : i64, scratch_operands = 0 : i64, tpu.core_type = #tpu.core_type<tc>, window_params = [{pipeline_mode = #tpu.pipeline_mode<synchronous>, transform_indices = @transform_0, window_bounds = array<i64: 2, 8>}, {pipeline_mode = #tpu.pipeline_mode<synchronous>, transform_indices = @transform_1, window_bounds = array<i64: 8, 16>}, {pipeline_mode = #tpu.pipeline_mode<synchronous>, transform_indices = @transform_2, window_bounds = array<i64: 1, 16>}, {pipeline_mode = #tpu.pipeline_mode<synchronous>, transform_indices = @transform_3, window_bounds = array<i64: 16, 16>}, {pipeline_mode = #tpu.pipeline_mode<synchronous>, transform_indices = @transform_4, window_bounds = array<i64: 1, 16>}, {pipeline_mode = #tpu.pipeline_mode<synchronous>, transform_indices = @transform_5, window_bounds = array<i64: 2, 16>}]} {
    %c0 = arith.constant 0 : index
    %c0_0 = arith.constant 0 : index
    %0 = vector.load %arg1[%c0, %c0_0] : memref<2x8xf32, #tpu.memory_space<vmem>>, vector<2x8xf32>
    %c0_1 = arith.constant 0 : index
    %c0_2 = arith.constant 0 : index
    %1 = vector.load %arg2[%c0_1, %c0_2] : memref<8x16xf32, #tpu.memory_space<vmem>>, vector<8x16xf32>
    %cst = arith.constant dense<0.000000e+00> : vector<2x16xf32>
    %2 = tpu.matmul %0, %1, %cst {dimension_numbers = #tpu.dot_dimension_numbers<[1], [0], [0], [1], [0, 0, 1, 1], [], []>} : vector<2x8xf32>, vector<8x16xf32>, vector<2x16xf32> -> vector<2x16xf32>
    %c0_3 = arith.constant 0 : index
    %c0_4 = arith.constant 0 : index
    %3 = vector.load %arg3[%c0_3, %c0_4] : memref<1x16xf32, #tpu.memory_space<vmem>>, vector<1x16xf32>
    %4 = vector.broadcast %3 : vector<1x16xf32> to vector<2x16xf32>
    %5 = arith.addf %2, %4 : vector<2x16xf32>
    %cst_5 = arith.constant 0.000000e+00 : f32
    %6 = vector.broadcast %cst_5 : f32 to vector<2x16xf32>
    %7 = arith.maximumf %5, %6 : vector<2x16xf32>
    %c0_6 = arith.constant 0 : index
    %c0_7 = arith.constant 0 : index
    %8 = vector.load %arg4[%c0_6, %c0_7] : memref<16x16xf32, #tpu.memory_space<vmem>>, vector<16x16xf32>
    %cst_8 = arith.constant dense<0.000000e+00> : vector<2x16xf32>
    %9 = tpu.matmul %7, %8, %cst_8 {dimension_numbers = #tpu.dot_dimension_numbers<[1], [0], [0], [1], [0, 0, 1, 1], [], []>} : vector<2x16xf32>, vector<16x16xf32>, vector<2x16xf32> -> vector<2x16xf32>
    %c0_9 = arith.constant 0 : index
    %c0_10 = arith.constant 0 : index
    %10 = vector.load %arg5[%c0_9, %c0_10] : memref<1x16xf32, #tpu.memory_space<vmem>>, vector<1x16xf32>
    %11 = vector.broadcast %10 : vector<1x16xf32> to vector<2x16xf32>
    %12 = arith.addf %9, %11 : vector<2x16xf32>
    %c0_11 = arith.constant 0 : index
    %c0_12 = arith.constant 0 : index
    %13 = vector.load %arg6[%c0_11, %c0_12] : memref<2x16xf32, #tpu.memory_space<vmem>>, vector<2x16xf32>
    tpu.vector_store %arg6[%c0_11, %c0_12], %12 {strides = array<i32>} : memref<2x16xf32, #tpu.memory_space<vmem>>, vector<2x16xf32>,
    return
  }
  func.func @transform_0(%arg0: i32) -> (i32, i32) {
    %c0_i32 = arith.constant 0 : i32
    %c0_i32_0 = arith.constant 0 : i32
    %c0_i32_1 = arith.constant 0 : i32
    return %c0_i32, %c0_i32_0 : i32, i32
  }
  func.func @transform_1(%arg0: i32) -> (i32, i32) {
    %c0_i32 = arith.constant 0 : i32
    %c0_i32_0 = arith.constant 0 : i32
    %c0_i32_1 = arith.constant 0 : i32
    return %c0_i32, %c0_i32_0 : i32, i32
  }
  func.func @transform_2(%arg0: i32) -> (i32, i32) {
    %c0_i32 = arith.constant 0 : i32
    %c0_i32_0 = arith.constant 0 : i32
    %c0_i32_1 = arith.constant 0 : i32
    return %c0_i32, %c0_i32_0 : i32, i32
  }
  func.func @transform_3(%arg0: i32) -> (i32, i32) {
    %c0_i32 = arith.constant 0 : i32
    %c0_i32_0 = arith.constant 0 : i32
    %c0_i32_1 = arith.constant 0 : i32
    return %c0_i32, %c0_i32_0 : i32, i32
  }
  func.func @transform_4(%arg0: i32) -> (i32, i32) {
    %c0_i32 = arith.constant 0 : i32
    %c0_i32_0 = arith.constant 0 : i32
    %c0_i32_1 = arith.constant 0 : i32
    return %c0_i32, %c0_i32_0 : i32, i32
  }
  func.func @transform_5(%arg0: i32) -> (i32, i32) {
    %c0_i32 = arith.constant 0 : i32
    %c0_i32_0 = arith.constant 0 : i32
    %c0_i32_1 = arith.constant 0 : i32
    return %c0_i32, %c0_i32_0 : i32, i32
  }
}

module attributes {stable_mosaic.version = 11 : i64} {
  func.func @_adain_kernel(%arg0: i32, %arg1: i32, %arg2: i32, %arg3: memref<1x8x8x8xbf16, #tpu.memory_space<vmem>>, %arg4: memref<1x1x1x8xf32, #tpu.memory_space<vmem>>, %arg5: memref<1x1x1x8xf32, #tpu.memory_space<vmem>>, %arg6: memref<1x8x8x8xbf16, #tpu.memory_space<vmem>>, %arg7: memref<1x8xf32, #tpu.memory_space<vmem>>, %arg8: memref<1x8xf32, #tpu.memory_space<vmem>>) attributes {dimension_semantics = [#tpu.dimension_semantics<parallel>, #tpu.dimension_semantics<arbitrary>, #tpu.dimension_semantics<arbitrary>], iteration_bounds = array<i64: 2, 2, 1>, scalar_prefetch = 0 : i64, scratch_operands = 2 : i64, tpu.core_type = #tpu.core_type<tc>, window_params = [{transform_indices = @transform_0, window_bounds = array<i64: 1, 8, 8, 8>}, {transform_indices = @transform_1, window_bounds = array<i64: 1, 1, 1, 8>}, {transform_indices = @transform_2, window_bounds = array<i64: 1, 1, 1, 8>}, {transform_indices = @transform_3, window_bounds = array<i64: 1, 8, 8, 8>}]} {
    %c0_i32 = arith.constant 0 : i32
    %0 = arith.cmpi eq, %arg1, %c0_i32 : i32
    %1 = arith.extui %0 : i1 to i32
    %c0_i32_0 = arith.constant 0 : i32
    %2 = arith.cmpi ne, %1, %c0_i32_0 : i32
    scf.if %2 {
      %c0 = arith.constant 0 : index
      %c0_2 = arith.constant 0 : index
      %c0_3 = arith.constant 0 : index
      %c0_4 = arith.constant 0 : index
      %6 = vector.load %arg3[%c0, %c0_2, %c0_3, %c0_4] : memref<1x8x8x8xbf16, #tpu.memory_space<vmem>>, vector<1x8x8x8xbf16>
      %7 = arith.extf %6 : vector<1x8x8x8xbf16> to vector<1x8x8x8xf32>
      %c0_i32_5 = arith.constant 0 : i32
      %8 = arith.cmpi eq, %arg2, %c0_i32_5 : i32
      %9 = arith.extui %8 : i1 to i32
      %c0_i32_6 = arith.constant 0 : i32
      %10 = arith.cmpi ne, %9, %c0_i32_6 : i32
      scf.if %10 {
        %cst_16 = arith.constant 0.000000e+00 : f32
        %20 = vector.broadcast %cst_16 : f32 to vector<1x8xf32>
        %c0_17 = arith.constant 0 : index
        %c0_18 = arith.constant 0 : index
        %21 = vector.load %arg7[%c0_17, %c0_18] : memref<1x8xf32, #tpu.memory_space<vmem>>, vector<1x8xf32>
        tpu.vector_store %arg7[%c0_17, %c0_18], %20 {strides = array<i32>} : memref<1x8xf32, #tpu.memory_space<vmem>>, vector<1x8xf32>,
        %cst_19 = arith.constant 0.000000e+00 : f32
        %22 = vector.broadcast %cst_19 : f32 to vector<1x8xf32>
        %c0_20 = arith.constant 0 : index
        %c0_21 = arith.constant 0 : index
        %23 = vector.load %arg8[%c0_20, %c0_21] : memref<1x8xf32, #tpu.memory_space<vmem>>, vector<1x8xf32>
        tpu.vector_store %arg8[%c0_20, %c0_21], %22 {strides = array<i32>} : memref<1x8xf32, #tpu.memory_space<vmem>>, vector<1x8xf32>,
      } else {
      }
      %c0_7 = arith.constant 0 : index
      %c0_8 = arith.constant 0 : index
      %11 = vector.load %arg7[%c0_7, %c0_8] : memref<1x8xf32, #tpu.memory_space<vmem>>, vector<1x8xf32>
      %cst = arith.constant dense<0.000000e+00> : vector<1x8xf32>
      %12 = vector.multi_reduction <add>, %7, %cst [1, 2] : vector<1x8x8x8xf32> to vector<1x8xf32>
      %13 = arith.addf %11, %12 : vector<1x8xf32>
      %c0_9 = arith.constant 0 : index
      %c0_10 = arith.constant 0 : index
      %14 = vector.load %arg7[%c0_9, %c0_10] : memref<1x8xf32, #tpu.memory_space<vmem>>, vector<1x8xf32>
      tpu.vector_store %arg7[%c0_9, %c0_10], %13 {strides = array<i32>} : memref<1x8xf32, #tpu.memory_space<vmem>>, vector<1x8xf32>,
      %c0_11 = arith.constant 0 : index
      %c0_12 = arith.constant 0 : index
      %15 = vector.load %arg8[%c0_11, %c0_12] : memref<1x8xf32, #tpu.memory_space<vmem>>, vector<1x8xf32>
      %16 = arith.mulf %7, %7 : vector<1x8x8x8xf32>
      %cst_13 = arith.constant dense<0.000000e+00> : vector<1x8xf32>
      %17 = vector.multi_reduction <add>, %16, %cst_13 [1, 2] : vector<1x8x8x8xf32> to vector<1x8xf32>
      %18 = arith.addf %15, %17 : vector<1x8xf32>
      %c0_14 = arith.constant 0 : index
      %c0_15 = arith.constant 0 : index
      %19 = vector.load %arg8[%c0_14, %c0_15] : memref<1x8xf32, #tpu.memory_space<vmem>>, vector<1x8xf32>
      tpu.vector_store %arg8[%c0_14, %c0_15], %18 {strides = array<i32>} : memref<1x8xf32, #tpu.memory_space<vmem>>, vector<1x8xf32>,
    } else {
    }
    %c1_i32 = arith.constant 1 : i32
    %3 = arith.cmpi eq, %arg1, %c1_i32 : i32
    %4 = arith.extui %3 : i1 to i32
    %c0_i32_1 = arith.constant 0 : i32
    %5 = arith.cmpi ne, %4, %c0_i32_1 : i32
    scf.if %5 {
      %c0 = arith.constant 0 : index
      %c0_2 = arith.constant 0 : index
      %c0_3 = arith.constant 0 : index
      %c0_4 = arith.constant 0 : index
      %6 = vector.load %arg3[%c0, %c0_2, %c0_3, %c0_4] : memref<1x8x8x8xbf16, #tpu.memory_space<vmem>>, vector<1x8x8x8xbf16>
      %7 = arith.extf %6 : vector<1x8x8x8xbf16> to vector<1x8x8x8xf32>
      %c0_5 = arith.constant 0 : index
      %c0_6 = arith.constant 0 : index
      %8 = vector.load %arg7[%c0_5, %c0_6] : memref<1x8xf32, #tpu.memory_space<vmem>>, vector<1x8xf32>
      %cst = arith.constant 1.562500e-02 : f32
      %9 = vector.broadcast %cst : f32 to vector<1x8xf32>
      %10 = arith.mulf %8, %9 : vector<1x8xf32>
      %c0_7 = arith.constant 0 : index
      %c0_8 = arith.constant 0 : index
      %11 = vector.load %arg8[%c0_7, %c0_8] : memref<1x8xf32, #tpu.memory_space<vmem>>, vector<1x8xf32>
      %cst_9 = arith.constant 1.562500e-02 : f32
      %12 = vector.broadcast %cst_9 : f32 to vector<1x8xf32>
      %13 = arith.mulf %11, %12 : vector<1x8xf32>
      %14 = arith.mulf %10, %10 : vector<1x8xf32>
      %15 = arith.subf %13, %14 : vector<1x8xf32>
      %cst_10 = arith.constant 0.000000e+00 : f32
      %16 = vector.broadcast %cst_10 : f32 to vector<1x8xf32>
      %17 = arith.maximumf %15, %16 : vector<1x8xf32>
      %cst_11 = arith.constant 9.99999974E-6 : f32
      %18 = vector.broadcast %cst_11 : f32 to vector<1x8xf32>
      %19 = arith.addf %17, %18 : vector<1x8xf32>
      %20 = math.rsqrt %19 : vector<1x8xf32>
      %21 = vector.shape_cast %10 : vector<1x8xf32> to vector<1x1x1x8xf32>
      %22 = vector.broadcast %21 : vector<1x1x1x8xf32> to vector<1x8x8x8xf32>
      %23 = arith.subf %7, %22 : vector<1x8x8x8xf32>
      %24 = vector.shape_cast %20 : vector<1x8xf32> to vector<1x1x1x8xf32>
      %25 = vector.broadcast %24 : vector<1x1x1x8xf32> to vector<1x8x8x8xf32>
      %26 = arith.mulf %23, %25 : vector<1x8x8x8xf32>
      %c0_12 = arith.constant 0 : index
      %c0_13 = arith.constant 0 : index
      %c0_14 = arith.constant 0 : index
      %c0_15 = arith.constant 0 : index
      %27 = vector.load %arg4[%c0_12, %c0_13, %c0_14, %c0_15] : memref<1x1x1x8xf32, #tpu.memory_space<vmem>>, vector<1x1x1x8xf32>
      %cst_16 = arith.constant 1.000000e+00 : f32
      %28 = vector.broadcast %cst_16 : f32 to vector<1x1x1x8xf32>
      %29 = arith.addf %28, %27 : vector<1x1x1x8xf32>
      %30 = vector.broadcast %29 : vector<1x1x1x8xf32> to vector<1x8x8x8xf32>
      %31 = arith.mulf %26, %30 : vector<1x8x8x8xf32>
      %c0_17 = arith.constant 0 : index
      %c0_18 = arith.constant 0 : index
      %c0_19 = arith.constant 0 : index
      %c0_20 = arith.constant 0 : index
      %32 = vector.load %arg5[%c0_17, %c0_18, %c0_19, %c0_20] : memref<1x1x1x8xf32, #tpu.memory_space<vmem>>, vector<1x1x1x8xf32>
      %33 = vector.broadcast %32 : vector<1x1x1x8xf32> to vector<1x8x8x8xf32>
      %34 = arith.addf %31, %33 : vector<1x8x8x8xf32>
      %cst_21 = arith.constant 0.000000e+00 : f32
      %35 = vector.broadcast %cst_21 : f32 to vector<1x8x8x8xf32>
      %36 = arith.cmpf oge, %34, %35 : vector<1x8x8x8xf32>
      %cst_22 = arith.constant 0.00999999977 : f32
      %37 = vector.broadcast %cst_22 : f32 to vector<1x8x8x8xf32>
      %38 = arith.mulf %37, %34 : vector<1x8x8x8xf32>
      %39 = arith.select %36, %34, %38 : vector<1x8x8x8xi1>, vector<1x8x8x8xf32>
      %40 = arith.truncf %39 : vector<1x8x8x8xf32> to vector<1x8x8x8xbf16>
      %c0_23 = arith.constant 0 : index
      %c0_24 = arith.constant 0 : index
      %c0_25 = arith.constant 0 : index
      %c0_26 = arith.constant 0 : index
      %41 = vector.load %arg6[%c0_23, %c0_24, %c0_25, %c0_26] : memref<1x8x8x8xbf16, #tpu.memory_space<vmem>>, vector<1x8x8x8xbf16>
      tpu.vector_store %arg6[%c0_23, %c0_24, %c0_25, %c0_26], %40 {strides = array<i32>} : memref<1x8x8x8xbf16, #tpu.memory_space<vmem>>, vector<1x8x8x8xbf16>,
    } else {
    }
    return
  }
  func.func @transform_0(%arg0: i32, %arg1: i32, %arg2: i32) -> (i32, i32, i32, i32) {
    %c0_i32 = arith.constant 0 : i32
    %c0_i32_0 = arith.constant 0 : i32
    %c0_i32_1 = arith.constant 0 : i32
    return %arg0, %arg2, %c0_i32, %c0_i32_0 : i32, i32, i32, i32
  }
  func.func @transform_1(%arg0: i32, %arg1: i32, %arg2: i32) -> (i32, i32, i32, i32) {
    %c0_i32 = arith.constant 0 : i32
    %c0_i32_0 = arith.constant 0 : i32
    %c0_i32_1 = arith.constant 0 : i32
    %c0_i32_2 = arith.constant 0 : i32
    return %arg0, %c0_i32, %c0_i32_0, %c0_i32_1 : i32, i32, i32, i32
  }
  func.func @transform_2(%arg0: i32, %arg1: i32, %arg2: i32) -> (i32, i32, i32, i32) {
    %c0_i32 = arith.constant 0 : i32
    %c0_i32_0 = arith.constant 0 : i32
    %c0_i32_1 = arith.constant 0 : i32
    %c0_i32_2 = arith.constant 0 : i32
    return %arg0, %c0_i32, %c0_i32_0, %c0_i32_1 : i32, i32, i32, i32
  }
  func.func @transform_3(%arg0: i32, %arg1: i32, %arg2: i32) -> (i32, i32, i32, i32) {
    %0 = arith.muli %arg2, %arg1 : i32
    %c0_i32 = arith.constant 0 : i32
    %c0_i32_0 = arith.constant 0 : i32
    %c0_i32_1 = arith.constant 0 : i32
    return %arg0, %0, %c0_i32, %c0_i32_0 : i32, i32, i32, i32
  }
}

module attributes {stable_mosaic.version = 11 : i64} {
  func.func @_adain_kernel(%arg0: i32, %arg1: i32, %arg2: i32, %arg3: memref<1x8x8x8xbf16, #tpu.memory_space<vmem>>, %arg4: memref<1x1x1x8xf32, #tpu.memory_space<vmem>>, %arg5: memref<1x1x1x8xf32, #tpu.memory_space<vmem>>, %arg6: memref<1x8x8x8xbf16, #tpu.memory_space<vmem>>, %arg7: memref<1x8xf32, #tpu.memory_space<vmem>>, %arg8: memref<1x8xf32, #tpu.memory_space<vmem>>) attributes {dimension_semantics = [#tpu.dimension_semantics<parallel>, #tpu.dimension_semantics<arbitrary>, #tpu.dimension_semantics<arbitrary>], iteration_bounds = array<i64: 2, 2, 1>, scalar_prefetch = 0 : i64, scratch_operands = 2 : i64, tpu.core_type = #tpu.core_type<tc>, window_params = [{transform_indices = @transform_0, window_bounds = array<i64: 1, 8, 8, 8>}, {transform_indices = @transform_1, window_bounds = array<i64: 1, 1, 1, 8>}, {transform_indices = @transform_2, window_bounds = array<i64: 1, 1, 1, 8>}, {transform_indices = @transform_3, window_bounds = array<i64: 1, 8, 8, 8>}]} {
    %c0_i32 = arith.constant 0 : i32
    %0 = arith.cmpi eq, %arg1, %c0_i32 : i32
    %1 = arith.extui %0 : i1 to i32
    %c0_i32_0 = arith.constant 0 : i32
    %2 = arith.cmpi ne, %1, %c0_i32_0 : i32
    scf.if %2 {
      %c0 = arith.constant 0 : index
      %c0_2 = arith.constant 0 : index
      %c0_3 = arith.constant 0 : index
      %c0_4 = arith.constant 0 : index
      %6 = vector.load %arg3[%c0, %c0_2, %c0_3, %c0_4] : memref<1x8x8x8xbf16, #tpu.memory_space<vmem>>, vector<1x8x8x8xbf16>
      %7 = arith.extf %6 : vector<1x8x8x8xbf16> to vector<1x8x8x8xf32>
      %c0_i32_5 = arith.constant 0 : i32
      %8 = arith.cmpi eq, %arg2, %c0_i32_5 : i32
      %9 = arith.extui %8 : i1 to i32
      %c0_i32_6 = arith.constant 0 : i32
      %10 = arith.cmpi ne, %9, %c0_i32_6 : i32
      scf.if %10 {
        %cst_16 = arith.constant 0.000000e+00 : f32
        %20 = vector.broadcast %cst_16 : f32 to vector<1x8xf32>
        %c0_17 = arith.constant 0 : index
        %c0_18 = arith.constant 0 : index
        %21 = vector.load %arg7[%c0_17, %c0_18] : memref<1x8xf32, #tpu.memory_space<vmem>>, vector<1x8xf32>
        tpu.vector_store %arg7[%c0_17, %c0_18], %20 {strides = array<i32>} : memref<1x8xf32, #tpu.memory_space<vmem>>, vector<1x8xf32>,
        %cst_19 = arith.constant 0.000000e+00 : f32
        %22 = vector.broadcast %cst_19 : f32 to vector<1x8xf32>
        %c0_20 = arith.constant 0 : index
        %c0_21 = arith.constant 0 : index
        %23 = vector.load %arg8[%c0_20, %c0_21] : memref<1x8xf32, #tpu.memory_space<vmem>>, vector<1x8xf32>
        tpu.vector_store %arg8[%c0_20, %c0_21], %22 {strides = array<i32>} : memref<1x8xf32, #tpu.memory_space<vmem>>, vector<1x8xf32>,
      } else {
      }
      %c0_7 = arith.constant 0 : index
      %c0_8 = arith.constant 0 : index
      %11 = vector.load %arg7[%c0_7, %c0_8] : memref<1x8xf32, #tpu.memory_space<vmem>>, vector<1x8xf32>
      %cst = arith.constant dense<0.000000e+00> : vector<1x8xf32>
      %12 = vector.multi_reduction <add>, %7, %cst [1, 2] : vector<1x8x8x8xf32> to vector<1x8xf32>
      %13 = arith.addf %11, %12 : vector<1x8xf32>
      %c0_9 = arith.constant 0 : index
      %c0_10 = arith.constant 0 : index
      %14 = vector.load %arg7[%c0_9, %c0_10] : memref<1x8xf32, #tpu.memory_space<vmem>>, vector<1x8xf32>
      tpu.vector_store %arg7[%c0_9, %c0_10], %13 {strides = array<i32>} : memref<1x8xf32, #tpu.memory_space<vmem>>, vector<1x8xf32>,
      %c0_11 = arith.constant 0 : index
      %c0_12 = arith.constant 0 : index
      %15 = vector.load %arg8[%c0_11, %c0_12] : memref<1x8xf32, #tpu.memory_space<vmem>>, vector<1x8xf32>
      %16 = arith.mulf %7, %7 : vector<1x8x8x8xf32>
      %cst_13 = arith.constant dense<0.000000e+00> : vector<1x8xf32>
      %17 = vector.multi_reduction <add>, %16, %cst_13 [1, 2] : vector<1x8x8x8xf32> to vector<1x8xf32>
      %18 = arith.addf %15, %17 : vector<1x8xf32>
      %c0_14 = arith.constant 0 : index
      %c0_15 = arith.constant 0 : index
      %19 = vector.load %arg8[%c0_14, %c0_15] : memref<1x8xf32, #tpu.memory_space<vmem>>, vector<1x8xf32>
      tpu.vector_store %arg8[%c0_14, %c0_15], %18 {strides = array<i32>} : memref<1x8xf32, #tpu.memory_space<vmem>>, vector<1x8xf32>,
    } else {
    }
    %c1_i32 = arith.constant 1 : i32
    %3 = arith.cmpi eq, %arg1, %c1_i32 : i32
    %4 = arith.extui %3 : i1 to i32
    %c0_i32_1 = arith.constant 0 : i32
    %5 = arith.cmpi ne, %4, %c0_i32_1 : i32
    scf.if %5 {
      %c0 = arith.constant 0 : index
      %c0_2 = arith.constant 0 : index
      %c0_3 = arith.constant 0 : index
      %c0_4 = arith.constant 0 : index
      %6 = vector.load %arg3[%c0, %c0_2, %c0_3, %c0_4] : memref<1x8x8x8xbf16, #tpu.memory_space<vmem>>, vector<1x8x8x8xbf16>
      %7 = arith.extf %6 : vector<1x8x8x8xbf16> to vector<1x8x8x8xf32>
      %c0_5 = arith.constant 0 : index
      %c0_6 = arith.constant 0 : index
      %8 = vector.load %arg7[%c0_5, %c0_6] : memref<1x8xf32, #tpu.memory_space<vmem>>, vector<1x8xf32>
      %cst = arith.constant 1.562500e-02 : f32
      %9 = vector.broadcast %cst : f32 to vector<1x8xf32>
      %10 = arith.mulf %8, %9 : vector<1x8xf32>
      %c0_7 = arith.constant 0 : index
      %c0_8 = arith.constant 0 : index
      %11 = vector.load %arg8[%c0_7, %c0_8] : memref<1x8xf32, #tpu.memory_space<vmem>>, vector<1x8xf32>
      %cst_9 = arith.constant 1.562500e-02 : f32
      %12 = vector.broadcast %cst_9 : f32 to vector<1x8xf32>
      %13 = arith.mulf %11, %12 : vector<1x8xf32>
      %14 = arith.mulf %10, %10 : vector<1x8xf32>
      %15 = arith.subf %13, %14 : vector<1x8xf32>
      %cst_10 = arith.constant 0.000000e+00 : f32
      %16 = vector.broadcast %cst_10 : f32 to vector<1x8xf32>
      %17 = arith.maximumf %15, %16 : vector<1x8xf32>
      %cst_11 = arith.constant 9.99999974E-6 : f32
      %18 = vector.broadcast %cst_11 : f32 to vector<1x8xf32>
      %19 = arith.addf %17, %18 : vector<1x8xf32>
      %20 = math.rsqrt %19 : vector<1x8xf32>
      %21 = vector.shape_cast %10 : vector<1x8xf32> to vector<1x1x1x8xf32>
      %22 = vector.broadcast %21 : vector<1x1x1x8xf32> to vector<1x8x8x8xf32>
      %23 = arith.subf %7, %22 : vector<1x8x8x8xf32>
      %24 = vector.shape_cast %20 : vector<1x8xf32> to vector<1x1x1x8xf32>
      %25 = vector.broadcast %24 : vector<1x1x1x8xf32> to vector<1x8x8x8xf32>
      %26 = arith.mulf %23, %25 : vector<1x8x8x8xf32>
      %c0_12 = arith.constant 0 : index
      %c0_13 = arith.constant 0 : index
      %c0_14 = arith.constant 0 : index
      %c0_15 = arith.constant 0 : index
      %27 = vector.load %arg4[%c0_12, %c0_13, %c0_14, %c0_15] : memref<1x1x1x8xf32, #tpu.memory_space<vmem>>, vector<1x1x1x8xf32>
      %cst_16 = arith.constant 1.000000e+00 : f32
      %28 = vector.broadcast %cst_16 : f32 to vector<1x1x1x8xf32>
      %29 = arith.addf %28, %27 : vector<1x1x1x8xf32>
      %30 = vector.broadcast %29 : vector<1x1x1x8xf32> to vector<1x8x8x8xf32>
      %31 = arith.mulf %26, %30 : vector<1x8x8x8xf32>
      %c0_17 = arith.constant 0 : index
      %c0_18 = arith.constant 0 : index
      %c0_19 = arith.constant 0 : index
      %c0_20 = arith.constant 0 : index
      %32 = vector.load %arg5[%c0_17, %c0_18, %c0_19, %c0_20] : memref<1x1x1x8xf32, #tpu.memory_space<vmem>>, vector<1x1x1x8xf32>
      %33 = vector.broadcast %32 : vector<1x1x1x8xf32> to vector<1x8x8x8xf32>
      %34 = arith.addf %31, %33 : vector<1x8x8x8xf32>
      %35 = arith.truncf %34 : vector<1x8x8x8xf32> to vector<1x8x8x8xbf16>
      %c0_21 = arith.constant 0 : index
      %c0_22 = arith.constant 0 : index
      %c0_23 = arith.constant 0 : index
      %c0_24 = arith.constant 0 : index
      %36 = vector.load %arg6[%c0_21, %c0_22, %c0_23, %c0_24] : memref<1x8x8x8xbf16, #tpu.memory_space<vmem>>, vector<1x8x8x8xbf16>
      tpu.vector_store %arg6[%c0_21, %c0_22, %c0_23, %c0_24], %35 {strides = array<i32>} : memref<1x8x8x8xbf16, #tpu.memory_space<vmem>>, vector<1x8x8x8xbf16>,
    } else {
    }
    return
  }
  func.func @transform_0(%arg0: i32, %arg1: i32, %arg2: i32) -> (i32, i32, i32, i32) {
    %c0_i32 = arith.constant 0 : i32
    %c0_i32_0 = arith.constant 0 : i32
    %c0_i32_1 = arith.constant 0 : i32
    return %arg0, %arg2, %c0_i32, %c0_i32_0 : i32, i32, i32, i32
  }
  func.func @transform_1(%arg0: i32, %arg1: i32, %arg2: i32) -> (i32, i32, i32, i32) {
    %c0_i32 = arith.constant 0 : i32
    %c0_i32_0 = arith.constant 0 : i32
    %c0_i32_1 = arith.constant 0 : i32
    %c0_i32_2 = arith.constant 0 : i32
    return %arg0, %c0_i32, %c0_i32_0, %c0_i32_1 : i32, i32, i32, i32
  }
  func.func @transform_2(%arg0: i32, %arg1: i32, %arg2: i32) -> (i32, i32, i32, i32) {
    %c0_i32 = arith.constant 0 : i32
    %c0_i32_0 = arith.constant 0 : i32
    %c0_i32_1 = arith.constant 0 : i32
    %c0_i32_2 = arith.constant 0 : i32
    return %arg0, %c0_i32, %c0_i32_0, %c0_i32_1 : i32, i32, i32, i32
  }
  func.func @transform_3(%arg0: i32, %arg1: i32, %arg2: i32) -> (i32, i32, i32, i32) {
    %0 = arith.muli %arg2, %arg1 : i32
    %c0_i32 = arith.constant 0 : i32
    %c0_i32_0 = arith.constant 0 : i32
    %c0_i32_1 = arith.constant 0 : i32
    return %arg0, %0, %c0_i32, %c0_i32_0 : i32, i32, i32, i32
  }
}

module attributes {stable_mosaic.version = 11 : i64} {
  func.func @_mm_bias_act_kernel(%arg0: i32, %arg1: i32, %arg2: i32, %arg3: memref<256x128xbf16, #tpu.memory_space<vmem>>, %arg4: memref<128x128xbf16, #tpu.memory_space<vmem>>, %arg5: memref<1x128xf32, #tpu.memory_space<vmem>>, %arg6: memref<256x128xbf16, #tpu.memory_space<vmem>>, %arg7: memref<256x128xf32, #tpu.memory_space<vmem>>) attributes {dimension_semantics = [#tpu.dimension_semantics<parallel>, #tpu.dimension_semantics<parallel>, #tpu.dimension_semantics<arbitrary>], iteration_bounds = array<i64: 2, 1, 1>, scalar_prefetch = 0 : i64, scratch_operands = 1 : i64, tpu.core_type = #tpu.core_type<tc>, window_params = [{transform_indices = @transform_0, window_bounds = array<i64: 256, 128>}, {transform_indices = @transform_1, window_bounds = array<i64: 128, 128>}, {transform_indices = @transform_2, window_bounds = array<i64: 1, 128>}, {transform_indices = @transform_3, window_bounds = array<i64: 256, 128>}]} {
    %c0_i32 = arith.constant 0 : i32
    %0 = arith.cmpi eq, %arg2, %c0_i32 : i32
    %1 = arith.extui %0 : i1 to i32
    %c0_i32_0 = arith.constant 0 : i32
    %2 = arith.cmpi ne, %1, %c0_i32_0 : i32
    scf.if %2 {
      %cst_10 = arith.constant 0.000000e+00 : f32
      %12 = vector.broadcast %cst_10 : f32 to vector<256x128xf32>
      %c0_11 = arith.constant 0 : index
      %c0_12 = arith.constant 0 : index
      %13 = vector.load %arg7[%c0_11, %c0_12] : memref<256x128xf32, #tpu.memory_space<vmem>>, vector<256x128xf32>
      tpu.vector_store %arg7[%c0_11, %c0_12], %12 {strides = array<i32>} : memref<256x128xf32, #tpu.memory_space<vmem>>, vector<256x128xf32>,
    } else {
    }
    %c0 = arith.constant 0 : index
    %c0_1 = arith.constant 0 : index
    %3 = vector.load %arg7[%c0, %c0_1] : memref<256x128xf32, #tpu.memory_space<vmem>>, vector<256x128xf32>
    %c0_2 = arith.constant 0 : index
    %c0_3 = arith.constant 0 : index
    %4 = vector.load %arg3[%c0_2, %c0_3] : memref<256x128xbf16, #tpu.memory_space<vmem>>, vector<256x128xbf16>
    %c0_4 = arith.constant 0 : index
    %c0_5 = arith.constant 0 : index
    %5 = vector.load %arg4[%c0_4, %c0_5] : memref<128x128xbf16, #tpu.memory_space<vmem>>, vector<128x128xbf16>
    %cst = arith.constant dense<0.000000e+00> : vector<256x128xf32>
    %6 = tpu.matmul %4, %5, %cst {dimension_numbers = #tpu.dot_dimension_numbers<[1], [0], [0], [1], [0, 0, 1, 1], [], []>} : vector<256x128xbf16>, vector<128x128xbf16>, vector<256x128xf32> -> vector<256x128xf32>
    %7 = arith.addf %3, %6 : vector<256x128xf32>
    %c0_6 = arith.constant 0 : index
    %c0_7 = arith.constant 0 : index
    %8 = vector.load %arg7[%c0_6, %c0_7] : memref<256x128xf32, #tpu.memory_space<vmem>>, vector<256x128xf32>
    tpu.vector_store %arg7[%c0_6, %c0_7], %7 {strides = array<i32>} : memref<256x128xf32, #tpu.memory_space<vmem>>, vector<256x128xf32>,
    %c0_i32_8 = arith.constant 0 : i32
    %9 = arith.cmpi eq, %arg2, %c0_i32_8 : i32
    %10 = arith.extui %9 : i1 to i32
    %c0_i32_9 = arith.constant 0 : i32
    %11 = arith.cmpi ne, %10, %c0_i32_9 : i32
    scf.if %11 {
      %c0_10 = arith.constant 0 : index
      %c0_11 = arith.constant 0 : index
      %12 = vector.load %arg7[%c0_10, %c0_11] : memref<256x128xf32, #tpu.memory_space<vmem>>, vector<256x128xf32>
      %c0_12 = arith.constant 0 : index
      %c0_13 = arith.constant 0 : index
      %13 = vector.load %arg5[%c0_12, %c0_13] : memref<1x128xf32, #tpu.memory_space<vmem>>, vector<1x128xf32>
      %14 = vector.broadcast %13 : vector<1x128xf32> to vector<256x128xf32>
      %15 = arith.addf %12, %14 : vector<256x128xf32>
      %cst_14 = arith.constant 0.000000e+00 : f32
      %16 = vector.broadcast %cst_14 : f32 to vector<256x128xf32>
      %17 = arith.cmpf oge, %15, %16 : vector<256x128xf32>
      %cst_15 = arith.constant 0.00999999977 : f32
      %18 = vector.broadcast %cst_15 : f32 to vector<256x128xf32>
      %19 = arith.mulf %18, %15 : vector<256x128xf32>
      %20 = arith.select %17, %15, %19 : vector<256x128xi1>, vector<256x128xf32>
      %21 = arith.truncf %20 : vector<256x128xf32> to vector<256x128xbf16>
      %c0_16 = arith.constant 0 : index
      %c0_17 = arith.constant 0 : index
      %22 = vector.load %arg6[%c0_16, %c0_17] : memref<256x128xbf16, #tpu.memory_space<vmem>>, vector<256x128xbf16>
      tpu.vector_store %arg6[%c0_16, %c0_17], %21 {strides = array<i32>} : memref<256x128xbf16, #tpu.memory_space<vmem>>, vector<256x128xbf16>,
    } else {
    }
    return
  }
  func.func @transform_0(%arg0: i32, %arg1: i32, %arg2: i32) -> (i32, i32) {
    %c0_i32 = arith.constant 0 : i32
    return %arg0, %arg2 : i32, i32
  }
  func.func @transform_1(%arg0: i32, %arg1: i32, %arg2: i32) -> (i32, i32) {
    %c0_i32 = arith.constant 0 : i32
    return %arg2, %arg1 : i32, i32
  }
  func.func @transform_2(%arg0: i32, %arg1: i32, %arg2: i32) -> (i32, i32) {
    %c0_i32 = arith.constant 0 : i32
    %c0_i32_0 = arith.constant 0 : i32
    return %c0_i32, %arg1 : i32, i32
  }
  func.func @transform_3(%arg0: i32, %arg1: i32, %arg2: i32) -> (i32, i32) {
    %c0_i32 = arith.constant 0 : i32
    return %arg0, %arg1 : i32, i32
  }
}

module attributes {stable_mosaic.version = 11 : i64} {
  func.func @_mm_bias_act_kernel(%arg0: i32, %arg1: i32, %arg2: i32, %arg3: memref<256x256xbf16, #tpu.memory_space<vmem>>, %arg4: memref<256x128xbf16, #tpu.memory_space<vmem>>, %arg5: memref<1x128xf32, #tpu.memory_space<vmem>>, %arg6: memref<256x128xf32, #tpu.memory_space<vmem>>, %arg7: memref<256x128xf32, #tpu.memory_space<vmem>>) attributes {dimension_semantics = [#tpu.dimension_semantics<parallel>, #tpu.dimension_semantics<parallel>, #tpu.dimension_semantics<arbitrary>], iteration_bounds = array<i64: 2, 1, 1>, scalar_prefetch = 0 : i64, scratch_operands = 1 : i64, tpu.core_type = #tpu.core_type<tc>, window_params = [{transform_indices = @transform_0, window_bounds = array<i64: 256, 256>}, {transform_indices = @transform_1, window_bounds = array<i64: 256, 128>}, {transform_indices = @transform_2, window_bounds = array<i64: 1, 128>}, {transform_indices = @transform_3, window_bounds = array<i64: 256, 128>}]} {
    %c0_i32 = arith.constant 0 : i32
    %0 = arith.cmpi eq, %arg2, %c0_i32 : i32
    %1 = arith.extui %0 : i1 to i32
    %c0_i32_0 = arith.constant 0 : i32
    %2 = arith.cmpi ne, %1, %c0_i32_0 : i32
    scf.if %2 {
      %cst_10 = arith.constant 0.000000e+00 : f32
      %12 = vector.broadcast %cst_10 : f32 to vector<256x128xf32>
      %c0_11 = arith.constant 0 : index
      %c0_12 = arith.constant 0 : index
      %13 = vector.load %arg7[%c0_11, %c0_12] : memref<256x128xf32, #tpu.memory_space<vmem>>, vector<256x128xf32>
      tpu.vector_store %arg7[%c0_11, %c0_12], %12 {strides = array<i32>} : memref<256x128xf32, #tpu.memory_space<vmem>>, vector<256x128xf32>,
    } else {
    }
    %c0 = arith.constant 0 : index
    %c0_1 = arith.constant 0 : index
    %3 = vector.load %arg7[%c0, %c0_1] : memref<256x128xf32, #tpu.memory_space<vmem>>, vector<256x128xf32>
    %c0_2 = arith.constant 0 : index
    %c0_3 = arith.constant 0 : index
    %4 = vector.load %arg3[%c0_2, %c0_3] : memref<256x256xbf16, #tpu.memory_space<vmem>>, vector<256x256xbf16>
    %c0_4 = arith.constant 0 : index
    %c0_5 = arith.constant 0 : index
    %5 = vector.load %arg4[%c0_4, %c0_5] : memref<256x128xbf16, #tpu.memory_space<vmem>>, vector<256x128xbf16>
    %cst = arith.constant dense<0.000000e+00> : vector<256x128xf32>
    %6 = tpu.matmul %4, %5, %cst {dimension_numbers = #tpu.dot_dimension_numbers<[1], [0], [0], [1], [0, 0, 1, 1], [], []>} : vector<256x256xbf16>, vector<256x128xbf16>, vector<256x128xf32> -> vector<256x128xf32>
    %7 = arith.addf %3, %6 : vector<256x128xf32>
    %c0_6 = arith.constant 0 : index
    %c0_7 = arith.constant 0 : index
    %8 = vector.load %arg7[%c0_6, %c0_7] : memref<256x128xf32, #tpu.memory_space<vmem>>, vector<256x128xf32>
    tpu.vector_store %arg7[%c0_6, %c0_7], %7 {strides = array<i32>} : memref<256x128xf32, #tpu.memory_space<vmem>>, vector<256x128xf32>,
    %c0_i32_8 = arith.constant 0 : i32
    %9 = arith.cmpi eq, %arg2, %c0_i32_8 : i32
    %10 = arith.extui %9 : i1 to i32
    %c0_i32_9 = arith.constant 0 : i32
    %11 = arith.cmpi ne, %10, %c0_i32_9 : i32
    scf.if %11 {
      %c0_10 = arith.constant 0 : index
      %c0_11 = arith.constant 0 : index
      %12 = vector.load %arg7[%c0_10, %c0_11] : memref<256x128xf32, #tpu.memory_space<vmem>>, vector<256x128xf32>
      %c0_12 = arith.constant 0 : index
      %c0_13 = arith.constant 0 : index
      %13 = vector.load %arg5[%c0_12, %c0_13] : memref<1x128xf32, #tpu.memory_space<vmem>>, vector<1x128xf32>
      %14 = vector.broadcast %13 : vector<1x128xf32> to vector<256x128xf32>
      %15 = arith.addf %12, %14 : vector<256x128xf32>
      %cst_14 = arith.constant 0.000000e+00 : f32
      %16 = vector.broadcast %cst_14 : f32 to vector<256x128xf32>
      %17 = arith.subf %16, %15 : vector<256x128xf32>
      %18 = math.exp %17 : vector<256x128xf32>
      %cst_15 = arith.constant 1.000000e+00 : f32
      %19 = vector.broadcast %cst_15 : f32 to vector<256x128xf32>
      %20 = arith.addf %19, %18 : vector<256x128xf32>
      %21 = tpu.reciprocal %20 : vector<256x128xf32> -> vector<256x128xf32>
      %c0_16 = arith.constant 0 : index
      %c0_17 = arith.constant 0 : index
      %22 = vector.load %arg6[%c0_16, %c0_17] : memref<256x128xf32, #tpu.memory_space<vmem>>, vector<256x128xf32>
      tpu.vector_store %arg6[%c0_16, %c0_17], %21 {strides = array<i32>} : memref<256x128xf32, #tpu.memory_space<vmem>>, vector<256x128xf32>,
    } else {
    }
    return
  }
  func.func @transform_0(%arg0: i32, %arg1: i32, %arg2: i32) -> (i32, i32) {
    %c0_i32 = arith.constant 0 : i32
    return %arg0, %arg2 : i32, i32
  }
  func.func @transform_1(%arg0: i32, %arg1: i32, %arg2: i32) -> (i32, i32) {
    %c0_i32 = arith.constant 0 : i32
    return %arg2, %arg1 : i32, i32
  }
  func.func @transform_2(%arg0: i32, %arg1: i32, %arg2: i32) -> (i32, i32) {
    %c0_i32 = arith.constant 0 : i32
    %c0_i32_0 = arith.constant 0 : i32
    return %c0_i32, %arg1 : i32, i32
  }
  func.func @transform_3(%arg0: i32, %arg1: i32, %arg2: i32) -> (i32, i32) {
    %c0_i32 = arith.constant 0 : i32
    return %arg0, %arg1 : i32, i32
  }
}

</mosaic_0001>

<llo_original>
// kernel: decoder_forward.25
$region0: #{decoder_forward.25}
  #allocation0 [shape = 'u32[]', space=smem, size = 0x4, offset = 0x4, fixed_abs, tag = 'smem constant byte address 0x4 - core index']
  #allocation1 [shape = 'u32[144,128]{1,0:T(1,128)}', space=vmem, size = 0x12000, scoped, tag = 'internal scratch']
  #allocation2 [shape = 'f32[1,32]{1,0:T(1,128)}', space=vmem, size = 0x200, scoped, tag = 'scratch operand']
  #allocation3 [shape = 'f32[1,32]{1,0:T(1,128)}', space=vmem, size = 0x200, scoped, tag = 'scratch operand']
  %s0 = inlined_call_operand.vmem [shape: bf16[2,4,4,32], index: 0, kind: input, shape index: {}]
  %s1 = inlined_call_operand.vmem [shape: f32[2,1,1,32], index: 1, kind: input, shape index: {}]
  %s2 = inlined_call_operand.vmem [shape: f32[2,1,1,32], index: 2, kind: input, shape index: {}]
  %s3 = inlined_call_operand.vmem [shape: bf16[2,4,4,32], index: 3, kind: output, shape index: {}]
  %s4 = sld [smem:[#allocation0]]
  $region57: #{decoder_forward.25} parent=0
    _
  %s6 = ssub.s32 1, %s4
  %s7 = scalar_select 0, %s6, %s4
  loop: start=0, step=1, limit=6
  $region2: #{decoder_forward.25} parent=0 // loop_pre_header
    _
  $region3: #{decoder_forward.25} parent=0 // loop_header
    %s9 = sphi 0, %s13
    %p10 = scmp.ge.s32.totalorder %s9, 6
    %s16 = sphi 0, %s35
    %s17 = sphi 0, %s31
    %s18 = sphi 0, %s27
    %s19 = sphi 0, %s16
    %s20 = sphi 0, %s17
    %s21 = sphi 0, %s18
    %s22 = sphi 0, %s19
    %s23 = sphi 0, %s20
    %s24 = sphi 0, %s21
    %s40 = sphi 0, %s42
    %s43 = sphi 0, %s40
    %s44 = sphi 0, %s43
    %s60 = sphi 0, %s44
    %s66 = sphi 0, %s68
    %s69 = sphi 0, %s66
    %s70 = sphi 0, %s69
    %s86 = sphi 0, %s70
    %s92 = sphi 0, %s94
    %s95 = sphi 0, %s92
    %s96 = sphi 0, %s95
    %s112 = sphi 0, %s96
    %s122 = sphi 0, %s124
    %s125 = sphi 0, %s122
    %s126 = sphi 0, %s125
    %s142 = sphi 0, %s126
  $region4: #{decoder_forward.25} parent=0 // loop_header_branch
    %12 = sbr.rel (%p10) target = $region8
  $region5: #{decoder_forward.25} parent=0 // loop_body
    %s14 = ssub.s32 %s9, 1
    %s15 = ssub.s32 %s9, 2
    %s25 = sadd.s32 1, %s18
    %p26 = scmp.ge.s32.totalorder %s25, 1
    %s27 = scalar_select %p26, 0, %s25
    %s28 = sadd.s32 1, %s17
    %s29 = scalar_select %p26, %s28, %s17
    %p30 = scmp.ge.s32.totalorder %s29, 2
    %s31 = scalar_select %p30, 0, %s29
    %s32 = sadd.s32 1, %s16
    %s33 = scalar_select %p30, %s32, %s16
    %p34 = scmp.ge.s32.totalorder %s33, 2
    %s35 = scalar_select %p34, 0, %s33
    %s36 = ssub.s32 %s16, %s35
    %s37 = ssub.s32 %s18, %s27
    %s38 = sor.u32 %s36, %s37
    %p39 = scmp.eq.s32.totalorder %s38, 0
    %s41 = sadd.s32 %s40, 1
    %s42 = scalar_select %p39, %s40, %s41
    %p45 = pneg %p39
    %p46 = scmp.eq.s32.totalorder %s9, 3
    %p47 = por %p45, %p46
    %p48 = scmp.ne.s32.totalorder %s40, %s43
    %p49 = scmp.eq.s32.totalorder %s9, 0
    %p50 = por %p48, %p49
    %p51 = scmp.ne.s32.totalorder %s40, %s43
    %p52 = scmp.eq.s32.totalorder %s14, 3
    %p53 = por %p51, %p52
    %p54 = scmp.ne.s32.totalorder %s43, %s44
    %p55 = scmp.eq.s32.totalorder %s14, 0
    %p56 = por %p54, %p55
    %p57 = scmp.ne.s32.totalorder %s43, %s44
    %p58 = scmp.eq.s32.totalorder %s15, 3
    %p59 = por %p57, %p58
    %p61 = scmp.ne.s32.totalorder %s44, %s60
    %p62 = scmp.eq.s32.totalorder %s15, 0
    %p63 = por %p61, %p62
    %s64 = ssub.s32 %s16, %s35
    %p65 = scmp.eq.s32.totalorder %s64, 0
    %s67 = sadd.s32 %s66, 1
    %s68 = scalar_select %p65, %s66, %s67
    %p71 = pneg %p65
    %p72 = scmp.eq.s32.totalorder %s9, 3
    %p73 = por %p71, %p72
    %p74 = scmp.ne.s32.totalorder %s66, %s69
    %p75 = scmp.eq.s32.totalorder %s9, 0
    %p76 = por %p74, %p75
    %p77 = scmp.ne.s32.totalorder %s66, %s69
    %p78 = scmp.eq.s32.totalorder %s14, 3
    %p79 = por %p77, %p78
    %p80 = scmp.ne.s32.totalorder %s69, %s70
    %p81 = scmp.eq.s32.totalorder %s14, 0
    %p82 = por %p80, %p81
    %p83 = scmp.ne.s32.totalorder %s69, %s70
    %p84 = scmp.eq.s32.totalorder %s15, 3
    %p85 = por %p83, %p84
    %p87 = scmp.ne.s32.totalorder %s70, %s86
    %p88 = scmp.eq.s32.totalorder %s15, 0
    %p89 = por %p87, %p88
    %s90 = ssub.s32 %s16, %s35
    %p91 = scmp.eq.s32.totalorder %s90, 0
    %s93 = sadd.s32 %s92, 1
    %s94 = scalar_select %p91, %s92, %s93
    %p97 = pneg %p91
    %p98 = scmp.eq.s32.totalorder %s9, 3
    %p99 = por %p97, %p98
    %p100 = scmp.ne.s32.totalorder %s92, %s95
    %p101 = scmp.eq.s32.totalorder %s9, 0
    %p102 = por %p100, %p101
    %p103 = scmp.ne.s32.totalorder %s92, %s95
    %p104 = scmp.eq.s32.totalorder %s14, 3
    %p105 = por %p103, %p104
    %p106 = scmp.ne.s32.totalorder %s95, %s96
    %p107 = scmp.eq.s32.totalorder %s14, 0
    %p108 = por %p106, %p107
    %p109 = scmp.ne.s32.totalorder %s95, %s96
    %p110 = scmp.eq.s32.totalorder %s15, 3
    %p111 = por %p109, %p110
    %p113 = scmp.ne.s32.totalorder %s96, %s112
    %p114 = scmp.eq.s32.totalorder %s15, 0
    %p115 = por %p113, %p114
    %s116 = smul.u32 %s18, %s17
    %s117 = smul.u32 %s27, %s31
    %s118 = ssub.s32 %s16, %s35
    %s119 = ssub.s32 %s116, %s117
    %s120 = sor.u32 %s118, %s119
    %p121 = scmp.eq.s32.totalorder %s120, 0
    %s123 = sadd.s32 %s122, 1
    %s124 = scalar_select %p121, %s122, %s123
    %p127 = pneg %p121
    %p128 = scmp.eq.s32.totalorder %s9, 3
    %p129 = por %p127, %p128
    %p130 = scmp.ne.s32.totalorder %s122, %s125
    %p131 = scmp.eq.s32.totalorder %s9, 0
    %p132 = por %p130, %p131
    %p133 = scmp.ne.s32.totalorder %s122, %s125
    %p134 = scmp.eq.s32.totalorder %s14, 3
    %p135 = por %p133, %p134
    %p136 = scmp.ne.s32.totalorder %s125, %s126
    %p137 = scmp.eq.s32.totalorder %s14, 0
    %p138 = por %p136, %p137
    %p139 = scmp.ne.s32.totalorder %s125, %s126
    %p140 = scmp.eq.s32.totalorder %s15, 3
    %p141 = por %p139, %p140
    %p143 = scmp.ne.s32.totalorder %s126, %s142
    %p144 = scmp.eq.s32.totalorder %s15, 0
    %p145 = por %p143, %p144
    %p146 = scmp.le.s32.totalorder 1, %s9
    %p147 = scmp.lt.s32.totalorder %s9, 5
    %p148 = pnand %p146, %p147
    %p149 = pneg %p148
    // Predicated region
    $region9: #{decoder_forward.25} parent=5 // pred_check
      _
    $region10: #{decoder_forward.25} parent=5 // pred_check_branch
      %151 = sbr.rel (%p148) target = $region12
    $region11: #{decoder_forward.25} parent=5 // pred_region
      %s152 = ssub.s32 %s9, 1
    $region12: #{decoder_forward.25} parent=5 // pred_fallthru
      _
    %p153 = scmp.lt.s32.totalorder %s9, 4
    // Predicated region
    $region13: #{decoder_forward.25} parent=5 // pred_check
      %p154 = pneg %p153
    $region14: #{decoder_forward.25} parent=5 // pred_check_branch
      %156 = sbr.rel (%p154) target = $region16
    $region15: #{decoder_forward.25} parent=5 // pred_region
      // Predicated region
      $region17: #{decoder_forward.25} parent=15 // pred_check
        %p157 = pneg %p50
      $region18: #{decoder_forward.25} parent=15 // pred_check_branch
        %159 = sbr.rel (%p157) target = $region20
      $region19: #{decoder_forward.25} parent=15 // pred_region
        %s160 = smul.u32 4, %s18
        %p161 = scmp.lt.s32.totalorder %s16, 1
        %s162 = scalar_select %p161, %s16, 1
        %p163 = scmp.lt.s32.totalorder %s160, 3
        %s164 = scalar_select %p163, %s160, 3
        %s165 = smul.addr %s162, 4
        %s166 = sadd.s32 %s164, %s165
        %s167 = smul.addr %s166, 2
        %s168 = scalar_lea.vmem %s0, %s167
        %s169 = smul.u32 4, %s18
      $region20: #{decoder_forward.25} parent=15 // pred_fallthru
        _
      // Predicated region
      $region21: #{decoder_forward.25} parent=15 // pred_check
        %p170 = pneg %p76
      $region22: #{decoder_forward.25} parent=15 // pred_check_branch
        %172 = sbr.rel (%p170) target = $region24
      $region23: #{decoder_forward.25} parent=15 // pred_region
        %p173 = scmp.lt.s32.totalorder %s16, 1
        %s174 = scalar_select %p173, %s16, 1
        %s175 = scalar_lea.vmem %s1, %s174
      $region24: #{decoder_forward.25} parent=15 // pred_fallthru
        _
      // Predicated region
      $region25: #{decoder_forward.25} parent=15 // pred_check
        %p176 = pneg %p102
      $region26: #{decoder_forward.25} parent=15 // pred_check_branch
        %178 = sbr.rel (%p176) target = $region28
      $region27: #{decoder_forward.25} parent=15 // pred_region
        %p179 = scmp.lt.s32.totalorder %s16, 1
        %s180 = scalar_select %p179, %s16, 1
        %s181 = scalar_lea.vmem %s2, %s180
      $region28: #{decoder_forward.25} parent=15 // pred_fallthru
        _
    $region16: #{decoder_forward.25} parent=5 // pred_fallthru
      _
    %p182 = scmp.le.s32.totalorder 1, %s9
    %p183 = scmp.lt.s32.totalorder %s9, 5
    %p184 = pnand %p182, %p183
    %p185 = pneg %p184
    // Predicated region
    $region29: #{decoder_forward.25} parent=5 // pred_check
      _
    $region30: #{decoder_forward.25} parent=5 // pred_check_branch
      %187 = sbr.rel (%p184) target = $region32
    $region31: #{decoder_forward.25} parent=5 // pred_region
      %s188 = ssub.s32 %s9, 1
      %s189 = smul.u32 4, %s21
      %p190 = scmp.lt.s32.totalorder %s19, 1
      %s191 = scalar_select %p190, %s19, 1
      %p192 = scmp.lt.s32.totalorder %s189, 3
      %s193 = scalar_select %p192, %s189, 3
      %s194 = smul.addr %s191, 4
      %s195 = sadd.s32 %s193, %s194
      %s196 = smul.addr %s195, 2
      %s197 = scalar_lea.vmem %s0, %s196
      %p198 = pneg %p56
      %p199 = pneg %p53
      %p200 = scmp.lt.s32.totalorder %s19, 1
      %s201 = scalar_select %p200, %s19, 1
      %s202 = scalar_lea.vmem %s1, %s201
      %p203 = pneg %p82
      %p204 = pneg %p79
      %p205 = scmp.lt.s32.totalorder %s19, 1
      %s206 = scalar_select %p205, %s19, 1
      %s207 = scalar_lea.vmem %s2, %s206
      %p208 = pneg %p108
      %p209 = pneg %p105
      %p210 = pneg %p138
      %p211 = pneg %p135
      %s212 = smul.u32 %s21, %s20
      %s213 = smul.u32 4, %s212
      %p214 = scmp.lt.s32.totalorder %s19, 1
      %s215 = scalar_select %p214, %s19, 1
      %p216 = scmp.lt.s32.totalorder %s213, 3
      %s217 = scalar_select %p216, %s213, 3
      %s218 = smul.addr %s215, 4
      %s219 = sadd.s32 %s217, %s218
      %s220 = smul.addr %s219, 2
      %s221 = scalar_lea.vmem %s3, %s220
      %s222 = smul.u32 4, %s21
      %p223 = scmp.lt.s32.totalorder %s19, 1
      %s224 = scalar_select %p223, %s19, 1
      %p225 = scmp.lt.s32.totalorder %s222, 3
      %s226 = scalar_select %p225, %s222, 3
      %s227 = smul.addr %s224, 4
      %s228 = sadd.s32 %s226, %s227
      %s229 = smul.addr %s228, 2
      %s230 = scalar_lea.vmem %s0, %s229
      %s231 = smul.u32 4, %s21
      %p232 = scmp.lt.s32.totalorder %s19, 1
      %s233 = scalar_select %p232, %s19, 1
      %s234 = scalar_lea.vmem %s1, %s233
      %p235 = scmp.lt.s32.totalorder %s19, 1
      %s236 = scalar_select %p235, %s19, 1
      %s237 = scalar_lea.vmem %s2, %s236
      %s238 = smul.u32 %s21, %s20
      %s239 = smul.u32 4, %s238
      %p240 = scmp.lt.s32.totalorder %s19, 1
      %s241 = scalar_select %p240, %s19, 1
      %p242 = scmp.lt.s32.totalorder %s239, 3
      %s243 = scalar_select %p242, %s239, 3
      %s244 = smul.addr %s241, 4
      %s245 = sadd.s32 %s243, %s244
      %s246 = smul.addr %s245, 2
      %s247 = scalar_lea.vmem %s3, %s246
      %s248 = smul.u32 %s21, %s20
      %s249 = smul.u32 4, %s248
      %p250 = scmp.eq.s32.totalorder %s20, 0
      // Predicated region
      $region33: #{decoder_forward.25} parent=31 // pred_check
        %p251 = pneg %p250
      $region34: #{decoder_forward.25} parent=31 // pred_check_branch
        %253 = sbr.rel (%p251) target = $region36
      $region35: #{decoder_forward.25} parent=31 // pred_region
        %v254 = vld [vmem:[%s230] sm:$0x3]
        %v255 = vld [vmem:[%s230 + $0x2] sm:$0x3]
        %v256 = vld [vmem:[%s230 + $0x4] sm:$0x3]
        %v257 = vld [vmem:[%s230 + $0x6] sm:$0x3]
        %v258 = vunpack.c.l.bf16 %v254
        %v259 = vunpack.c.l.bf16 %v255
        %v260 = vunpack.c.l.bf16 %v256
        %v261 = vunpack.c.l.bf16 %v257
        %p262 = scmp.eq.s32.totalorder %s21, 0
        // Predicated region
        $region37: #{decoder_forward.25} parent=35 // pred_check
          %p263 = pneg %p262
        $region38: #{decoder_forward.25} parent=35 // pred_check_branch
          %265 = sbr.rel (%p263) target = $region40
        $region39: #{decoder_forward.25} parent=35 // pred_region
          %vm266 = vcmask 253952
          %267 = vst.msk [vmem:[#allocation2] sm:$0x1] %vm266, 0.0
          %268 = vst.msk [vmem:[#allocation3] sm:$0x1] %vm266, 0.0
        $region40: #{decoder_forward.25} parent=35 // pred_fallthru
          _
        %v269 = vld [vmem:[#allocation2] sm:$0x1]
        %vm270 = vcmask 257024
        %v271 = vsel %vm270, %v258, 0.0
        %v272 = vsel %vm270, %v259, 0.0
        %v273 = vadd.f32 %v271, %v272
        %v274 = vsel %vm270, %v260, 0.0
        %v275 = vadd.f32 %v273, %v274
        %v276 = vsel %vm270, %v261, 0.0
        %v277 = vadd.f32 %v275, %v276
        %v278 = vrot.slane %v277, 4
        %v279 = vadd.f32 %v277, %v278
        %v280 = vrot.slane %v279, 2
        %v281 = vadd.f32 %v279, %v280
        %v282 = vrot.slane %v281, 1
        %v283 = vadd.f32 %v281, %v282
        %v284 = vadd.f32 %v269, %v283
        %vm285 = vcmask 253952
        %286 = vst.msk [vmem:[#allocation2] sm:$0x1] %vm285, %v284
        %v287 = vld [vmem:[#allocation3] sm:$0x1]
        %v288 = vmul.f32 %v258, %v258
        %v289 = vmul.f32 %v259, %v259
        %v290 = vmul.f32 %v260, %v260
        %v291 = vmul.f32 %v261, %v261
        %v292 = vsel %vm270, %v288, 0.0
        %v293 = vsel %vm270, %v289, 0.0
        %v294 = vadd.f32 %v292, %v293
        %v295 = vsel %vm270, %v290, 0.0
        %v296 = vadd.f32 %v294, %v295
        %v297 = vsel %vm270, %v291, 0.0
        %v298 = vadd.f32 %v296, %v297
        %v299 = vrot.slane %v298, 4
        %v300 = vadd.f32 %v298, %v299
        %v301 = vrot.slane %v300, 2
        %v302 = vadd.f32 %v300, %v301
        %v303 = vrot.slane %v302, 1
        %v304 = vadd.f32 %v302, %v303
        %v305 = vadd.f32 %v287, %v304
        %306 = vst.msk [vmem:[#allocation3] sm:$0x1] %vm285, %v305
      $region36: #{decoder_forward.25} parent=31 // pred_fallthru
        _
      %p307 = scmp.eq.s32.totalorder %s20, 1
      // Predicated region
      $region41: #{decoder_forward.25} parent=31 // pred_check
        %p308 = pneg %p307
      $region42: #{decoder_forward.25} parent=31 // pred_check_branch
        %310 = sbr.rel (%p308) target = $region44
      $region43: #{decoder_forward.25} parent=31 // pred_region
        %v311 = vld [vmem:[%s230] sm:$0x3]
        %v312 = vld [vmem:[%s230 + $0x2] sm:$0x3]
        %v313 = vld [vmem:[%s230 + $0x4] sm:$0x3]
        %v314 = vld [vmem:[%s230 + $0x6] sm:$0x3]
        %v315 = vunpack.c.l.bf16 %v311
        %v316 = vunpack.c.l.bf16 %v312
        %v317 = vunpack.c.l.bf16 %v313
        %v318 = vunpack.c.l.bf16 %v314
        %v319 = vld [vmem:[#allocation2] sm:$0x1]
        %v320 = vmul.f32 %v319, 0.0625
        %v321 = vld [vmem:[#allocation3] sm:$0x1]
        %v322 = vmul.f32 %v321, 0.0625
        %v323 = vmul.f32 %v320, %v320
        %v324 = vsub.f32 %v322, %v323
        %v325 = vmax.f32 %v324, 0.0
        %v326 = vadd.f32 %v325, 1e-05
        %v327 = vrsqrt.pop %v326
        %v329 = vlaneseq
        %v330 = vshrl.u32 %v329, 7
        %v331 = vsub.s32 0, %v330
        %v332 = vrot.slane %v320, %v331
        %v334 = vsub.f32 %v315, %v332
        %v335 = vsub.f32 %v316, %v332
        %v336 = vsub.f32 %v317, %v332
        %v337 = vsub.f32 %v318, %v332
        %v339 = vlaneseq
        %v340 = vshrl.u32 %v339, 7
        %v341 = vsub.s32 0, %v340
        %v342 = vrot.slane %v327, %v341
        %v344 = vmul.f32 %v334, %v342
        %v345 = vmul.f32 %v335, %v342
        %v346 = vmul.f32 %v336, %v342
        %v347 = vmul.f32 %v337, %v342
        %v348 = vld [vmem:[%s234] sm:$0x1]
        %v349 = vadd.f32 %v348, 1.0
        %v351 = vlaneseq
        %v352 = vshrl.u32 %v351, 7
        %v353 = vsub.s32 0, %v352
        %v354 = vrot.slane %v349, %v353
        %v356 = vmul.f32 %v344, %v354
        %v357 = vmul.f32 %v345, %v354
        %v358 = vmul.f32 %v346, %v354
        %v359 = vmul.f32 %v347, %v354
        %v360 = vld [vmem:[%s237] sm:$0x1]
        %v362 = vlaneseq
        %v363 = vshrl.u32 %v362, 7
        %v364 = vsub.s32 0, %v363
        %v365 = vrot.slane %v360, %v364
        %v367 = vadd.f32 %v356, %v365
        %v368 = vadd.f32 %v357, %v365
        %v369 = vadd.f32 %v358, %v365
        %v370 = vadd.f32 %v359, %v365
        %vm371 = vcmp.ge.f32.partialorder %v367, 0.0
        %vm372 = vcmp.ge.f32.partialorder %v368, 0.0
        %vm373 = vcmp.ge.f32.partialorder %v369, 0.0
        %vm374 = vcmp.ge.f32.partialorder %v370, 0.0
        %v375 = vmul.f32 %v367, 0.01
        %v376 = vmul.f32 %v368, 0.01
        %v377 = vmul.f32 %v369, 0.01
        %v378 = vmul.f32 %v370, 0.01
        %v379 = vsel %vm371, %v367, %v375
        %v380 = vsel %vm372, %v368, %v376
        %v381 = vsel %vm373, %v369, %v377
        %v382 = vsel %vm374, %v370, %v378
        %v383 = vpack.c.bf16 %v379, %v379
        %v384 = vpack.c.bf16 %v380, %v380
        %v385 = vpack.c.bf16 %v381, %v381
        %v386 = vpack.c.bf16 %v382, %v382
        %vm387 = vcmask 254976
        %388 = vst.msk [vmem:[%s247] sm:$0x3] %vm387, %v383
        %389 = vst.msk [vmem:[%s247 + $0x2] sm:$0x3] %vm387, %v384
        %390 = vst.msk [vmem:[%s247 + $0x4] sm:$0x3] %vm387, %v385
        %391 = vst.msk [vmem:[%s247 + $0x6] sm:$0x3] %vm387, %v386
      $region44: #{decoder_forward.25} parent=31 // pred_fallthru
        _
      %s392 = smul.u32 %s21, %s20
      %s393 = smul.u32 4, %s392
      %p394 = scmp.lt.s32.totalorder %s19, 1
      %s395 = scalar_select %p394, %s19, 1
      %p396 = scmp.lt.s32.totalorder %s393, 3
      %s397 = scalar_select %p396, %s393, 3
      %s398 = smul.addr %s395, 4
      %s399 = sadd.s32 %s397, %s398
      %s400 = smul.addr %s399, 2
      %s401 = scalar_lea.vmem %s3, %s400
      // Predicated region
      $region45: #{decoder_forward.25} parent=31 // pred_check
        %p402 = pneg %p135
      $region46: #{decoder_forward.25} parent=31 // pred_check_branch
        %404 = sbr.rel (%p402) target = $region48
      $region47: #{decoder_forward.25} parent=31 // pred_region
        %s405 = smul.u32 %s21, %s20
        %s406 = smul.u32 4, %s405
      $region48: #{decoder_forward.25} parent=31 // pred_fallthru
        _
    $region32: #{decoder_forward.25} parent=5 // pred_fallthru
      _
    %p407 = scmp.le.s32.totalorder 2, %s9
    // Predicated region
    $region49: #{decoder_forward.25} parent=5 // pred_check
      %p408 = pneg %p407
    $region50: #{decoder_forward.25} parent=5 // pred_check_branch
      %410 = sbr.rel (%p408) target = $region52
    $region51: #{decoder_forward.25} parent=5 // pred_region
      %s411 = ssub.s32 %s9, 2
      // Predicated region
      $region53: #{decoder_forward.25} parent=51 // pred_check
        %p412 = pneg %p141
      $region54: #{decoder_forward.25} parent=51 // pred_check_branch
        %414 = sbr.rel (%p412) target = $region56
      $region55: #{decoder_forward.25} parent=51 // pred_region
        %s415 = smul.u32 %s24, %s23
        %s416 = smul.u32 4, %s415
        %p417 = scmp.lt.s32.totalorder %s22, 1
        %s418 = scalar_select %p417, %s22, 1
        %p419 = scmp.lt.s32.totalorder %s416, 3
        %s420 = scalar_select %p419, %s416, 3
        %s421 = smul.addr %s418, 4
        %s422 = sadd.s32 %s420, %s421
        %s423 = smul.addr %s422, 2
        %s424 = scalar_lea.vmem %s3, %s423
      $region56: #{decoder_forward.25} parent=51 // pred_fallthru
        _
    $region52: #{decoder_forward.25} parent=5 // pred_fallthru
      _
  $region6: #{decoder_forward.25} parent=0 // loop_footer
    %s13 = sadd.s32 1, %s9
  $region7: #{decoder_forward.25} parent=0 // loop_footer_branch
    %8 = sbr.rel target = $region3
  $region8: #{decoder_forward.25} parent=0 // loop_exit
    _

// kernel: decoder_forward.28
$region0: #{decoder_forward.28}
  #allocation0 [shape = 'u32[]', space=smem, size = 0x4, offset = 0x4, fixed_abs, tag = 'smem constant byte address 0x4 - core index']
  #allocation1 [shape = 'u32[144,128]{1,0:T(1,128)}', space=vmem, size = 0x12000, scoped, tag = 'internal scratch']
  #allocation2 [shape = 'f32[1,32]{1,0:T(1,128)}', space=vmem, size = 0x200, scoped, tag = 'scratch operand']
  #allocation3 [shape = 'f32[1,32]{1,0:T(1,128)}', space=vmem, size = 0x200, scoped, tag = 'scratch operand']
  %s0 = inlined_call_operand.vmem [shape: bf16[2,4,4,32], index: 0, kind: input, shape index: {}]
  %s1 = inlined_call_operand.vmem [shape: f32[2,1,1,32], index: 1, kind: input, shape index: {}]
  %s2 = inlined_call_operand.vmem [shape: f32[2,1,1,32], index: 2, kind: input, shape index: {}]
  %s3 = inlined_call_operand.vmem [shape: bf16[2,4,4,32], index: 3, kind: output, shape index: {}]
  %s4 = sld [smem:[#allocation0]]
  $region57: #{decoder_forward.28} parent=0
    _
  %s6 = ssub.s32 1, %s4
  %s7 = scalar_select 0, %s6, %s4
  loop: start=0, step=1, limit=6
  $region2: #{decoder_forward.28} parent=0 // loop_pre_header
    _
  $region3: #{decoder_forward.28} parent=0 // loop_header
    %s9 = sphi 0, %s13
    %p10 = scmp.ge.s32.totalorder %s9, 6
    %s16 = sphi 0, %s35
    %s17 = sphi 0, %s31
    %s18 = sphi 0, %s27
    %s19 = sphi 0, %s16
    %s20 = sphi 0, %s17
    %s21 = sphi 0, %s18
    %s22 = sphi 0, %s19
    %s23 = sphi 0, %s20
    %s24 = sphi 0, %s21
    %s40 = sphi 0, %s42
    %s43 = sphi 0, %s40
    %s44 = sphi 0, %s43
    %s60 = sphi 0, %s44
    %s66 = sphi 0, %s68
    %s69 = sphi 0, %s66
    %s70 = sphi 0, %s69
    %s86 = sphi 0, %s70
    %s92 = sphi 0, %s94
    %s95 = sphi 0, %s92
    %s96 = sphi 0, %s95
    %s112 = sphi 0, %s96
    %s122 = sphi 0, %s124
    %s125 = sphi 0, %s122
    %s126 = sphi 0, %s125
    %s142 = sphi 0, %s126
  $region4: #{decoder_forward.28} parent=0 // loop_header_branch
    %12 = sbr.rel (%p10) target = $region8
  $region5: #{decoder_forward.28} parent=0 // loop_body
    %s14 = ssub.s32 %s9, 1
    %s15 = ssub.s32 %s9, 2
    %s25 = sadd.s32 1, %s18
    %p26 = scmp.ge.s32.totalorder %s25, 1
    %s27 = scalar_select %p26, 0, %s25
    %s28 = sadd.s32 1, %s17
    %s29 = scalar_select %p26, %s28, %s17
    %p30 = scmp.ge.s32.totalorder %s29, 2
    %s31 = scalar_select %p30, 0, %s29
    %s32 = sadd.s32 1, %s16
    %s33 = scalar_select %p30, %s32, %s16
    %p34 = scmp.ge.s32.totalorder %s33, 2
    %s35 = scalar_select %p34, 0, %s33
    %s36 = ssub.s32 %s16, %s35
    %s37 = ssub.s32 %s18, %s27
    %s38 = sor.u32 %s36, %s37
    %p39 = scmp.eq.s32.totalorder %s38, 0
    %s41 = sadd.s32 %s40, 1
    %s42 = scalar_select %p39, %s40, %s41
    %p45 = pneg %p39
    %p46 = scmp.eq.s32.totalorder %s9, 3
    %p47 = por %p45, %p46
    %p48 = scmp.ne.s32.totalorder %s40, %s43
    %p49 = scmp.eq.s32.totalorder %s9, 0
    %p50 = por %p48, %p49
    %p51 = scmp.ne.s32.totalorder %s40, %s43
    %p52 = scmp.eq.s32.totalorder %s14, 3
    %p53 = por %p51, %p52
    %p54 = scmp.ne.s32.totalorder %s43, %s44
    %p55 = scmp.eq.s32.totalorder %s14, 0
    %p56 = por %p54, %p55
    %p57 = scmp.ne.s32.totalorder %s43, %s44
    %p58 = scmp.eq.s32.totalorder %s15, 3
    %p59 = por %p57, %p58
    %p61 = scmp.ne.s32.totalorder %s44, %s60
    %p62 = scmp.eq.s32.totalorder %s15, 0
    %p63 = por %p61, %p62
    %s64 = ssub.s32 %s16, %s35
    %p65 = scmp.eq.s32.totalorder %s64, 0
    %s67 = sadd.s32 %s66, 1
    %s68 = scalar_select %p65, %s66, %s67
    %p71 = pneg %p65
    %p72 = scmp.eq.s32.totalorder %s9, 3
    %p73 = por %p71, %p72
    %p74 = scmp.ne.s32.totalorder %s66, %s69
    %p75 = scmp.eq.s32.totalorder %s9, 0
    %p76 = por %p74, %p75
    %p77 = scmp.ne.s32.totalorder %s66, %s69
    %p78 = scmp.eq.s32.totalorder %s14, 3
    %p79 = por %p77, %p78
    %p80 = scmp.ne.s32.totalorder %s69, %s70
    %p81 = scmp.eq.s32.totalorder %s14, 0
    %p82 = por %p80, %p81
    %p83 = scmp.ne.s32.totalorder %s69, %s70
    %p84 = scmp.eq.s32.totalorder %s15, 3
    %p85 = por %p83, %p84
    %p87 = scmp.ne.s32.totalorder %s70, %s86
    %p88 = scmp.eq.s32.totalorder %s15, 0
    %p89 = por %p87, %p88
    %s90 = ssub.s32 %s16, %s35
    %p91 = scmp.eq.s32.totalorder %s90, 0
    %s93 = sadd.s32 %s92, 1
    %s94 = scalar_select %p91, %s92, %s93
    %p97 = pneg %p91
    %p98 = scmp.eq.s32.totalorder %s9, 3
    %p99 = por %p97, %p98
    %p100 = scmp.ne.s32.totalorder %s92, %s95
    %p101 = scmp.eq.s32.totalorder %s9, 0
    %p102 = por %p100, %p101
    %p103 = scmp.ne.s32.totalorder %s92, %s95
    %p104 = scmp.eq.s32.totalorder %s14, 3
    %p105 = por %p103, %p104
    %p106 = scmp.ne.s32.totalorder %s95, %s96
    %p107 = scmp.eq.s32.totalorder %s14, 0
    %p108 = por %p106, %p107
    %p109 = scmp.ne.s32.totalorder %s95, %s96
    %p110 = scmp.eq.s32.totalorder %s15, 3
    %p111 = por %p109, %p110
    %p113 = scmp.ne.s32.totalorder %s96, %s112
    %p114 = scmp.eq.s32.totalorder %s15, 0
    %p115 = por %p113, %p114
    %s116 = smul.u32 %s18, %s17
    %s117 = smul.u32 %s27, %s31
    %s118 = ssub.s32 %s16, %s35
    %s119 = ssub.s32 %s116, %s117
    %s120 = sor.u32 %s118, %s119
    %p121 = scmp.eq.s32.totalorder %s120, 0
    %s123 = sadd.s32 %s122, 1
    %s124 = scalar_select %p121, %s122, %s123
    %p127 = pneg %p121
    %p128 = scmp.eq.s32.totalorder %s9, 3
    %p129 = por %p127, %p128
    %p130 = scmp.ne.s32.totalorder %s122, %s125
    %p131 = scmp.eq.s32.totalorder %s9, 0
    %p132 = por %p130, %p131
    %p133 = scmp.ne.s32.totalorder %s122, %s125
    %p134 = scmp.eq.s32.totalorder %s14, 3
    %p135 = por %p133, %p134
    %p136 = scmp.ne.s32.totalorder %s125, %s126
    %p137 = scmp.eq.s32.totalorder %s14, 0
    %p138 = por %p136, %p137
    %p139 = scmp.ne.s32.totalorder %s125, %s126
    %p140 = scmp.eq.s32.totalorder %s15, 3
    %p141 = por %p139, %p140
    %p143 = scmp.ne.s32.totalorder %s126, %s142
    %p144 = scmp.eq.s32.totalorder %s15, 0
    %p145 = por %p143, %p144
    %p146 = scmp.le.s32.totalorder 1, %s9
    %p147 = scmp.lt.s32.totalorder %s9, 5
    %p148 = pnand %p146, %p147
    %p149 = pneg %p148
    // Predicated region
    $region9: #{decoder_forward.28} parent=5 // pred_check
      _
    $region10: #{decoder_forward.28} parent=5 // pred_check_branch
      %151 = sbr.rel (%p148) target = $region12
    $region11: #{decoder_forward.28} parent=5 // pred_region
      %s152 = ssub.s32 %s9, 1
    $region12: #{decoder_forward.28} parent=5 // pred_fallthru
      _
    %p153 = scmp.lt.s32.totalorder %s9, 4
    // Predicated region
    $region13: #{decoder_forward.28} parent=5 // pred_check
      %p154 = pneg %p153
    $region14: #{decoder_forward.28} parent=5 // pred_check_branch
      %156 = sbr.rel (%p154) target = $region16
    $region15: #{decoder_forward.28} parent=5 // pred_region
      // Predicated region
      $region17: #{decoder_forward.28} parent=15 // pred_check
        %p157 = pneg %p50
      $region18: #{decoder_forward.28} parent=15 // pred_check_branch
        %159 = sbr.rel (%p157) target = $region20
      $region19: #{decoder_forward.28} parent=15 // pred_region
        %s160 = smul.u32 4, %s18
        %p161 = scmp.lt.s32.totalorder %s16, 1
        %s162 = scalar_select %p161, %s16, 1
        %p163 = scmp.lt.s32.totalorder %s160, 3
        %s164 = scalar_select %p163, %s160, 3
        %s165 = smul.addr %s162, 4
        %s166 = sadd.s32 %s164, %s165
        %s167 = smul.addr %s166, 2
        %s168 = scalar_lea.vmem %s0, %s167
        %s169 = smul.u32 4, %s18
      $region20: #{decoder_forward.28} parent=15 // pred_fallthru
        _
      // Predicated region
      $region21: #{decoder_forward.28} parent=15 // pred_check
        %p170 = pneg %p76
      $region22: #{decoder_forward.28} parent=15 // pred_check_branch
        %172 = sbr.rel (%p170) target = $region24
      $region23: #{decoder_forward.28} parent=15 // pred_region
        %p173 = scmp.lt.s32.totalorder %s16, 1
        %s174 = scalar_select %p173, %s16, 1
        %s175 = scalar_lea.vmem %s1, %s174
      $region24: #{decoder_forward.28} parent=15 // pred_fallthru
        _
      // Predicated region
      $region25: #{decoder_forward.28} parent=15 // pred_check
        %p176 = pneg %p102
      $region26: #{decoder_forward.28} parent=15 // pred_check_branch
        %178 = sbr.rel (%p176) target = $region28
      $region27: #{decoder_forward.28} parent=15 // pred_region
        %p179 = scmp.lt.s32.totalorder %s16, 1
        %s180 = scalar_select %p179, %s16, 1
        %s181 = scalar_lea.vmem %s2, %s180
      $region28: #{decoder_forward.28} parent=15 // pred_fallthru
        _
    $region16: #{decoder_forward.28} parent=5 // pred_fallthru
      _
    %p182 = scmp.le.s32.totalorder 1, %s9
    %p183 = scmp.lt.s32.totalorder %s9, 5
    %p184 = pnand %p182, %p183
    %p185 = pneg %p184
    // Predicated region
    $region29: #{decoder_forward.28} parent=5 // pred_check
      _
    $region30: #{decoder_forward.28} parent=5 // pred_check_branch
      %187 = sbr.rel (%p184) target = $region32
    $region31: #{decoder_forward.28} parent=5 // pred_region
      %s188 = ssub.s32 %s9, 1
      %s189 = smul.u32 4, %s21
      %p190 = scmp.lt.s32.totalorder %s19, 1
      %s191 = scalar_select %p190, %s19, 1
      %p192 = scmp.lt.s32.totalorder %s189, 3
      %s193 = scalar_select %p192, %s189, 3
      %s194 = smul.addr %s191, 4
      %s195 = sadd.s32 %s193, %s194
      %s196 = smul.addr %s195, 2
      %s197 = scalar_lea.vmem %s0, %s196
      %p198 = pneg %p56
      %p199 = pneg %p53
      %p200 = scmp.lt.s32.totalorder %s19, 1
      %s201 = scalar_select %p200, %s19, 1
      %s202 = scalar_lea.vmem %s1, %s201
      %p203 = pneg %p82
      %p204 = pneg %p79
      %p205 = scmp.lt.s32.totalorder %s19, 1
      %s206 = scalar_select %p205, %s19, 1
      %s207 = scalar_lea.vmem %s2, %s206
      %p208 = pneg %p108
      %p209 = pneg %p105
      %p210 = pneg %p138
      %p211 = pneg %p135
      %s212 = smul.u32 %s21, %s20
      %s213 = smul.u32 4, %s212
      %p214 = scmp.lt.s32.totalorder %s19, 1
      %s215 = scalar_select %p214, %s19, 1
      %p216 = scmp.lt.s32.totalorder %s213, 3
      %s217 = scalar_select %p216, %s213, 3
      %s218 = smul.addr %s215, 4
      %s219 = sadd.s32 %s217, %s218
      %s220 = smul.addr %s219, 2
      %s221 = scalar_lea.vmem %s3, %s220
      %s222 = smul.u32 4, %s21
      %p223 = scmp.lt.s32.totalorder %s19, 1
      %s224 = scalar_select %p223, %s19, 1
      %p225 = scmp.lt.s32.totalorder %s222, 3
      %s226 = scalar_select %p225, %s222, 3
      %s227 = smul.addr %s224, 4
      %s228 = sadd.s32 %s226, %s227
      %s229 = smul.addr %s228, 2
      %s230 = scalar_lea.vmem %s0, %s229
      %s231 = smul.u32 4, %s21
      %p232 = scmp.lt.s32.totalorder %s19, 1
      %s233 = scalar_select %p232, %s19, 1
      %s234 = scalar_lea.vmem %s1, %s233
      %p235 = scmp.lt.s32.totalorder %s19, 1
      %s236 = scalar_select %p235, %s19, 1
      %s237 = scalar_lea.vmem %s2, %s236
      %s238 = smul.u32 %s21, %s20
      %s239 = smul.u32 4, %s238
      %p240 = scmp.lt.s32.totalorder %s19, 1
      %s241 = scalar_select %p240, %s19, 1
      %p242 = scmp.lt.s32.totalorder %s239, 3
      %s243 = scalar_select %p242, %s239, 3
      %s244 = smul.addr %s241, 4
      %s245 = sadd.s32 %s243, %s244
      %s246 = smul.addr %s245, 2
      %s247 = scalar_lea.vmem %s3, %s246
      %s248 = smul.u32 %s21, %s20
      %s249 = smul.u32 4, %s248
      %p250 = scmp.eq.s32.totalorder %s20, 0
      // Predicated region
      $region33: #{decoder_forward.28} parent=31 // pred_check
        %p251 = pneg %p250
      $region34: #{decoder_forward.28} parent=31 // pred_check_branch
        %253 = sbr.rel (%p251) target = $region36
      $region35: #{decoder_forward.28} parent=31 // pred_region
        %v254 = vld [vmem:[%s230] sm:$0x3]
        %v255 = vld [vmem:[%s230 + $0x2] sm:$0x3]
        %v256 = vld [vmem:[%s230 + $0x4] sm:$0x3]
        %v257 = vld [vmem:[%s230 + $0x6] sm:$0x3]
        %v258 = vunpack.c.l.bf16 %v254
        %v259 = vunpack.c.l.bf16 %v255
        %v260 = vunpack.c.l.bf16 %v256
        %v261 = vunpack.c.l.bf16 %v257
        %p262 = scmp.eq.s32.totalorder %s21, 0
        // Predicated region
        $region37: #{decoder_forward.28} parent=35 // pred_check
          %p263 = pneg %p262
        $region38: #{decoder_forward.28} parent=35 // pred_check_branch
          %265 = sbr.rel (%p263) target = $region40
        $region39: #{decoder_forward.28} parent=35 // pred_region
          %vm266 = vcmask 253952
          %267 = vst.msk [vmem:[#allocation2] sm:$0x1] %vm266, 0.0
          %268 = vst.msk [vmem:[#allocation3] sm:$0x1] %vm266, 0.0
        $region40: #{decoder_forward.28} parent=35 // pred_fallthru
          _
        %v269 = vld [vmem:[#allocation2] sm:$0x1]
        %vm270 = vcmask 257024
        %v271 = vsel %vm270, %v258, 0.0
        %v272 = vsel %vm270, %v259, 0.0
        %v273 = vadd.f32 %v271, %v272
        %v274 = vsel %vm270, %v260, 0.0
        %v275 = vadd.f32 %v273, %v274
        %v276 = vsel %vm270, %v261, 0.0
        %v277 = vadd.f32 %v275, %v276
        %v278 = vrot.slane %v277, 4
        %v279 = vadd.f32 %v277, %v278
        %v280 = vrot.slane %v279, 2
        %v281 = vadd.f32 %v279, %v280
        %v282 = vrot.slane %v281, 1
        %v283 = vadd.f32 %v281, %v282
        %v284 = vadd.f32 %v269, %v283
        %vm285 = vcmask 253952
        %286 = vst.msk [vmem:[#allocation2] sm:$0x1] %vm285, %v284
        %v287 = vld [vmem:[#allocation3] sm:$0x1]
        %v288 = vmul.f32 %v258, %v258
        %v289 = vmul.f32 %v259, %v259
        %v290 = vmul.f32 %v260, %v260
        %v291 = vmul.f32 %v261, %v261
        %v292 = vsel %vm270, %v288, 0.0
        %v293 = vsel %vm270, %v289, 0.0
        %v294 = vadd.f32 %v292, %v293
        %v295 = vsel %vm270, %v290, 0.0
        %v296 = vadd.f32 %v294, %v295
        %v297 = vsel %vm270, %v291, 0.0
        %v298 = vadd.f32 %v296, %v297
        %v299 = vrot.slane %v298, 4
        %v300 = vadd.f32 %v298, %v299
        %v301 = vrot.slane %v300, 2
        %v302 = vadd.f32 %v300, %v301
        %v303 = vrot.slane %v302, 1
        %v304 = vadd.f32 %v302, %v303
        %v305 = vadd.f32 %v287, %v304
        %306 = vst.msk [vmem:[#allocation3] sm:$0x1] %vm285, %v305
      $region36: #{decoder_forward.28} parent=31 // pred_fallthru
        _
      %p307 = scmp.eq.s32.totalorder %s20, 1
      // Predicated region
      $region41: #{decoder_forward.28} parent=31 // pred_check
        %p308 = pneg %p307
      $region42: #{decoder_forward.28} parent=31 // pred_check_branch
        %310 = sbr.rel (%p308) target = $region44
      $region43: #{decoder_forward.28} parent=31 // pred_region
        %v311 = vld [vmem:[%s230] sm:$0x3]
        %v312 = vld [vmem:[%s230 + $0x2] sm:$0x3]
        %v313 = vld [vmem:[%s230 + $0x4] sm:$0x3]
        %v314 = vld [vmem:[%s230 + $0x6] sm:$0x3]
        %v315 = vunpack.c.l.bf16 %v311
        %v316 = vunpack.c.l.bf16 %v312
        %v317 = vunpack.c.l.bf16 %v313
        %v318 = vunpack.c.l.bf16 %v314
        %v319 = vld [vmem:[#allocation2] sm:$0x1]
        %v320 = vmul.f32 %v319, 0.0625
        %v321 = vld [vmem:[#allocation3] sm:$0x1]
        %v322 = vmul.f32 %v321, 0.0625
        %v323 = vmul.f32 %v320, %v320
        %v324 = vsub.f32 %v322, %v323
        %v325 = vmax.f32 %v324, 0.0
        %v326 = vadd.f32 %v325, 1e-05
        %v327 = vrsqrt.pop %v326
        %v329 = vlaneseq
        %v330 = vshrl.u32 %v329, 7
        %v331 = vsub.s32 0, %v330
        %v332 = vrot.slane %v320, %v331
        %v334 = vsub.f32 %v315, %v332
        %v335 = vsub.f32 %v316, %v332
        %v336 = vsub.f32 %v317, %v332
        %v337 = vsub.f32 %v318, %v332
        %v339 = vlaneseq
        %v340 = vshrl.u32 %v339, 7
        %v341 = vsub.s32 0, %v340
        %v342 = vrot.slane %v327, %v341
        %v344 = vmul.f32 %v334, %v342
        %v345 = vmul.f32 %v335, %v342
        %v346 = vmul.f32 %v336, %v342
        %v347 = vmul.f32 %v337, %v342
        %v348 = vld [vmem:[%s234] sm:$0x1]
        %v349 = vadd.f32 %v348, 1.0
        %v351 = vlaneseq
        %v352 = vshrl.u32 %v351, 7
        %v353 = vsub.s32 0, %v352
        %v354 = vrot.slane %v349, %v353
        %v356 = vmul.f32 %v344, %v354
        %v357 = vmul.f32 %v345, %v354
        %v358 = vmul.f32 %v346, %v354
        %v359 = vmul.f32 %v347, %v354
        %v360 = vld [vmem:[%s237] sm:$0x1]
        %v362 = vlaneseq
        %v363 = vshrl.u32 %v362, 7
        %v364 = vsub.s32 0, %v363
        %v365 = vrot.slane %v360, %v364
        %v367 = vadd.f32 %v356, %v365
        %v368 = vadd.f32 %v357, %v365
        %v369 = vadd.f32 %v358, %v365
        %v370 = vadd.f32 %v359, %v365
        %v371 = vpack.c.bf16 %v367, %v367
        %v372 = vpack.c.bf16 %v368, %v368
        %v373 = vpack.c.bf16 %v369, %v369
        %v374 = vpack.c.bf16 %v370, %v370
        %vm375 = vcmask 254976
        %376 = vst.msk [vmem:[%s247] sm:$0x3] %vm375, %v371
        %377 = vst.msk [vmem:[%s247 + $0x2] sm:$0x3] %vm375, %v372
        %378 = vst.msk [vmem:[%s247 + $0x4] sm:$0x3] %vm375, %v373
        %379 = vst.msk [vmem:[%s247 + $0x6] sm:$0x3] %vm375, %v374
      $region44: #{decoder_forward.28} parent=31 // pred_fallthru
        _
      %s380 = smul.u32 %s21, %s20
      %s381 = smul.u32 4, %s380
      %p382 = scmp.lt.s32.totalorder %s19, 1
      %s383 = scalar_select %p382, %s19, 1
      %p384 = scmp.lt.s32.totalorder %s381, 3
      %s385 = scalar_select %p384, %s381, 3
      %s386 = smul.addr %s383, 4
      %s387 = sadd.s32 %s385, %s386
      %s388 = smul.addr %s387, 2
      %s389 = scalar_lea.vmem %s3, %s388
      // Predicated region
      $region45: #{decoder_forward.28} parent=31 // pred_check
        %p390 = pneg %p135
      $region46: #{decoder_forward.28} parent=31 // pred_check_branch
        %392 = sbr.rel (%p390) target = $region48
      $region47: #{decoder_forward.28} parent=31 // pred_region
        %s393 = smul.u32 %s21, %s20
        %s394 = smul.u32 4, %s393
      $region48: #{decoder_forward.28} parent=31 // pred_fallthru
        _
    $region32: #{decoder_forward.28} parent=5 // pred_fallthru
      _
    %p395 = scmp.le.s32.totalorder 2, %s9
    // Predicated region
    $region49: #{decoder_forward.28} parent=5 // pred_check
      %p396 = pneg %p395
    $region50: #{decoder_forward.28} parent=5 // pred_check_branch
      %398 = sbr.rel (%p396) target = $region52
    $region51: #{decoder_forward.28} parent=5 // pred_region
      %s399 = ssub.s32 %s9, 2
      // Predicated region
      $region53: #{decoder_forward.28} parent=51 // pred_check
        %p400 = pneg %p141
      $region54: #{decoder_forward.28} parent=51 // pred_check_branch
        %402 = sbr.rel (%p400) target = $region56
      $region55: #{decoder_forward.28} parent=51 // pred_region
        %s403 = smul.u32 %s24, %s23
        %s404 = smul.u32 4, %s403
        %p405 = scmp.lt.s32.totalorder %s22, 1
        %s406 = scalar_select %p405, %s22, 1
        %p407 = scmp.lt.s32.totalorder %s404, 3
        %s408 = scalar_select %p407, %s404, 3
        %s409 = smul.addr %s406, 4
        %s410 = sadd.s32 %s408, %s409
        %s411 = smul.addr %s410, 2
        %s412 = scalar_lea.vmem %s3, %s411
      $region56: #{decoder_forward.28} parent=51 // pred_fallthru
        _
    $region52: #{decoder_forward.28} parent=5 // pred_fallthru
      _
  $region6: #{decoder_forward.28} parent=0 // loop_footer
    %s13 = sadd.s32 1, %s9
  $region7: #{decoder_forward.28} parent=0 // loop_footer_branch
    %8 = sbr.rel target = $region3
  $region8: #{decoder_forward.28} parent=0 // loop_exit
    _

// kernel: decoder_forward.23
$region0: #{decoder_forward.23}
  #allocation0 [shape = 'u32[]', space=smem, size = 0x4, offset = 0x4, fixed_abs, tag = 'smem constant byte address 0x4 - core index']
  #allocation1 [shape = 'u32[144,128]{1,0:T(1,128)}', space=vmem, size = 0x12000, scoped, tag = 'internal scratch']
  %s0 = inlined_call_operand.vmem [shape: f32[2,8], index: 0, kind: input, shape index: {}]
  %s1 = inlined_call_operand.vmem [shape: f32[8,16], index: 1, kind: input, shape index: {}]
  %s2 = inlined_call_operand.vmem [shape: f32[1,16], index: 2, kind: input, shape index: {}]
  %s3 = inlined_call_operand.vmem [shape: f32[16,64], index: 3, kind: input, shape index: {}]
  %s4 = inlined_call_operand.vmem [shape: f32[1,64], index: 4, kind: input, shape index: {}]
  %s5 = inlined_call_operand.vmem [shape: f32[2,64], index: 5, kind: output, shape index: {}]
  %s6 = sld [smem:[#allocation0]]
  $region30: #{decoder_forward.23} parent=0
    _
  %s8 = ssub.s32 1, %s6
  %s9 = scalar_select 0, %s8, %s6
  // Predicated region
  $region2: #{decoder_forward.23} parent=0 // pred_check
    _
  $region3: #{decoder_forward.23} parent=0 // pred_check_branch
    %11 = sbr.rel (0) target = $region5
  $region4: #{decoder_forward.23} parent=0 // pred_region
    _
  $region5: #{decoder_forward.23} parent=0 // pred_fallthru
    _
  // Predicated region
  $region6: #{decoder_forward.23} parent=0 // pred_check
    _
  $region7: #{decoder_forward.23} parent=0 // pred_check_branch
    %13 = sbr.rel (0) target = $region9
  $region8: #{decoder_forward.23} parent=0 // pred_region
    _
  $region9: #{decoder_forward.23} parent=0 // pred_fallthru
    _
  // Predicated region
  $region10: #{decoder_forward.23} parent=0 // pred_check
    _
  $region11: #{decoder_forward.23} parent=0 // pred_check_branch
    %15 = sbr.rel (0) target = $region13
  $region12: #{decoder_forward.23} parent=0 // pred_region
    _
  $region13: #{decoder_forward.23} parent=0 // pred_fallthru
    _
  // Predicated region
  $region14: #{decoder_forward.23} parent=0 // pred_check
    _
  $region15: #{decoder_forward.23} parent=0 // pred_check_branch
    %17 = sbr.rel (0) target = $region17
  $region16: #{decoder_forward.23} parent=0 // pred_region
    _
  $region17: #{decoder_forward.23} parent=0 // pred_fallthru
    _
  // Predicated region
  $region18: #{decoder_forward.23} parent=0 // pred_check
    _
  $region19: #{decoder_forward.23} parent=0 // pred_check_branch
    %19 = sbr.rel (0) target = $region21
  $region20: #{decoder_forward.23} parent=0 // pred_region
    _
  $region21: #{decoder_forward.23} parent=0 // pred_fallthru
    _
  %v20 = vld [vmem:[%s0] sm:$0x3]
  %v21 = vld [vmem:[%s1] sm:$0xff]
  %v22 = vld [vmem:[%s2] sm:$0x1]
  %v24 = vlaneseq
  %v25 = vshrl.u32 %v24, 7
  %v26 = vsub.s32 0, %v25
  %v27 = vrot.slane %v22, %v26
  %vm29 = vcmask 64512
  %v31 = vsel %vm29, %v20, 0
  %33 = vmatprep.subr.mxu0 0.0
  %34 = vmatpush1.msra.mxu0 0.0
  %35 = vmatprep.subr.mxu0 0.0
  %36 = vmatpush1.msra.mxu0 0.0
  %37 = vmatprep.subr.mxu0 0.0
  %38 = vmatpush1.msra.mxu0 0.0
  %39 = vmatprep.subr.mxu0 0.0
  %40 = vmatpush1.msra.mxu0 0.0
  %41 = vmatprep.subr.mxu0 0.0
  %42 = vmatpush1.msra.mxu0 0.0
  %43 = vmatprep.subr.mxu0 0.0
  %44 = vmatpush1.msra.mxu0 0.0
  %45 = vmatprep.subr.mxu0 0.0
  %46 = vmatpush1.msra.mxu0 0.0
  %47 = vmatprep.subr.mxu0 0.0
  %48 = vmatpush1.msra.mxu0 0.0
  %49 = vmatprep.subr.mxu0 0.0
  %50 = vmatpush1.msra.mxu0 0.0
  %51 = vmatprep.subr.mxu0 0.0
  %52 = vmatpush1.msra.mxu0 0.0
  %53 = vmatprep.subr.mxu0 0.0
  %54 = vmatpush1.msra.mxu0 0.0
  %55 = vmatprep.subr.mxu0 0.0
  %56 = vmatpush1.msra.mxu0 0.0
  %57 = vmatprep.subr.mxu0 0.0
  %58 = vmatpush1.msra.mxu0 0.0
  %59 = vmatprep.subr.mxu0 0.0
  %60 = vmatpush1.msra.mxu0 0.0
  %61 = vmatprep.subr.mxu0 0.0
  %62 = vmatpush1.msra.mxu0 0.0
  %63 = vmatprep.subr.mxu0 0.0
  %64 = vmatpush1.msra.mxu0 %v21
  %65 = vmatprep.subr.mxu0 0.0
  %66 = vmatpush2.msra.mxu0 0.0
  %67 = vmatprep.subr.mxu0 0.0
  %68 = vmatpush2.msra.mxu0 0.0
  %69 = vmatprep.subr.mxu0 0.0
  %70 = vmatpush2.msra.mxu0 0.0
  %71 = vmatprep.subr.mxu0 0.0
  %72 = vmatpush2.msra.mxu0 0.0
  %73 = vmatprep.subr.mxu0 0.0
  %74 = vmatpush2.msra.mxu0 0.0
  %75 = vmatprep.subr.mxu0 0.0
  %76 = vmatpush2.msra.mxu0 0.0
  %77 = vmatprep.subr.mxu0 0.0
  %78 = vmatpush2.msra.mxu0 0.0
  %79 = vmatprep.subr.mxu0 0.0
  %80 = vmatpush2.msra.mxu0 0.0
  %81 = vmatprep.subr.mxu0 0.0
  %82 = vmatpush2.msra.mxu0 0.0
  %83 = vmatprep.subr.mxu0 0.0
  %84 = vmatpush2.msra.mxu0 0.0
  %85 = vmatprep.subr.mxu0 0.0
  %86 = vmatpush2.msra.mxu0 0.0
  %87 = vmatprep.subr.mxu0 0.0
  %88 = vmatpush2.msra.mxu0 0.0
  %89 = vmatprep.subr.mxu0 0.0
  %90 = vmatpush2.msra.mxu0 0.0
  %91 = vmatprep.subr.mxu0 0.0
  %92 = vmatpush2.msra.mxu0 0.0
  %93 = vmatprep.subr.mxu0 0.0
  %94 = vmatpush2.msra.mxu0 0.0
  %95 = vmatprep.subr.mxu0 0.0
  %96 = vmatpush2.msra.mxu0 0.0
  %97 = vmatprep.mubr.f32.mxu0 0.0
  %98 = vmatmul.mubr.f32.gmra.mxu0 %v31
  %v99 = vpop.f32.mrf.mxu0
  %v100 = vadd.f32 %v27, %v99
  %v101 = vpop.f32.mrf.mxu0
  %102 = vdwg.mxu0
  %v103 = vmax.f32 %v100, 0.0
  %v104 = vld [vmem:[%s3] sm:$0xff]
  %v105 = vld [vmem:[%s3 + $0x8] sm:$0xff]
  %v106 = vld [vmem:[%s4] sm:$0x1]
  %v108 = vlaneseq
  %v109 = vshrl.u32 %v108, 7
  %v110 = vsub.s32 0, %v109
  %v111 = vrot.slane %v106, %v110
  %vm113 = vcmask 130048
  %v115 = vsel %vm113, %v103, 0
  %117 = vmatprep.subr.mxu0 0.0
  %118 = vmatpush1.msra.mxu0 0.0
  %119 = vmatprep.subr.mxu0 0.0
  %120 = vmatpush1.msra.mxu0 0.0
  %121 = vmatprep.subr.mxu0 0.0
  %122 = vmatpush1.msra.mxu0 0.0
  %123 = vmatprep.subr.mxu0 0.0
  %124 = vmatpush1.msra.mxu0 0.0
  %125 = vmatprep.subr.mxu0 0.0
  %126 = vmatpush1.msra.mxu0 0.0
  %127 = vmatprep.subr.mxu0 0.0
  %128 = vmatpush1.msra.mxu0 0.0
  %129 = vmatprep.subr.mxu0 0.0
  %130 = vmatpush1.msra.mxu0 0.0
  %131 = vmatprep.subr.mxu0 0.0
  %132 = vmatpush1.msra.mxu0 0.0
  %133 = vmatprep.subr.mxu0 0.0
  %134 = vmatpush1.msra.mxu0 0.0
  %135 = vmatprep.subr.mxu0 0.0
  %136 = vmatpush1.msra.mxu0 0.0
  %137 = vmatprep.subr.mxu0 0.0
  %138 = vmatpush1.msra.mxu0 0.0
  %139 = vmatprep.subr.mxu0 0.0
  %140 = vmatpush1.msra.mxu0 0.0
  %141 = vmatprep.subr.mxu0 0.0
  %142 = vmatpush1.msra.mxu0 0.0
  %143 = vmatprep.subr.mxu0 0.0
  %144 = vmatpush1.msra.mxu0 0.0
  %145 = vmatprep.subr.mxu0 0.0
  %146 = vmatpush1.msra.mxu0 %v105
  %147 = vmatprep.subr.mxu0 0.0
  %148 = vmatpush1.msra.mxu0 %v104
  %149 = vmatprep.subr.mxu0 0.0
  %150 = vmatpush2.msra.mxu0 0.0
  %151 = vmatprep.subr.mxu0 0.0
  %152 = vmatpush2.msra.mxu0 0.0
  %153 = vmatprep.subr.mxu0 0.0
  %154 = vmatpush2.msra.mxu0 0.0
  %155 = vmatprep.subr.mxu0 0.0
  %156 = vmatpush2.msra.mxu0 0.0
  %157 = vmatprep.subr.mxu0 0.0
  %158 = vmatpush2.msra.mxu0 0.0
  %159 = vmatprep.subr.mxu0 0.0
  %160 = vmatpush2.msra.mxu0 0.0
  %161 = vmatprep.subr.mxu0 0.0
  %162 = vmatpush2.msra.mxu0 0.0
  %163 = vmatprep.subr.mxu0 0.0
  %164 = vmatpush2.msra.mxu0 0.0
  %165 = vmatprep.subr.mxu0 0.0
  %166 = vmatpush2.msra.mxu0 0.0
  %167 = vmatprep.subr.mxu0 0.0
  %168 = vmatpush2.msra.mxu0 0.0
  %169 = vmatprep.subr.mxu0 0.0
  %170 = vmatpush2.msra.mxu0 0.0
  %171 = vmatprep.subr.mxu0 0.0
  %172 = vmatpush2.msra.mxu0 0.0
  %173 = vmatprep.subr.mxu0 0.0
  %174 = vmatpush2.msra.mxu0 0.0
  %175 = vmatprep.subr.mxu0 0.0
  %176 = vmatpush2.msra.mxu0 0.0
  %177 = vmatprep.subr.mxu0 0.0
  %178 = vmatpush2.msra.mxu0 0.0
  %179 = vmatprep.subr.mxu0 0.0
  %180 = vmatpush2.msra.mxu0 0.0
  %181 = vmatprep.mubr.f32.mxu0 0.0
  %182 = vmatmul.mubr.f32.gmra.mxu0 %v115
  %v183 = vpop.f32.mrf.mxu0
  %v184 = vadd.f32 %v111, %v183
  %v185 = vpop.f32.mrf.mxu0
  %186 = vdwg.mxu0
  %vm187 = vcmask 517120
  %188 = vst.msk [vmem:[%s5] sm:$0x3] %vm187, %v184
  // Predicated region
  $region22: #{decoder_forward.23} parent=0 // pred_check
    _
  $region23: #{decoder_forward.23} parent=0 // pred_check_branch
    %190 = sbr.rel (0) target = $region25
  $region24: #{decoder_forward.23} parent=0 // pred_region
    _
  $region25: #{decoder_forward.23} parent=0 // pred_fallthru
    _
  // Predicated region
  $region26: #{decoder_forward.23} parent=0 // pred_check
    _
  $region27: #{decoder_forward.23} parent=0 // pred_check_branch
    %192 = sbr.rel (0) target = $region29
  $region28: #{decoder_forward.23} parent=0 // pred_region
    _
  $region29: #{decoder_forward.23} parent=0 // pred_fallthru
    _

// kernel: decoder_forward.24
$region0: #{decoder_forward.24}
  #allocation0 [shape = 'u32[]', space=smem, size = 0x4, offset = 0x4, fixed_abs, tag = 'smem constant byte address 0x4 - core index']
  #allocation1 [shape = 'u32[144,128]{1,0:T(1,128)}', space=vmem, size = 0x12000, scoped, tag = 'internal scratch']
  #allocation2 [shape = 'f32[32,128]{1,0:T(8,128)}', space=vmem, size = 0x4000, scoped, tag = 'scratch operand']
  %s0 = inlined_call_operand.vmem [shape: bf16[32,384], index: 0, kind: input, shape index: {}]
  %s1 = inlined_call_operand.vmem [shape: bf16[384,128], index: 1, kind: input, shape index: {}]
  %s2 = inlined_call_operand.vmem [shape: f32[1,128], index: 2, kind: input, shape index: {}]
  %s3 = inlined_call_operand.vmem [shape: bf16[32,128], index: 3, kind: output, shape index: {}]
  %s4 = sld [smem:[#allocation0]]
  $region30: #{decoder_forward.24} parent=0
    _
  %s6 = ssub.s32 1, %s4
  %s7 = scalar_select 0, %s6, %s4
  // Predicated region
  $region2: #{decoder_forward.24} parent=0 // pred_check
    _
  $region3: #{decoder_forward.24} parent=0 // pred_check_branch
    %9 = sbr.rel (0) target = $region5
  $region4: #{decoder_forward.24} parent=0 // pred_region
    _
  $region5: #{decoder_forward.24} parent=0 // pred_fallthru
    _
  // Predicated region
  $region6: #{decoder_forward.24} parent=0 // pred_check
    _
  $region7: #{decoder_forward.24} parent=0 // pred_check_branch
    %11 = sbr.rel (0) target = $region9
  $region8: #{decoder_forward.24} parent=0 // pred_region
    _
  $region9: #{decoder_forward.24} parent=0 // pred_fallthru
    _
  // Predicated region
  $region10: #{decoder_forward.24} parent=0 // pred_check
    _
  $region11: #{decoder_forward.24} parent=0 // pred_check_branch
    %13 = sbr.rel (0) target = $region13
  $region12: #{decoder_forward.24} parent=0 // pred_region
    _
  $region13: #{decoder_forward.24} parent=0 // pred_fallthru
    _
  %p15 = scmp.eq.s32.totalorder 0, 0
  // Predicated region
  $region14: #{decoder_forward.24} parent=0 // pred_check
    %p16 = pneg %p15
  $region15: #{decoder_forward.24} parent=0 // pred_check_branch
    %18 = sbr.rel (%p16) target = $region17
  $region16: #{decoder_forward.24} parent=0 // pred_region
    %19 = vst [vmem:[#allocation2] sm:$0xff] 0.0
    %20 = vst [vmem:[#allocation2 + $0x8] sm:$0xff] 0.0
    %21 = vst [vmem:[#allocation2 + $0x10] sm:$0xff] 0.0
    %22 = vst [vmem:[#allocation2 + $0x18] sm:$0xff] 0.0
  $region17: #{decoder_forward.24} parent=0 // pred_fallthru
    _
  %v23 = vld [vmem:[#allocation2] sm:$0xff]
  %v24 = vld [vmem:[#allocation2 + $0x8] sm:$0xff]
  %v25 = vld [vmem:[#allocation2 + $0x10] sm:$0xff]
  %v26 = vld [vmem:[#allocation2 + $0x18] sm:$0xff]
  %v27 = vld [vmem:[%s0] sm:$0xff]
  %v28 = vld [vmem:[%s0 + $0x8] sm:$0xf]
  %v29 = vld [vmem:[%s0 + $0xc] sm:$0xff]
  %v30 = vld [vmem:[%s0 + $0x14] sm:$0xf]
  %v31 = vld [vmem:[%s0 + $0x18] sm:$0xff]
  %v32 = vld [vmem:[%s0 + $0x20] sm:$0xf]
  %v33 = vld [vmem:[%s0 + $0x24] sm:$0xff]
  %v34 = vld [vmem:[%s0 + $0x2c] sm:$0xf]
  %v35 = vld [vmem:[%s1] sm:$0xf]
  %v36 = vld [vmem:[%s1 + $0x4] sm:$0xf]
  %v37 = vld [vmem:[%s1 + $0x8] sm:$0xf]
  %v38 = vld [vmem:[%s1 + $0xc] sm:$0xf]
  %v39 = vld [vmem:[%s1 + $0x10] sm:$0xf]
  %v40 = vld [vmem:[%s1 + $0x14] sm:$0xf]
  %v41 = vld [vmem:[%s1 + $0x18] sm:$0xf]
  %v42 = vld [vmem:[%s1 + $0x1c] sm:$0xf]
  %v43 = vld [vmem:[%s1 + $0x20] sm:$0xf]
  %v44 = vld [vmem:[%s1 + $0x24] sm:$0xf]
  %v45 = vld [vmem:[%s1 + $0x28] sm:$0xf]
  %v46 = vld [vmem:[%s1 + $0x2c] sm:$0xf]
  %v47 = vld [vmem:[%s1 + $0x30] sm:$0xf]
  %v48 = vld [vmem:[%s1 + $0x34] sm:$0xf]
  %v49 = vld [vmem:[%s1 + $0x38] sm:$0xf]
  %v50 = vld [vmem:[%s1 + $0x3c] sm:$0xf]
  %v51 = vld [vmem:[%s1 + $0x40] sm:$0xf]
  %v52 = vld [vmem:[%s1 + $0x44] sm:$0xf]
  %v53 = vld [vmem:[%s1 + $0x48] sm:$0xf]
  %v54 = vld [vmem:[%s1 + $0x4c] sm:$0xf]
  %v55 = vld [vmem:[%s1 + $0x50] sm:$0xf]
  %v56 = vld [vmem:[%s1 + $0x54] sm:$0xf]
  %v57 = vld [vmem:[%s1 + $0x58] sm:$0xf]
  %v58 = vld [vmem:[%s1 + $0x5c] sm:$0xf]
  %v59 = vld [vmem:[%s1 + $0x60] sm:$0xf]
  %v60 = vld [vmem:[%s1 + $0x64] sm:$0xf]
  %v61 = vld [vmem:[%s1 + $0x68] sm:$0xf]
  %v62 = vld [vmem:[%s1 + $0x6c] sm:$0xf]
  %v63 = vld [vmem:[%s1 + $0x70] sm:$0xf]
  %v64 = vld [vmem:[%s1 + $0x74] sm:$0xf]
  %v65 = vld [vmem:[%s1 + $0x78] sm:$0xf]
  %v66 = vld [vmem:[%s1 + $0x7c] sm:$0xf]
  %v67 = vld [vmem:[%s1 + $0x80] sm:$0xf]
  %v68 = vld [vmem:[%s1 + $0x84] sm:$0xf]
  %v69 = vld [vmem:[%s1 + $0x88] sm:$0xf]
  %v70 = vld [vmem:[%s1 + $0x8c] sm:$0xf]
  %v71 = vld [vmem:[%s1 + $0x90] sm:$0xf]
  %v72 = vld [vmem:[%s1 + $0x94] sm:$0xf]
  %v73 = vld [vmem:[%s1 + $0x98] sm:$0xf]
  %v74 = vld [vmem:[%s1 + $0x9c] sm:$0xf]
  %v75 = vld [vmem:[%s1 + $0xa0] sm:$0xf]
  %v76 = vld [vmem:[%s1 + $0xa4] sm:$0xf]
  %v77 = vld [vmem:[%s1 + $0xa8] sm:$0xf]
  %v78 = vld [vmem:[%s1 + $0xac] sm:$0xf]
  %v79 = vld [vmem:[%s1 + $0xb0] sm:$0xf]
  %v80 = vld [vmem:[%s1 + $0xb4] sm:$0xf]
  %v81 = vld [vmem:[%s1 + $0xb8] sm:$0xf]
  %v82 = vld [vmem:[%s1 + $0xbc] sm:$0xf]
  %v91 = vunpack.c.l.b16 %v27
  %v92 = vunpack.c.h.b16 %v27
  %v93 = vunpack.c.l.b16 %v28
  %v94 = vunpack.c.l.b16 %v29
  %v95 = vunpack.c.h.b16 %v29
  %v96 = vunpack.c.l.b16 %v30
  %v97 = vunpack.c.l.b16 %v31
  %v98 = vunpack.c.h.b16 %v31
  %v99 = vunpack.c.l.b16 %v32
  %v100 = vunpack.c.l.b16 %v33
  %v101 = vunpack.c.h.b16 %v33
  %v102 = vunpack.c.l.b16 %v34
  %v103 = vpack.c.b16 %v94, %v91
  %v104 = vpack.c.b16 %v95, %v92
  %v105 = vpack.c.b16 %v96, %v93
  %v106 = vpack.c.b16 %v100, %v97
  %v107 = vpack.c.b16 %v101, %v98
  %v108 = vpack.c.b16 %v102, %v99
  %v163 = vunpack.c.l.b16 %v35
  %v164 = vunpack.c.l.b16 %v36
  %v165 = vunpack.c.l.b16 %v37
  %v166 = vunpack.c.l.b16 %v38
  %v167 = vunpack.c.l.b16 %v39
  %v168 = vunpack.c.l.b16 %v40
  %v169 = vunpack.c.l.b16 %v41
  %v170 = vunpack.c.l.b16 %v42
  %v171 = vunpack.c.l.b16 %v43
  %v172 = vunpack.c.l.b16 %v44
  %v173 = vunpack.c.l.b16 %v45
  %v174 = vunpack.c.l.b16 %v46
  %v175 = vunpack.c.l.b16 %v47
  %v176 = vunpack.c.l.b16 %v48
  %v177 = vunpack.c.l.b16 %v49
  %v178 = vunpack.c.l.b16 %v50
  %v179 = vunpack.c.l.b16 %v51
  %v180 = vunpack.c.l.b16 %v52
  %v181 = vunpack.c.l.b16 %v53
  %v182 = vunpack.c.l.b16 %v54
  %v183 = vunpack.c.l.b16 %v55
  %v184 = vunpack.c.l.b16 %v56
  %v185 = vunpack.c.l.b16 %v57
  %v186 = vunpack.c.l.b16 %v58
  %v187 = vunpack.c.l.b16 %v59
  %v188 = vunpack.c.l.b16 %v60
  %v189 = vunpack.c.l.b16 %v61
  %v190 = vunpack.c.l.b16 %v62
  %v191 = vunpack.c.l.b16 %v63
  %v192 = vunpack.c.l.b16 %v64
  %v193 = vunpack.c.l.b16 %v65
  %v194 = vunpack.c.l.b16 %v66
  %v195 = vunpack.c.l.b16 %v67
  %v196 = vunpack.c.l.b16 %v68
  %v197 = vunpack.c.l.b16 %v69
  %v198 = vunpack.c.l.b16 %v70
  %v199 = vunpack.c.l.b16 %v71
  %v200 = vunpack.c.l.b16 %v72
  %v201 = vunpack.c.l.b16 %v73
  %v202 = vunpack.c.l.b16 %v74
  %v203 = vunpack.c.l.b16 %v75
  %v204 = vunpack.c.l.b16 %v76
  %v205 = vunpack.c.l.b16 %v77
  %v206 = vunpack.c.l.b16 %v78
  %v207 = vunpack.c.l.b16 %v79
  %v208 = vunpack.c.l.b16 %v80
  %v209 = vunpack.c.l.b16 %v81
  %v210 = vunpack.c.l.b16 %v82
  %v211 = vpack.c.b16 %v164, %v163
  %v212 = vpack.c.b16 %v166, %v165
  %v213 = vpack.c.b16 %v168, %v167
  %v214 = vpack.c.b16 %v170, %v169
  %v215 = vpack.c.b16 %v172, %v171
  %v216 = vpack.c.b16 %v174, %v173
  %v217 = vpack.c.b16 %v176, %v175
  %v218 = vpack.c.b16 %v178, %v177
  %v219 = vpack.c.b16 %v180, %v179
  %v220 = vpack.c.b16 %v182, %v181
  %v221 = vpack.c.b16 %v184, %v183
  %v222 = vpack.c.b16 %v186, %v185
  %v223 = vpack.c.b16 %v188, %v187
  %v224 = vpack.c.b16 %v190, %v189
  %v225 = vpack.c.b16 %v192, %v191
  %v226 = vpack.c.b16 %v194, %v193
  %v227 = vpack.c.b16 %v196, %v195
  %v228 = vpack.c.b16 %v198, %v197
  %v229 = vpack.c.b16 %v200, %v199
  %v230 = vpack.c.b16 %v202, %v201
  %v231 = vpack.c.b16 %v204, %v203
  %v232 = vpack.c.b16 %v206, %v205
  %v233 = vpack.c.b16 %v208, %v207
  %v234 = vpack.c.b16 %v210, %v209
  %259 = vmatprep.subr.bf16.mxu0 0
  %260 = vmatpush1.bf16.msra.mxu0 %v218
  %261 = vmatprep.subr.bf16.mxu0 0
  %262 = vmatpush1.bf16.msra.mxu0 %v217
  %263 = vmatprep.subr.bf16.mxu0 0
  %264 = vmatpush1.bf16.msra.mxu0 %v216
  %265 = vmatprep.subr.bf16.mxu0 0
  %266 = vmatpush1.bf16.msra.mxu0 %v215
  %267 = vmatprep.subr.bf16.mxu0 0
  %268 = vmatpush1.bf16.msra.mxu0 %v214
  %269 = vmatprep.subr.bf16.mxu0 0
  %270 = vmatpush1.bf16.msra.mxu0 %v213
  %271 = vmatprep.subr.bf16.mxu0 0
  %272 = vmatpush1.bf16.msra.mxu0 %v212
  %273 = vmatprep.subr.bf16.mxu0 0
  %274 = vmatpush1.bf16.msra.mxu0 %v211
  %275 = vmatprep.subr.bf16.mxu0 0
  %276 = vmatpush2.bf16.msra.mxu0 %v226
  %277 = vmatprep.subr.bf16.mxu0 0
  %278 = vmatpush2.bf16.msra.mxu0 %v225
  %279 = vmatprep.subr.bf16.mxu0 0
  %280 = vmatpush2.bf16.msra.mxu0 %v224
  %281 = vmatprep.subr.bf16.mxu0 0
  %282 = vmatpush2.bf16.msra.mxu0 %v223
  %283 = vmatprep.subr.bf16.mxu0 0
  %284 = vmatpush2.bf16.msra.mxu0 %v222
  %285 = vmatprep.subr.bf16.mxu0 0
  %286 = vmatpush2.bf16.msra.mxu0 %v221
  %287 = vmatprep.subr.bf16.mxu0 0
  %288 = vmatpush2.bf16.msra.mxu0 %v220
  %289 = vmatprep.subr.bf16.mxu0 0
  %290 = vmatpush2.bf16.msra.mxu0 %v219
  %291 = vmatprep.mubr.bf16.mxu0 %v104
  %292 = vmatmul.mubr.bf16.gmra.mxu0 %v103
  %v293 = vpop.f32.mrf.mxu0
  %v294 = vadd.f32 0.0, %v293
  %v295 = vpop.f32.mrf.mxu0
  %v296 = vpop.f32.mrf.mxu0
  %v297 = vadd.f32 0.0, %v296
  %v298 = vpop.f32.mrf.mxu0
  %299 = vmatprep.mubr.bf16.mxu0 %v107
  %300 = vmatmul.mubr.bf16.gmra.mxu0 %v106
  %v301 = vpop.f32.mrf.mxu0
  %v302 = vadd.f32 0.0, %v301
  %v303 = vpop.f32.mrf.mxu0
  %v304 = vpop.f32.mrf.mxu0
  %v305 = vadd.f32 0.0, %v304
  %v306 = vpop.f32.mrf.mxu0
  %307 = vdwg.mxu0
  %308 = vmatprep.subr.bf16.mxu0 0
  %309 = vmatpush1.bf16.msra.mxu0 %v234
  %310 = vmatprep.subr.bf16.mxu0 0
  %311 = vmatpush1.bf16.msra.mxu0 %v233
  %312 = vmatprep.subr.bf16.mxu0 0
  %313 = vmatpush1.bf16.msra.mxu0 %v232
  %314 = vmatprep.subr.bf16.mxu0 0
  %315 = vmatpush1.bf16.msra.mxu0 %v231
  %316 = vmatprep.subr.bf16.mxu0 0
  %317 = vmatpush1.bf16.msra.mxu0 %v230
  %318 = vmatprep.subr.bf16.mxu0 0
  %319 = vmatpush1.bf16.msra.mxu0 %v229
  %320 = vmatprep.subr.bf16.mxu0 0
  %321 = vmatpush1.bf16.msra.mxu0 %v228
  %322 = vmatprep.subr.bf16.mxu0 0
  %323 = vmatpush1.bf16.msra.mxu0 %v227
  %324 = vmatprep.subr.bf16.mxu0 0
  %325 = vmatpush2.bf16.msra.mxu0 0
  %326 = vmatprep.subr.bf16.mxu0 0
  %327 = vmatpush2.bf16.msra.mxu0 0
  %328 = vmatprep.subr.bf16.mxu0 0
  %329 = vmatpush2.bf16.msra.mxu0 0
  %330 = vmatprep.subr.bf16.mxu0 0
  %331 = vmatpush2.bf16.msra.mxu0 0
  %332 = vmatprep.subr.bf16.mxu0 0
  %333 = vmatpush2.bf16.msra.mxu0 0
  %334 = vmatprep.subr.bf16.mxu0 0
  %335 = vmatpush2.bf16.msra.mxu0 0
  %336 = vmatprep.subr.bf16.mxu0 0
  %337 = vmatpush2.bf16.msra.mxu0 0
  %338 = vmatprep.subr.bf16.mxu0 0
  %339 = vmatpush2.bf16.msra.mxu0 0
  %340 = vmatprep.mubr.bf16.mxu0 0
  %341 = vmatmul.mubr.bf16.gmra.mxu0 %v105
  %v342 = vpop.f32.mrf.mxu0
  %v343 = vadd.f32 %v294, %v342
  %v344 = vpop.f32.mrf.mxu0
  %v345 = vpop.f32.mrf.mxu0
  %v346 = vadd.f32 %v297, %v345
  %v347 = vpop.f32.mrf.mxu0
  %348 = vmatprep.mubr.bf16.mxu0 0
  %349 = vmatmul.mubr.bf16.gmra.mxu0 %v108
  %v350 = vpop.f32.mrf.mxu0
  %v351 = vadd.f32 %v302, %v350
  %v352 = vpop.f32.mrf.mxu0
  %v353 = vpop.f32.mrf.mxu0
  %v354 = vadd.f32 %v305, %v353
  %v355 = vpop.f32.mrf.mxu0
  %356 = vdwg.mxu0
  %v357 = vadd.f32 %v23, %v343
  %v358 = vadd.f32 %v24, %v346
  %v359 = vadd.f32 %v25, %v351
  %v360 = vadd.f32 %v26, %v354
  %361 = vst [vmem:[#allocation2] sm:$0xff] %v357
  %362 = vst [vmem:[#allocation2 + $0x8] sm:$0xff] %v358
  %363 = vst [vmem:[#allocation2 + $0x10] sm:$0xff] %v359
  %364 = vst [vmem:[#allocation2 + $0x18] sm:$0xff] %v360
  // Predicated region
  $region18: #{decoder_forward.24} parent=0 // pred_check
    %p365 = pneg %p15
  $region19: #{decoder_forward.24} parent=0 // pred_check_branch
    %367 = sbr.rel (%p365) target = $region21
  $region20: #{decoder_forward.24} parent=0 // pred_region
    %v368 = vld [vmem:[#allocation2] sm:$0xff]
    %v369 = vld [vmem:[#allocation2 + $0x8] sm:$0xff]
    %v370 = vld [vmem:[#allocation2 + $0x10] sm:$0xff]
    %v371 = vld [vmem:[#allocation2 + $0x18] sm:$0xff]
    %v372 = vld [vmem:[%s2] sm:$0x1]
    %v374 = vlaneseq
    %v375 = vshrl.u32 %v374, 7
    %v376 = vsub.s32 0, %v375
    %v377 = vrot.slane %v372, %v376
    %v379 = vadd.f32 %v368, %v377
    %v380 = vadd.f32 %v369, %v377
    %v381 = vadd.f32 %v370, %v377
    %v382 = vadd.f32 %v371, %v377
    %v383 = vpack.c.bf16 %v380, %v379
    %v384 = vpack.c.bf16 %v382, %v381
    %v387 = vunpack.c.l.b16 %v383
    %v388 = vunpack.c.h.b16 %v383
    %v389 = vunpack.c.l.b16 %v384
    %v390 = vunpack.c.h.b16 %v384
    %v391 = vpack.c.b16 %v387, %v387
    %v392 = vpack.c.b16 %v388, %v388
    %v393 = vpack.c.b16 %v389, %v389
    %v394 = vpack.c.b16 %v390, %v390
    %399 = vst [vmem:[%s3] sm:$0xf] %v391
    %400 = vst [vmem:[%s3 + $0x4] sm:$0xf] %v392
    %401 = vst [vmem:[%s3 + $0x8] sm:$0xf] %v393
    %402 = vst [vmem:[%s3 + $0xc] sm:$0xf] %v394
  $region21: #{decoder_forward.24} parent=0 // pred_fallthru
    _
  // Predicated region
  $region22: #{decoder_forward.24} parent=0 // pred_check
    _
  $region23: #{decoder_forward.24} parent=0 // pred_check_branch
    %404 = sbr.rel (0) target = $region25
  $region24: #{decoder_forward.24} parent=0 // pred_region
    _
  $region25: #{decoder_forward.24} parent=0 // pred_fallthru
    _
  // Predicated region
  $region26: #{decoder_forward.24} parent=0 // pred_check
    _
  $region27: #{decoder_forward.24} parent=0 // pred_check_branch
    %406 = sbr.rel (0) target = $region29
  $region28: #{decoder_forward.24} parent=0 // pred_region
    _
  $region29: #{decoder_forward.24} parent=0 // pred_fallthru
    _

// kernel: decoder_forward.29
$region0: #{decoder_forward.29}
  #allocation0 [shape = 'u32[]', space=smem, size = 0x4, offset = 0x4, fixed_abs, tag = 'smem constant byte address 0x4 - core index']
  #allocation1 [shape = 'u32[144,128]{1,0:T(1,128)}', space=vmem, size = 0x12000, scoped, tag = 'internal scratch']
  #allocation2 [shape = 'f32[32,128]{1,0:T(8,128)}', space=vmem, size = 0x4000, scoped, tag = 'scratch operand']
  %s0 = inlined_call_operand.vmem [shape: bf16[32,128], index: 0, kind: input, shape index: {}]
  %s1 = inlined_call_operand.vmem [shape: bf16[128,128], index: 1, kind: input, shape index: {}]
  %s2 = inlined_call_operand.vmem [shape: f32[1,128], index: 2, kind: input, shape index: {}]
  %s3 = inlined_call_operand.vmem [shape: bf16[32,128], index: 3, kind: output, shape index: {}]
  %s4 = sld [smem:[#allocation0]]
  $region30: #{decoder_forward.29} parent=0
    _
  %s6 = ssub.s32 1, %s4
  %s7 = scalar_select 0, %s6, %s4
  // Predicated region
  $region2: #{decoder_forward.29} parent=0 // pred_check
    _
  $region3: #{decoder_forward.29} parent=0 // pred_check_branch
    %9 = sbr.rel (0) target = $region5
  $region4: #{decoder_forward.29} parent=0 // pred_region
    _
  $region5: #{decoder_forward.29} parent=0 // pred_fallthru
    _
  // Predicated region
  $region6: #{decoder_forward.29} parent=0 // pred_check
    _
  $region7: #{decoder_forward.29} parent=0 // pred_check_branch
    %11 = sbr.rel (0) target = $region9
  $region8: #{decoder_forward.29} parent=0 // pred_region
    _
  $region9: #{decoder_forward.29} parent=0 // pred_fallthru
    _
  // Predicated region
  $region10: #{decoder_forward.29} parent=0 // pred_check
    _
  $region11: #{decoder_forward.29} parent=0 // pred_check_branch
    %13 = sbr.rel (0) target = $region13
  $region12: #{decoder_forward.29} parent=0 // pred_region
    _
  $region13: #{decoder_forward.29} parent=0 // pred_fallthru
    _
  %p15 = scmp.eq.s32.totalorder 0, 0
  // Predicated region
  $region14: #{decoder_forward.29} parent=0 // pred_check
    %p16 = pneg %p15
  $region15: #{decoder_forward.29} parent=0 // pred_check_branch
    %18 = sbr.rel (%p16) target = $region17
  $region16: #{decoder_forward.29} parent=0 // pred_region
    %19 = vst [vmem:[#allocation2] sm:$0xff] 0.0
    %20 = vst [vmem:[#allocation2 + $0x8] sm:$0xff] 0.0
    %21 = vst [vmem:[#allocation2 + $0x10] sm:$0xff] 0.0
    %22 = vst [vmem:[#allocation2 + $0x18] sm:$0xff] 0.0
  $region17: #{decoder_forward.29} parent=0 // pred_fallthru
    _
  %v23 = vld [vmem:[#allocation2] sm:$0xff]
  %v24 = vld [vmem:[#allocation2 + $0x8] sm:$0xff]
  %v25 = vld [vmem:[#allocation2 + $0x10] sm:$0xff]
  %v26 = vld [vmem:[#allocation2 + $0x18] sm:$0xff]
  %v27 = vld [vmem:[%s0] sm:$0xf]
  %v28 = vld [vmem:[%s0 + $0x4] sm:$0xf]
  %v29 = vld [vmem:[%s0 + $0x8] sm:$0xf]
  %v30 = vld [vmem:[%s0 + $0xc] sm:$0xf]
  %v31 = vld [vmem:[%s1] sm:$0xf]
  %v32 = vld [vmem:[%s1 + $0x4] sm:$0xf]
  %v33 = vld [vmem:[%s1 + $0x8] sm:$0xf]
  %v34 = vld [vmem:[%s1 + $0xc] sm:$0xf]
  %v35 = vld [vmem:[%s1 + $0x10] sm:$0xf]
  %v36 = vld [vmem:[%s1 + $0x14] sm:$0xf]
  %v37 = vld [vmem:[%s1 + $0x18] sm:$0xf]
  %v38 = vld [vmem:[%s1 + $0x1c] sm:$0xf]
  %v39 = vld [vmem:[%s1 + $0x20] sm:$0xf]
  %v40 = vld [vmem:[%s1 + $0x24] sm:$0xf]
  %v41 = vld [vmem:[%s1 + $0x28] sm:$0xf]
  %v42 = vld [vmem:[%s1 + $0x2c] sm:$0xf]
  %v43 = vld [vmem:[%s1 + $0x30] sm:$0xf]
  %v44 = vld [vmem:[%s1 + $0x34] sm:$0xf]
  %v45 = vld [vmem:[%s1 + $0x38] sm:$0xf]
  %v46 = vld [vmem:[%s1 + $0x3c] sm:$0xf]
  %v51 = vunpack.c.l.b16 %v27
  %v52 = vunpack.c.l.b16 %v28
  %v53 = vunpack.c.l.b16 %v29
  %v54 = vunpack.c.l.b16 %v30
  %v55 = vpack.c.b16 %v52, %v51
  %v56 = vpack.c.b16 %v54, %v53
  %v75 = vunpack.c.l.b16 %v31
  %v76 = vunpack.c.l.b16 %v32
  %v77 = vunpack.c.l.b16 %v33
  %v78 = vunpack.c.l.b16 %v34
  %v79 = vunpack.c.l.b16 %v35
  %v80 = vunpack.c.l.b16 %v36
  %v81 = vunpack.c.l.b16 %v37
  %v82 = vunpack.c.l.b16 %v38
  %v83 = vunpack.c.l.b16 %v39
  %v84 = vunpack.c.l.b16 %v40
  %v85 = vunpack.c.l.b16 %v41
  %v86 = vunpack.c.l.b16 %v42
  %v87 = vunpack.c.l.b16 %v43
  %v88 = vunpack.c.l.b16 %v44
  %v89 = vunpack.c.l.b16 %v45
  %v90 = vunpack.c.l.b16 %v46
  %v91 = vpack.c.b16 %v76, %v75
  %v92 = vpack.c.b16 %v78, %v77
  %v93 = vpack.c.b16 %v80, %v79
  %v94 = vpack.c.b16 %v82, %v81
  %v95 = vpack.c.b16 %v84, %v83
  %v96 = vpack.c.b16 %v86, %v85
  %v97 = vpack.c.b16 %v88, %v87
  %v98 = vpack.c.b16 %v90, %v89
  %107 = vmatprep.subr.bf16.mxu0 0
  %108 = vmatpush1.bf16.msra.mxu0 %v98
  %109 = vmatprep.subr.bf16.mxu0 0
  %110 = vmatpush1.bf16.msra.mxu0 %v97
  %111 = vmatprep.subr.bf16.mxu0 0
  %112 = vmatpush1.bf16.msra.mxu0 %v96
  %113 = vmatprep.subr.bf16.mxu0 0
  %114 = vmatpush1.bf16.msra.mxu0 %v95
  %115 = vmatprep.subr.bf16.mxu0 0
  %116 = vmatpush1.bf16.msra.mxu0 %v94
  %117 = vmatprep.subr.bf16.mxu0 0
  %118 = vmatpush1.bf16.msra.mxu0 %v93
  %119 = vmatprep.subr.bf16.mxu0 0
  %120 = vmatpush1.bf16.msra.mxu0 %v92
  %121 = vmatprep.subr.bf16.mxu0 0
  %122 = vmatpush1.bf16.msra.mxu0 %v91
  %123 = vmatprep.subr.bf16.mxu0 0
  %124 = vmatpush2.bf16.msra.mxu0 0
  %125 = vmatprep.subr.bf16.mxu0 0
  %126 = vmatpush2.bf16.msra.mxu0 0
  %127 = vmatprep.subr.bf16.mxu0 0
  %128 = vmatpush2.bf16.msra.mxu0 0
  %129 = vmatprep.subr.bf16.mxu0 0
  %130 = vmatpush2.bf16.msra.mxu0 0
  %131 = vmatprep.subr.bf16.mxu0 0
  %132 = vmatpush2.bf16.msra.mxu0 0
  %133 = vmatprep.subr.bf16.mxu0 0
  %134 = vmatpush2.bf16.msra.mxu0 0
  %135 = vmatprep.subr.bf16.mxu0 0
  %136 = vmatpush2.bf16.msra.mxu0 0
  %137 = vmatprep.subr.bf16.mxu0 0
  %138 = vmatpush2.bf16.msra.mxu0 0
  %139 = vmatprep.mubr.bf16.mxu0 0
  %140 = vmatmul.mubr.bf16.gmra.mxu0 %v55
  %v141 = vpop.f32.mrf.mxu0
  %v142 = vadd.f32 0.0, %v141
  %v143 = vpop.f32.mrf.mxu0
  %v144 = vpop.f32.mrf.mxu0
  %v145 = vadd.f32 0.0, %v144
  %v146 = vpop.f32.mrf.mxu0
  %147 = vmatprep.mubr.bf16.mxu0 0
  %148 = vmatmul.mubr.bf16.gmra.mxu0 %v56
  %v149 = vpop.f32.mrf.mxu0
  %v150 = vadd.f32 0.0, %v149
  %v151 = vpop.f32.mrf.mxu0
  %v152 = vpop.f32.mrf.mxu0
  %v153 = vadd.f32 0.0, %v152
  %v154 = vpop.f32.mrf.mxu0
  %155 = vdwg.mxu0
  %v156 = vadd.f32 %v23, %v142
  %v157 = vadd.f32 %v24, %v145
  %v158 = vadd.f32 %v25, %v150
  %v159 = vadd.f32 %v26, %v153
  %160 = vst [vmem:[#allocation2] sm:$0xff] %v156
  %161 = vst [vmem:[#allocation2 + $0x8] sm:$0xff] %v157
  %162 = vst [vmem:[#allocation2 + $0x10] sm:$0xff] %v158
  %163 = vst [vmem:[#allocation2 + $0x18] sm:$0xff] %v159
  // Predicated region
  $region18: #{decoder_forward.29} parent=0 // pred_check
    %p164 = pneg %p15
  $region19: #{decoder_forward.29} parent=0 // pred_check_branch
    %166 = sbr.rel (%p164) target = $region21
  $region20: #{decoder_forward.29} parent=0 // pred_region
    %v167 = vld [vmem:[#allocation2] sm:$0xff]
    %v168 = vld [vmem:[#allocation2 + $0x8] sm:$0xff]
    %v169 = vld [vmem:[#allocation2 + $0x10] sm:$0xff]
    %v170 = vld [vmem:[#allocation2 + $0x18] sm:$0xff]
    %v171 = vld [vmem:[%s2] sm:$0x1]
    %v173 = vlaneseq
    %v174 = vshrl.u32 %v173, 7
    %v175 = vsub.s32 0, %v174
    %v176 = vrot.slane %v171, %v175
    %v178 = vadd.f32 %v167, %v176
    %v179 = vadd.f32 %v168, %v176
    %v180 = vadd.f32 %v169, %v176
    %v181 = vadd.f32 %v170, %v176
    %vm182 = vcmp.ge.f32.partialorder %v178, 0.0
    %vm183 = vcmp.ge.f32.partialorder %v179, 0.0
    %vm184 = vcmp.ge.f32.partialorder %v180, 0.0
    %vm185 = vcmp.ge.f32.partialorder %v181, 0.0
    %v186 = vmul.f32 %v178, 0.01
    %v187 = vmul.f32 %v179, 0.01
    %v188 = vmul.f32 %v180, 0.01
    %v189 = vmul.f32 %v181, 0.01
    %v190 = vsel %vm182, %v178, %v186
    %v191 = vsel %vm183, %v179, %v187
    %v192 = vsel %vm184, %v180, %v188
    %v193 = vsel %vm185, %v181, %v189
    %v194 = vpack.c.bf16 %v191, %v190
    %v195 = vpack.c.bf16 %v193, %v192
    %v198 = vunpack.c.l.b16 %v194
    %v199 = vunpack.c.h.b16 %v194
    %v200 = vunpack.c.l.b16 %v195
    %v201 = vunpack.c.h.b16 %v195
    %v202 = vpack.c.b16 %v198, %v198
    %v203 = vpack.c.b16 %v199, %v199
    %v204 = vpack.c.b16 %v200, %v200
    %v205 = vpack.c.b16 %v201, %v201
    %210 = vst [vmem:[%s3] sm:$0xf] %v202
    %211 = vst [vmem:[%s3 + $0x4] sm:$0xf] %v203
    %212 = vst [vmem:[%s3 + $0x8] sm:$0xf] %v204
    %213 = vst [vmem:[%s3 + $0xc] sm:$0xf] %v205
  $region21: #{decoder_forward.29} parent=0 // pred_fallthru
    _
  // Predicated region
  $region22: #{decoder_forward.29} parent=0 // pred_check
    _
  $region23: #{decoder_forward.29} parent=0 // pred_check_branch
    %215 = sbr.rel (0) target = $region25
  $region24: #{decoder_forward.29} parent=0 // pred_region
    _
  $region25: #{decoder_forward.29} parent=0 // pred_fallthru
    _
  // Predicated region
  $region26: #{decoder_forward.29} parent=0 // pred_check
    _
  $region27: #{decoder_forward.29} parent=0 // pred_check_branch
    %217 = sbr.rel (0) target = $region29
  $region28: #{decoder_forward.29} parent=0 // pred_region
    _
  $region29: #{decoder_forward.29} parent=0 // pred_fallthru
    _

// kernel: decoder_forward.33
$region0: #{decoder_forward.33}
  #allocation0 [shape = 'u32[]', space=smem, size = 0x4, offset = 0x4, fixed_abs, tag = 'smem constant byte address 0x4 - core index']
  #allocation1 [shape = 'u32[144,128]{1,0:T(1,128)}', space=vmem, size = 0x12000, scoped, tag = 'internal scratch']
  #allocation2 [shape = 'f32[128,128]{1,0:T(8,128)}', space=vmem, size = 0x10000, scoped, tag = 'scratch operand']
  %s0 = inlined_call_operand.vmem [shape: bf16[128,128], index: 0, kind: input, shape index: {}]
  %s1 = inlined_call_operand.vmem [shape: bf16[128,128], index: 1, kind: input, shape index: {}]
  %s2 = inlined_call_operand.vmem [shape: f32[1,128], index: 2, kind: input, shape index: {}]
  %s3 = inlined_call_operand.vmem [shape: bf16[128,128], index: 3, kind: output, shape index: {}]
  %s4 = sld [smem:[#allocation0]]
  $region30: #{decoder_forward.33} parent=0
    _
  %s6 = ssub.s32 1, %s4
  %s7 = scalar_select 0, %s6, %s4
  // Predicated region
  $region2: #{decoder_forward.33} parent=0 // pred_check
    _
  $region3: #{decoder_forward.33} parent=0 // pred_check_branch
    %9 = sbr.rel (0) target = $region5
  $region4: #{decoder_forward.33} parent=0 // pred_region
    _
  $region5: #{decoder_forward.33} parent=0 // pred_fallthru
    _
  // Predicated region
  $region6: #{decoder_forward.33} parent=0 // pred_check
    _
  $region7: #{decoder_forward.33} parent=0 // pred_check_branch
    %11 = sbr.rel (0) target = $region9
  $region8: #{decoder_forward.33} parent=0 // pred_region
    _
  $region9: #{decoder_forward.33} parent=0 // pred_fallthru
    _
  // Predicated region
  $region10: #{decoder_forward.33} parent=0 // pred_check
    _
  $region11: #{decoder_forward.33} parent=0 // pred_check_branch
    %13 = sbr.rel (0) target = $region13
  $region12: #{decoder_forward.33} parent=0 // pred_region
    _
  $region13: #{decoder_forward.33} parent=0 // pred_fallthru
    _
  %p15 = scmp.eq.s32.totalorder 0, 0
  // Predicated region
  $region14: #{decoder_forward.33} parent=0 // pred_check
    %p16 = pneg %p15
  $region15: #{decoder_forward.33} parent=0 // pred_check_branch
    %18 = sbr.rel (%p16) target = $region17
  $region16: #{decoder_forward.33} parent=0 // pred_region
    %19 = vst [vmem:[#allocation2] sm:$0xff] 0.0
    %20 = vst [vmem:[#allocation2 + $0x8] sm:$0xff] 0.0
    %21 = vst [vmem:[#allocation2 + $0x10] sm:$0xff] 0.0
    %22 = vst [vmem:[#allocation2 + $0x18] sm:$0xff] 0.0
    %23 = vst [vmem:[#allocation2 + $0x20] sm:$0xff] 0.0
    %24 = vst [vmem:[#allocation2 + $0x28] sm:$0xff] 0.0
    %25 = vst [vmem:[#allocation2 + $0x30] sm:$0xff] 0.0
    %26 = vst [vmem:[#allocation2 + $0x38] sm:$0xff] 0.0
    %27 = vst [vmem:[#allocation2 + $0x40] sm:$0xff] 0.0
    %28 = vst [vmem:[#allocation2 + $0x48] sm:$0xff] 0.0
    %29 = vst [vmem:[#allocation2 + $0x50] sm:$0xff] 0.0
    %30 = vst [vmem:[#allocation2 + $0x58] sm:$0xff] 0.0
    %31 = vst [vmem:[#allocation2 + $0x60] sm:$0xff] 0.0
    %32 = vst [vmem:[#allocation2 + $0x68] sm:$0xff] 0.0
    %33 = vst [vmem:[#allocation2 + $0x70] sm:$0xff] 0.0
    %34 = vst [vmem:[#allocation2 + $0x78] sm:$0xff] 0.0
  $region17: #{decoder_forward.33} parent=0 // pred_fallthru
    _
  %v35 = vld [vmem:[#allocation2] sm:$0xff]
  %v36 = vld [vmem:[#allocation2 + $0x8] sm:$0xff]
  %v37 = vld [vmem:[#allocation2 + $0x10] sm:$0xff]
  %v38 = vld [vmem:[#allocation2 + $0x18] sm:$0xff]
  %v39 = vld [vmem:[#allocation2 + $0x20] sm:$0xff]
  %v40 = vld [vmem:[#allocation2 + $0x28] sm:$0xff]
  %v41 = vld [vmem:[#allocation2 + $0x30] sm:$0xff]
  %v42 = vld [vmem:[#allocation2 + $0x38] sm:$0xff]
  %v43 = vld [vmem:[#allocation2 + $0x40] sm:$0xff]
  %v44 = vld [vmem:[#allocation2 + $0x48] sm:$0xff]
  %v45 = vld [vmem:[#allocation2 + $0x50] sm:$0xff]
  %v46 = vld [vmem:[#allocation2 + $0x58] sm:$0xff]
  %v47 = vld [vmem:[#allocation2 + $0x60] sm:$0xff]
  %v48 = vld [vmem:[#allocation2 + $0x68] sm:$0xff]
  %v49 = vld [vmem:[#allocation2 + $0x70] sm:$0xff]
  %v50 = vld [vmem:[#allocation2 + $0x78] sm:$0xff]
  %v51 = vld [vmem:[%s0] sm:$0xf]
  %v52 = vld [vmem:[%s0 + $0x4] sm:$0xf]
  %v53 = vld [vmem:[%s0 + $0x8] sm:$0xf]
  %v54 = vld [vmem:[%s0 + $0xc] sm:$0xf]
  %v55 = vld [vmem:[%s0 + $0x10] sm:$0xf]
  %v56 = vld [vmem:[%s0 + $0x14] sm:$0xf]
  %v57 = vld [vmem:[%s0 + $0x18] sm:$0xf]
  %v58 = vld [vmem:[%s0 + $0x1c] sm:$0xf]
  %v59 = vld [vmem:[%s0 + $0x20] sm:$0xf]
  %v60 = vld [vmem:[%s0 + $0x24] sm:$0xf]
  %v61 = vld [vmem:[%s0 + $0x28] sm:$0xf]
  %v62 = vld [vmem:[%s0 + $0x2c] sm:$0xf]
  %v63 = vld [vmem:[%s0 + $0x30] sm:$0xf]
  %v64 = vld [vmem:[%s0 + $0x34] sm:$0xf]
  %v65 = vld [vmem:[%s0 + $0x38] sm:$0xf]
  %v66 = vld [vmem:[%s0 + $0x3c] sm:$0xf]
  %v67 = vld [vmem:[%s1] sm:$0xf]
  %v68 = vld [vmem:[%s1 + $0x4] sm:$0xf]
  %v69 = vld [vmem:[%s1 + $0x8] sm:$0xf]
  %v70 = vld [vmem:[%s1 + $0xc] sm:$0xf]
  %v71 = vld [vmem:[%s1 + $0x10] sm:$0xf]
  %v72 = vld [vmem:[%s1 + $0x14] sm:$0xf]
  %v73 = vld [vmem:[%s1 + $0x18] sm:$0xf]
  %v74 = vld [vmem:[%s1 + $0x1c] sm:$0xf]
  %v75 = vld [vmem:[%s1 + $0x20] sm:$0xf]
  %v76 = vld [vmem:[%s1 + $0x24] sm:$0xf]
  %v77 = vld [vmem:[%s1 + $0x28] sm:$0xf]
  %v78 = vld [vmem:[%s1 + $0x2c] sm:$0xf]
  %v79 = vld [vmem:[%s1 + $0x30] sm:$0xf]
  %v80 = vld [vmem:[%s1 + $0x34] sm:$0xf]
  %v81 = vld [vmem:[%s1 + $0x38] sm:$0xf]
  %v82 = vld [vmem:[%s1 + $0x3c] sm:$0xf]
  %v99 = vunpack.c.l.b16 %v51
  %v100 = vunpack.c.l.b16 %v52
  %v101 = vunpack.c.l.b16 %v53
  %v102 = vunpack.c.l.b16 %v54
  %v103 = vunpack.c.l.b16 %v55
  %v104 = vunpack.c.l.b16 %v56
  %v105 = vunpack.c.l.b16 %v57
  %v106 = vunpack.c.l.b16 %v58
  %v107 = vunpack.c.l.b16 %v59
  %v108 = vunpack.c.l.b16 %v60
  %v109 = vunpack.c.l.b16 %v61
  %v110 = vunpack.c.l.b16 %v62
  %v111 = vunpack.c.l.b16 %v63
  %v112 = vunpack.c.l.b16 %v64
  %v113 = vunpack.c.l.b16 %v65
  %v114 = vunpack.c.l.b16 %v66
  %v115 = vpack.c.b16 %v100, %v99
  %v116 = vpack.c.b16 %v102, %v101
  %v117 = vpack.c.b16 %v104, %v103
  %v118 = vpack.c.b16 %v106, %v105
  %v119 = vpack.c.b16 %v108, %v107
  %v120 = vpack.c.b16 %v110, %v109
  %v121 = vpack.c.b16 %v112, %v111
  %v122 = vpack.c.b16 %v114, %v113
  %v147 = vunpack.c.l.b16 %v67
  %v148 = vunpack.c.l.b16 %v68
  %v149 = vunpack.c.l.b16 %v69
  %v150 = vunpack.c.l.b16 %v70
  %v151 = vunpack.c.l.b16 %v71
  %v152 = vunpack.c.l.b16 %v72
  %v153 = vunpack.c.l.b16 %v73
  %v154 = vunpack.c.l.b16 %v74
  %v155 = vunpack.c.l.b16 %v75
  %v156 = vunpack.c.l.b16 %v76
  %v157 = vunpack.c.l.b16 %v77
  %v158 = vunpack.c.l.b16 %v78
  %v159 = vunpack.c.l.b16 %v79
  %v160 = vunpack.c.l.b16 %v80
  %v161 = vunpack.c.l.b16 %v81
  %v162 = vunpack.c.l.b16 %v82
  %v163 = vpack.c.b16 %v148, %v147
  %v164 = vpack.c.b16 %v150, %v149
  %v165 = vpack.c.b16 %v152, %v151
  %v166 = vpack.c.b16 %v154, %v153
  %v167 = vpack.c.b16 %v156, %v155
  %v168 = vpack.c.b16 %v158, %v157
  %v169 = vpack.c.b16 %v160, %v159
  %v170 = vpack.c.b16 %v162, %v161
  %179 = vmatprep.subr.bf16.mxu0 0
  %180 = vmatpush1.bf16.msra.mxu0 %v170
  %181 = vmatprep.subr.bf16.mxu0 0
  %182 = vmatpush1.bf16.msra.mxu0 %v169
  %183 = vmatprep.subr.bf16.mxu0 0
  %184 = vmatpush1.bf16.msra.mxu0 %v168
  %185 = vmatprep.subr.bf16.mxu0 0
  %186 = vmatpush1.bf16.msra.mxu0 %v167
  %187 = vmatprep.subr.bf16.mxu0 0
  %188 = vmatpush1.bf16.msra.mxu0 %v166
  %189 = vmatprep.subr.bf16.mxu0 0
  %190 = vmatpush1.bf16.msra.mxu0 %v165
  %191 = vmatprep.subr.bf16.mxu0 0
  %192 = vmatpush1.bf16.msra.mxu0 %v164
  %193 = vmatprep.subr.bf16.mxu0 0
  %194 = vmatpush1.bf16.msra.mxu0 %v163
  %195 = vmatprep.subr.bf16.mxu0 0
  %196 = vmatpush2.bf16.msra.mxu0 0
  %197 = vmatprep.subr.bf16.mxu0 0
  %198 = vmatpush2.bf16.msra.mxu0 0
  %199 = vmatprep.subr.bf16.mxu0 0
  %200 = vmatpush2.bf16.msra.mxu0 0
  %201 = vmatprep.subr.bf16.mxu0 0
  %202 = vmatpush2.bf16.msra.mxu0 0
  %203 = vmatprep.subr.bf16.mxu0 0
  %204 = vmatpush2.bf16.msra.mxu0 0
  %205 = vmatprep.subr.bf16.mxu0 0
  %206 = vmatpush2.bf16.msra.mxu0 0
  %207 = vmatprep.subr.bf16.mxu0 0
  %208 = vmatpush2.bf16.msra.mxu0 0
  %209 = vmatprep.subr.bf16.mxu0 0
  %210 = vmatpush2.bf16.msra.mxu0 0
  %211 = vmatprep.mubr.bf16.mxu0 0
  %212 = vmatmul.mubr.bf16.gmra.mxu0 %v115
  %v213 = vpop.f32.mrf.mxu0
  %v214 = vadd.f32 0.0, %v213
  %v215 = vpop.f32.mrf.mxu0
  %v216 = vpop.f32.mrf.mxu0
  %v217 = vadd.f32 0.0, %v216
  %v218 = vpop.f32.mrf.mxu0
  %219 = vmatprep.mubr.bf16.mxu0 0
  %220 = vmatmul.mubr.bf16.gmra.mxu0 %v116
  %v221 = vpop.f32.mrf.mxu0
  %v222 = vadd.f32 0.0, %v221
  %v223 = vpop.f32.mrf.mxu0
  %v224 = vpop.f32.mrf.mxu0
  %v225 = vadd.f32 0.0, %v224
  %v226 = vpop.f32.mrf.mxu0
  %227 = vmatprep.mubr.bf16.mxu0 0
  %228 = vmatmul.mubr.bf16.gmra.mxu0 %v117
  %v229 = vpop.f32.mrf.mxu0
  %v230 = vadd.f32 0.0, %v229
  %v231 = vpop.f32.mrf.mxu0
  %v232 = vpop.f32.mrf.mxu0
  %v233 = vadd.f32 0.0, %v232
  %v234 = vpop.f32.mrf.mxu0
  %235 = vmatprep.mubr.bf16.mxu0 0
  %236 = vmatmul.mubr.bf16.gmra.mxu0 %v118
  %v237 = vpop.f32.mrf.mxu0
  %v238 = vadd.f32 0.0, %v237
  %v239 = vpop.f32.mrf.mxu0
  %v240 = vpop.f32.mrf.mxu0
  %v241 = vadd.f32 0.0, %v240
  %v242 = vpop.f32.mrf.mxu0
  %243 = vmatprep.mubr.bf16.mxu0 0
  %244 = vmatmul.mubr.bf16.gmra.mxu0 %v119
  %v245 = vpop.f32.mrf.mxu0
  %v246 = vadd.f32 0.0, %v245
  %v247 = vpop.f32.mrf.mxu0
  %v248 = vpop.f32.mrf.mxu0
  %v249 = vadd.f32 0.0, %v248
  %v250 = vpop.f32.mrf.mxu0
  %251 = vmatprep.mubr.bf16.mxu0 0
  %252 = vmatmul.mubr.bf16.gmra.mxu0 %v120
  %v253 = vpop.f32.mrf.mxu0
  %v254 = vadd.f32 0.0, %v253
  %v255 = vpop.f32.mrf.mxu0
  %v256 = vpop.f32.mrf.mxu0
  %v257 = vadd.f32 0.0, %v256
  %v258 = vpop.f32.mrf.mxu0
  %259 = vmatprep.mubr.bf16.mxu0 0
  %260 = vmatmul.mubr.bf16.gmra.mxu0 %v121
  %v261 = vpop.f32.mrf.mxu0
  %v262 = vadd.f32 0.0, %v261
  %v263 = vpop.f32.mrf.mxu0
  %v264 = vpop.f32.mrf.mxu0
  %v265 = vadd.f32 0.0, %v264
  %v266 = vpop.f32.mrf.mxu0
  %267 = vmatprep.mubr.bf16.mxu0 0
  %268 = vmatmul.mubr.bf16.gmra.mxu0 %v122
  %v269 = vpop.f32.mrf.mxu0
  %v270 = vadd.f32 0.0, %v269
  %v271 = vpop.f32.mrf.mxu0
  %v272 = vpop.f32.mrf.mxu0
  %v273 = vadd.f32 0.0, %v272
  %v274 = vpop.f32.mrf.mxu0
  %275 = vdwg.mxu0
  %v276 = vadd.f32 %v35, %v214
  %v277 = vadd.f32 %v36, %v217
  %v278 = vadd.f32 %v37, %v222
  %v279 = vadd.f32 %v38, %v225
  %v280 = vadd.f32 %v39, %v230
  %v281 = vadd.f32 %v40, %v233
  %v282 = vadd.f32 %v41, %v238
  %v283 = vadd.f32 %v42, %v241
  %v284 = vadd.f32 %v43, %v246
  %v285 = vadd.f32 %v44, %v249
  %v286 = vadd.f32 %v45, %v254
  %v287 = vadd.f32 %v46, %v257
  %v288 = vadd.f32 %v47, %v262
  %v289 = vadd.f32 %v48, %v265
  %v290 = vadd.f32 %v49, %v270
  %v291 = vadd.f32 %v50, %v273
  %292 = vst [vmem:[#allocation2] sm:$0xff] %v276
  %293 = vst [vmem:[#allocation2 + $0x8] sm:$0xff] %v277
  %294 = vst [vmem:[#allocation2 + $0x10] sm:$0xff] %v278
  %295 = vst [vmem:[#allocation2 + $0x18] sm:$0xff] %v279
  %296 = vst [vmem:[#allocation2 + $0x20] sm:$0xff] %v280
  %297 = vst [vmem:[#allocation2 + $0x28] sm:$0xff] %v281
  %298 = vst [vmem:[#allocation2 + $0x30] sm:$0xff] %v282
  %299 = vst [vmem:[#allocation2 + $0x38] sm:$0xff] %v283
  %300 = vst [vmem:[#allocation2 + $0x40] sm:$0xff] %v284
  %301 = vst [vmem:[#allocation2 + $0x48] sm:$0xff] %v285
  %302 = vst [vmem:[#allocation2 + $0x50] sm:$0xff] %v286
  %303 = vst [vmem:[#allocation2 + $0x58] sm:$0xff] %v287
  %304 = vst [vmem:[#allocation2 + $0x60] sm:$0xff] %v288
  %305 = vst [vmem:[#allocation2 + $0x68] sm:$0xff] %v289
  %306 = vst [vmem:[#allocation2 + $0x70] sm:$0xff] %v290
  %307 = vst [vmem:[#allocation2 + $0x78] sm:$0xff] %v291
  // Predicated region
  $region18: #{decoder_forward.33} parent=0 // pred_check
    %p308 = pneg %p15
  $region19: #{decoder_forward.33} parent=0 // pred_check_branch
    %310 = sbr.rel (%p308) target = $region21
  $region20: #{decoder_forward.33} parent=0 // pred_region
    %v311 = vld [vmem:[#allocation2] sm:$0xff]
    %v312 = vld [vmem:[#allocation2 + $0x8] sm:$0xff]
    %v313 = vld [vmem:[#allocation2 + $0x10] sm:$0xff]
    %v314 = vld [vmem:[#allocation2 + $0x18] sm:$0xff]
    %v315 = vld [vmem:[#allocation2 + $0x20] sm:$0xff]
    %v316 = vld [vmem:[#allocation2 + $0x28] sm:$0xff]
    %v317 = vld [vmem:[#allocation2 + $0x30] sm:$0xff]
    %v318 = vld [vmem:[#allocation2 + $0x38] sm:$0xff]
    %v319 = vld [vmem:[#allocation2 + $0x40] sm:$0xff]
    %v320 = vld [vmem:[#allocation2 + $0x48] sm:$0xff]
    %v321 = vld [vmem:[#allocation2 + $0x50] sm:$0xff]
    %v322 = vld [vmem:[#allocation2 + $0x58] sm:$0xff]
    %v323 = vld [vmem:[#allocation2 + $0x60] sm:$0xff]
    %v324 = vld [vmem:[#allocation2 + $0x68] sm:$0xff]
    %v325 = vld [vmem:[#allocation2 + $0x70] sm:$0xff]
    %v326 = vld [vmem:[#allocation2 + $0x78] sm:$0xff]
    %v327 = vld [vmem:[%s2] sm:$0x1]
    %v329 = vlaneseq
    %v330 = vshrl.u32 %v329, 7
    %v331 = vsub.s32 0, %v330
    %v332 = vrot.slane %v327, %v331
    %v334 = vadd.f32 %v311, %v332
    %v335 = vadd.f32 %v312, %v332
    %v336 = vadd.f32 %v313, %v332
    %v337 = vadd.f32 %v314, %v332
    %v338 = vadd.f32 %v315, %v332
    %v339 = vadd.f32 %v316, %v332
    %v340 = vadd.f32 %v317, %v332
    %v341 = vadd.f32 %v318, %v332
    %v342 = vadd.f32 %v319, %v332
    %v343 = vadd.f32 %v320, %v332
    %v344 = vadd.f32 %v321, %v332
    %v345 = vadd.f32 %v322, %v332
    %v346 = vadd.f32 %v323, %v332
    %v347 = vadd.f32 %v324, %v332
    %v348 = vadd.f32 %v325, %v332
    %v349 = vadd.f32 %v326, %v332
    %vm350 = vcmp.ge.f32.partialorder %v334, 0.0
    %vm351 = vcmp.ge.f32.partialorder %v335, 0.0
    %vm352 = vcmp.ge.f32.partialorder %v336, 0.0
    %vm353 = vcmp.ge.f32.partialorder %v337, 0.0
    %vm354 = vcmp.ge.f32.partialorder %v338, 0.0
    %vm355 = vcmp.ge.f32.partialorder %v339, 0.0
    %vm356 = vcmp.ge.f32.partialorder %v340, 0.0
    %vm357 = vcmp.ge.f32.partialorder %v341, 0.0
    %vm358 = vcmp.ge.f32.partialorder %v342, 0.0
    %vm359 = vcmp.ge.f32.partialorder %v343, 0.0
    %vm360 = vcmp.ge.f32.partialorder %v344, 0.0
    %vm361 = vcmp.ge.f32.partialorder %v345, 0.0
    %vm362 = vcmp.ge.f32.partialorder %v346, 0.0
    %vm363 = vcmp.ge.f32.partialorder %v347, 0.0
    %vm364 = vcmp.ge.f32.partialorder %v348, 0.0
    %vm365 = vcmp.ge.f32.partialorder %v349, 0.0
    %v366 = vmul.f32 %v334, 0.01
    %v367 = vmul.f32 %v335, 0.01
    %v368 = vmul.f32 %v336, 0.01
    %v369 = vmul.f32 %v337, 0.01
    %v370 = vmul.f32 %v338, 0.01
    %v371 = vmul.f32 %v339, 0.01
    %v372 = vmul.f32 %v340, 0.01
    %v373 = vmul.f32 %v341, 0.01
    %v374 = vmul.f32 %v342, 0.01
    %v375 = vmul.f32 %v343, 0.01
    %v376 = vmul.f32 %v344, 0.01
    %v377 = vmul.f32 %v345, 0.01
    %v378 = vmul.f32 %v346, 0.01
    %v379 = vmul.f32 %v347, 0.01
    %v380 = vmul.f32 %v348, 0.01
    %v381 = vmul.f32 %v349, 0.01
    %v382 = vsel %vm350, %v334, %v366
    %v383 = vsel %vm351, %v335, %v367
    %v384 = vsel %vm352, %v336, %v368
    %v385 = vsel %vm353, %v337, %v369
    %v386 = vsel %vm354, %v338, %v370
    %v387 = vsel %vm355, %v339, %v371
    %v388 = vsel %vm356, %v340, %v372
    %v389 = vsel %vm357, %v341, %v373
    %v390 = vsel %vm358, %v342, %v374
    %v391 = vsel %vm359, %v343, %v375
    %v392 = vsel %vm360, %v344, %v376
    %v393 = vsel %vm361, %v345, %v377
    %v394 = vsel %vm362, %v346, %v378
    %v395 = vsel %vm363, %v347, %v379
    %v396 = vsel %vm364, %v348, %v380
    %v397 = vsel %vm365, %v349, %v381
    %v398 = vpack.c.bf16 %v383, %v382
    %v399 = vpack.c.bf16 %v385, %v384
    %v400 = vpack.c.bf16 %v387, %v386
    %v401 = vpack.c.bf16 %v389, %v388
    %v402 = vpack.c.bf16 %v391, %v390
    %v403 = vpack.c.bf16 %v393, %v392
    %v404 = vpack.c.bf16 %v395, %v394
    %v405 = vpack.c.bf16 %v397, %v396
    %v414 = vunpack.c.l.b16 %v398
    %v415 = vunpack.c.h.b16 %v398
    %v416 = vunpack.c.l.b16 %v399
    %v417 = vunpack.c.h.b16 %v399
    %v418 = vunpack.c.l.b16 %v400
    %v419 = vunpack.c.h.b16 %v400
    %v420 = vunpack.c.l.b16 %v401
    %v421 = vunpack.c.h.b16 %v401
    %v422 = vunpack.c.l.b16 %v402
    %v423 = vunpack.c.h.b16 %v402
    %v424 = vunpack.c.l.b16 %v403
    %v425 = vunpack.c.h.b16 %v403
    %v426 = vunpack.c.l.b16 %v404
    %v427 = vunpack.c.h.b16 %v404
    %v428 = vunpack.c.l.b16 %v405
    %v429 = vunpack.c.h.b16 %v405
    %v430 = vpack.c.b16 %v414, %v414
    %v431 = vpack.c.b16 %v415, %v415
    %v432 = vpack.c.b16 %v416, %v416
    %v433 = vpack.c.b16 %v417, %v417
    %v434 = vpack.c.b16 %v418, %v418
    %v435 = vpack.c.b16 %v419, %v419
    %v436 = vpack.c.b16 %v420, %v420
    %v437 = vpack.c.b16 %v421, %v421
    %v438 = vpack.c.b16 %v422, %v422
    %v439 = vpack.c.b16 %v423, %v423
    %v440 = vpack.c.b16 %v424, %v424
    %v441 = vpack.c.b16 %v425, %v425
    %v442 = vpack.c.b16 %v426, %v426
    %v443 = vpack.c.b16 %v427, %v427
    %v444 = vpack.c.b16 %v428, %v428
    %v445 = vpack.c.b16 %v429, %v429
    %462 = vst [vmem:[%s3] sm:$0xf] %v430
    %463 = vst [vmem:[%s3 + $0x4] sm:$0xf] %v431
    %464 = vst [vmem:[%s3 + $0x8] sm:$0xf] %v432
    %465 = vst [vmem:[%s3 + $0xc] sm:$0xf] %v433
    %466 = vst [vmem:[%s3 + $0x10] sm:$0xf] %v434
    %467 = vst [vmem:[%s3 + $0x14] sm:$0xf] %v435
    %468 = vst [vmem:[%s3 + $0x18] sm:$0xf] %v436
    %469 = vst [vmem:[%s3 + $0x1c] sm:$0xf] %v437
    %470 = vst [vmem:[%s3 + $0x20] sm:$0xf] %v438
    %471 = vst [vmem:[%s3 + $0x24] sm:$0xf] %v439
    %472 = vst [vmem:[%s3 + $0x28] sm:$0xf] %v440
    %473 = vst [vmem:[%s3 + $0x2c] sm:$0xf] %v441
    %474 = vst [vmem:[%s3 + $0x30] sm:$0xf] %v442
    %475 = vst [vmem:[%s3 + $0x34] sm:$0xf] %v443
    %476 = vst [vmem:[%s3 + $0x38] sm:$0xf] %v444
    %477 = vst [vmem:[%s3 + $0x3c] sm:$0xf] %v445
  $region21: #{decoder_forward.33} parent=0 // pred_fallthru
    _
  // Predicated region
  $region22: #{decoder_forward.33} parent=0 // pred_check
    _
  $region23: #{decoder_forward.33} parent=0 // pred_check_branch
    %479 = sbr.rel (0) target = $region25
  $region24: #{decoder_forward.33} parent=0 // pred_region
    _
  $region25: #{decoder_forward.33} parent=0 // pred_fallthru
    _
  // Predicated region
  $region26: #{decoder_forward.33} parent=0 // pred_check
    _
  $region27: #{decoder_forward.33} parent=0 // pred_check_branch
    %481 = sbr.rel (0) target = $region29
  $region28: #{decoder_forward.33} parent=0 // pred_region
    _
  $region29: #{decoder_forward.33} parent=0 // pred_fallthru
    _

// kernel: decoder_forward.34
$region0: #{decoder_forward.34}
  #allocation0 [shape = 'u32[]', space=smem, size = 0x4, offset = 0x4, fixed_abs, tag = 'smem constant byte address 0x4 - core index']
  #allocation1 [shape = 'u32[144,128]{1,0:T(1,128)}', space=vmem, size = 0x12000, scoped, tag = 'internal scratch']
  %s0 = inlined_call_operand.vmem [shape: f32[2,8], index: 0, kind: input, shape index: {}]
  %s1 = inlined_call_operand.vmem [shape: f32[8,16], index: 1, kind: input, shape index: {}]
  %s2 = inlined_call_operand.vmem [shape: f32[1,16], index: 2, kind: input, shape index: {}]
  %s3 = inlined_call_operand.vmem [shape: f32[16,16], index: 3, kind: input, shape index: {}]
  %s4 = inlined_call_operand.vmem [shape: f32[1,16], index: 4, kind: input, shape index: {}]
  %s5 = inlined_call_operand.vmem [shape: f32[2,16], index: 5, kind: output, shape index: {}]
  %s6 = sld [smem:[#allocation0]]
  $region30: #{decoder_forward.34} parent=0
    _
  %s8 = ssub.s32 1, %s6
  %s9 = scalar_select 0, %s8, %s6
  // Predicated region
  $region2: #{decoder_forward.34} parent=0 // pred_check
    _
  $region3: #{decoder_forward.34} parent=0 // pred_check_branch
    %11 = sbr.rel (0) target = $region5
  $region4: #{decoder_forward.34} parent=0 // pred_region
    _
  $region5: #{decoder_forward.34} parent=0 // pred_fallthru
    _
  // Predicated region
  $region6: #{decoder_forward.34} parent=0 // pred_check
    _
  $region7: #{decoder_forward.34} parent=0 // pred_check_branch
    %13 = sbr.rel (0) target = $region9
  $region8: #{decoder_forward.34} parent=0 // pred_region
    _
  $region9: #{decoder_forward.34} parent=0 // pred_fallthru
    _
  // Predicated region
  $region10: #{decoder_forward.34} parent=0 // pred_check
    _
  $region11: #{decoder_forward.34} parent=0 // pred_check_branch
    %15 = sbr.rel (0) target = $region13
  $region12: #{decoder_forward.34} parent=0 // pred_region
    _
  $region13: #{decoder_forward.34} parent=0 // pred_fallthru
    _
  // Predicated region
  $region14: #{decoder_forward.34} parent=0 // pred_check
    _
  $region15: #{decoder_forward.34} parent=0 // pred_check_branch
    %17 = sbr.rel (0) target = $region17
  $region16: #{decoder_forward.34} parent=0 // pred_region
    _
  $region17: #{decoder_forward.34} parent=0 // pred_fallthru
    _
  // Predicated region
  $region18: #{decoder_forward.34} parent=0 // pred_check
    _
  $region19: #{decoder_forward.34} parent=0 // pred_check_branch
    %19 = sbr.rel (0) target = $region21
  $region20: #{decoder_forward.34} parent=0 // pred_region
    _
  $region21: #{decoder_forward.34} parent=0 // pred_fallthru
    _
  %v20 = vld [vmem:[%s0] sm:$0x3]
  %v21 = vld [vmem:[%s1] sm:$0xff]
  %v22 = vld [vmem:[%s2] sm:$0x1]
  %v24 = vlaneseq
  %v25 = vshrl.u32 %v24, 7
  %v26 = vsub.s32 0, %v25
  %v27 = vrot.slane %v22, %v26
  %vm29 = vcmask 64512
  %v31 = vsel %vm29, %v20, 0
  %33 = vmatprep.subr.mxu0 0.0
  %34 = vmatpush1.msra.mxu0 0.0
  %35 = vmatprep.subr.mxu0 0.0
  %36 = vmatpush1.msra.mxu0 0.0
  %37 = vmatprep.subr.mxu0 0.0
  %38 = vmatpush1.msra.mxu0 0.0
  %39 = vmatprep.subr.mxu0 0.0
  %40 = vmatpush1.msra.mxu0 0.0
  %41 = vmatprep.subr.mxu0 0.0
  %42 = vmatpush1.msra.mxu0 0.0
  %43 = vmatprep.subr.mxu0 0.0
  %44 = vmatpush1.msra.mxu0 0.0
  %45 = vmatprep.subr.mxu0 0.0
  %46 = vmatpush1.msra.mxu0 0.0
  %47 = vmatprep.subr.mxu0 0.0
  %48 = vmatpush1.msra.mxu0 0.0
  %49 = vmatprep.subr.mxu0 0.0
  %50 = vmatpush1.msra.mxu0 0.0
  %51 = vmatprep.subr.mxu0 0.0
  %52 = vmatpush1.msra.mxu0 0.0
  %53 = vmatprep.subr.mxu0 0.0
  %54 = vmatpush1.msra.mxu0 0.0
  %55 = vmatprep.subr.mxu0 0.0
  %56 = vmatpush1.msra.mxu0 0.0
  %57 = vmatprep.subr.mxu0 0.0
  %58 = vmatpush1.msra.mxu0 0.0
  %59 = vmatprep.subr.mxu0 0.0
  %60 = vmatpush1.msra.mxu0 0.0
  %61 = vmatprep.subr.mxu0 0.0
  %62 = vmatpush1.msra.mxu0 0.0
  %63 = vmatprep.subr.mxu0 0.0
  %64 = vmatpush1.msra.mxu0 %v21
  %65 = vmatprep.subr.mxu0 0.0
  %66 = vmatpush2.msra.mxu0 0.0
  %67 = vmatprep.subr.mxu0 0.0
  %68 = vmatpush2.msra.mxu0 0.0
  %69 = vmatprep.subr.mxu0 0.0
  %70 = vmatpush2.msra.mxu0 0.0
  %71 = vmatprep.subr.mxu0 0.0
  %72 = vmatpush2.msra.mxu0 0.0
  %73 = vmatprep.subr.mxu0 0.0
  %74 = vmatpush2.msra.mxu0 0.0
  %75 = vmatprep.subr.mxu0 0.0
  %76 = vmatpush2.msra.mxu0 0.0
  %77 = vmatprep.subr.mxu0 0.0
  %78 = vmatpush2.msra.mxu0 0.0
  %79 = vmatprep.subr.mxu0 0.0
  %80 = vmatpush2.msra.mxu0 0.0
  %81 = vmatprep.subr.mxu0 0.0
  %82 = vmatpush2.msra.mxu0 0.0
  %83 = vmatprep.subr.mxu0 0.0
  %84 = vmatpush2.msra.mxu0 0.0
  %85 = vmatprep.subr.mxu0 0.0
  %86 = vmatpush2.msra.mxu0 0.0
  %87 = vmatprep.subr.mxu0 0.0
  %88 = vmatpush2.msra.mxu0 0.0
  %89 = vmatprep.subr.mxu0 0.0
  %90 = vmatpush2.msra.mxu0 0.0
  %91 = vmatprep.subr.mxu0 0.0
  %92 = vmatpush2.msra.mxu0 0.0
  %93 = vmatprep.subr.mxu0 0.0
  %94 = vmatpush2.msra.mxu0 0.0
  %95 = vmatprep.subr.mxu0 0.0
  %96 = vmatpush2.msra.mxu0 0.0
  %97 = vmatprep.mubr.f32.mxu0 0.0
  %98 = vmatmul.mubr.f32.gmra.mxu0 %v31
  %v99 = vpop.f32.mrf.mxu0
  %v100 = vadd.f32 %v27, %v99
  %v101 = vpop.f32.mrf.mxu0
  %102 = vdwg.mxu0
  %v103 = vmax.f32 %v100, 0.0
  %v104 = vld [vmem:[%s3] sm:$0xff]
  %v105 = vld [vmem:[%s3 + $0x8] sm:$0xff]
  %v106 = vld [vmem:[%s4] sm:$0x1]
  %v108 = vlaneseq
  %v109 = vshrl.u32 %v108, 7
  %v110 = vsub.s32 0, %v109
  %v111 = vrot.slane %v106, %v110
  %vm113 = vcmask 130048
  %v115 = vsel %vm113, %v103, 0
  %117 = vmatprep.subr.mxu0 0.0
  %118 = vmatpush1.msra.mxu0 0.0
  %119 = vmatprep.subr.mxu0 0.0
  %120 = vmatpush1.msra.mxu0 0.0
  %121 = vmatprep.subr.mxu0 0.0
  %122 = vmatpush1.msra.mxu0 0.0
  %123 = vmatprep.subr.mxu0 0.0
  %124 = vmatpush1.msra.mxu0 0.0
  %125 = vmatprep.subr.mxu0 0.0
  %126 = vmatpush1.msra.mxu0 0.0
  %127 = vmatprep.subr.mxu0 0.0
  %128 = vmatpush1.msra.mxu0 0.0
  %129 = vmatprep.subr.mxu0 0.0
  %130 = vmatpush1.msra.mxu0 0.0
  %131 = vmatprep.subr.mxu0 0.0
  %132 = vmatpush1.msra.mxu0 0.0
  %133 = vmatprep.subr.mxu0 0.0
  %134 = vmatpush1.msra.mxu0 0.0
  %135 = vmatprep.subr.mxu0 0.0
  %136 = vmatpush1.msra.mxu0 0.0
  %137 = vmatprep.subr.mxu0 0.0
  %138 = vmatpush1.msra.mxu0 0.0
  %139 = vmatprep.subr.mxu0 0.0
  %140 = vmatpush1.msra.mxu0 0.0
  %141 = vmatprep.subr.mxu0 0.0
  %142 = vmatpush1.msra.mxu0 0.0
  %143 = vmatprep.subr.mxu0 0.0
  %144 = vmatpush1.msra.mxu0 0.0
  %145 = vmatprep.subr.mxu0 0.0
  %146 = vmatpush1.msra.mxu0 %v105
  %147 = vmatprep.subr.mxu0 0.0
  %148 = vmatpush1.msra.mxu0 %v104
  %149 = vmatprep.subr.mxu0 0.0
  %150 = vmatpush2.msra.mxu0 0.0
  %151 = vmatprep.subr.mxu0 0.0
  %152 = vmatpush2.msra.mxu0 0.0
  %153 = vmatprep.subr.mxu0 0.0
  %154 = vmatpush2.msra.mxu0 0.0
  %155 = vmatprep.subr.mxu0 0.0
  %156 = vmatpush2.msra.mxu0 0.0
  %157 = vmatprep.subr.mxu0 0.0
  %158 = vmatpush2.msra.mxu0 0.0
  %159 = vmatprep.subr.mxu0 0.0
  %160 = vmatpush2.msra.mxu0 0.0
  %161 = vmatprep.subr.mxu0 0.0
  %162 = vmatpush2.msra.mxu0 0.0
  %163 = vmatprep.subr.mxu0 0.0
  %164 = vmatpush2.msra.mxu0 0.0
  %165 = vmatprep.subr.mxu0 0.0
  %166 = vmatpush2.msra.mxu0 0.0
  %167 = vmatprep.subr.mxu0 0.0
  %168 = vmatpush2.msra.mxu0 0.0
  %169 = vmatprep.subr.mxu0 0.0
  %170 = vmatpush2.msra.mxu0 0.0
  %171 = vmatprep.subr.mxu0 0.0
  %172 = vmatpush2.msra.mxu0 0.0
  %173 = vmatprep.subr.mxu0 0.0
  %174 = vmatpush2.msra.mxu0 0.0
  %175 = vmatprep.subr.mxu0 0.0
  %176 = vmatpush2.msra.mxu0 0.0
  %177 = vmatprep.subr.mxu0 0.0
  %178 = vmatpush2.msra.mxu0 0.0
  %179 = vmatprep.subr.mxu0 0.0
  %180 = vmatpush2.msra.mxu0 0.0
  %181 = vmatprep.mubr.f32.mxu0 0.0
  %182 = vmatmul.mubr.f32.gmra.mxu0 %v115
  %v183 = vpop.f32.mrf.mxu0
  %v184 = vadd.f32 %v111, %v183
  %v185 = vpop.f32.mrf.mxu0
  %186 = vdwg.mxu0
  %vm187 = vcmask 123904
  %188 = vst.msk [vmem:[%s5] sm:$0x3] %vm187, %v184
  // Predicated region
  $region22: #{decoder_forward.34} parent=0 // pred_check
    _
  $region23: #{decoder_forward.34} parent=0 // pred_check_branch
    %190 = sbr.rel (0) target = $region25
  $region24: #{decoder_forward.34} parent=0 // pred_region
    _
  $region25: #{decoder_forward.34} parent=0 // pred_fallthru
    _
  // Predicated region
  $region26: #{decoder_forward.34} parent=0 // pred_check
    _
  $region27: #{decoder_forward.34} parent=0 // pred_check_branch
    %192 = sbr.rel (0) target = $region29
  $region28: #{decoder_forward.34} parent=0 // pred_region
    _
  $region29: #{decoder_forward.34} parent=0 // pred_fallthru
    _

// kernel: decoder_forward.35
$region0: #{decoder_forward.35}
  #allocation0 [shape = 'u32[]', space=smem, size = 0x4, offset = 0x4, fixed_abs, tag = 'smem constant byte address 0x4 - core index']
  #allocation1 [shape = 'u32[144,128]{1,0:T(1,128)}', space=vmem, size = 0x12000, scoped, tag = 'internal scratch']
  #allocation2 [shape = 'f32[128,128]{1,0:T(8,128)}', space=vmem, size = 0x10000, scoped, tag = 'scratch operand']
  %s0 = inlined_call_operand.vmem [shape: bf16[128,128], index: 0, kind: input, shape index: {}]
  %s1 = inlined_call_operand.vmem [shape: bf16[128,128], index: 1, kind: input, shape index: {}]
  %s2 = inlined_call_operand.vmem [shape: f32[1,128], index: 2, kind: input, shape index: {}]
  %s3 = inlined_call_operand.vmem [shape: bf16[128,128], index: 3, kind: output, shape index: {}]
  %s4 = sld [smem:[#allocation0]]
  $region30: #{decoder_forward.35} parent=0
    _
  %s6 = ssub.s32 1, %s4
  %s7 = scalar_select 0, %s6, %s4
  // Predicated region
  $region2: #{decoder_forward.35} parent=0 // pred_check
    _
  $region3: #{decoder_forward.35} parent=0 // pred_check_branch
    %9 = sbr.rel (0) target = $region5
  $region4: #{decoder_forward.35} parent=0 // pred_region
    _
  $region5: #{decoder_forward.35} parent=0 // pred_fallthru
    _
  // Predicated region
  $region6: #{decoder_forward.35} parent=0 // pred_check
    _
  $region7: #{decoder_forward.35} parent=0 // pred_check_branch
    %11 = sbr.rel (0) target = $region9
  $region8: #{decoder_forward.35} parent=0 // pred_region
    _
  $region9: #{decoder_forward.35} parent=0 // pred_fallthru
    _
  // Predicated region
  $region10: #{decoder_forward.35} parent=0 // pred_check
    _
  $region11: #{decoder_forward.35} parent=0 // pred_check_branch
    %13 = sbr.rel (0) target = $region13
  $region12: #{decoder_forward.35} parent=0 // pred_region
    _
  $region13: #{decoder_forward.35} parent=0 // pred_fallthru
    _
  %p15 = scmp.eq.s32.totalorder 0, 0
  // Predicated region
  $region14: #{decoder_forward.35} parent=0 // pred_check
    %p16 = pneg %p15
  $region15: #{decoder_forward.35} parent=0 // pred_check_branch
    %18 = sbr.rel (%p16) target = $region17
  $region16: #{decoder_forward.35} parent=0 // pred_region
    %19 = vst [vmem:[#allocation2] sm:$0xff] 0.0
    %20 = vst [vmem:[#allocation2 + $0x8] sm:$0xff] 0.0
    %21 = vst [vmem:[#allocation2 + $0x10] sm:$0xff] 0.0
    %22 = vst [vmem:[#allocation2 + $0x18] sm:$0xff] 0.0
    %23 = vst [vmem:[#allocation2 + $0x20] sm:$0xff] 0.0
    %24 = vst [vmem:[#allocation2 + $0x28] sm:$0xff] 0.0
    %25 = vst [vmem:[#allocation2 + $0x30] sm:$0xff] 0.0
    %26 = vst [vmem:[#allocation2 + $0x38] sm:$0xff] 0.0
    %27 = vst [vmem:[#allocation2 + $0x40] sm:$0xff] 0.0
    %28 = vst [vmem:[#allocation2 + $0x48] sm:$0xff] 0.0
    %29 = vst [vmem:[#allocation2 + $0x50] sm:$0xff] 0.0
    %30 = vst [vmem:[#allocation2 + $0x58] sm:$0xff] 0.0
    %31 = vst [vmem:[#allocation2 + $0x60] sm:$0xff] 0.0
    %32 = vst [vmem:[#allocation2 + $0x68] sm:$0xff] 0.0
    %33 = vst [vmem:[#allocation2 + $0x70] sm:$0xff] 0.0
    %34 = vst [vmem:[#allocation2 + $0x78] sm:$0xff] 0.0
  $region17: #{decoder_forward.35} parent=0 // pred_fallthru
    _
  %v35 = vld [vmem:[#allocation2] sm:$0xff]
  %v36 = vld [vmem:[#allocation2 + $0x8] sm:$0xff]
  %v37 = vld [vmem:[#allocation2 + $0x10] sm:$0xff]
  %v38 = vld [vmem:[#allocation2 + $0x18] sm:$0xff]
  %v39 = vld [vmem:[#allocation2 + $0x20] sm:$0xff]
  %v40 = vld [vmem:[#allocation2 + $0x28] sm:$0xff]
  %v41 = vld [vmem:[#allocation2 + $0x30] sm:$0xff]
  %v42 = vld [vmem:[#allocation2 + $0x38] sm:$0xff]
  %v43 = vld [vmem:[#allocation2 + $0x40] sm:$0xff]
  %v44 = vld [vmem:[#allocation2 + $0x48] sm:$0xff]
  %v45 = vld [vmem:[#allocation2 + $0x50] sm:$0xff]
  %v46 = vld [vmem:[#allocation2 + $0x58] sm:$0xff]
  %v47 = vld [vmem:[#allocation2 + $0x60] sm:$0xff]
  %v48 = vld [vmem:[#allocation2 + $0x68] sm:$0xff]
  %v49 = vld [vmem:[#allocation2 + $0x70] sm:$0xff]
  %v50 = vld [vmem:[#allocation2 + $0x78] sm:$0xff]
  %v51 = vld [vmem:[%s0] sm:$0xf]
  %v52 = vld [vmem:[%s0 + $0x4] sm:$0xf]
  %v53 = vld [vmem:[%s0 + $0x8] sm:$0xf]
  %v54 = vld [vmem:[%s0 + $0xc] sm:$0xf]
  %v55 = vld [vmem:[%s0 + $0x10] sm:$0xf]
  %v56 = vld [vmem:[%s0 + $0x14] sm:$0xf]
  %v57 = vld [vmem:[%s0 + $0x18] sm:$0xf]
  %v58 = vld [vmem:[%s0 + $0x1c] sm:$0xf]
  %v59 = vld [vmem:[%s0 + $0x20] sm:$0xf]
  %v60 = vld [vmem:[%s0 + $0x24] sm:$0xf]
  %v61 = vld [vmem:[%s0 + $0x28] sm:$0xf]
  %v62 = vld [vmem:[%s0 + $0x2c] sm:$0xf]
  %v63 = vld [vmem:[%s0 + $0x30] sm:$0xf]
  %v64 = vld [vmem:[%s0 + $0x34] sm:$0xf]
  %v65 = vld [vmem:[%s0 + $0x38] sm:$0xf]
  %v66 = vld [vmem:[%s0 + $0x3c] sm:$0xf]
  %v67 = vld [vmem:[%s1] sm:$0xf]
  %v68 = vld [vmem:[%s1 + $0x4] sm:$0xf]
  %v69 = vld [vmem:[%s1 + $0x8] sm:$0xf]
  %v70 = vld [vmem:[%s1 + $0xc] sm:$0xf]
  %v71 = vld [vmem:[%s1 + $0x10] sm:$0xf]
  %v72 = vld [vmem:[%s1 + $0x14] sm:$0xf]
  %v73 = vld [vmem:[%s1 + $0x18] sm:$0xf]
  %v74 = vld [vmem:[%s1 + $0x1c] sm:$0xf]
  %v75 = vld [vmem:[%s1 + $0x20] sm:$0xf]
  %v76 = vld [vmem:[%s1 + $0x24] sm:$0xf]
  %v77 = vld [vmem:[%s1 + $0x28] sm:$0xf]
  %v78 = vld [vmem:[%s1 + $0x2c] sm:$0xf]
  %v79 = vld [vmem:[%s1 + $0x30] sm:$0xf]
  %v80 = vld [vmem:[%s1 + $0x34] sm:$0xf]
  %v81 = vld [vmem:[%s1 + $0x38] sm:$0xf]
  %v82 = vld [vmem:[%s1 + $0x3c] sm:$0xf]
  %v99 = vunpack.c.l.b16 %v51
  %v100 = vunpack.c.l.b16 %v52
  %v101 = vunpack.c.l.b16 %v53
  %v102 = vunpack.c.l.b16 %v54
  %v103 = vunpack.c.l.b16 %v55
  %v104 = vunpack.c.l.b16 %v56
  %v105 = vunpack.c.l.b16 %v57
  %v106 = vunpack.c.l.b16 %v58
  %v107 = vunpack.c.l.b16 %v59
  %v108 = vunpack.c.l.b16 %v60
  %v109 = vunpack.c.l.b16 %v61
  %v110 = vunpack.c.l.b16 %v62
  %v111 = vunpack.c.l.b16 %v63
  %v112 = vunpack.c.l.b16 %v64
  %v113 = vunpack.c.l.b16 %v65
  %v114 = vunpack.c.l.b16 %v66
  %v115 = vpack.c.b16 %v100, %v99
  %v116 = vpack.c.b16 %v102, %v101
  %v117 = vpack.c.b16 %v104, %v103
  %v118 = vpack.c.b16 %v106, %v105
  %v119 = vpack.c.b16 %v108, %v107
  %v120 = vpack.c.b16 %v110, %v109
  %v121 = vpack.c.b16 %v112, %v111
  %v122 = vpack.c.b16 %v114, %v113
  %v147 = vunpack.c.l.b16 %v67
  %v148 = vunpack.c.l.b16 %v68
  %v149 = vunpack.c.l.b16 %v69
  %v150 = vunpack.c.l.b16 %v70
  %v151 = vunpack.c.l.b16 %v71
  %v152 = vunpack.c.l.b16 %v72
  %v153 = vunpack.c.l.b16 %v73
  %v154 = vunpack.c.l.b16 %v74
  %v155 = vunpack.c.l.b16 %v75
  %v156 = vunpack.c.l.b16 %v76
  %v157 = vunpack.c.l.b16 %v77
  %v158 = vunpack.c.l.b16 %v78
  %v159 = vunpack.c.l.b16 %v79
  %v160 = vunpack.c.l.b16 %v80
  %v161 = vunpack.c.l.b16 %v81
  %v162 = vunpack.c.l.b16 %v82
  %v163 = vpack.c.b16 %v148, %v147
  %v164 = vpack.c.b16 %v150, %v149
  %v165 = vpack.c.b16 %v152, %v151
  %v166 = vpack.c.b16 %v154, %v153
  %v167 = vpack.c.b16 %v156, %v155
  %v168 = vpack.c.b16 %v158, %v157
  %v169 = vpack.c.b16 %v160, %v159
  %v170 = vpack.c.b16 %v162, %v161
  %179 = vmatprep.subr.bf16.mxu0 0
  %180 = vmatpush1.bf16.msra.mxu0 %v170
  %181 = vmatprep.subr.bf16.mxu0 0
  %182 = vmatpush1.bf16.msra.mxu0 %v169
  %183 = vmatprep.subr.bf16.mxu0 0
  %184 = vmatpush1.bf16.msra.mxu0 %v168
  %185 = vmatprep.subr.bf16.mxu0 0
  %186 = vmatpush1.bf16.msra.mxu0 %v167
  %187 = vmatprep.subr.bf16.mxu0 0
  %188 = vmatpush1.bf16.msra.mxu0 %v166
  %189 = vmatprep.subr.bf16.mxu0 0
  %190 = vmatpush1.bf16.msra.mxu0 %v165
  %191 = vmatprep.subr.bf16.mxu0 0
  %192 = vmatpush1.bf16.msra.mxu0 %v164
  %193 = vmatprep.subr.bf16.mxu0 0
  %194 = vmatpush1.bf16.msra.mxu0 %v163
  %195 = vmatprep.subr.bf16.mxu0 0
  %196 = vmatpush2.bf16.msra.mxu0 0
  %197 = vmatprep.subr.bf16.mxu0 0
  %198 = vmatpush2.bf16.msra.mxu0 0
  %199 = vmatprep.subr.bf16.mxu0 0
  %200 = vmatpush2.bf16.msra.mxu0 0
  %201 = vmatprep.subr.bf16.mxu0 0
  %202 = vmatpush2.bf16.msra.mxu0 0
  %203 = vmatprep.subr.bf16.mxu0 0
  %204 = vmatpush2.bf16.msra.mxu0 0
  %205 = vmatprep.subr.bf16.mxu0 0
  %206 = vmatpush2.bf16.msra.mxu0 0
  %207 = vmatprep.subr.bf16.mxu0 0
  %208 = vmatpush2.bf16.msra.mxu0 0
  %209 = vmatprep.subr.bf16.mxu0 0
  %210 = vmatpush2.bf16.msra.mxu0 0
  %211 = vmatprep.mubr.bf16.mxu0 0
  %212 = vmatmul.mubr.bf16.gmra.mxu0 %v115
  %v213 = vpop.f32.mrf.mxu0
  %v214 = vadd.f32 0.0, %v213
  %v215 = vpop.f32.mrf.mxu0
  %v216 = vpop.f32.mrf.mxu0
  %v217 = vadd.f32 0.0, %v216
  %v218 = vpop.f32.mrf.mxu0
  %219 = vmatprep.mubr.bf16.mxu0 0
  %220 = vmatmul.mubr.bf16.gmra.mxu0 %v116
  %v221 = vpop.f32.mrf.mxu0
  %v222 = vadd.f32 0.0, %v221
  %v223 = vpop.f32.mrf.mxu0
  %v224 = vpop.f32.mrf.mxu0
  %v225 = vadd.f32 0.0, %v224
  %v226 = vpop.f32.mrf.mxu0
  %227 = vmatprep.mubr.bf16.mxu0 0
  %228 = vmatmul.mubr.bf16.gmra.mxu0 %v117
  %v229 = vpop.f32.mrf.mxu0
  %v230 = vadd.f32 0.0, %v229
  %v231 = vpop.f32.mrf.mxu0
  %v232 = vpop.f32.mrf.mxu0
  %v233 = vadd.f32 0.0, %v232
  %v234 = vpop.f32.mrf.mxu0
  %235 = vmatprep.mubr.bf16.mxu0 0
  %236 = vmatmul.mubr.bf16.gmra.mxu0 %v118
  %v237 = vpop.f32.mrf.mxu0
  %v238 = vadd.f32 0.0, %v237
  %v239 = vpop.f32.mrf.mxu0
  %v240 = vpop.f32.mrf.mxu0
  %v241 = vadd.f32 0.0, %v240
  %v242 = vpop.f32.mrf.mxu0
  %243 = vmatprep.mubr.bf16.mxu0 0
  %244 = vmatmul.mubr.bf16.gmra.mxu0 %v119
  %v245 = vpop.f32.mrf.mxu0
  %v246 = vadd.f32 0.0, %v245
  %v247 = vpop.f32.mrf.mxu0
  %v248 = vpop.f32.mrf.mxu0
  %v249 = vadd.f32 0.0, %v248
  %v250 = vpop.f32.mrf.mxu0
  %251 = vmatprep.mubr.bf16.mxu0 0
  %252 = vmatmul.mubr.bf16.gmra.mxu0 %v120
  %v253 = vpop.f32.mrf.mxu0
  %v254 = vadd.f32 0.0, %v253
  %v255 = vpop.f32.mrf.mxu0
  %v256 = vpop.f32.mrf.mxu0
  %v257 = vadd.f32 0.0, %v256
  %v258 = vpop.f32.mrf.mxu0
  %259 = vmatprep.mubr.bf16.mxu0 0
  %260 = vmatmul.mubr.bf16.gmra.mxu0 %v121
  %v261 = vpop.f32.mrf.mxu0
  %v262 = vadd.f32 0.0, %v261
  %v263 = vpop.f32.mrf.mxu0
  %v264 = vpop.f32.mrf.mxu0
  %v265 = vadd.f32 0.0, %v264
  %v266 = vpop.f32.mrf.mxu0
  %267 = vmatprep.mubr.bf16.mxu0 0
  %268 = vmatmul.mubr.bf16.gmra.mxu0 %v122
  %v269 = vpop.f32.mrf.mxu0
  %v270 = vadd.f32 0.0, %v269
  %v271 = vpop.f32.mrf.mxu0
  %v272 = vpop.f32.mrf.mxu0
  %v273 = vadd.f32 0.0, %v272
  %v274 = vpop.f32.mrf.mxu0
  %275 = vdwg.mxu0
  %v276 = vadd.f32 %v35, %v214
  %v277 = vadd.f32 %v36, %v217
  %v278 = vadd.f32 %v37, %v222
  %v279 = vadd.f32 %v38, %v225
  %v280 = vadd.f32 %v39, %v230
  %v281 = vadd.f32 %v40, %v233
  %v282 = vadd.f32 %v41, %v238
  %v283 = vadd.f32 %v42, %v241
  %v284 = vadd.f32 %v43, %v246
  %v285 = vadd.f32 %v44, %v249
  %v286 = vadd.f32 %v45, %v254
  %v287 = vadd.f32 %v46, %v257
  %v288 = vadd.f32 %v47, %v262
  %v289 = vadd.f32 %v48, %v265
  %v290 = vadd.f32 %v49, %v270
  %v291 = vadd.f32 %v50, %v273
  %292 = vst [vmem:[#allocation2] sm:$0xff] %v276
  %293 = vst [vmem:[#allocation2 + $0x8] sm:$0xff] %v277
  %294 = vst [vmem:[#allocation2 + $0x10] sm:$0xff] %v278
  %295 = vst [vmem:[#allocation2 + $0x18] sm:$0xff] %v279
  %296 = vst [vmem:[#allocation2 + $0x20] sm:$0xff] %v280
  %297 = vst [vmem:[#allocation2 + $0x28] sm:$0xff] %v281
  %298 = vst [vmem:[#allocation2 + $0x30] sm:$0xff] %v282
  %299 = vst [vmem:[#allocation2 + $0x38] sm:$0xff] %v283
  %300 = vst [vmem:[#allocation2 + $0x40] sm:$0xff] %v284
  %301 = vst [vmem:[#allocation2 + $0x48] sm:$0xff] %v285
  %302 = vst [vmem:[#allocation2 + $0x50] sm:$0xff] %v286
  %303 = vst [vmem:[#allocation2 + $0x58] sm:$0xff] %v287
  %304 = vst [vmem:[#allocation2 + $0x60] sm:$0xff] %v288
  %305 = vst [vmem:[#allocation2 + $0x68] sm:$0xff] %v289
  %306 = vst [vmem:[#allocation2 + $0x70] sm:$0xff] %v290
  %307 = vst [vmem:[#allocation2 + $0x78] sm:$0xff] %v291
  // Predicated region
  $region18: #{decoder_forward.35} parent=0 // pred_check
    %p308 = pneg %p15
  $region19: #{decoder_forward.35} parent=0 // pred_check_branch
    %310 = sbr.rel (%p308) target = $region21
  $region20: #{decoder_forward.35} parent=0 // pred_region
    %v311 = vld [vmem:[#allocation2] sm:$0xff]
    %v312 = vld [vmem:[#allocation2 + $0x8] sm:$0xff]
    %v313 = vld [vmem:[#allocation2 + $0x10] sm:$0xff]
    %v314 = vld [vmem:[#allocation2 + $0x18] sm:$0xff]
    %v315 = vld [vmem:[#allocation2 + $0x20] sm:$0xff]
    %v316 = vld [vmem:[#allocation2 + $0x28] sm:$0xff]
    %v317 = vld [vmem:[#allocation2 + $0x30] sm:$0xff]
    %v318 = vld [vmem:[#allocation2 + $0x38] sm:$0xff]
    %v319 = vld [vmem:[#allocation2 + $0x40] sm:$0xff]
    %v320 = vld [vmem:[#allocation2 + $0x48] sm:$0xff]
    %v321 = vld [vmem:[#allocation2 + $0x50] sm:$0xff]
    %v322 = vld [vmem:[#allocation2 + $0x58] sm:$0xff]
    %v323 = vld [vmem:[#allocation2 + $0x60] sm:$0xff]
    %v324 = vld [vmem:[#allocation2 + $0x68] sm:$0xff]
    %v325 = vld [vmem:[#allocation2 + $0x70] sm:$0xff]
    %v326 = vld [vmem:[#allocation2 + $0x78] sm:$0xff]
    %v327 = vld [vmem:[%s2] sm:$0x1]
    %v329 = vlaneseq
    %v330 = vshrl.u32 %v329, 7
    %v331 = vsub.s32 0, %v330
    %v332 = vrot.slane %v327, %v331
    %v334 = vadd.f32 %v311, %v332
    %v335 = vadd.f32 %v312, %v332
    %v336 = vadd.f32 %v313, %v332
    %v337 = vadd.f32 %v314, %v332
    %v338 = vadd.f32 %v315, %v332
    %v339 = vadd.f32 %v316, %v332
    %v340 = vadd.f32 %v317, %v332
    %v341 = vadd.f32 %v318, %v332
    %v342 = vadd.f32 %v319, %v332
    %v343 = vadd.f32 %v320, %v332
    %v344 = vadd.f32 %v321, %v332
    %v345 = vadd.f32 %v322, %v332
    %v346 = vadd.f32 %v323, %v332
    %v347 = vadd.f32 %v324, %v332
    %v348 = vadd.f32 %v325, %v332
    %v349 = vadd.f32 %v326, %v332
    %v350 = vpack.c.bf16 %v335, %v334
    %v351 = vpack.c.bf16 %v337, %v336
    %v352 = vpack.c.bf16 %v339, %v338
    %v353 = vpack.c.bf16 %v341, %v340
    %v354 = vpack.c.bf16 %v343, %v342
    %v355 = vpack.c.bf16 %v345, %v344
    %v356 = vpack.c.bf16 %v347, %v346
    %v357 = vpack.c.bf16 %v349, %v348
    %v366 = vunpack.c.l.b16 %v350
    %v367 = vunpack.c.h.b16 %v350
    %v368 = vunpack.c.l.b16 %v351
    %v369 = vunpack.c.h.b16 %v351
    %v370 = vunpack.c.l.b16 %v352
    %v371 = vunpack.c.h.b16 %v352
    %v372 = vunpack.c.l.b16 %v353
    %v373 = vunpack.c.h.b16 %v353
    %v374 = vunpack.c.l.b16 %v354
    %v375 = vunpack.c.h.b16 %v354
    %v376 = vunpack.c.l.b16 %v355
    %v377 = vunpack.c.h.b16 %v355
    %v378 = vunpack.c.l.b16 %v356
    %v379 = vunpack.c.h.b16 %v356
    %v380 = vunpack.c.l.b16 %v357
    %v381 = vunpack.c.h.b16 %v357
    %v382 = vpack.c.b16 %v366, %v366
    %v383 = vpack.c.b16 %v367, %v367
    %v384 = vpack.c.b16 %v368, %v368
    %v385 = vpack.c.b16 %v369, %v369
    %v386 = vpack.c.b16 %v370, %v370
    %v387 = vpack.c.b16 %v371, %v371
    %v388 = vpack.c.b16 %v372, %v372
    %v389 = vpack.c.b16 %v373, %v373
    %v390 = vpack.c.b16 %v374, %v374
    %v391 = vpack.c.b16 %v375, %v375
    %v392 = vpack.c.b16 %v376, %v376
    %v393 = vpack.c.b16 %v377, %v377
    %v394 = vpack.c.b16 %v378, %v378
    %v395 = vpack.c.b16 %v379, %v379
    %v396 = vpack.c.b16 %v380, %v380
    %v397 = vpack.c.b16 %v381, %v381
    %414 = vst [vmem:[%s3] sm:$0xf] %v382
    %415 = vst [vmem:[%s3 + $0x4] sm:$0xf] %v383
    %416 = vst [vmem:[%s3 + $0x8] sm:$0xf] %v384
    %417 = vst [vmem:[%s3 + $0xc] sm:$0xf] %v385
    %418 = vst [vmem:[%s3 + $0x10] sm:$0xf] %v386
    %419 = vst [vmem:[%s3 + $0x14] sm:$0xf] %v387
    %420 = vst [vmem:[%s3 + $0x18] sm:$0xf] %v388
    %421 = vst [vmem:[%s3 + $0x1c] sm:$0xf] %v389
    %422 = vst [vmem:[%s3 + $0x20] sm:$0xf] %v390
    %423 = vst [vmem:[%s3 + $0x24] sm:$0xf] %v391
    %424 = vst [vmem:[%s3 + $0x28] sm:$0xf] %v392
    %425 = vst [vmem:[%s3 + $0x2c] sm:$0xf] %v393
    %426 = vst [vmem:[%s3 + $0x30] sm:$0xf] %v394
    %427 = vst [vmem:[%s3 + $0x34] sm:$0xf] %v395
    %428 = vst [vmem:[%s3 + $0x38] sm:$0xf] %v396
    %429 = vst [vmem:[%s3 + $0x3c] sm:$0xf] %v397
  $region21: #{decoder_forward.35} parent=0 // pred_fallthru
    _
  // Predicated region
  $region22: #{decoder_forward.35} parent=0 // pred_check
    _
  $region23: #{decoder_forward.35} parent=0 // pred_check_branch
    %431 = sbr.rel (0) target = $region25
  $region24: #{decoder_forward.35} parent=0 // pred_region
    _
  $region25: #{decoder_forward.35} parent=0 // pred_fallthru
    _
  // Predicated region
  $region26: #{decoder_forward.35} parent=0 // pred_check
    _
  $region27: #{decoder_forward.35} parent=0 // pred_check_branch
    %433 = sbr.rel (0) target = $region29
  $region28: #{decoder_forward.35} parent=0 // pred_region
    _
  $region29: #{decoder_forward.35} parent=0 // pred_fallthru
    _

// kernel: decoder_forward.36
$region0: #{decoder_forward.36}
  #allocation0 [shape = 'u32[]', space=smem, size = 0x4, offset = 0x4, fixed_abs, tag = 'smem constant byte address 0x4 - core index']
  #allocation1 [shape = 'u32[144,128]{1,0:T(1,128)}', space=vmem, size = 0x12000, scoped, tag = 'internal scratch']
  #allocation2 [shape = 'f32[1,8]{1,0:T(1,128)}', space=vmem, size = 0x200, scoped, tag = 'scratch operand']
  #allocation3 [shape = 'f32[1,8]{1,0:T(1,128)}', space=vmem, size = 0x200, scoped, tag = 'scratch operand']
  %s0 = inlined_call_operand.vmem [shape: bf16[2,8,8,8], index: 0, kind: input, shape index: {}]
  %s1 = inlined_call_operand.vmem [shape: f32[2,1,1,8], index: 1, kind: input, shape index: {}]
  %s2 = inlined_call_operand.vmem [shape: f32[2,1,1,8], index: 2, kind: input, shape index: {}]
  %s3 = inlined_call_operand.vmem [shape: bf16[2,8,8,8], index: 3, kind: output, shape index: {}]
  %s4 = sld [smem:[#allocation0]]
  $region57: #{decoder_forward.36} parent=0
    _
  %s6 = ssub.s32 1, %s4
  %s7 = scalar_select 0, %s6, %s4
  loop: start=0, step=1, limit=6
  $region2: #{decoder_forward.36} parent=0 // loop_pre_header
    _
  $region3: #{decoder_forward.36} parent=0 // loop_header
    %s9 = sphi 0, %s13
    %p10 = scmp.ge.s32.totalorder %s9, 6
    %s16 = sphi 0, %s35
    %s17 = sphi 0, %s31
    %s18 = sphi 0, %s27
    %s19 = sphi 0, %s16
    %s20 = sphi 0, %s17
    %s21 = sphi 0, %s18
    %s22 = sphi 0, %s19
    %s23 = sphi 0, %s20
    %s24 = sphi 0, %s21
    %s40 = sphi 0, %s42
    %s43 = sphi 0, %s40
    %s44 = sphi 0, %s43
    %s60 = sphi 0, %s44
    %s66 = sphi 0, %s68
    %s69 = sphi 0, %s66
    %s70 = sphi 0, %s69
    %s86 = sphi 0, %s70
    %s92 = sphi 0, %s94
    %s95 = sphi 0, %s92
    %s96 = sphi 0, %s95
    %s112 = sphi 0, %s96
    %s122 = sphi 0, %s124
    %s125 = sphi 0, %s122
    %s126 = sphi 0, %s125
    %s142 = sphi 0, %s126
  $region4: #{decoder_forward.36} parent=0 // loop_header_branch
    %12 = sbr.rel (%p10) target = $region8
  $region5: #{decoder_forward.36} parent=0 // loop_body
    %s14 = ssub.s32 %s9, 1
    %s15 = ssub.s32 %s9, 2
    %s25 = sadd.s32 1, %s18
    %p26 = scmp.ge.s32.totalorder %s25, 1
    %s27 = scalar_select %p26, 0, %s25
    %s28 = sadd.s32 1, %s17
    %s29 = scalar_select %p26, %s28, %s17
    %p30 = scmp.ge.s32.totalorder %s29, 2
    %s31 = scalar_select %p30, 0, %s29
    %s32 = sadd.s32 1, %s16
    %s33 = scalar_select %p30, %s32, %s16
    %p34 = scmp.ge.s32.totalorder %s33, 2
    %s35 = scalar_select %p34, 0, %s33
    %s36 = ssub.s32 %s16, %s35
    %s37 = ssub.s32 %s18, %s27
    %s38 = sor.u32 %s36, %s37
    %p39 = scmp.eq.s32.totalorder %s38, 0
    %s41 = sadd.s32 %s40, 1
    %s42 = scalar_select %p39, %s40, %s41
    %p45 = pneg %p39
    %p46 = scmp.eq.s32.totalorder %s9, 3
    %p47 = por %p45, %p46
    %p48 = scmp.ne.s32.totalorder %s40, %s43
    %p49 = scmp.eq.s32.totalorder %s9, 0
    %p50 = por %p48, %p49
    %p51 = scmp.ne.s32.totalorder %s40, %s43
    %p52 = scmp.eq.s32.totalorder %s14, 3
    %p53 = por %p51, %p52
    %p54 = scmp.ne.s32.totalorder %s43, %s44
    %p55 = scmp.eq.s32.totalorder %s14, 0
    %p56 = por %p54, %p55
    %p57 = scmp.ne.s32.totalorder %s43, %s44
    %p58 = scmp.eq.s32.totalorder %s15, 3
    %p59 = por %p57, %p58
    %p61 = scmp.ne.s32.totalorder %s44, %s60
    %p62 = scmp.eq.s32.totalorder %s15, 0
    %p63 = por %p61, %p62
    %s64 = ssub.s32 %s16, %s35
    %p65 = scmp.eq.s32.totalorder %s64, 0
    %s67 = sadd.s32 %s66, 1
    %s68 = scalar_select %p65, %s66, %s67
    %p71 = pneg %p65
    %p72 = scmp.eq.s32.totalorder %s9, 3
    %p73 = por %p71, %p72
    %p74 = scmp.ne.s32.totalorder %s66, %s69
    %p75 = scmp.eq.s32.totalorder %s9, 0
    %p76 = por %p74, %p75
    %p77 = scmp.ne.s32.totalorder %s66, %s69
    %p78 = scmp.eq.s32.totalorder %s14, 3
    %p79 = por %p77, %p78
    %p80 = scmp.ne.s32.totalorder %s69, %s70
    %p81 = scmp.eq.s32.totalorder %s14, 0
    %p82 = por %p80, %p81
    %p83 = scmp.ne.s32.totalorder %s69, %s70
    %p84 = scmp.eq.s32.totalorder %s15, 3
    %p85 = por %p83, %p84
    %p87 = scmp.ne.s32.totalorder %s70, %s86
    %p88 = scmp.eq.s32.totalorder %s15, 0
    %p89 = por %p87, %p88
    %s90 = ssub.s32 %s16, %s35
    %p91 = scmp.eq.s32.totalorder %s90, 0
    %s93 = sadd.s32 %s92, 1
    %s94 = scalar_select %p91, %s92, %s93
    %p97 = pneg %p91
    %p98 = scmp.eq.s32.totalorder %s9, 3
    %p99 = por %p97, %p98
    %p100 = scmp.ne.s32.totalorder %s92, %s95
    %p101 = scmp.eq.s32.totalorder %s9, 0
    %p102 = por %p100, %p101
    %p103 = scmp.ne.s32.totalorder %s92, %s95
    %p104 = scmp.eq.s32.totalorder %s14, 3
    %p105 = por %p103, %p104
    %p106 = scmp.ne.s32.totalorder %s95, %s96
    %p107 = scmp.eq.s32.totalorder %s14, 0
    %p108 = por %p106, %p107
    %p109 = scmp.ne.s32.totalorder %s95, %s96
    %p110 = scmp.eq.s32.totalorder %s15, 3
    %p111 = por %p109, %p110
    %p113 = scmp.ne.s32.totalorder %s96, %s112
    %p114 = scmp.eq.s32.totalorder %s15, 0
    %p115 = por %p113, %p114
    %s116 = smul.u32 %s18, %s17
    %s117 = smul.u32 %s27, %s31
    %s118 = ssub.s32 %s16, %s35
    %s119 = ssub.s32 %s116, %s117
    %s120 = sor.u32 %s118, %s119
    %p121 = scmp.eq.s32.totalorder %s120, 0
    %s123 = sadd.s32 %s122, 1
    %s124 = scalar_select %p121, %s122, %s123
    %p127 = pneg %p121
    %p128 = scmp.eq.s32.totalorder %s9, 3
    %p129 = por %p127, %p128
    %p130 = scmp.ne.s32.totalorder %s122, %s125
    %p131 = scmp.eq.s32.totalorder %s9, 0
    %p132 = por %p130, %p131
    %p133 = scmp.ne.s32.totalorder %s122, %s125
    %p134 = scmp.eq.s32.totalorder %s14, 3
    %p135 = por %p133, %p134
    %p136 = scmp.ne.s32.totalorder %s125, %s126
    %p137 = scmp.eq.s32.totalorder %s14, 0
    %p138 = por %p136, %p137
    %p139 = scmp.ne.s32.totalorder %s125, %s126
    %p140 = scmp.eq.s32.totalorder %s15, 3
    %p141 = por %p139, %p140
    %p143 = scmp.ne.s32.totalorder %s126, %s142
    %p144 = scmp.eq.s32.totalorder %s15, 0
    %p145 = por %p143, %p144
    %p146 = scmp.le.s32.totalorder 1, %s9
    %p147 = scmp.lt.s32.totalorder %s9, 5
    %p148 = pnand %p146, %p147
    %p149 = pneg %p148
    // Predicated region
    $region9: #{decoder_forward.36} parent=5 // pred_check
      _
    $region10: #{decoder_forward.36} parent=5 // pred_check_branch
      %151 = sbr.rel (%p148) target = $region12
    $region11: #{decoder_forward.36} parent=5 // pred_region
      %s152 = ssub.s32 %s9, 1
    $region12: #{decoder_forward.36} parent=5 // pred_fallthru
      _
    %p153 = scmp.lt.s32.totalorder %s9, 4
    // Predicated region
    $region13: #{decoder_forward.36} parent=5 // pred_check
      %p154 = pneg %p153
    $region14: #{decoder_forward.36} parent=5 // pred_check_branch
      %156 = sbr.rel (%p154) target = $region16
    $region15: #{decoder_forward.36} parent=5 // pred_region
      // Predicated region
      $region17: #{decoder_forward.36} parent=15 // pred_check
        %p157 = pneg %p50
      $region18: #{decoder_forward.36} parent=15 // pred_check_branch
        %159 = sbr.rel (%p157) target = $region20
      $region19: #{decoder_forward.36} parent=15 // pred_region
        %s160 = smul.u32 8, %s18
        %p161 = scmp.lt.s32.totalorder %s16, 1
        %s162 = scalar_select %p161, %s16, 1
        %p163 = scmp.lt.s32.totalorder %s160, 7
        %s164 = scalar_select %p163, %s160, 7
        %s165 = smul.addr %s162, 8
        %s166 = sadd.s32 %s164, %s165
        %s167 = smul.addr %s166, 4
        %s168 = scalar_lea.vmem %s0, %s167
        %s169 = smul.u32 8, %s18
      $region20: #{decoder_forward.36} parent=15 // pred_fallthru
        _
      // Predicated region
      $region21: #{decoder_forward.36} parent=15 // pred_check
        %p170 = pneg %p76
      $region22: #{decoder_forward.36} parent=15 // pred_check_branch
        %172 = sbr.rel (%p170) target = $region24
      $region23: #{decoder_forward.36} parent=15 // pred_region
        %p173 = scmp.lt.s32.totalorder %s16, 1
        %s174 = scalar_select %p173, %s16, 1
        %s175 = scalar_lea.vmem %s1, %s174
      $region24: #{decoder_forward.36} parent=15 // pred_fallthru
        _
      // Predicated region
      $region25: #{decoder_forward.36} parent=15 // pred_check
        %p176 = pneg %p102
      $region26: #{decoder_forward.36} parent=15 // pred_check_branch
        %178 = sbr.rel (%p176) target = $region28
      $region27: #{decoder_forward.36} parent=15 // pred_region
        %p179 = scmp.lt.s32.totalorder %s16, 1
        %s180 = scalar_select %p179, %s16, 1
        %s181 = scalar_lea.vmem %s2, %s180
      $region28: #{decoder_forward.36} parent=15 // pred_fallthru
        _
    $region16: #{decoder_forward.36} parent=5 // pred_fallthru
      _
    %p182 = scmp.le.s32.totalorder 1, %s9
    %p183 = scmp.lt.s32.totalorder %s9, 5
    %p184 = pnand %p182, %p183
    %p185 = pneg %p184
    // Predicated region
    $region29: #{decoder_forward.36} parent=5 // pred_check
      _
    $region30: #{decoder_forward.36} parent=5 // pred_check_branch
      %187 = sbr.rel (%p184) target = $region32
    $region31: #{decoder_forward.36} parent=5 // pred_region
      %s188 = ssub.s32 %s9, 1
      %s189 = smul.u32 8, %s21
      %p190 = scmp.lt.s32.totalorder %s19, 1
      %s191 = scalar_select %p190, %s19, 1
      %p192 = scmp.lt.s32.totalorder %s189, 7
      %s193 = scalar_select %p192, %s189, 7
      %s194 = smul.addr %s191, 8
      %s195 = sadd.s32 %s193, %s194
      %s196 = smul.addr %s195, 4
      %s197 = scalar_lea.vmem %s0, %s196
      %p198 = pneg %p56
      %p199 = pneg %p53
      %p200 = scmp.lt.s32.totalorder %s19, 1
      %s201 = scalar_select %p200, %s19, 1
      %s202 = scalar_lea.vmem %s1, %s201
      %p203 = pneg %p82
      %p204 = pneg %p79
      %p205 = scmp.lt.s32.totalorder %s19, 1
      %s206 = scalar_select %p205, %s19, 1
      %s207 = scalar_lea.vmem %s2, %s206
      %p208 = pneg %p108
      %p209 = pneg %p105
      %p210 = pneg %p138
      %p211 = pneg %p135
      %s212 = smul.u32 %s21, %s20
      %s213 = smul.u32 8, %s212
      %p214 = scmp.lt.s32.totalorder %s19, 1
      %s215 = scalar_select %p214, %s19, 1
      %p216 = scmp.lt.s32.totalorder %s213, 7
      %s217 = scalar_select %p216, %s213, 7
      %s218 = smul.addr %s215, 8
      %s219 = sadd.s32 %s217, %s218
      %s220 = smul.addr %s219, 4
      %s221 = scalar_lea.vmem %s3, %s220
      %s222 = smul.u32 8, %s21
      %p223 = scmp.lt.s32.totalorder %s19, 1
      %s224 = scalar_select %p223, %s19, 1
      %p225 = scmp.lt.s32.totalorder %s222, 7
      %s226 = scalar_select %p225, %s222, 7
      %s227 = smul.addr %s224, 8
      %s228 = sadd.s32 %s226, %s227
      %s229 = smul.addr %s228, 4
      %s230 = scalar_lea.vmem %s0, %s229
      %s231 = smul.u32 8, %s21
      %p232 = scmp.lt.s32.totalorder %s19, 1
      %s233 = scalar_select %p232, %s19, 1
      %s234 = scalar_lea.vmem %s1, %s233
      %p235 = scmp.lt.s32.totalorder %s19, 1
      %s236 = scalar_select %p235, %s19, 1
      %s237 = scalar_lea.vmem %s2, %s236
      %s238 = smul.u32 %s21, %s20
      %s239 = smul.u32 8, %s238
      %p240 = scmp.lt.s32.totalorder %s19, 1
      %s241 = scalar_select %p240, %s19, 1
      %p242 = scmp.lt.s32.totalorder %s239, 7
      %s243 = scalar_select %p242, %s239, 7
      %s244 = smul.addr %s241, 8
      %s245 = sadd.s32 %s243, %s244
      %s246 = smul.addr %s245, 4
      %s247 = scalar_lea.vmem %s3, %s246
      %s248 = smul.u32 %s21, %s20
      %s249 = smul.u32 8, %s248
      %p250 = scmp.eq.s32.totalorder %s20, 0
      // Predicated region
      $region33: #{decoder_forward.36} parent=31 // pred_check
        %p251 = pneg %p250
      $region34: #{decoder_forward.36} parent=31 // pred_check_branch
        %253 = sbr.rel (%p251) target = $region36
      $region35: #{decoder_forward.36} parent=31 // pred_region
        %v254 = vld [vmem:[%s230] sm:$0xf]
        %v255 = vld [vmem:[%s230 + $0x4] sm:$0xf]
        %v256 = vld [vmem:[%s230 + $0x8] sm:$0xf]
        %v257 = vld [vmem:[%s230 + $0xc] sm:$0xf]
        %v258 = vld [vmem:[%s230 + $0x10] sm:$0xf]
        %v259 = vld [vmem:[%s230 + $0x14] sm:$0xf]
        %v260 = vld [vmem:[%s230 + $0x18] sm:$0xf]
        %v261 = vld [vmem:[%s230 + $0x1c] sm:$0xf]
        %v262 = vunpack.c.l.bf16 %v254
        %v263 = vunpack.c.l.bf16 %v255
        %v264 = vunpack.c.l.bf16 %v256
        %v265 = vunpack.c.l.bf16 %v257
        %v266 = vunpack.c.l.bf16 %v258
        %v267 = vunpack.c.l.bf16 %v259
        %v268 = vunpack.c.l.bf16 %v260
        %v269 = vunpack.c.l.bf16 %v261
        %p270 = scmp.eq.s32.totalorder %s21, 0
        // Predicated region
        $region37: #{decoder_forward.36} parent=35 // pred_check
          %p271 = pneg %p270
        $region38: #{decoder_forward.36} parent=35 // pred_check_branch
          %273 = sbr.rel (%p271) target = $region40
        $region39: #{decoder_forward.36} parent=35 // pred_region
          %vm274 = vcmask 57344
          %275 = vst.msk [vmem:[#allocation2] sm:$0x1] %vm274, 0.0
          %276 = vst.msk [vmem:[#allocation3] sm:$0x1] %vm274, 0.0
        $region40: #{decoder_forward.36} parent=35 // pred_fallthru
          _
        %v277 = vld [vmem:[#allocation2] sm:$0x1]
        %vm278 = vcmask 64512
        %v279 = vsel %vm278, %v262, 0.0
        %v280 = vsel %vm278, %v263, 0.0
        %v281 = vadd.f32 %v279, %v280
        %v282 = vsel %vm278, %v264, 0.0
        %v283 = vadd.f32 %v281, %v282
        %v284 = vsel %vm278, %v265, 0.0
        %v285 = vadd.f32 %v283, %v284
        %v286 = vsel %vm278, %v266, 0.0
        %v287 = vadd.f32 %v285, %v286
        %v288 = vsel %vm278, %v267, 0.0
        %v289 = vadd.f32 %v287, %v288
        %v290 = vsel %vm278, %v268, 0.0
        %v291 = vadd.f32 %v289, %v290
        %v292 = vsel %vm278, %v269, 0.0
        %v293 = vadd.f32 %v291, %v292
        %v294 = vrot.slane %v293, 4
        %v295 = vadd.f32 %v293, %v294
        %v296 = vrot.slane %v295, 2
        %v297 = vadd.f32 %v295, %v296
        %v298 = vrot.slane %v297, 1
        %v299 = vadd.f32 %v297, %v298
        %v300 = vadd.f32 %v277, %v299
        %vm301 = vcmask 57344
        %302 = vst.msk [vmem:[#allocation2] sm:$0x1] %vm301, %v300
        %v303 = vld [vmem:[#allocation3] sm:$0x1]
        %v304 = vmul.f32 %v262, %v262
        %v305 = vmul.f32 %v263, %v263
        %v306 = vmul.f32 %v264, %v264
        %v307 = vmul.f32 %v265, %v265
        %v308 = vmul.f32 %v266, %v266
        %v309 = vmul.f32 %v267, %v267
        %v310 = vmul.f32 %v268, %v268
        %v311 = vmul.f32 %v269, %v269
        %v312 = vsel %vm278, %v304, 0.0
        %v313 = vsel %vm278, %v305, 0.0
        %v314 = vadd.f32 %v312, %v313
        %v315 = vsel %vm278, %v306, 0.0
        %v316 = vadd.f32 %v314, %v315
        %v317 = vsel %vm278, %v307, 0.0
        %v318 = vadd.f32 %v316, %v317
        %v319 = vsel %vm278, %v308, 0.0
        %v320 = vadd.f32 %v318, %v319
        %v321 = vsel %vm278, %v309, 0.0
        %v322 = vadd.f32 %v320, %v321
        %v323 = vsel %vm278, %v310, 0.0
        %v324 = vadd.f32 %v322, %v323
        %v325 = vsel %vm278, %v311, 0.0
        %v326 = vadd.f32 %v324, %v325
        %v327 = vrot.slane %v326, 4
        %v328 = vadd.f32 %v326, %v327
        %v329 = vrot.slane %v328, 2
        %v330 = vadd.f32 %v328, %v329
        %v331 = vrot.slane %v330, 1
        %v332 = vadd.f32 %v330, %v331
        %v333 = vadd.f32 %v303, %v332
        %334 = vst.msk [vmem:[#allocation3] sm:$0x1] %vm301, %v333
      $region36: #{decoder_forward.36} parent=31 // pred_fallthru
        _
      %p335 = scmp.eq.s32.totalorder %s20, 1
      // Predicated region
      $region41: #{decoder_forward.36} parent=31 // pred_check
        %p336 = pneg %p335
      $region42: #{decoder_forward.36} parent=31 // pred_check_branch
        %338 = sbr.rel (%p336) target = $region44
      $region43: #{decoder_forward.36} parent=31 // pred_region
        %v339 = vld [vmem:[%s230] sm:$0xf]
        %v340 = vld [vmem:[%s230 + $0x4] sm:$0xf]
        %v341 = vld [vmem:[%s230 + $0x8] sm:$0xf]
        %v342 = vld [vmem:[%s230 + $0xc] sm:$0xf]
        %v343 = vld [vmem:[%s230 + $0x10] sm:$0xf]
        %v344 = vld [vmem:[%s230 + $0x14] sm:$0xf]
        %v345 = vld [vmem:[%s230 + $0x18] sm:$0xf]
        %v346 = vld [vmem:[%s230 + $0x1c] sm:$0xf]
        %v347 = vunpack.c.l.bf16 %v339
        %v348 = vunpack.c.l.bf16 %v340
        %v349 = vunpack.c.l.bf16 %v341
        %v350 = vunpack.c.l.bf16 %v342
        %v351 = vunpack.c.l.bf16 %v343
        %v352 = vunpack.c.l.bf16 %v344
        %v353 = vunpack.c.l.bf16 %v345
        %v354 = vunpack.c.l.bf16 %v346
        %v355 = vld [vmem:[#allocation2] sm:$0x1]
        %v356 = vmul.f32 %v355, 0.015625
        %v357 = vld [vmem:[#allocation3] sm:$0x1]
        %v358 = vmul.f32 %v357, 0.015625
        %v359 = vmul.f32 %v356, %v356
        %v360 = vsub.f32 %v358, %v359
        %v361 = vmax.f32 %v360, 0.0
        %v362 = vadd.f32 %v361, 1e-05
        %v363 = vrsqrt.pop %v362
        %v365 = vlaneseq
        %v366 = vshrl.u32 %v365, 7
        %v367 = vsub.s32 0, %v366
        %v368 = vrot.slane %v356, %v367
        %v370 = vsub.f32 %v347, %v368
        %v371 = vsub.f32 %v348, %v368
        %v372 = vsub.f32 %v349, %v368
        %v373 = vsub.f32 %v350, %v368
        %v374 = vsub.f32 %v351, %v368
        %v375 = vsub.f32 %v352, %v368
        %v376 = vsub.f32 %v353, %v368
        %v377 = vsub.f32 %v354, %v368
        %v379 = vlaneseq
        %v380 = vshrl.u32 %v379, 7
        %v381 = vsub.s32 0, %v380
        %v382 = vrot.slane %v363, %v381
        %v384 = vmul.f32 %v370, %v382
        %v385 = vmul.f32 %v371, %v382
        %v386 = vmul.f32 %v372, %v382
        %v387 = vmul.f32 %v373, %v382
        %v388 = vmul.f32 %v374, %v382
        %v389 = vmul.f32 %v375, %v382
        %v390 = vmul.f32 %v376, %v382
        %v391 = vmul.f32 %v377, %v382
        %v392 = vld [vmem:[%s234] sm:$0x1]
        %v393 = vadd.f32 %v392, 1.0
        %v395 = vlaneseq
        %v396 = vshrl.u32 %v395, 7
        %v397 = vsub.s32 0, %v396
        %v398 = vrot.slane %v393, %v397
        %v400 = vmul.f32 %v384, %v398
        %v401 = vmul.f32 %v385, %v398
        %v402 = vmul.f32 %v386, %v398
        %v403 = vmul.f32 %v387, %v398
        %v404 = vmul.f32 %v388, %v398
        %v405 = vmul.f32 %v389, %v398
        %v406 = vmul.f32 %v390, %v398
        %v407 = vmul.f32 %v391, %v398
        %v408 = vld [vmem:[%s237] sm:$0x1]
        %v410 = vlaneseq
        %v411 = vshrl.u32 %v410, 7
        %v412 = vsub.s32 0, %v411
        %v413 = vrot.slane %v408, %v412
        %v415 = vadd.f32 %v400, %v413
        %v416 = vadd.f32 %v401, %v413
        %v417 = vadd.f32 %v402, %v413
        %v418 = vadd.f32 %v403, %v413
        %v419 = vadd.f32 %v404, %v413
        %v420 = vadd.f32 %v405, %v413
        %v421 = vadd.f32 %v406, %v413
        %v422 = vadd.f32 %v407, %v413
        %vm423 = vcmp.ge.f32.partialorder %v415, 0.0
        %vm424 = vcmp.ge.f32.partialorder %v416, 0.0
        %vm425 = vcmp.ge.f32.partialorder %v417, 0.0
        %vm426 = vcmp.ge.f32.partialorder %v418, 0.0
        %vm427 = vcmp.ge.f32.partialorder %v419, 0.0
        %vm428 = vcmp.ge.f32.partialorder %v420, 0.0
        %vm429 = vcmp.ge.f32.partialorder %v421, 0.0
        %vm430 = vcmp.ge.f32.partialorder %v422, 0.0
        %v431 = vmul.f32 %v415, 0.01
        %v432 = vmul.f32 %v416, 0.01
        %v433 = vmul.f32 %v417, 0.01
        %v434 = vmul.f32 %v418, 0.01
        %v435 = vmul.f32 %v419, 0.01
        %v436 = vmul.f32 %v420, 0.01
        %v437 = vmul.f32 %v421, 0.01
        %v438 = vmul.f32 %v422, 0.01
        %v439 = vsel %vm423, %v415, %v431
        %v440 = vsel %vm424, %v416, %v432
        %v441 = vsel %vm425, %v417, %v433
        %v442 = vsel %vm426, %v418, %v434
        %v443 = vsel %vm427, %v419, %v435
        %v444 = vsel %vm428, %v420, %v436
        %v445 = vsel %vm429, %v421, %v437
        %v446 = vsel %vm430, %v422, %v438
        %v447 = vpack.c.bf16 %v439, %v439
        %v448 = vpack.c.bf16 %v440, %v440
        %v449 = vpack.c.bf16 %v441, %v441
        %v450 = vpack.c.bf16 %v442, %v442
        %v451 = vpack.c.bf16 %v443, %v443
        %v452 = vpack.c.bf16 %v444, %v444
        %v453 = vpack.c.bf16 %v445, %v445
        %v454 = vpack.c.bf16 %v446, %v446
        %vm455 = vcmask 60416
        %456 = vst.msk [vmem:[%s247] sm:$0xf] %vm455, %v447
        %457 = vst.msk [vmem:[%s247 + $0x4] sm:$0xf] %vm455, %v448
        %458 = vst.msk [vmem:[%s247 + $0x8] sm:$0xf] %vm455, %v449
        %459 = vst.msk [vmem:[%s247 + $0xc] sm:$0xf] %vm455, %v450
        %460 = vst.msk [vmem:[%s247 + $0x10] sm:$0xf] %vm455, %v451
        %461 = vst.msk [vmem:[%s247 + $0x14] sm:$0xf] %vm455, %v452
        %462 = vst.msk [vmem:[%s247 + $0x18] sm:$0xf] %vm455, %v453
        %463 = vst.msk [vmem:[%s247 + $0x1c] sm:$0xf] %vm455, %v454
      $region44: #{decoder_forward.36} parent=31 // pred_fallthru
        _
      %s464 = smul.u32 %s21, %s20
      %s465 = smul.u32 8, %s464
      %p466 = scmp.lt.s32.totalorder %s19, 1
      %s467 = scalar_select %p466, %s19, 1
      %p468 = scmp.lt.s32.totalorder %s465, 7
      %s469 = scalar_select %p468, %s465, 7
      %s470 = smul.addr %s467, 8
      %s471 = sadd.s32 %s469, %s470
      %s472 = smul.addr %s471, 4
      %s473 = scalar_lea.vmem %s3, %s472
      // Predicated region
      $region45: #{decoder_forward.36} parent=31 // pred_check
        %p474 = pneg %p135
      $region46: #{decoder_forward.36} parent=31 // pred_check_branch
        %476 = sbr.rel (%p474) target = $region48
      $region47: #{decoder_forward.36} parent=31 // pred_region
        %s477 = smul.u32 %s21, %s20
        %s478 = smul.u32 8, %s477
      $region48: #{decoder_forward.36} parent=31 // pred_fallthru
        _
    $region32: #{decoder_forward.36} parent=5 // pred_fallthru
      _
    %p479 = scmp.le.s32.totalorder 2, %s9
    // Predicated region
    $region49: #{decoder_forward.36} parent=5 // pred_check
      %p480 = pneg %p479
    $region50: #{decoder_forward.36} parent=5 // pred_check_branch
      %482 = sbr.rel (%p480) target = $region52
    $region51: #{decoder_forward.36} parent=5 // pred_region
      %s483 = ssub.s32 %s9, 2
      // Predicated region
      $region53: #{decoder_forward.36} parent=51 // pred_check
        %p484 = pneg %p141
      $region54: #{decoder_forward.36} parent=51 // pred_check_branch
        %486 = sbr.rel (%p484) target = $region56
      $region55: #{decoder_forward.36} parent=51 // pred_region
        %s487 = smul.u32 %s24, %s23
        %s488 = smul.u32 8, %s487
        %p489 = scmp.lt.s32.totalorder %s22, 1
        %s490 = scalar_select %p489, %s22, 1
        %p491 = scmp.lt.s32.totalorder %s488, 7
        %s492 = scalar_select %p491, %s488, 7
        %s493 = smul.addr %s490, 8
        %s494 = sadd.s32 %s492, %s493
        %s495 = smul.addr %s494, 4
        %s496 = scalar_lea.vmem %s3, %s495
      $region56: #{decoder_forward.36} parent=51 // pred_fallthru
        _
    $region52: #{decoder_forward.36} parent=5 // pred_fallthru
      _
  $region6: #{decoder_forward.36} parent=0 // loop_footer
    %s13 = sadd.s32 1, %s9
  $region7: #{decoder_forward.36} parent=0 // loop_footer_branch
    %8 = sbr.rel target = $region3
  $region8: #{decoder_forward.36} parent=0 // loop_exit
    _

// kernel: decoder_forward.39
$region0: #{decoder_forward.39}
  #allocation0 [shape = 'u32[]', space=smem, size = 0x4, offset = 0x4, fixed_abs, tag = 'smem constant byte address 0x4 - core index']
  #allocation1 [shape = 'u32[144,128]{1,0:T(1,128)}', space=vmem, size = 0x12000, scoped, tag = 'internal scratch']
  #allocation2 [shape = 'f32[1,8]{1,0:T(1,128)}', space=vmem, size = 0x200, scoped, tag = 'scratch operand']
  #allocation3 [shape = 'f32[1,8]{1,0:T(1,128)}', space=vmem, size = 0x200, scoped, tag = 'scratch operand']
  %s0 = inlined_call_operand.vmem [shape: bf16[2,8,8,8], index: 0, kind: input, shape index: {}]
  %s1 = inlined_call_operand.vmem [shape: f32[2,1,1,8], index: 1, kind: input, shape index: {}]
  %s2 = inlined_call_operand.vmem [shape: f32[2,1,1,8], index: 2, kind: input, shape index: {}]
  %s3 = inlined_call_operand.vmem [shape: bf16[2,8,8,8], index: 3, kind: output, shape index: {}]
  %s4 = sld [smem:[#allocation0]]
  $region57: #{decoder_forward.39} parent=0
    _
  %s6 = ssub.s32 1, %s4
  %s7 = scalar_select 0, %s6, %s4
  loop: start=0, step=1, limit=6
  $region2: #{decoder_forward.39} parent=0 // loop_pre_header
    _
  $region3: #{decoder_forward.39} parent=0 // loop_header
    %s9 = sphi 0, %s13
    %p10 = scmp.ge.s32.totalorder %s9, 6
    %s16 = sphi 0, %s35
    %s17 = sphi 0, %s31
    %s18 = sphi 0, %s27
    %s19 = sphi 0, %s16
    %s20 = sphi 0, %s17
    %s21 = sphi 0, %s18
    %s22 = sphi 0, %s19
    %s23 = sphi 0, %s20
    %s24 = sphi 0, %s21
    %s40 = sphi 0, %s42
    %s43 = sphi 0, %s40
    %s44 = sphi 0, %s43
    %s60 = sphi 0, %s44
    %s66 = sphi 0, %s68
    %s69 = sphi 0, %s66
    %s70 = sphi 0, %s69
    %s86 = sphi 0, %s70
    %s92 = sphi 0, %s94
    %s95 = sphi 0, %s92
    %s96 = sphi 0, %s95
    %s112 = sphi 0, %s96
    %s122 = sphi 0, %s124
    %s125 = sphi 0, %s122
    %s126 = sphi 0, %s125
    %s142 = sphi 0, %s126
  $region4: #{decoder_forward.39} parent=0 // loop_header_branch
    %12 = sbr.rel (%p10) target = $region8
  $region5: #{decoder_forward.39} parent=0 // loop_body
    %s14 = ssub.s32 %s9, 1
    %s15 = ssub.s32 %s9, 2
    %s25 = sadd.s32 1, %s18
    %p26 = scmp.ge.s32.totalorder %s25, 1
    %s27 = scalar_select %p26, 0, %s25
    %s28 = sadd.s32 1, %s17
    %s29 = scalar_select %p26, %s28, %s17
    %p30 = scmp.ge.s32.totalorder %s29, 2
    %s31 = scalar_select %p30, 0, %s29
    %s32 = sadd.s32 1, %s16
    %s33 = scalar_select %p30, %s32, %s16
    %p34 = scmp.ge.s32.totalorder %s33, 2
    %s35 = scalar_select %p34, 0, %s33
    %s36 = ssub.s32 %s16, %s35
    %s37 = ssub.s32 %s18, %s27
    %s38 = sor.u32 %s36, %s37
    %p39 = scmp.eq.s32.totalorder %s38, 0
    %s41 = sadd.s32 %s40, 1
    %s42 = scalar_select %p39, %s40, %s41
    %p45 = pneg %p39
    %p46 = scmp.eq.s32.totalorder %s9, 3
    %p47 = por %p45, %p46
    %p48 = scmp.ne.s32.totalorder %s40, %s43
    %p49 = scmp.eq.s32.totalorder %s9, 0
    %p50 = por %p48, %p49
    %p51 = scmp.ne.s32.totalorder %s40, %s43
    %p52 = scmp.eq.s32.totalorder %s14, 3
    %p53 = por %p51, %p52
    %p54 = scmp.ne.s32.totalorder %s43, %s44
    %p55 = scmp.eq.s32.totalorder %s14, 0
    %p56 = por %p54, %p55
    %p57 = scmp.ne.s32.totalorder %s43, %s44
    %p58 = scmp.eq.s32.totalorder %s15, 3
    %p59 = por %p57, %p58
    %p61 = scmp.ne.s32.totalorder %s44, %s60
    %p62 = scmp.eq.s32.totalorder %s15, 0
    %p63 = por %p61, %p62
    %s64 = ssub.s32 %s16, %s35
    %p65 = scmp.eq.s32.totalorder %s64, 0
    %s67 = sadd.s32 %s66, 1
    %s68 = scalar_select %p65, %s66, %s67
    %p71 = pneg %p65
    %p72 = scmp.eq.s32.totalorder %s9, 3
    %p73 = por %p71, %p72
    %p74 = scmp.ne.s32.totalorder %s66, %s69
    %p75 = scmp.eq.s32.totalorder %s9, 0
    %p76 = por %p74, %p75
    %p77 = scmp.ne.s32.totalorder %s66, %s69
    %p78 = scmp.eq.s32.totalorder %s14, 3
    %p79 = por %p77, %p78
    %p80 = scmp.ne.s32.totalorder %s69, %s70
    %p81 = scmp.eq.s32.totalorder %s14, 0
    %p82 = por %p80, %p81
    %p83 = scmp.ne.s32.totalorder %s69, %s70
    %p84 = scmp.eq.s32.totalorder %s15, 3
    %p85 = por %p83, %p84
    %p87 = scmp.ne.s32.totalorder %s70, %s86
    %p88 = scmp.eq.s32.totalorder %s15, 0
    %p89 = por %p87, %p88
    %s90 = ssub.s32 %s16, %s35
    %p91 = scmp.eq.s32.totalorder %s90, 0
    %s93 = sadd.s32 %s92, 1
    %s94 = scalar_select %p91, %s92, %s93
    %p97 = pneg %p91
    %p98 = scmp.eq.s32.totalorder %s9, 3
    %p99 = por %p97, %p98
    %p100 = scmp.ne.s32.totalorder %s92, %s95
    %p101 = scmp.eq.s32.totalorder %s9, 0
    %p102 = por %p100, %p101
    %p103 = scmp.ne.s32.totalorder %s92, %s95
    %p104 = scmp.eq.s32.totalorder %s14, 3
    %p105 = por %p103, %p104
    %p106 = scmp.ne.s32.totalorder %s95, %s96
    %p107 = scmp.eq.s32.totalorder %s14, 0
    %p108 = por %p106, %p107
    %p109 = scmp.ne.s32.totalorder %s95, %s96
    %p110 = scmp.eq.s32.totalorder %s15, 3
    %p111 = por %p109, %p110
    %p113 = scmp.ne.s32.totalorder %s96, %s112
    %p114 = scmp.eq.s32.totalorder %s15, 0
    %p115 = por %p113, %p114
    %s116 = smul.u32 %s18, %s17
    %s117 = smul.u32 %s27, %s31
    %s118 = ssub.s32 %s16, %s35
    %s119 = ssub.s32 %s116, %s117
    %s120 = sor.u32 %s118, %s119
    %p121 = scmp.eq.s32.totalorder %s120, 0
    %s123 = sadd.s32 %s122, 1
    %s124 = scalar_select %p121, %s122, %s123
    %p127 = pneg %p121
    %p128 = scmp.eq.s32.totalorder %s9, 3
    %p129 = por %p127, %p128
    %p130 = scmp.ne.s32.totalorder %s122, %s125
    %p131 = scmp.eq.s32.totalorder %s9, 0
    %p132 = por %p130, %p131
    %p133 = scmp.ne.s32.totalorder %s122, %s125
    %p134 = scmp.eq.s32.totalorder %s14, 3
    %p135 = por %p133, %p134
    %p136 = scmp.ne.s32.totalorder %s125, %s126
    %p137 = scmp.eq.s32.totalorder %s14, 0
    %p138 = por %p136, %p137
    %p139 = scmp.ne.s32.totalorder %s125, %s126
    %p140 = scmp.eq.s32.totalorder %s15, 3
    %p141 = por %p139, %p140
    %p143 = scmp.ne.s32.totalorder %s126, %s142
    %p144 = scmp.eq.s32.totalorder %s15, 0
    %p145 = por %p143, %p144
    %p146 = scmp.le.s32.totalorder 1, %s9
    %p147 = scmp.lt.s32.totalorder %s9, 5
    %p148 = pnand %p146, %p147
    %p149 = pneg %p148
    // Predicated region
    $region9: #{decoder_forward.39} parent=5 // pred_check
      _
    $region10: #{decoder_forward.39} parent=5 // pred_check_branch
      %151 = sbr.rel (%p148) target = $region12
    $region11: #{decoder_forward.39} parent=5 // pred_region
      %s152 = ssub.s32 %s9, 1
    $region12: #{decoder_forward.39} parent=5 // pred_fallthru
      _
    %p153 = scmp.lt.s32.totalorder %s9, 4
    // Predicated region
    $region13: #{decoder_forward.39} parent=5 // pred_check
      %p154 = pneg %p153
    $region14: #{decoder_forward.39} parent=5 // pred_check_branch
      %156 = sbr.rel (%p154) target = $region16
    $region15: #{decoder_forward.39} parent=5 // pred_region
      // Predicated region
      $region17: #{decoder_forward.39} parent=15 // pred_check
        %p157 = pneg %p50
      $region18: #{decoder_forward.39} parent=15 // pred_check_branch
        %159 = sbr.rel (%p157) target = $region20
      $region19: #{decoder_forward.39} parent=15 // pred_region
        %s160 = smul.u32 8, %s18
        %p161 = scmp.lt.s32.totalorder %s16, 1
        %s162 = scalar_select %p161, %s16, 1
        %p163 = scmp.lt.s32.totalorder %s160, 7
        %s164 = scalar_select %p163, %s160, 7
        %s165 = smul.addr %s162, 8
        %s166 = sadd.s32 %s164, %s165
        %s167 = smul.addr %s166, 4
        %s168 = scalar_lea.vmem %s0, %s167
        %s169 = smul.u32 8, %s18
      $region20: #{decoder_forward.39} parent=15 // pred_fallthru
        _
      // Predicated region
      $region21: #{decoder_forward.39} parent=15 // pred_check
        %p170 = pneg %p76
      $region22: #{decoder_forward.39} parent=15 // pred_check_branch
        %172 = sbr.rel (%p170) target = $region24
      $region23: #{decoder_forward.39} parent=15 // pred_region
        %p173 = scmp.lt.s32.totalorder %s16, 1
        %s174 = scalar_select %p173, %s16, 1
        %s175 = scalar_lea.vmem %s1, %s174
      $region24: #{decoder_forward.39} parent=15 // pred_fallthru
        _
      // Predicated region
      $region25: #{decoder_forward.39} parent=15 // pred_check
        %p176 = pneg %p102
      $region26: #{decoder_forward.39} parent=15 // pred_check_branch
        %178 = sbr.rel (%p176) target = $region28
      $region27: #{decoder_forward.39} parent=15 // pred_region
        %p179 = scmp.lt.s32.totalorder %s16, 1
        %s180 = scalar_select %p179, %s16, 1
        %s181 = scalar_lea.vmem %s2, %s180
      $region28: #{decoder_forward.39} parent=15 // pred_fallthru
        _
    $region16: #{decoder_forward.39} parent=5 // pred_fallthru
      _
    %p182 = scmp.le.s32.totalorder 1, %s9
    %p183 = scmp.lt.s32.totalorder %s9, 5
    %p184 = pnand %p182, %p183
    %p185 = pneg %p184
    // Predicated region
    $region29: #{decoder_forward.39} parent=5 // pred_check
      _
    $region30: #{decoder_forward.39} parent=5 // pred_check_branch
      %187 = sbr.rel (%p184) target = $region32
    $region31: #{decoder_forward.39} parent=5 // pred_region
      %s188 = ssub.s32 %s9, 1
      %s189 = smul.u32 8, %s21
      %p190 = scmp.lt.s32.totalorder %s19, 1
      %s191 = scalar_select %p190, %s19, 1
      %p192 = scmp.lt.s32.totalorder %s189, 7
      %s193 = scalar_select %p192, %s189, 7
      %s194 = smul.addr %s191, 8
      %s195 = sadd.s32 %s193, %s194
      %s196 = smul.addr %s195, 4
      %s197 = scalar_lea.vmem %s0, %s196
      %p198 = pneg %p56
      %p199 = pneg %p53
      %p200 = scmp.lt.s32.totalorder %s19, 1
      %s201 = scalar_select %p200, %s19, 1
      %s202 = scalar_lea.vmem %s1, %s201
      %p203 = pneg %p82
      %p204 = pneg %p79
      %p205 = scmp.lt.s32.totalorder %s19, 1
      %s206 = scalar_select %p205, %s19, 1
      %s207 = scalar_lea.vmem %s2, %s206
      %p208 = pneg %p108
      %p209 = pneg %p105
      %p210 = pneg %p138
      %p211 = pneg %p135
      %s212 = smul.u32 %s21, %s20
      %s213 = smul.u32 8, %s212
      %p214 = scmp.lt.s32.totalorder %s19, 1
      %s215 = scalar_select %p214, %s19, 1
      %p216 = scmp.lt.s32.totalorder %s213, 7
      %s217 = scalar_select %p216, %s213, 7
      %s218 = smul.addr %s215, 8
      %s219 = sadd.s32 %s217, %s218
      %s220 = smul.addr %s219, 4
      %s221 = scalar_lea.vmem %s3, %s220
      %s222 = smul.u32 8, %s21
      %p223 = scmp.lt.s32.totalorder %s19, 1
      %s224 = scalar_select %p223, %s19, 1
      %p225 = scmp.lt.s32.totalorder %s222, 7
      %s226 = scalar_select %p225, %s222, 7
      %s227 = smul.addr %s224, 8
      %s228 = sadd.s32 %s226, %s227
      %s229 = smul.addr %s228, 4
      %s230 = scalar_lea.vmem %s0, %s229
      %s231 = smul.u32 8, %s21
      %p232 = scmp.lt.s32.totalorder %s19, 1
      %s233 = scalar_select %p232, %s19, 1
      %s234 = scalar_lea.vmem %s1, %s233
      %p235 = scmp.lt.s32.totalorder %s19, 1
      %s236 = scalar_select %p235, %s19, 1
      %s237 = scalar_lea.vmem %s2, %s236
      %s238 = smul.u32 %s21, %s20
      %s239 = smul.u32 8, %s238
      %p240 = scmp.lt.s32.totalorder %s19, 1
      %s241 = scalar_select %p240, %s19, 1
      %p242 = scmp.lt.s32.totalorder %s239, 7
      %s243 = scalar_select %p242, %s239, 7
      %s244 = smul.addr %s241, 8
      %s245 = sadd.s32 %s243, %s244
      %s246 = smul.addr %s245, 4
      %s247 = scalar_lea.vmem %s3, %s246
      %s248 = smul.u32 %s21, %s20
      %s249 = smul.u32 8, %s248
      %p250 = scmp.eq.s32.totalorder %s20, 0
      // Predicated region
      $region33: #{decoder_forward.39} parent=31 // pred_check
        %p251 = pneg %p250
      $region34: #{decoder_forward.39} parent=31 // pred_check_branch
        %253 = sbr.rel (%p251) target = $region36
      $region35: #{decoder_forward.39} parent=31 // pred_region
        %v254 = vld [vmem:[%s230] sm:$0xf]
        %v255 = vld [vmem:[%s230 + $0x4] sm:$0xf]
        %v256 = vld [vmem:[%s230 + $0x8] sm:$0xf]
        %v257 = vld [vmem:[%s230 + $0xc] sm:$0xf]
        %v258 = vld [vmem:[%s230 + $0x10] sm:$0xf]
        %v259 = vld [vmem:[%s230 + $0x14] sm:$0xf]
        %v260 = vld [vmem:[%s230 + $0x18] sm:$0xf]
        %v261 = vld [vmem:[%s230 + $0x1c] sm:$0xf]
        %v262 = vunpack.c.l.bf16 %v254
        %v263 = vunpack.c.l.bf16 %v255
        %v264 = vunpack.c.l.bf16 %v256
        %v265 = vunpack.c.l.bf16 %v257
        %v266 = vunpack.c.l.bf16 %v258
        %v267 = vunpack.c.l.bf16 %v259
        %v268 = vunpack.c.l.bf16 %v260
        %v269 = vunpack.c.l.bf16 %v261
        %p270 = scmp.eq.s32.totalorder %s21, 0
        // Predicated region
        $region37: #{decoder_forward.39} parent=35 // pred_check
          %p271 = pneg %p270
        $region38: #{decoder_forward.39} parent=35 // pred_check_branch
          %273 = sbr.rel (%p271) target = $region40
        $region39: #{decoder_forward.39} parent=35 // pred_region
          %vm274 = vcmask 57344
          %275 = vst.msk [vmem:[#allocation2] sm:$0x1] %vm274, 0.0
          %276 = vst.msk [vmem:[#allocation3] sm:$0x1] %vm274, 0.0
        $region40: #{decoder_forward.39} parent=35 // pred_fallthru
          _
        %v277 = vld [vmem:[#allocation2] sm:$0x1]
        %vm278 = vcmask 64512
        %v279 = vsel %vm278, %v262, 0.0
        %v280 = vsel %vm278, %v263, 0.0
        %v281 = vadd.f32 %v279, %v280
        %v282 = vsel %vm278, %v264, 0.0
        %v283 = vadd.f32 %v281, %v282
        %v284 = vsel %vm278, %v265, 0.0
        %v285 = vadd.f32 %v283, %v284
        %v286 = vsel %vm278, %v266, 0.0
        %v287 = vadd.f32 %v285, %v286
        %v288 = vsel %vm278, %v267, 0.0
        %v289 = vadd.f32 %v287, %v288
        %v290 = vsel %vm278, %v268, 0.0
        %v291 = vadd.f32 %v289, %v290
        %v292 = vsel %vm278, %v269, 0.0
        %v293 = vadd.f32 %v291, %v292
        %v294 = vrot.slane %v293, 4
        %v295 = vadd.f32 %v293, %v294
        %v296 = vrot.slane %v295, 2
        %v297 = vadd.f32 %v295, %v296
        %v298 = vrot.slane %v297, 1
        %v299 = vadd.f32 %v297, %v298
        %v300 = vadd.f32 %v277, %v299
        %vm301 = vcmask 57344
        %302 = vst.msk [vmem:[#allocation2] sm:$0x1] %vm301, %v300
        %v303 = vld [vmem:[#allocation3] sm:$0x1]
        %v304 = vmul.f32 %v262, %v262
        %v305 = vmul.f32 %v263, %v263
        %v306 = vmul.f32 %v264, %v264
        %v307 = vmul.f32 %v265, %v265
        %v308 = vmul.f32 %v266, %v266
        %v309 = vmul.f32 %v267, %v267
        %v310 = vmul.f32 %v268, %v268
        %v311 = vmul.f32 %v269, %v269
        %v312 = vsel %vm278, %v304, 0.0
        %v313 = vsel %vm278, %v305, 0.0
        %v314 = vadd.f32 %v312, %v313
        %v315 = vsel %vm278, %v306, 0.0
        %v316 = vadd.f32 %v314, %v315
        %v317 = vsel %vm278, %v307, 0.0
        %v318 = vadd.f32 %v316, %v317
        %v319 = vsel %vm278, %v308, 0.0
        %v320 = vadd.f32 %v318, %v319
        %v321 = vsel %vm278, %v309, 0.0
        %v322 = vadd.f32 %v320, %v321
        %v323 = vsel %vm278, %v310, 0.0
        %v324 = vadd.f32 %v322, %v323
        %v325 = vsel %vm278, %v311, 0.0
        %v326 = vadd.f32 %v324, %v325
        %v327 = vrot.slane %v326, 4
        %v328 = vadd.f32 %v326, %v327
        %v329 = vrot.slane %v328, 2
        %v330 = vadd.f32 %v328, %v329
        %v331 = vrot.slane %v330, 1
        %v332 = vadd.f32 %v330, %v331
        %v333 = vadd.f32 %v303, %v332
        %334 = vst.msk [vmem:[#allocation3] sm:$0x1] %vm301, %v333
      $region36: #{decoder_forward.39} parent=31 // pred_fallthru
        _
      %p335 = scmp.eq.s32.totalorder %s20, 1
      // Predicated region
      $region41: #{decoder_forward.39} parent=31 // pred_check
        %p336 = pneg %p335
      $region42: #{decoder_forward.39} parent=31 // pred_check_branch
        %338 = sbr.rel (%p336) target = $region44
      $region43: #{decoder_forward.39} parent=31 // pred_region
        %v339 = vld [vmem:[%s230] sm:$0xf]
        %v340 = vld [vmem:[%s230 + $0x4] sm:$0xf]
        %v341 = vld [vmem:[%s230 + $0x8] sm:$0xf]
        %v342 = vld [vmem:[%s230 + $0xc] sm:$0xf]
        %v343 = vld [vmem:[%s230 + $0x10] sm:$0xf]
        %v344 = vld [vmem:[%s230 + $0x14] sm:$0xf]
        %v345 = vld [vmem:[%s230 + $0x18] sm:$0xf]
        %v346 = vld [vmem:[%s230 + $0x1c] sm:$0xf]
        %v347 = vunpack.c.l.bf16 %v339
        %v348 = vunpack.c.l.bf16 %v340
        %v349 = vunpack.c.l.bf16 %v341
        %v350 = vunpack.c.l.bf16 %v342
        %v351 = vunpack.c.l.bf16 %v343
        %v352 = vunpack.c.l.bf16 %v344
        %v353 = vunpack.c.l.bf16 %v345
        %v354 = vunpack.c.l.bf16 %v346
        %v355 = vld [vmem:[#allocation2] sm:$0x1]
        %v356 = vmul.f32 %v355, 0.015625
        %v357 = vld [vmem:[#allocation3] sm:$0x1]
        %v358 = vmul.f32 %v357, 0.015625
        %v359 = vmul.f32 %v356, %v356
        %v360 = vsub.f32 %v358, %v359
        %v361 = vmax.f32 %v360, 0.0
        %v362 = vadd.f32 %v361, 1e-05
        %v363 = vrsqrt.pop %v362
        %v365 = vlaneseq
        %v366 = vshrl.u32 %v365, 7
        %v367 = vsub.s32 0, %v366
        %v368 = vrot.slane %v356, %v367
        %v370 = vsub.f32 %v347, %v368
        %v371 = vsub.f32 %v348, %v368
        %v372 = vsub.f32 %v349, %v368
        %v373 = vsub.f32 %v350, %v368
        %v374 = vsub.f32 %v351, %v368
        %v375 = vsub.f32 %v352, %v368
        %v376 = vsub.f32 %v353, %v368
        %v377 = vsub.f32 %v354, %v368
        %v379 = vlaneseq
        %v380 = vshrl.u32 %v379, 7
        %v381 = vsub.s32 0, %v380
        %v382 = vrot.slane %v363, %v381
        %v384 = vmul.f32 %v370, %v382
        %v385 = vmul.f32 %v371, %v382
        %v386 = vmul.f32 %v372, %v382
        %v387 = vmul.f32 %v373, %v382
        %v388 = vmul.f32 %v374, %v382
        %v389 = vmul.f32 %v375, %v382
        %v390 = vmul.f32 %v376, %v382
        %v391 = vmul.f32 %v377, %v382
        %v392 = vld [vmem:[%s234] sm:$0x1]
        %v393 = vadd.f32 %v392, 1.0
        %v395 = vlaneseq
        %v396 = vshrl.u32 %v395, 7
        %v397 = vsub.s32 0, %v396
        %v398 = vrot.slane %v393, %v397
        %v400 = vmul.f32 %v384, %v398
        %v401 = vmul.f32 %v385, %v398
        %v402 = vmul.f32 %v386, %v398
        %v403 = vmul.f32 %v387, %v398
        %v404 = vmul.f32 %v388, %v398
        %v405 = vmul.f32 %v389, %v398
        %v406 = vmul.f32 %v390, %v398
        %v407 = vmul.f32 %v391, %v398
        %v408 = vld [vmem:[%s237] sm:$0x1]
        %v410 = vlaneseq
        %v411 = vshrl.u32 %v410, 7
        %v412 = vsub.s32 0, %v411
        %v413 = vrot.slane %v408, %v412
        %v415 = vadd.f32 %v400, %v413
        %v416 = vadd.f32 %v401, %v413
        %v417 = vadd.f32 %v402, %v413
        %v418 = vadd.f32 %v403, %v413
        %v419 = vadd.f32 %v404, %v413
        %v420 = vadd.f32 %v405, %v413
        %v421 = vadd.f32 %v406, %v413
        %v422 = vadd.f32 %v407, %v413
        %v423 = vpack.c.bf16 %v415, %v415
        %v424 = vpack.c.bf16 %v416, %v416
        %v425 = vpack.c.bf16 %v417, %v417
        %v426 = vpack.c.bf16 %v418, %v418
        %v427 = vpack.c.bf16 %v419, %v419
        %v428 = vpack.c.bf16 %v420, %v420
        %v429 = vpack.c.bf16 %v421, %v421
        %v430 = vpack.c.bf16 %v422, %v422
        %vm431 = vcmask 60416
        %432 = vst.msk [vmem:[%s247] sm:$0xf] %vm431, %v423
        %433 = vst.msk [vmem:[%s247 + $0x4] sm:$0xf] %vm431, %v424
        %434 = vst.msk [vmem:[%s247 + $0x8] sm:$0xf] %vm431, %v425
        %435 = vst.msk [vmem:[%s247 + $0xc] sm:$0xf] %vm431, %v426
        %436 = vst.msk [vmem:[%s247 + $0x10] sm:$0xf] %vm431, %v427
        %437 = vst.msk [vmem:[%s247 + $0x14] sm:$0xf] %vm431, %v428
        %438 = vst.msk [vmem:[%s247 + $0x18] sm:$0xf] %vm431, %v429
        %439 = vst.msk [vmem:[%s247 + $0x1c] sm:$0xf] %vm431, %v430
      $region44: #{decoder_forward.39} parent=31 // pred_fallthru
        _
      %s440 = smul.u32 %s21, %s20
      %s441 = smul.u32 8, %s440
      %p442 = scmp.lt.s32.totalorder %s19, 1
      %s443 = scalar_select %p442, %s19, 1
      %p444 = scmp.lt.s32.totalorder %s441, 7
      %s445 = scalar_select %p444, %s441, 7
      %s446 = smul.addr %s443, 8
      %s447 = sadd.s32 %s445, %s446
      %s448 = smul.addr %s447, 4
      %s449 = scalar_lea.vmem %s3, %s448
      // Predicated region
      $region45: #{decoder_forward.39} parent=31 // pred_check
        %p450 = pneg %p135
      $region46: #{decoder_forward.39} parent=31 // pred_check_branch
        %452 = sbr.rel (%p450) target = $region48
      $region47: #{decoder_forward.39} parent=31 // pred_region
        %s453 = smul.u32 %s21, %s20
        %s454 = smul.u32 8, %s453
      $region48: #{decoder_forward.39} parent=31 // pred_fallthru
        _
    $region32: #{decoder_forward.39} parent=5 // pred_fallthru
      _
    %p455 = scmp.le.s32.totalorder 2, %s9
    // Predicated region
    $region49: #{decoder_forward.39} parent=5 // pred_check
      %p456 = pneg %p455
    $region50: #{decoder_forward.39} parent=5 // pred_check_branch
      %458 = sbr.rel (%p456) target = $region52
    $region51: #{decoder_forward.39} parent=5 // pred_region
      %s459 = ssub.s32 %s9, 2
      // Predicated region
      $region53: #{decoder_forward.39} parent=51 // pred_check
        %p460 = pneg %p141
      $region54: #{decoder_forward.39} parent=51 // pred_check_branch
        %462 = sbr.rel (%p460) target = $region56
      $region55: #{decoder_forward.39} parent=51 // pred_region
        %s463 = smul.u32 %s24, %s23
        %s464 = smul.u32 8, %s463
        %p465 = scmp.lt.s32.totalorder %s22, 1
        %s466 = scalar_select %p465, %s22, 1
        %p467 = scmp.lt.s32.totalorder %s464, 7
        %s468 = scalar_select %p467, %s464, 7
        %s469 = smul.addr %s466, 8
        %s470 = sadd.s32 %s468, %s469
        %s471 = smul.addr %s470, 4
        %s472 = scalar_lea.vmem %s3, %s471
      $region56: #{decoder_forward.39} parent=51 // pred_fallthru
        _
    $region52: #{decoder_forward.39} parent=5 // pred_fallthru
      _
  $region6: #{decoder_forward.39} parent=0 // loop_footer
    %s13 = sadd.s32 1, %s9
  $region7: #{decoder_forward.39} parent=0 // loop_footer_branch
    %8 = sbr.rel target = $region3
  $region8: #{decoder_forward.39} parent=0 // loop_exit
    _

// kernel: decoder_forward.44
$region0: #{decoder_forward.44}
  #allocation0 [shape = 'u32[]', space=smem, size = 0x4, offset = 0x4, fixed_abs, tag = 'smem constant byte address 0x4 - core index']
  #allocation1 [shape = 'u32[144,128]{1,0:T(1,128)}', space=vmem, size = 0x12000, scoped, tag = 'internal scratch']
  #allocation2 [shape = 'f32[256,128]{1,0:T(8,128)}', space=vmem, size = 0x20000, scoped, tag = 'scratch operand']
  %s0 = inlined_call_operand.vmem [shape: bf16[512,128], index: 0, kind: input, shape index: {}]
  %s1 = inlined_call_operand.vmem [shape: bf16[128,128], index: 1, kind: input, shape index: {}]
  %s2 = inlined_call_operand.vmem [shape: f32[1,128], index: 2, kind: input, shape index: {}]
  %s3 = inlined_call_operand.vmem [shape: bf16[512,128], index: 3, kind: output, shape index: {}]
  %s4 = sld [smem:[#allocation0]]
  $region53: #{decoder_forward.44} parent=0
    _
  %s6 = ssub.s32 1, %s4
  %s7 = scalar_select 0, %s6, %s4
  loop: start=0, step=1, limit=4
  $region2: #{decoder_forward.44} parent=0 // loop_pre_header
    _
  $region3: #{decoder_forward.44} parent=0 // loop_header
    %s9 = sphi 0, %s13
    %p10 = scmp.ge.s32.totalorder %s9, 4
    %s16 = sphi 0, %s35
    %s17 = sphi 0, %s31
    %s18 = sphi 0, %s27
    %s19 = sphi 0, %s16
    %s20 = sphi 0, %s17
    %s21 = sphi 0, %s18
    %s22 = sphi 0, %s19
    %s23 = sphi 0, %s20
    %s24 = sphi 0, %s21
    %s40 = sphi 0, %s42
    %s43 = sphi 0, %s40
    %s44 = sphi 0, %s43
    %s60 = sphi 0, %s44
    %s68 = sphi 0, %s70
    %s71 = sphi 0, %s68
    %s72 = sphi 0, %s71
    %s88 = sphi 0, %s72
    %s94 = sphi 0, %s96
    %s97 = sphi 0, %s94
    %s98 = sphi 0, %s97
    %s114 = sphi 0, %s98
    %s122 = sphi 0, %s124
    %s125 = sphi 0, %s122
    %s126 = sphi 0, %s125
    %s142 = sphi 0, %s126
  $region4: #{decoder_forward.44} parent=0 // loop_header_branch
    %12 = sbr.rel (%p10) target = $region8
  $region5: #{decoder_forward.44} parent=0 // loop_body
    %s14 = ssub.s32 %s9, 1
    %s15 = ssub.s32 %s9, 2
    %s25 = sadd.s32 1, %s18
    %p26 = scmp.ge.s32.totalorder %s25, 1
    %s27 = scalar_select %p26, 0, %s25
    %s28 = sadd.s32 1, %s17
    %s29 = scalar_select %p26, %s28, %s17
    %p30 = scmp.ge.s32.totalorder %s29, 1
    %s31 = scalar_select %p30, 0, %s29
    %s32 = sadd.s32 1, %s16
    %s33 = scalar_select %p30, %s32, %s16
    %p34 = scmp.ge.s32.totalorder %s33, 2
    %s35 = scalar_select %p34, 0, %s33
    %s36 = ssub.s32 %s16, %s35
    %s37 = ssub.s32 %s18, %s27
    %s38 = sor.u32 %s36, %s37
    %p39 = scmp.eq.s32.totalorder %s38, 0
    %s41 = sadd.s32 %s40, 1
    %s42 = scalar_select %p39, %s40, %s41
    %p45 = pneg %p39
    %p46 = scmp.eq.s32.totalorder %s9, 1
    %p47 = por %p45, %p46
    %p48 = scmp.ne.s32.totalorder %s40, %s43
    %p49 = scmp.eq.s32.totalorder %s9, 0
    %p50 = por %p48, %p49
    %p51 = scmp.ne.s32.totalorder %s40, %s43
    %p52 = scmp.eq.s32.totalorder %s14, 1
    %p53 = por %p51, %p52
    %p54 = scmp.ne.s32.totalorder %s43, %s44
    %p55 = scmp.eq.s32.totalorder %s14, 0
    %p56 = por %p54, %p55
    %p57 = scmp.ne.s32.totalorder %s43, %s44
    %p58 = scmp.eq.s32.totalorder %s15, 1
    %p59 = por %p57, %p58
    %p61 = scmp.ne.s32.totalorder %s44, %s60
    %p62 = scmp.eq.s32.totalorder %s15, 0
    %p63 = por %p61, %p62
    %s64 = ssub.s32 %s18, %s27
    %s65 = ssub.s32 %s17, %s31
    %s66 = sor.u32 %s64, %s65
    %p67 = scmp.eq.s32.totalorder %s66, 0
    %s69 = sadd.s32 %s68, 1
    %s70 = scalar_select %p67, %s68, %s69
    %p73 = pneg %p67
    %p74 = scmp.eq.s32.totalorder %s9, 1
    %p75 = por %p73, %p74
    %p76 = scmp.ne.s32.totalorder %s68, %s71
    %p77 = scmp.eq.s32.totalorder %s9, 0
    %p78 = por %p76, %p77
    %p79 = scmp.ne.s32.totalorder %s68, %s71
    %p80 = scmp.eq.s32.totalorder %s14, 1
    %p81 = por %p79, %p80
    %p82 = scmp.ne.s32.totalorder %s71, %s72
    %p83 = scmp.eq.s32.totalorder %s14, 0
    %p84 = por %p82, %p83
    %p85 = scmp.ne.s32.totalorder %s71, %s72
    %p86 = scmp.eq.s32.totalorder %s15, 1
    %p87 = por %p85, %p86
    %p89 = scmp.ne.s32.totalorder %s72, %s88
    %p90 = scmp.eq.s32.totalorder %s15, 0
    %p91 = por %p89, %p90
    %s92 = ssub.s32 %s17, %s31
    %p93 = scmp.eq.s32.totalorder %s92, 0
    %s95 = sadd.s32 %s94, 1
    %s96 = scalar_select %p93, %s94, %s95
    %p99 = pneg %p93
    %p100 = scmp.eq.s32.totalorder %s9, 1
    %p101 = por %p99, %p100
    %p102 = scmp.ne.s32.totalorder %s94, %s97
    %p103 = scmp.eq.s32.totalorder %s9, 0
    %p104 = por %p102, %p103
    %p105 = scmp.ne.s32.totalorder %s94, %s97
    %p106 = scmp.eq.s32.totalorder %s14, 1
    %p107 = por %p105, %p106
    %p108 = scmp.ne.s32.totalorder %s97, %s98
    %p109 = scmp.eq.s32.totalorder %s14, 0
    %p110 = por %p108, %p109
    %p111 = scmp.ne.s32.totalorder %s97, %s98
    %p112 = scmp.eq.s32.totalorder %s15, 1
    %p113 = por %p111, %p112
    %p115 = scmp.ne.s32.totalorder %s98, %s114
    %p116 = scmp.eq.s32.totalorder %s15, 0
    %p117 = por %p115, %p116
    %s118 = ssub.s32 %s16, %s35
    %s119 = ssub.s32 %s17, %s31
    %s120 = sor.u32 %s118, %s119
    %p121 = scmp.eq.s32.totalorder %s120, 0
    %s123 = sadd.s32 %s122, 1
    %s124 = scalar_select %p121, %s122, %s123
    %p127 = pneg %p121
    %p128 = scmp.eq.s32.totalorder %s9, 1
    %p129 = por %p127, %p128
    %p130 = scmp.ne.s32.totalorder %s122, %s125
    %p131 = scmp.eq.s32.totalorder %s9, 0
    %p132 = por %p130, %p131
    %p133 = scmp.ne.s32.totalorder %s122, %s125
    %p134 = scmp.eq.s32.totalorder %s14, 1
    %p135 = por %p133, %p134
    %p136 = scmp.ne.s32.totalorder %s125, %s126
    %p137 = scmp.eq.s32.totalorder %s14, 0
    %p138 = por %p136, %p137
    %p139 = scmp.ne.s32.totalorder %s125, %s126
    %p140 = scmp.eq.s32.totalorder %s15, 1
    %p141 = por %p139, %p140
    %p143 = scmp.ne.s32.totalorder %s126, %s142
    %p144 = scmp.eq.s32.totalorder %s15, 0
    %p145 = por %p143, %p144
    %p146 = scmp.le.s32.totalorder 1, %s9
    %p147 = scmp.lt.s32.totalorder %s9, 3
    %p148 = pnand %p146, %p147
    %p149 = pneg %p148
    // Predicated region
    $region9: #{decoder_forward.44} parent=5 // pred_check
      _
    $region10: #{decoder_forward.44} parent=5 // pred_check_branch
      %151 = sbr.rel (%p148) target = $region12
    $region11: #{decoder_forward.44} parent=5 // pred_region
      %s152 = ssub.s32 %s9, 1
      // Predicated region
      $region13: #{decoder_forward.44} parent=11 // pred_check
        %p153 = pneg %p84
      $region14: #{decoder_forward.44} parent=11 // pred_check_branch
        %155 = sbr.rel (%p153) target = $region16
      $region15: #{decoder_forward.44} parent=11 // pred_region
        %s156 = smul.u32 16, %s21
        %p157 = scmp.lt.s32.totalorder %s156, 15
        %s158 = scalar_select %p157, %s156, 15
        %p159 = scmp.lt.s32.totalorder %s20, 0
        %s160 = scalar_select %p159, %s20, 0
        %s161 = sadd.s32 %s160, %s158
        %s162 = smul.addr %s161, 4
        %s163 = scalar_lea.vmem %s1, %s162
        %s164 = smul.u32 16, %s21
      $region16: #{decoder_forward.44} parent=11 // pred_fallthru
        _
      // Predicated region
      $region17: #{decoder_forward.44} parent=11 // pred_check
        %p165 = pneg %p110
      $region18: #{decoder_forward.44} parent=11 // pred_check_branch
        %167 = sbr.rel (%p165) target = $region20
      $region19: #{decoder_forward.44} parent=11 // pred_region
        %p168 = scmp.lt.s32.totalorder %s20, 0
        %s169 = scalar_select %p168, %s20, 0
        %s170 = scalar_lea.vmem %s2, %s169
      $region20: #{decoder_forward.44} parent=11 // pred_fallthru
        _
    $region12: #{decoder_forward.44} parent=5 // pred_fallthru
      _
    %p171 = scmp.lt.s32.totalorder %s9, 2
    // Predicated region
    $region21: #{decoder_forward.44} parent=5 // pred_check
      %p172 = pneg %p171
    $region22: #{decoder_forward.44} parent=5 // pred_check_branch
      %174 = sbr.rel (%p172) target = $region24
    $region23: #{decoder_forward.44} parent=5 // pred_region
      // Predicated region
      $region25: #{decoder_forward.44} parent=23 // pred_check
        %p175 = pneg %p50
      $region26: #{decoder_forward.44} parent=23 // pred_check_branch
        %177 = sbr.rel (%p175) target = $region28
      $region27: #{decoder_forward.44} parent=23 // pred_region
        %s178 = smul.u32 32, %s16
        %p179 = scmp.lt.s32.totalorder %s178, 63
        %s180 = scalar_select %p179, %s178, 63
        %p181 = scmp.lt.s32.totalorder %s18, 0
        %s182 = scalar_select %p181, %s18, 0
        %s183 = sadd.s32 %s182, %s180
        %s184 = smul.addr %s183, 4
        %s185 = scalar_lea.vmem %s0, %s184
        %s186 = smul.u32 32, %s16
      $region28: #{decoder_forward.44} parent=23 // pred_fallthru
        _
    $region24: #{decoder_forward.44} parent=5 // pred_fallthru
      _
    %p187 = scmp.le.s32.totalorder 1, %s9
    %p188 = scmp.lt.s32.totalorder %s9, 3
    %p189 = pnand %p187, %p188
    %p190 = pneg %p189
    // Predicated region
    $region29: #{decoder_forward.44} parent=5 // pred_check
      _
    $region30: #{decoder_forward.44} parent=5 // pred_check_branch
      %192 = sbr.rel (%p189) target = $region32
    $region31: #{decoder_forward.44} parent=5 // pred_region
      %s193 = ssub.s32 %s9, 1
      %s194 = smul.u32 32, %s19
      %p195 = scmp.lt.s32.totalorder %s194, 63
      %s196 = scalar_select %p195, %s194, 63
      %p197 = scmp.lt.s32.totalorder %s21, 0
      %s198 = scalar_select %p197, %s21, 0
      %s199 = sadd.s32 %s198, %s196
      %s200 = smul.addr %s199, 4
      %s201 = scalar_lea.vmem %s0, %s200
      %p202 = pneg %p56
      %p203 = pneg %p53
      %s204 = smul.u32 16, %s21
      %p205 = scmp.lt.s32.totalorder %s204, 15
      %s206 = scalar_select %p205, %s204, 15
      %p207 = scmp.lt.s32.totalorder %s20, 0
      %s208 = scalar_select %p207, %s20, 0
      %s209 = sadd.s32 %s208, %s206
      %s210 = smul.addr %s209, 4
      %s211 = scalar_lea.vmem %s1, %s210
      %p212 = pneg %p84
      %p213 = pneg %p81
      %p214 = scmp.lt.s32.totalorder %s20, 0
      %s215 = scalar_select %p214, %s20, 0
      %s216 = scalar_lea.vmem %s2, %s215
      %p217 = pneg %p110
      %p218 = pneg %p107
      %p219 = pneg %p138
      %p220 = pneg %p135
      %s221 = smul.u32 32, %s19
      %p222 = scmp.lt.s32.totalorder %s221, 63
      %s223 = scalar_select %p222, %s221, 63
      %p224 = scmp.lt.s32.totalorder %s20, 0
      %s225 = scalar_select %p224, %s20, 0
      %s226 = sadd.s32 %s225, %s223
      %s227 = smul.addr %s226, 4
      %s228 = scalar_lea.vmem %s3, %s227
      %s229 = smul.u32 32, %s19
      %p230 = scmp.lt.s32.totalorder %s229, 63
      %s231 = scalar_select %p230, %s229, 63
      %p232 = scmp.lt.s32.totalorder %s21, 0
      %s233 = scalar_select %p232, %s21, 0
      %s234 = sadd.s32 %s233, %s231
      %s235 = smul.addr %s234, 4
      %s236 = scalar_lea.vmem %s0, %s235
      %s237 = smul.u32 32, %s19
      %s238 = smul.u32 16, %s21
      %p239 = scmp.lt.s32.totalorder %s238, 15
      %s240 = scalar_select %p239, %s238, 15
      %p241 = scmp.lt.s32.totalorder %s20, 0
      %s242 = scalar_select %p241, %s20, 0
      %s243 = sadd.s32 %s242, %s240
      %s244 = smul.addr %s243, 4
      %s245 = scalar_lea.vmem %s1, %s244
      %s246 = smul.u32 16, %s21
      %p247 = scmp.lt.s32.totalorder %s20, 0
      %s248 = scalar_select %p247, %s20, 0
      %s249 = scalar_lea.vmem %s2, %s248
      %s250 = smul.u32 32, %s19
      %p251 = scmp.lt.s32.totalorder %s250, 63
      %s252 = scalar_select %p251, %s250, 63
      %p253 = scmp.lt.s32.totalorder %s20, 0
      %s254 = scalar_select %p253, %s20, 0
      %s255 = sadd.s32 %s254, %s252
      %s256 = smul.addr %s255, 4
      %s257 = scalar_lea.vmem %s3, %s256
      %s258 = smul.u32 32, %s19
      %p260 = scmp.eq.s32.totalorder %s21, 0
      // Predicated region
      $region33: #{decoder_forward.44} parent=31 // pred_check
        %p261 = pneg %p260
      $region34: #{decoder_forward.44} parent=31 // pred_check_branch
        %263 = sbr.rel (%p261) target = $region36
      $region35: #{decoder_forward.44} parent=31 // pred_region
        %264 = vst [vmem:[#allocation2] sm:$0xff] 0.0
        %265 = vst [vmem:[#allocation2 + $0x8] sm:$0xff] 0.0
        %266 = vst [vmem:[#allocation2 + $0x10] sm:$0xff] 0.0
        %267 = vst [vmem:[#allocation2 + $0x18] sm:$0xff] 0.0
        %268 = vst [vmem:[#allocation2 + $0x20] sm:$0xff] 0.0
        %269 = vst [vmem:[#allocation2 + $0x28] sm:$0xff] 0.0
        %270 = vst [vmem:[#allocation2 + $0x30] sm:$0xff] 0.0
        %271 = vst [vmem:[#allocation2 + $0x38] sm:$0xff] 0.0
        %272 = vst [vmem:[#allocation2 + $0x40] sm:$0xff] 0.0
        %273 = vst [vmem:[#allocation2 + $0x48] sm:$0xff] 0.0
        %274 = vst [vmem:[#allocation2 + $0x50] sm:$0xff] 0.0
        %275 = vst [vmem:[#allocation2 + $0x58] sm:$0xff] 0.0
        %276 = vst [vmem:[#allocation2 + $0x60] sm:$0xff] 0.0
        %277 = vst [vmem:[#allocation2 + $0x68] sm:$0xff] 0.0
        %278 = vst [vmem:[#allocation2 + $0x70] sm:$0xff] 0.0
        %279 = vst [vmem:[#allocation2 + $0x78] sm:$0xff] 0.0
        %280 = vst [vmem:[#allocation2 + $0x80] sm:$0xff] 0.0
        %281 = vst [vmem:[#allocation2 + $0x88] sm:$0xff] 0.0
        %282 = vst [vmem:[#allocation2 + $0x90] sm:$0xff] 0.0
        %283 = vst [vmem:[#allocation2 + $0x98] sm:$0xff] 0.0
        %284 = vst [vmem:[#allocation2 + $0xa0] sm:$0xff] 0.0
        %285 = vst [vmem:[#allocation2 + $0xa8] sm:$0xff] 0.0
        %286 = vst [vmem:[#allocation2 + $0xb0] sm:$0xff] 0.0
        %287 = vst [vmem:[#allocation2 + $0xb8] sm:$0xff] 0.0
        %288 = vst [vmem:[#allocation2 + $0xc0] sm:$0xff] 0.0
        %289 = vst [vmem:[#allocation2 + $0xc8] sm:$0xff] 0.0
        %290 = vst [vmem:[#allocation2 + $0xd0] sm:$0xff] 0.0
        %291 = vst [vmem:[#allocation2 + $0xd8] sm:$0xff] 0.0
        %292 = vst [vmem:[#allocation2 + $0xe0] sm:$0xff] 0.0
        %293 = vst [vmem:[#allocation2 + $0xe8] sm:$0xff] 0.0
        %294 = vst [vmem:[#allocation2 + $0xf0] sm:$0xff] 0.0
        %295 = vst [vmem:[#allocation2 + $0xf8] sm:$0xff] 0.0
      $region36: #{decoder_forward.44} parent=31 // pred_fallthru
        _
      %v296 = vld [vmem:[#allocation2] sm:$0xff]
      %v297 = vld [vmem:[#allocation2 + $0x8] sm:$0xff]
      %v298 = vld [vmem:[#allocation2 + $0x10] sm:$0xff]
      %v299 = vld [vmem:[#allocation2 + $0x18] sm:$0xff]
      %v300 = vld [vmem:[#allocation2 + $0x20] sm:$0xff]
      %v301 = vld [vmem:[#allocation2 + $0x28] sm:$0xff]
      %v302 = vld [vmem:[#allocation2 + $0x30] sm:$0xff]
      %v303 = vld [vmem:[#allocation2 + $0x38] sm:$0xff]
      %v304 = vld [vmem:[#allocation2 + $0x40] sm:$0xff]
      %v305 = vld [vmem:[#allocation2 + $0x48] sm:$0xff]
      %v306 = vld [vmem:[#allocation2 + $0x50] sm:$0xff]
      %v307 = vld [vmem:[#allocation2 + $0x58] sm:$0xff]
      %v308 = vld [vmem:[#allocation2 + $0x60] sm:$0xff]
      %v309 = vld [vmem:[#allocation2 + $0x68] sm:$0xff]
      %v310 = vld [vmem:[#allocation2 + $0x70] sm:$0xff]
      %v311 = vld [vmem:[#allocation2 + $0x78] sm:$0xff]
      %v312 = vld [vmem:[#allocation2 + $0x80] sm:$0xff]
      %v313 = vld [vmem:[#allocation2 + $0x88] sm:$0xff]
      %v314 = vld [vmem:[#allocation2 + $0x90] sm:$0xff]
      %v315 = vld [vmem:[#allocation2 + $0x98] sm:$0xff]
      %v316 = vld [vmem:[#allocation2 + $0xa0] sm:$0xff]
      %v317 = vld [vmem:[#allocation2 + $0xa8] sm:$0xff]
      %v318 = vld [vmem:[#allocation2 + $0xb0] sm:$0xff]
      %v319 = vld [vmem:[#allocation2 + $0xb8] sm:$0xff]
      %v320 = vld [vmem:[#allocation2 + $0xc0] sm:$0xff]
      %v321 = vld [vmem:[#allocation2 + $0xc8] sm:$0xff]
      %v322 = vld [vmem:[#allocation2 + $0xd0] sm:$0xff]
      %v323 = vld [vmem:[#allocation2 + $0xd8] sm:$0xff]
      %v324 = vld [vmem:[#allocation2 + $0xe0] sm:$0xff]
      %v325 = vld [vmem:[#allocation2 + $0xe8] sm:$0xff]
      %v326 = vld [vmem:[#allocation2 + $0xf0] sm:$0xff]
      %v327 = vld [vmem:[#allocation2 + $0xf8] sm:$0xff]
      %v328 = vld [vmem:[%s236] sm:$0xf]
      %v329 = vld [vmem:[%s236 + $0x4] sm:$0xf]
      %v330 = vld [vmem:[%s236 + $0x8] sm:$0xf]
      %v331 = vld [vmem:[%s236 + $0xc] sm:$0xf]
      %v332 = vld [vmem:[%s236 + $0x10] sm:$0xf]
      %v333 = vld [vmem:[%s236 + $0x14] sm:$0xf]
      %v334 = vld [vmem:[%s236 + $0x18] sm:$0xf]
      %v335 = vld [vmem:[%s236 + $0x1c] sm:$0xf]
      %v336 = vld [vmem:[%s236 + $0x20] sm:$0xf]
      %v337 = vld [vmem:[%s236 + $0x24] sm:$0xf]
      %v338 = vld [vmem:[%s236 + $0x28] sm:$0xf]
      %v339 = vld [vmem:[%s236 + $0x2c] sm:$0xf]
      %v340 = vld [vmem:[%s236 + $0x30] sm:$0xf]
      %v341 = vld [vmem:[%s236 + $0x34] sm:$0xf]
      %v342 = vld [vmem:[%s236 + $0x38] sm:$0xf]
      %v343 = vld [vmem:[%s236 + $0x3c] sm:$0xf]
      %v344 = vld [vmem:[%s236 + $0x40] sm:$0xf]
      %v345 = vld [vmem:[%s236 + $0x44] sm:$0xf]
      %v346 = vld [vmem:[%s236 + $0x48] sm:$0xf]
      %v347 = vld [vmem:[%s236 + $0x4c] sm:$0xf]
      %v348 = vld [vmem:[%s236 + $0x50] sm:$0xf]
      %v349 = vld [vmem:[%s236 + $0x54] sm:$0xf]
      %v350 = vld [vmem:[%s236 + $0x58] sm:$0xf]
      %v351 = vld [vmem:[%s236 + $0x5c] sm:$0xf]
      %v352 = vld [vmem:[%s236 + $0x60] sm:$0xf]
      %v353 = vld [vmem:[%s236 + $0x64] sm:$0xf]
      %v354 = vld [vmem:[%s236 + $0x68] sm:$0xf]
      %v355 = vld [vmem:[%s236 + $0x6c] sm:$0xf]
      %v356 = vld [vmem:[%s236 + $0x70] sm:$0xf]
      %v357 = vld [vmem:[%s236 + $0x74] sm:$0xf]
      %v358 = vld [vmem:[%s236 + $0x78] sm:$0xf]
      %v359 = vld [vmem:[%s236 + $0x7c] sm:$0xf]
      %v360 = vld [vmem:[%s245] sm:$0xf]
      %v361 = vld [vmem:[%s245 + $0x4] sm:$0xf]
      %v362 = vld [vmem:[%s245 + $0x8] sm:$0xf]
      %v363 = vld [vmem:[%s245 + $0xc] sm:$0xf]
      %v364 = vld [vmem:[%s245 + $0x10] sm:$0xf]
      %v365 = vld [vmem:[%s245 + $0x14] sm:$0xf]
      %v366 = vld [vmem:[%s245 + $0x18] sm:$0xf]
      %v367 = vld [vmem:[%s245 + $0x1c] sm:$0xf]
      %v368 = vld [vmem:[%s245 + $0x20] sm:$0xf]
      %v369 = vld [vmem:[%s245 + $0x24] sm:$0xf]
      %v370 = vld [vmem:[%s245 + $0x28] sm:$0xf]
      %v371 = vld [vmem:[%s245 + $0x2c] sm:$0xf]
      %v372 = vld [vmem:[%s245 + $0x30] sm:$0xf]
      %v373 = vld [vmem:[%s245 + $0x34] sm:$0xf]
      %v374 = vld [vmem:[%s245 + $0x38] sm:$0xf]
      %v375 = vld [vmem:[%s245 + $0x3c] sm:$0xf]
      %v408 = vunpack.c.l.b16 %v328
      %v409 = vunpack.c.l.b16 %v329
      %v410 = vunpack.c.l.b16 %v330
      %v411 = vunpack.c.l.b16 %v331
      %v412 = vunpack.c.l.b16 %v332
      %v413 = vunpack.c.l.b16 %v333
      %v414 = vunpack.c.l.b16 %v334
      %v415 = vunpack.c.l.b16 %v335
      %v416 = vunpack.c.l.b16 %v336
      %v417 = vunpack.c.l.b16 %v337
      %v418 = vunpack.c.l.b16 %v338
      %v419 = vunpack.c.l.b16 %v339
      %v420 = vunpack.c.l.b16 %v340
      %v421 = vunpack.c.l.b16 %v341
      %v422 = vunpack.c.l.b16 %v342
      %v423 = vunpack.c.l.b16 %v343
      %v424 = vunpack.c.l.b16 %v344
      %v425 = vunpack.c.l.b16 %v345
      %v426 = vunpack.c.l.b16 %v346
      %v427 = vunpack.c.l.b16 %v347
      %v428 = vunpack.c.l.b16 %v348
      %v429 = vunpack.c.l.b16 %v349
      %v430 = vunpack.c.l.b16 %v350
      %v431 = vunpack.c.l.b16 %v351
      %v432 = vunpack.c.l.b16 %v352
      %v433 = vunpack.c.l.b16 %v353
      %v434 = vunpack.c.l.b16 %v354
      %v435 = vunpack.c.l.b16 %v355
      %v436 = vunpack.c.l.b16 %v356
      %v437 = vunpack.c.l.b16 %v357
      %v438 = vunpack.c.l.b16 %v358
      %v439 = vunpack.c.l.b16 %v359
      %v440 = vpack.c.b16 %v409, %v408
      %v441 = vpack.c.b16 %v411, %v410
      %v442 = vpack.c.b16 %v413, %v412
      %v443 = vpack.c.b16 %v415, %v414
      %v444 = vpack.c.b16 %v417, %v416
      %v445 = vpack.c.b16 %v419, %v418
      %v446 = vpack.c.b16 %v421, %v420
      %v447 = vpack.c.b16 %v423, %v422
      %v448 = vpack.c.b16 %v425, %v424
      %v449 = vpack.c.b16 %v427, %v426
      %v450 = vpack.c.b16 %v429, %v428
      %v451 = vpack.c.b16 %v431, %v430
      %v452 = vpack.c.b16 %v433, %v432
      %v453 = vpack.c.b16 %v435, %v434
      %v454 = vpack.c.b16 %v437, %v436
      %v455 = vpack.c.b16 %v439, %v438
      %v488 = vunpack.c.l.b16 %v360
      %v489 = vunpack.c.l.b16 %v361
      %v490 = vunpack.c.l.b16 %v362
      %v491 = vunpack.c.l.b16 %v363
      %v492 = vunpack.c.l.b16 %v364
      %v493 = vunpack.c.l.b16 %v365
      %v494 = vunpack.c.l.b16 %v366
      %v495 = vunpack.c.l.b16 %v367
      %v496 = vunpack.c.l.b16 %v368
      %v497 = vunpack.c.l.b16 %v369
      %v498 = vunpack.c.l.b16 %v370
      %v499 = vunpack.c.l.b16 %v371
      %v500 = vunpack.c.l.b16 %v372
      %v501 = vunpack.c.l.b16 %v373
      %v502 = vunpack.c.l.b16 %v374
      %v503 = vunpack.c.l.b16 %v375
      %v504 = vpack.c.b16 %v489, %v488
      %v505 = vpack.c.b16 %v491, %v490
      %v506 = vpack.c.b16 %v493, %v492
      %v507 = vpack.c.b16 %v495, %v494
      %v508 = vpack.c.b16 %v497, %v496
      %v509 = vpack.c.b16 %v499, %v498
      %v510 = vpack.c.b16 %v501, %v500
      %v511 = vpack.c.b16 %v503, %v502
      %520 = vmatprep.subr.bf16.mxu0 0
      %521 = vmatpush1.bf16.msra.mxu0 %v511
      %522 = vmatprep.subr.bf16.mxu0 0
      %523 = vmatpush1.bf16.msra.mxu0 %v510
      %524 = vmatprep.subr.bf16.mxu0 0
      %525 = vmatpush1.bf16.msra.mxu0 %v509
      %526 = vmatprep.subr.bf16.mxu0 0
      %527 = vmatpush1.bf16.msra.mxu0 %v508
      %528 = vmatprep.subr.bf16.mxu0 0
      %529 = vmatpush1.bf16.msra.mxu0 %v507
      %530 = vmatprep.subr.bf16.mxu0 0
      %531 = vmatpush1.bf16.msra.mxu0 %v506
      %532 = vmatprep.subr.bf16.mxu0 0
      %533 = vmatpush1.bf16.msra.mxu0 %v505
      %534 = vmatprep.subr.bf16.mxu0 0
      %535 = vmatpush1.bf16.msra.mxu0 %v504
      %536 = vmatprep.subr.bf16.mxu0 0
      %537 = vmatpush2.bf16.msra.mxu0 0
      %538 = vmatprep.subr.bf16.mxu0 0
      %539 = vmatpush2.bf16.msra.mxu0 0
      %540 = vmatprep.subr.bf16.mxu0 0
      %541 = vmatpush2.bf16.msra.mxu0 0
      %542 = vmatprep.subr.bf16.mxu0 0
      %543 = vmatpush2.bf16.msra.mxu0 0
      %544 = vmatprep.subr.bf16.mxu0 0
      %545 = vmatpush2.bf16.msra.mxu0 0
      %546 = vmatprep.subr.bf16.mxu0 0
      %547 = vmatpush2.bf16.msra.mxu0 0
      %548 = vmatprep.subr.bf16.mxu0 0
      %549 = vmatpush2.bf16.msra.mxu0 0
      %550 = vmatprep.subr.bf16.mxu0 0
      %551 = vmatpush2.bf16.msra.mxu0 0
      %552 = vmatprep.mubr.bf16.mxu0 0
      %553 = vmatmul.mubr.bf16.gmra.mxu0 %v440
      %v554 = vpop.f32.mrf.mxu0
      %v555 = vadd.f32 0.0, %v554
      %v556 = vpop.f32.mrf.mxu0
      %v557 = vpop.f32.mrf.mxu0
      %v558 = vadd.f32 0.0, %v557
      %v559 = vpop.f32.mrf.mxu0
      %560 = vmatprep.mubr.bf16.mxu0 0
      %561 = vmatmul.mubr.bf16.gmra.mxu0 %v441
      %v562 = vpop.f32.mrf.mxu0
      %v563 = vadd.f32 0.0, %v562
      %v564 = vpop.f32.mrf.mxu0
      %v565 = vpop.f32.mrf.mxu0
      %v566 = vadd.f32 0.0, %v565
      %v567 = vpop.f32.mrf.mxu0
      %568 = vmatprep.mubr.bf16.mxu0 0
      %569 = vmatmul.mubr.bf16.gmra.mxu0 %v442
      %v570 = vpop.f32.mrf.mxu0
      %v571 = vadd.f32 0.0, %v570
      %v572 = vpop.f32.mrf.mxu0
      %v573 = vpop.f32.mrf.mxu0
      %v574 = vadd.f32 0.0, %v573
      %v575 = vpop.f32.mrf.mxu0
      %576 = vmatprep.mubr.bf16.mxu0 0
      %577 = vmatmul.mubr.bf16.gmra.mxu0 %v443
      %v578 = vpop.f32.mrf.mxu0
      %v579 = vadd.f32 0.0, %v578
      %v580 = vpop.f32.mrf.mxu0
      %v581 = vpop.f32.mrf.mxu0
      %v582 = vadd.f32 0.0, %v581
      %v583 = vpop.f32.mrf.mxu0
      %584 = vmatprep.mubr.bf16.mxu0 0
      %585 = vmatmul.mubr.bf16.gmra.mxu0 %v444
      %v586 = vpop.f32.mrf.mxu0
      %v587 = vadd.f32 0.0, %v586
      %v588 = vpop.f32.mrf.mxu0
      %v589 = vpop.f32.mrf.mxu0
      %v590 = vadd.f32 0.0, %v589
      %v591 = vpop.f32.mrf.mxu0
      %592 = vmatprep.mubr.bf16.mxu0 0
      %593 = vmatmul.mubr.bf16.gmra.mxu0 %v445
      %v594 = vpop.f32.mrf.mxu0
      %v595 = vadd.f32 0.0, %v594
      %v596 = vpop.f32.mrf.mxu0
      %v597 = vpop.f32.mrf.mxu0
      %v598 = vadd.f32 0.0, %v597
      %v599 = vpop.f32.mrf.mxu0
      %600 = vmatprep.mubr.bf16.mxu0 0
      %601 = vmatmul.mubr.bf16.gmra.mxu0 %v446
      %v602 = vpop.f32.mrf.mxu0
      %v603 = vadd.f32 0.0, %v602
      %v604 = vpop.f32.mrf.mxu0
      %v605 = vpop.f32.mrf.mxu0
      %v606 = vadd.f32 0.0, %v605
      %v607 = vpop.f32.mrf.mxu0
      %608 = vmatprep.mubr.bf16.mxu0 0
      %609 = vmatmul.mubr.bf16.gmra.mxu0 %v447
      %v610 = vpop.f32.mrf.mxu0
      %v611 = vadd.f32 0.0, %v610
      %v612 = vpop.f32.mrf.mxu0
      %v613 = vpop.f32.mrf.mxu0
      %v614 = vadd.f32 0.0, %v613
      %v615 = vpop.f32.mrf.mxu0
      %616 = vmatprep.mubr.bf16.mxu0 0
      %617 = vmatmul.mubr.bf16.gmra.mxu0 %v448
      %v618 = vpop.f32.mrf.mxu0
      %v619 = vadd.f32 0.0, %v618
      %v620 = vpop.f32.mrf.mxu0
      %v621 = vpop.f32.mrf.mxu0
      %v622 = vadd.f32 0.0, %v621
      %v623 = vpop.f32.mrf.mxu0
      %624 = vmatprep.mubr.bf16.mxu0 0
      %625 = vmatmul.mubr.bf16.gmra.mxu0 %v449
      %v626 = vpop.f32.mrf.mxu0
      %v627 = vadd.f32 0.0, %v626
      %v628 = vpop.f32.mrf.mxu0
      %v629 = vpop.f32.mrf.mxu0
      %v630 = vadd.f32 0.0, %v629
      %v631 = vpop.f32.mrf.mxu0
      %632 = vmatprep.mubr.bf16.mxu0 0
      %633 = vmatmul.mubr.bf16.gmra.mxu0 %v450
      %v634 = vpop.f32.mrf.mxu0
      %v635 = vadd.f32 0.0, %v634
      %v636 = vpop.f32.mrf.mxu0
      %v637 = vpop.f32.mrf.mxu0
      %v638 = vadd.f32 0.0, %v637
      %v639 = vpop.f32.mrf.mxu0
      %640 = vmatprep.mubr.bf16.mxu0 0
      %641 = vmatmul.mubr.bf16.gmra.mxu0 %v451
      %v642 = vpop.f32.mrf.mxu0
      %v643 = vadd.f32 0.0, %v642
      %v644 = vpop.f32.mrf.mxu0
      %v645 = vpop.f32.mrf.mxu0
      %v646 = vadd.f32 0.0, %v645
      %v647 = vpop.f32.mrf.mxu0
      %648 = vmatprep.mubr.bf16.mxu0 0
      %649 = vmatmul.mubr.bf16.gmra.mxu0 %v452
      %v650 = vpop.f32.mrf.mxu0
      %v651 = vadd.f32 0.0, %v650
      %v652 = vpop.f32.mrf.mxu0
      %v653 = vpop.f32.mrf.mxu0
      %v654 = vadd.f32 0.0, %v653
      %v655 = vpop.f32.mrf.mxu0
      %656 = vmatprep.mubr.bf16.mxu0 0
      %657 = vmatmul.mubr.bf16.gmra.mxu0 %v453
      %v658 = vpop.f32.mrf.mxu0
      %v659 = vadd.f32 0.0, %v658
      %v660 = vpop.f32.mrf.mxu0
      %v661 = vpop.f32.mrf.mxu0
      %v662 = vadd.f32 0.0, %v661
      %v663 = vpop.f32.mrf.mxu0
      %664 = vmatprep.mubr.bf16.mxu0 0
      %665 = vmatmul.mubr.bf16.gmra.mxu0 %v454
      %v666 = vpop.f32.mrf.mxu0
      %v667 = vadd.f32 0.0, %v666
      %v668 = vpop.f32.mrf.mxu0
      %v669 = vpop.f32.mrf.mxu0
      %v670 = vadd.f32 0.0, %v669
      %v671 = vpop.f32.mrf.mxu0
      %672 = vmatprep.mubr.bf16.mxu0 0
      %673 = vmatmul.mubr.bf16.gmra.mxu0 %v455
      %v674 = vpop.f32.mrf.mxu0
      %v675 = vadd.f32 0.0, %v674
      %v676 = vpop.f32.mrf.mxu0
      %v677 = vpop.f32.mrf.mxu0
      %v678 = vadd.f32 0.0, %v677
      %v679 = vpop.f32.mrf.mxu0
      %680 = vdwg.mxu0
      %v681 = vadd.f32 %v296, %v555
      %v682 = vadd.f32 %v297, %v558
      %v683 = vadd.f32 %v298, %v563
      %v684 = vadd.f32 %v299, %v566
      %v685 = vadd.f32 %v300, %v571
      %v686 = vadd.f32 %v301, %v574
      %v687 = vadd.f32 %v302, %v579
      %v688 = vadd.f32 %v303, %v582
      %v689 = vadd.f32 %v304, %v587
      %v690 = vadd.f32 %v305, %v590
      %v691 = vadd.f32 %v306, %v595
      %v692 = vadd.f32 %v307, %v598
      %v693 = vadd.f32 %v308, %v603
      %v694 = vadd.f32 %v309, %v606
      %v695 = vadd.f32 %v310, %v611
      %v696 = vadd.f32 %v311, %v614
      %v697 = vadd.f32 %v312, %v619
      %v698 = vadd.f32 %v313, %v622
      %v699 = vadd.f32 %v314, %v627
      %v700 = vadd.f32 %v315, %v630
      %v701 = vadd.f32 %v316, %v635
      %v702 = vadd.f32 %v317, %v638
      %v703 = vadd.f32 %v318, %v643
      %v704 = vadd.f32 %v319, %v646
      %v705 = vadd.f32 %v320, %v651
      %v706 = vadd.f32 %v321, %v654
      %v707 = vadd.f32 %v322, %v659
      %v708 = vadd.f32 %v323, %v662
      %v709 = vadd.f32 %v324, %v667
      %v710 = vadd.f32 %v325, %v670
      %v711 = vadd.f32 %v326, %v675
      %v712 = vadd.f32 %v327, %v678
      %713 = vst [vmem:[#allocation2] sm:$0xff] %v681
      %714 = vst [vmem:[#allocation2 + $0x8] sm:$0xff] %v682
      %715 = vst [vmem:[#allocation2 + $0x10] sm:$0xff] %v683
      %716 = vst [vmem:[#allocation2 + $0x18] sm:$0xff] %v684
      %717 = vst [vmem:[#allocation2 + $0x20] sm:$0xff] %v685
      %718 = vst [vmem:[#allocation2 + $0x28] sm:$0xff] %v686
      %719 = vst [vmem:[#allocation2 + $0x30] sm:$0xff] %v687
      %720 = vst [vmem:[#allocation2 + $0x38] sm:$0xff] %v688
      %721 = vst [vmem:[#allocation2 + $0x40] sm:$0xff] %v689
      %722 = vst [vmem:[#allocation2 + $0x48] sm:$0xff] %v690
      %723 = vst [vmem:[#allocation2 + $0x50] sm:$0xff] %v691
      %724 = vst [vmem:[#allocation2 + $0x58] sm:$0xff] %v692
      %725 = vst [vmem:[#allocation2 + $0x60] sm:$0xff] %v693
      %726 = vst [vmem:[#allocation2 + $0x68] sm:$0xff] %v694
      %727 = vst [vmem:[#allocation2 + $0x70] sm:$0xff] %v695
      %728 = vst [vmem:[#allocation2 + $0x78] sm:$0xff] %v696
      %729 = vst [vmem:[#allocation2 + $0x80] sm:$0xff] %v697
      %730 = vst [vmem:[#allocation2 + $0x88] sm:$0xff] %v698
      %731 = vst [vmem:[#allocation2 + $0x90] sm:$0xff] %v699
      %732 = vst [vmem:[#allocation2 + $0x98] sm:$0xff] %v700
      %733 = vst [vmem:[#allocation2 + $0xa0] sm:$0xff] %v701
      %734 = vst [vmem:[#allocation2 + $0xa8] sm:$0xff] %v702
      %735 = vst [vmem:[#allocation2 + $0xb0] sm:$0xff] %v703
      %736 = vst [vmem:[#allocation2 + $0xb8] sm:$0xff] %v704
      %737 = vst [vmem:[#allocation2 + $0xc0] sm:$0xff] %v705
      %738 = vst [vmem:[#allocation2 + $0xc8] sm:$0xff] %v706
      %739 = vst [vmem:[#allocation2 + $0xd0] sm:$0xff] %v707
      %740 = vst [vmem:[#allocation2 + $0xd8] sm:$0xff] %v708
      %741 = vst [vmem:[#allocation2 + $0xe0] sm:$0xff] %v709
      %742 = vst [vmem:[#allocation2 + $0xe8] sm:$0xff] %v710
      %743 = vst [vmem:[#allocation2 + $0xf0] sm:$0xff] %v711
      %744 = vst [vmem:[#allocation2 + $0xf8] sm:$0xff] %v712
      // Predicated region
      $region37: #{decoder_forward.44} parent=31 // pred_check
        %p745 = pneg %p260
      $region38: #{decoder_forward.44} parent=31 // pred_check_branch
        %747 = sbr.rel (%p745) target = $region40
      $region39: #{decoder_forward.44} parent=31 // pred_region
        %v748 = vld [vmem:[#allocation2] sm:$0xff]
        %v749 = vld [vmem:[#allocation2 + $0x8] sm:$0xff]
        %v750 = vld [vmem:[#allocation2 + $0x10] sm:$0xff]
        %v751 = vld [vmem:[#allocation2 + $0x18] sm:$0xff]
        %v752 = vld [vmem:[#allocation2 + $0x20] sm:$0xff]
        %v753 = vld [vmem:[#allocation2 + $0x28] sm:$0xff]
        %v754 = vld [vmem:[#allocation2 + $0x30] sm:$0xff]
        %v755 = vld [vmem:[#allocation2 + $0x38] sm:$0xff]
        %v756 = vld [vmem:[#allocation2 + $0x40] sm:$0xff]
        %v757 = vld [vmem:[#allocation2 + $0x48] sm:$0xff]
        %v758 = vld [vmem:[#allocation2 + $0x50] sm:$0xff]
        %v759 = vld [vmem:[#allocation2 + $0x58] sm:$0xff]
        %v760 = vld [vmem:[#allocation2 + $0x60] sm:$0xff]
        %v761 = vld [vmem:[#allocation2 + $0x68] sm:$0xff]
        %v762 = vld [vmem:[#allocation2 + $0x70] sm:$0xff]
        %v763 = vld [vmem:[#allocation2 + $0x78] sm:$0xff]
        %v764 = vld [vmem:[#allocation2 + $0x80] sm:$0xff]
        %v765 = vld [vmem:[#allocation2 + $0x88] sm:$0xff]
        %v766 = vld [vmem:[#allocation2 + $0x90] sm:$0xff]
        %v767 = vld [vmem:[#allocation2 + $0x98] sm:$0xff]
        %v768 = vld [vmem:[#allocation2 + $0xa0] sm:$0xff]
        %v769 = vld [vmem:[#allocation2 + $0xa8] sm:$0xff]
        %v770 = vld [vmem:[#allocation2 + $0xb0] sm:$0xff]
        %v771 = vld [vmem:[#allocation2 + $0xb8] sm:$0xff]
        %v772 = vld [vmem:[#allocation2 + $0xc0] sm:$0xff]
        %v773 = vld [vmem:[#allocation2 + $0xc8] sm:$0xff]
        %v774 = vld [vmem:[#allocation2 + $0xd0] sm:$0xff]
        %v775 = vld [vmem:[#allocation2 + $0xd8] sm:$0xff]
        %v776 = vld [vmem:[#allocation2 + $0xe0] sm:$0xff]
        %v777 = vld [vmem:[#allocation2 + $0xe8] sm:$0xff]
        %v778 = vld [vmem:[#allocation2 + $0xf0] sm:$0xff]
        %v779 = vld [vmem:[#allocation2 + $0xf8] sm:$0xff]
        %v780 = vld [vmem:[%s249] sm:$0x1]
        %v782 = vlaneseq
        %v783 = vshrl.u32 %v782, 7
        %v784 = vsub.s32 0, %v783
        %v785 = vrot.slane %v780, %v784
        %v787 = vadd.f32 %v748, %v785
        %v788 = vadd.f32 %v749, %v785
        %v789 = vadd.f32 %v750, %v785
        %v790 = vadd.f32 %v751, %v785
        %v791 = vadd.f32 %v752, %v785
        %v792 = vadd.f32 %v753, %v785
        %v793 = vadd.f32 %v754, %v785
        %v794 = vadd.f32 %v755, %v785
        %v795 = vadd.f32 %v756, %v785
        %v796 = vadd.f32 %v757, %v785
        %v797 = vadd.f32 %v758, %v785
        %v798 = vadd.f32 %v759, %v785
        %v799 = vadd.f32 %v760, %v785
        %v800 = vadd.f32 %v761, %v785
        %v801 = vadd.f32 %v762, %v785
        %v802 = vadd.f32 %v763, %v785
        %v803 = vadd.f32 %v764, %v785
        %v804 = vadd.f32 %v765, %v785
        %v805 = vadd.f32 %v766, %v785
        %v806 = vadd.f32 %v767, %v785
        %v807 = vadd.f32 %v768, %v785
        %v808 = vadd.f32 %v769, %v785
        %v809 = vadd.f32 %v770, %v785
        %v810 = vadd.f32 %v771, %v785
        %v811 = vadd.f32 %v772, %v785
        %v812 = vadd.f32 %v773, %v785
        %v813 = vadd.f32 %v774, %v785
        %v814 = vadd.f32 %v775, %v785
        %v815 = vadd.f32 %v776, %v785
        %v816 = vadd.f32 %v777, %v785
        %v817 = vadd.f32 %v778, %v785
        %v818 = vadd.f32 %v779, %v785
        %vm819 = vcmp.ge.f32.partialorder %v787, 0.0
        %vm820 = vcmp.ge.f32.partialorder %v788, 0.0
        %vm821 = vcmp.ge.f32.partialorder %v789, 0.0
        %vm822 = vcmp.ge.f32.partialorder %v790, 0.0
        %vm823 = vcmp.ge.f32.partialorder %v791, 0.0
        %vm824 = vcmp.ge.f32.partialorder %v792, 0.0
        %vm825 = vcmp.ge.f32.partialorder %v793, 0.0
        %vm826 = vcmp.ge.f32.partialorder %v794, 0.0
        %vm827 = vcmp.ge.f32.partialorder %v795, 0.0
        %vm828 = vcmp.ge.f32.partialorder %v796, 0.0
        %vm829 = vcmp.ge.f32.partialorder %v797, 0.0
        %vm830 = vcmp.ge.f32.partialorder %v798, 0.0
        %vm831 = vcmp.ge.f32.partialorder %v799, 0.0
        %vm832 = vcmp.ge.f32.partialorder %v800, 0.0
        %vm833 = vcmp.ge.f32.partialorder %v801, 0.0
        %vm834 = vcmp.ge.f32.partialorder %v802, 0.0
        %vm835 = vcmp.ge.f32.partialorder %v803, 0.0
        %vm836 = vcmp.ge.f32.partialorder %v804, 0.0
        %vm837 = vcmp.ge.f32.partialorder %v805, 0.0
        %vm838 = vcmp.ge.f32.partialorder %v806, 0.0
        %vm839 = vcmp.ge.f32.partialorder %v807, 0.0
        %vm840 = vcmp.ge.f32.partialorder %v808, 0.0
        %vm841 = vcmp.ge.f32.partialorder %v809, 0.0
        %vm842 = vcmp.ge.f32.partialorder %v810, 0.0
        %vm843 = vcmp.ge.f32.partialorder %v811, 0.0
        %vm844 = vcmp.ge.f32.partialorder %v812, 0.0
        %vm845 = vcmp.ge.f32.partialorder %v813, 0.0
        %vm846 = vcmp.ge.f32.partialorder %v814, 0.0
        %vm847 = vcmp.ge.f32.partialorder %v815, 0.0
        %vm848 = vcmp.ge.f32.partialorder %v816, 0.0
        %vm849 = vcmp.ge.f32.partialorder %v817, 0.0
        %vm850 = vcmp.ge.f32.partialorder %v818, 0.0
        %v851 = vmul.f32 %v787, 0.01
        %v852 = vmul.f32 %v788, 0.01
        %v853 = vmul.f32 %v789, 0.01
        %v854 = vmul.f32 %v790, 0.01
        %v855 = vmul.f32 %v791, 0.01
        %v856 = vmul.f32 %v792, 0.01
        %v857 = vmul.f32 %v793, 0.01
        %v858 = vmul.f32 %v794, 0.01
        %v859 = vmul.f32 %v795, 0.01
        %v860 = vmul.f32 %v796, 0.01
        %v861 = vmul.f32 %v797, 0.01
        %v862 = vmul.f32 %v798, 0.01
        %v863 = vmul.f32 %v799, 0.01
        %v864 = vmul.f32 %v800, 0.01
        %v865 = vmul.f32 %v801, 0.01
        %v866 = vmul.f32 %v802, 0.01
        %v867 = vmul.f32 %v803, 0.01
        %v868 = vmul.f32 %v804, 0.01
        %v869 = vmul.f32 %v805, 0.01
        %v870 = vmul.f32 %v806, 0.01
        %v871 = vmul.f32 %v807, 0.01
        %v872 = vmul.f32 %v808, 0.01
        %v873 = vmul.f32 %v809, 0.01
        %v874 = vmul.f32 %v810, 0.01
        %v875 = vmul.f32 %v811, 0.01
        %v876 = vmul.f32 %v812, 0.01
        %v877 = vmul.f32 %v813, 0.01
        %v878 = vmul.f32 %v814, 0.01
        %v879 = vmul.f32 %v815, 0.01
        %v880 = vmul.f32 %v816, 0.01
        %v881 = vmul.f32 %v817, 0.01
        %v882 = vmul.f32 %v818, 0.01
        %v883 = vsel %vm819, %v787, %v851
        %v884 = vsel %vm820, %v788, %v852
        %v885 = vsel %vm821, %v789, %v853
        %v886 = vsel %vm822, %v790, %v854
        %v887 = vsel %vm823, %v791, %v855
        %v888 = vsel %vm824, %v792, %v856
        %v889 = vsel %vm825, %v793, %v857
        %v890 = vsel %vm826, %v794, %v858
        %v891 = vsel %vm827, %v795, %v859
        %v892 = vsel %vm828, %v796, %v860
        %v893 = vsel %vm829, %v797, %v861
        %v894 = vsel %vm830, %v798, %v862
        %v895 = vsel %vm831, %v799, %v863
        %v896 = vsel %vm832, %v800, %v864
        %v897 = vsel %vm833, %v801, %v865
        %v898 = vsel %vm834, %v802, %v866
        %v899 = vsel %vm835, %v803, %v867
        %v900 = vsel %vm836, %v804, %v868
        %v901 = vsel %vm837, %v805, %v869
        %v902 = vsel %vm838, %v806, %v870
        %v903 = vsel %vm839, %v807, %v871
        %v904 = vsel %vm840, %v808, %v872
        %v905 = vsel %vm841, %v809, %v873
        %v906 = vsel %vm842, %v810, %v874
        %v907 = vsel %vm843, %v811, %v875
        %v908 = vsel %vm844, %v812, %v876
        %v909 = vsel %vm845, %v813, %v877
        %v910 = vsel %vm846, %v814, %v878
        %v911 = vsel %vm847, %v815, %v879
        %v912 = vsel %vm848, %v816, %v880
        %v913 = vsel %vm849, %v817, %v881
        %v914 = vsel %vm850, %v818, %v882
        %v915 = vpack.c.bf16 %v884, %v883
        %v916 = vpack.c.bf16 %v886, %v885
        %v917 = vpack.c.bf16 %v888, %v887
        %v918 = vpack.c.bf16 %v890, %v889
        %v919 = vpack.c.bf16 %v892, %v891
        %v920 = vpack.c.bf16 %v894, %v893
        %v921 = vpack.c.bf16 %v896, %v895
        %v922 = vpack.c.bf16 %v898, %v897
        %v923 = vpack.c.bf16 %v900, %v899
        %v924 = vpack.c.bf16 %v902, %v901
        %v925 = vpack.c.bf16 %v904, %v903
        %v926 = vpack.c.bf16 %v906, %v905
        %v927 = vpack.c.bf16 %v908, %v907
        %v928 = vpack.c.bf16 %v910, %v909
        %v929 = vpack.c.bf16 %v912, %v911
        %v930 = vpack.c.bf16 %v914, %v913
        %v947 = vunpack.c.l.b16 %v915
        %v948 = vunpack.c.h.b16 %v915
        %v949 = vunpack.c.l.b16 %v916
        %v950 = vunpack.c.h.b16 %v916
        %v951 = vunpack.c.l.b16 %v917
        %v952 = vunpack.c.h.b16 %v917
        %v953 = vunpack.c.l.b16 %v918
        %v954 = vunpack.c.h.b16 %v918
        %v955 = vunpack.c.l.b16 %v919
        %v956 = vunpack.c.h.b16 %v919
        %v957 = vunpack.c.l.b16 %v920
        %v958 = vunpack.c.h.b16 %v920
        %v959 = vunpack.c.l.b16 %v921
        %v960 = vunpack.c.h.b16 %v921
        %v961 = vunpack.c.l.b16 %v922
        %v962 = vunpack.c.h.b16 %v922
        %v963 = vunpack.c.l.b16 %v923
        %v964 = vunpack.c.h.b16 %v923
        %v965 = vunpack.c.l.b16 %v924
        %v966 = vunpack.c.h.b16 %v924
        %v967 = vunpack.c.l.b16 %v925
        %v968 = vunpack.c.h.b16 %v925
        %v969 = vunpack.c.l.b16 %v926
        %v970 = vunpack.c.h.b16 %v926
        %v971 = vunpack.c.l.b16 %v927
        %v972 = vunpack.c.h.b16 %v927
        %v973 = vunpack.c.l.b16 %v928
        %v974 = vunpack.c.h.b16 %v928
        %v975 = vunpack.c.l.b16 %v929
        %v976 = vunpack.c.h.b16 %v929
        %v977 = vunpack.c.l.b16 %v930
        %v978 = vunpack.c.h.b16 %v930
        %v979 = vpack.c.b16 %v947, %v947
        %v980 = vpack.c.b16 %v948, %v948
        %v981 = vpack.c.b16 %v949, %v949
        %v982 = vpack.c.b16 %v950, %v950
        %v983 = vpack.c.b16 %v951, %v951
        %v984 = vpack.c.b16 %v952, %v952
        %v985 = vpack.c.b16 %v953, %v953
        %v986 = vpack.c.b16 %v954, %v954
        %v987 = vpack.c.b16 %v955, %v955
        %v988 = vpack.c.b16 %v956, %v956
        %v989 = vpack.c.b16 %v957, %v957
        %v990 = vpack.c.b16 %v958, %v958
        %v991 = vpack.c.b16 %v959, %v959
        %v992 = vpack.c.b16 %v960, %v960
        %v993 = vpack.c.b16 %v961, %v961
        %v994 = vpack.c.b16 %v962, %v962
        %v995 = vpack.c.b16 %v963, %v963
        %v996 = vpack.c.b16 %v964, %v964
        %v997 = vpack.c.b16 %v965, %v965
        %v998 = vpack.c.b16 %v966, %v966
        %v999 = vpack.c.b16 %v967, %v967
        %v1000 = vpack.c.b16 %v968, %v968
        %v1001 = vpack.c.b16 %v969, %v969
        %v1002 = vpack.c.b16 %v970, %v970
        %v1003 = vpack.c.b16 %v971, %v971
        %v1004 = vpack.c.b16 %v972, %v972
        %v1005 = vpack.c.b16 %v973, %v973
        %v1006 = vpack.c.b16 %v974, %v974
        %v1007 = vpack.c.b16 %v975, %v975
        %v1008 = vpack.c.b16 %v976, %v976
        %v1009 = vpack.c.b16 %v977, %v977
        %v1010 = vpack.c.b16 %v978, %v978
        %1043 = vst [vmem:[%s257] sm:$0xf] %v979
        %1044 = vst [vmem:[%s257 + $0x4] sm:$0xf] %v980
        %1045 = vst [vmem:[%s257 + $0x8] sm:$0xf] %v981
        %1046 = vst [vmem:[%s257 + $0xc] sm:$0xf] %v982
        %1047 = vst [vmem:[%s257 + $0x10] sm:$0xf] %v983
        %1048 = vst [vmem:[%s257 + $0x14] sm:$0xf] %v984
        %1049 = vst [vmem:[%s257 + $0x18] sm:$0xf] %v985
        %1050 = vst [vmem:[%s257 + $0x1c] sm:$0xf] %v986
        %1051 = vst [vmem:[%s257 + $0x20] sm:$0xf] %v987
        %1052 = vst [vmem:[%s257 + $0x24] sm:$0xf] %v988
        %1053 = vst [vmem:[%s257 + $0x28] sm:$0xf] %v989
        %1054 = vst [vmem:[%s257 + $0x2c] sm:$0xf] %v990
        %1055 = vst [vmem:[%s257 + $0x30] sm:$0xf] %v991
        %1056 = vst [vmem:[%s257 + $0x34] sm:$0xf] %v992
        %1057 = vst [vmem:[%s257 + $0x38] sm:$0xf] %v993
        %1058 = vst [vmem:[%s257 + $0x3c] sm:$0xf] %v994
        %1059 = vst [vmem:[%s257 + $0x40] sm:$0xf] %v995
        %1060 = vst [vmem:[%s257 + $0x44] sm:$0xf] %v996
        %1061 = vst [vmem:[%s257 + $0x48] sm:$0xf] %v997
        %1062 = vst [vmem:[%s257 + $0x4c] sm:$0xf] %v998
        %1063 = vst [vmem:[%s257 + $0x50] sm:$0xf] %v999
        %1064 = vst [vmem:[%s257 + $0x54] sm:$0xf] %v1000
        %1065 = vst [vmem:[%s257 + $0x58] sm:$0xf] %v1001
        %1066 = vst [vmem:[%s257 + $0x5c] sm:$0xf] %v1002
        %1067 = vst [vmem:[%s257 + $0x60] sm:$0xf] %v1003
        %1068 = vst [vmem:[%s257 + $0x64] sm:$0xf] %v1004
        %1069 = vst [vmem:[%s257 + $0x68] sm:$0xf] %v1005
        %1070 = vst [vmem:[%s257 + $0x6c] sm:$0xf] %v1006
        %1071 = vst [vmem:[%s257 + $0x70] sm:$0xf] %v1007
        %1072 = vst [vmem:[%s257 + $0x74] sm:$0xf] %v1008
        %1073 = vst [vmem:[%s257 + $0x78] sm:$0xf] %v1009
        %1074 = vst [vmem:[%s257 + $0x7c] sm:$0xf] %v1010
      $region40: #{decoder_forward.44} parent=31 // pred_fallthru
        _
      %s1075 = smul.u32 32, %s19
      %p1076 = scmp.lt.s32.totalorder %s1075, 63
      %s1077 = scalar_select %p1076, %s1075, 63
      %p1078 = scmp.lt.s32.totalorder %s20, 0
      %s1079 = scalar_select %p1078, %s20, 0
      %s1080 = sadd.s32 %s1079, %s1077
      %s1081 = smul.addr %s1080, 4
      %s1082 = scalar_lea.vmem %s3, %s1081
      // Predicated region
      $region41: #{decoder_forward.44} parent=31 // pred_check
        %p1083 = pneg %p135
      $region42: #{decoder_forward.44} parent=31 // pred_check_branch
        %1085 = sbr.rel (%p1083) target = $region44
      $region43: #{decoder_forward.44} parent=31 // pred_region
        %s1086 = smul.u32 32, %s19
      $region44: #{decoder_forward.44} parent=31 // pred_fallthru
        _
    $region32: #{decoder_forward.44} parent=5 // pred_fallthru
      _
    %p1087 = scmp.le.s32.totalorder 2, %s9
    // Predicated region
    $region45: #{decoder_forward.44} parent=5 // pred_check
      %p1088 = pneg %p1087
    $region46: #{decoder_forward.44} parent=5 // pred_check_branch
      %1090 = sbr.rel (%p1088) target = $region48
    $region47: #{decoder_forward.44} parent=5 // pred_region
      %s1091 = ssub.s32 %s9, 2
      // Predicated region
      $region49: #{decoder_forward.44} parent=47 // pred_check
        %p1092 = pneg %p141
      $region50: #{decoder_forward.44} parent=47 // pred_check_branch
        %1094 = sbr.rel (%p1092) target = $region52
      $region51: #{decoder_forward.44} parent=47 // pred_region
        %s1095 = smul.u32 32, %s22
        %p1096 = scmp.lt.s32.totalorder %s1095, 63
        %s1097 = scalar_select %p1096, %s1095, 63
        %p1098 = scmp.lt.s32.totalorder %s23, 0
        %s1099 = scalar_select %p1098, %s23, 0
        %s1100 = sadd.s32 %s1099, %s1097
        %s1101 = smul.addr %s1100, 4
        %s1102 = scalar_lea.vmem %s3, %s1101
      $region52: #{decoder_forward.44} parent=47 // pred_fallthru
        _
    $region48: #{decoder_forward.44} parent=5 // pred_fallthru
      _
  $region6: #{decoder_forward.44} parent=0 // loop_footer
    %s13 = sadd.s32 1, %s9
  $region7: #{decoder_forward.44} parent=0 // loop_footer_branch
    %8 = sbr.rel target = $region3
  $region8: #{decoder_forward.44} parent=0 // loop_exit
    _

// kernel: decoder_forward.45
$region0: #{decoder_forward.45}
  #allocation0 [shape = 'u32[]', space=smem, size = 0x4, offset = 0x4, fixed_abs, tag = 'smem constant byte address 0x4 - core index']
  #allocation1 [shape = 'u32[144,128]{1,0:T(1,128)}', space=vmem, size = 0x12000, scoped, tag = 'internal scratch']
  #allocation2 [shape = 'f32[256,128]{1,0:T(8,128)}', space=vmem, size = 0x20000, scoped, tag = 'scratch operand']
  %s0 = inlined_call_operand.vmem [shape: bf16[512,256], index: 0, kind: input, shape index: {}]
  %s1 = inlined_call_operand.vmem [shape: bf16[256,128], index: 1, kind: input, shape index: {}]
  %s2 = inlined_call_operand.vmem [shape: f32[1,128], index: 2, kind: input, shape index: {}]
  %s3 = inlined_call_operand.vmem [shape: f32[512,128], index: 3, kind: output, shape index: {}]
  %s4 = sld [smem:[#allocation0]]
  $region53: #{decoder_forward.45} parent=0
    _
  %s6 = ssub.s32 1, %s4
  %s7 = scalar_select 0, %s6, %s4
  loop: start=0, step=1, limit=4
  $region2: #{decoder_forward.45} parent=0 // loop_pre_header
    _
  $region3: #{decoder_forward.45} parent=0 // loop_header
    %s9 = sphi 0, %s13
    %p10 = scmp.ge.s32.totalorder %s9, 4
    %s16 = sphi 0, %s35
    %s17 = sphi 0, %s31
    %s18 = sphi 0, %s27
    %s19 = sphi 0, %s16
    %s20 = sphi 0, %s17
    %s21 = sphi 0, %s18
    %s22 = sphi 0, %s19
    %s23 = sphi 0, %s20
    %s24 = sphi 0, %s21
    %s40 = sphi 0, %s42
    %s43 = sphi 0, %s40
    %s44 = sphi 0, %s43
    %s60 = sphi 0, %s44
    %s68 = sphi 0, %s70
    %s71 = sphi 0, %s68
    %s72 = sphi 0, %s71
    %s88 = sphi 0, %s72
    %s94 = sphi 0, %s96
    %s97 = sphi 0, %s94
    %s98 = sphi 0, %s97
    %s114 = sphi 0, %s98
    %s122 = sphi 0, %s124
    %s125 = sphi 0, %s122
    %s126 = sphi 0, %s125
    %s142 = sphi 0, %s126
  $region4: #{decoder_forward.45} parent=0 // loop_header_branch
    %12 = sbr.rel (%p10) target = $region8
  $region5: #{decoder_forward.45} parent=0 // loop_body
    %s14 = ssub.s32 %s9, 1
    %s15 = ssub.s32 %s9, 2
    %s25 = sadd.s32 1, %s18
    %p26 = scmp.ge.s32.totalorder %s25, 1
    %s27 = scalar_select %p26, 0, %s25
    %s28 = sadd.s32 1, %s17
    %s29 = scalar_select %p26, %s28, %s17
    %p30 = scmp.ge.s32.totalorder %s29, 1
    %s31 = scalar_select %p30, 0, %s29
    %s32 = sadd.s32 1, %s16
    %s33 = scalar_select %p30, %s32, %s16
    %p34 = scmp.ge.s32.totalorder %s33, 2
    %s35 = scalar_select %p34, 0, %s33
    %s36 = ssub.s32 %s16, %s35
    %s37 = ssub.s32 %s18, %s27
    %s38 = sor.u32 %s36, %s37
    %p39 = scmp.eq.s32.totalorder %s38, 0
    %s41 = sadd.s32 %s40, 1
    %s42 = scalar_select %p39, %s40, %s41
    %p45 = pneg %p39
    %p46 = scmp.eq.s32.totalorder %s9, 1
    %p47 = por %p45, %p46
    %p48 = scmp.ne.s32.totalorder %s40, %s43
    %p49 = scmp.eq.s32.totalorder %s9, 0
    %p50 = por %p48, %p49
    %p51 = scmp.ne.s32.totalorder %s40, %s43
    %p52 = scmp.eq.s32.totalorder %s14, 1
    %p53 = por %p51, %p52
    %p54 = scmp.ne.s32.totalorder %s43, %s44
    %p55 = scmp.eq.s32.totalorder %s14, 0
    %p56 = por %p54, %p55
    %p57 = scmp.ne.s32.totalorder %s43, %s44
    %p58 = scmp.eq.s32.totalorder %s15, 1
    %p59 = por %p57, %p58
    %p61 = scmp.ne.s32.totalorder %s44, %s60
    %p62 = scmp.eq.s32.totalorder %s15, 0
    %p63 = por %p61, %p62
    %s64 = ssub.s32 %s18, %s27
    %s65 = ssub.s32 %s17, %s31
    %s66 = sor.u32 %s64, %s65
    %p67 = scmp.eq.s32.totalorder %s66, 0
    %s69 = sadd.s32 %s68, 1
    %s70 = scalar_select %p67, %s68, %s69
    %p73 = pneg %p67
    %p74 = scmp.eq.s32.totalorder %s9, 1
    %p75 = por %p73, %p74
    %p76 = scmp.ne.s32.totalorder %s68, %s71
    %p77 = scmp.eq.s32.totalorder %s9, 0
    %p78 = por %p76, %p77
    %p79 = scmp.ne.s32.totalorder %s68, %s71
    %p80 = scmp.eq.s32.totalorder %s14, 1
    %p81 = por %p79, %p80
    %p82 = scmp.ne.s32.totalorder %s71, %s72
    %p83 = scmp.eq.s32.totalorder %s14, 0
    %p84 = por %p82, %p83
    %p85 = scmp.ne.s32.totalorder %s71, %s72
    %p86 = scmp.eq.s32.totalorder %s15, 1
    %p87 = por %p85, %p86
    %p89 = scmp.ne.s32.totalorder %s72, %s88
    %p90 = scmp.eq.s32.totalorder %s15, 0
    %p91 = por %p89, %p90
    %s92 = ssub.s32 %s17, %s31
    %p93 = scmp.eq.s32.totalorder %s92, 0
    %s95 = sadd.s32 %s94, 1
    %s96 = scalar_select %p93, %s94, %s95
    %p99 = pneg %p93
    %p100 = scmp.eq.s32.totalorder %s9, 1
    %p101 = por %p99, %p100
    %p102 = scmp.ne.s32.totalorder %s94, %s97
    %p103 = scmp.eq.s32.totalorder %s9, 0
    %p104 = por %p102, %p103
    %p105 = scmp.ne.s32.totalorder %s94, %s97
    %p106 = scmp.eq.s32.totalorder %s14, 1
    %p107 = por %p105, %p106
    %p108 = scmp.ne.s32.totalorder %s97, %s98
    %p109 = scmp.eq.s32.totalorder %s14, 0
    %p110 = por %p108, %p109
    %p111 = scmp.ne.s32.totalorder %s97, %s98
    %p112 = scmp.eq.s32.totalorder %s15, 1
    %p113 = por %p111, %p112
    %p115 = scmp.ne.s32.totalorder %s98, %s114
    %p116 = scmp.eq.s32.totalorder %s15, 0
    %p117 = por %p115, %p116
    %s118 = ssub.s32 %s16, %s35
    %s119 = ssub.s32 %s17, %s31
    %s120 = sor.u32 %s118, %s119
    %p121 = scmp.eq.s32.totalorder %s120, 0
    %s123 = sadd.s32 %s122, 1
    %s124 = scalar_select %p121, %s122, %s123
    %p127 = pneg %p121
    %p128 = scmp.eq.s32.totalorder %s9, 1
    %p129 = por %p127, %p128
    %p130 = scmp.ne.s32.totalorder %s122, %s125
    %p131 = scmp.eq.s32.totalorder %s9, 0
    %p132 = por %p130, %p131
    %p133 = scmp.ne.s32.totalorder %s122, %s125
    %p134 = scmp.eq.s32.totalorder %s14, 1
    %p135 = por %p133, %p134
    %p136 = scmp.ne.s32.totalorder %s125, %s126
    %p137 = scmp.eq.s32.totalorder %s14, 0
    %p138 = por %p136, %p137
    %p139 = scmp.ne.s32.totalorder %s125, %s126
    %p140 = scmp.eq.s32.totalorder %s15, 1
    %p141 = por %p139, %p140
    %p143 = scmp.ne.s32.totalorder %s126, %s142
    %p144 = scmp.eq.s32.totalorder %s15, 0
    %p145 = por %p143, %p144
    %p146 = scmp.le.s32.totalorder 1, %s9
    %p147 = scmp.lt.s32.totalorder %s9, 3
    %p148 = pnand %p146, %p147
    %p149 = pneg %p148
    // Predicated region
    $region9: #{decoder_forward.45} parent=5 // pred_check
      _
    $region10: #{decoder_forward.45} parent=5 // pred_check_branch
      %151 = sbr.rel (%p148) target = $region12
    $region11: #{decoder_forward.45} parent=5 // pred_region
      %s152 = ssub.s32 %s9, 1
      // Predicated region
      $region13: #{decoder_forward.45} parent=11 // pred_check
        %p153 = pneg %p84
      $region14: #{decoder_forward.45} parent=11 // pred_check_branch
        %155 = sbr.rel (%p153) target = $region16
      $region15: #{decoder_forward.45} parent=11 // pred_region
        %s156 = smul.u32 32, %s21
        %p157 = scmp.lt.s32.totalorder %s156, 31
        %s158 = scalar_select %p157, %s156, 31
        %p159 = scmp.lt.s32.totalorder %s20, 0
        %s160 = scalar_select %p159, %s20, 0
        %s161 = sadd.s32 %s160, %s158
        %s162 = smul.addr %s161, 4
        %s163 = scalar_lea.vmem %s1, %s162
        %s164 = smul.u32 32, %s21
      $region16: #{decoder_forward.45} parent=11 // pred_fallthru
        _
      // Predicated region
      $region17: #{decoder_forward.45} parent=11 // pred_check
        %p165 = pneg %p110
      $region18: #{decoder_forward.45} parent=11 // pred_check_branch
        %167 = sbr.rel (%p165) target = $region20
      $region19: #{decoder_forward.45} parent=11 // pred_region
        %p168 = scmp.lt.s32.totalorder %s20, 0
        %s169 = scalar_select %p168, %s20, 0
        %s170 = scalar_lea.vmem %s2, %s169
      $region20: #{decoder_forward.45} parent=11 // pred_fallthru
        _
    $region12: #{decoder_forward.45} parent=5 // pred_fallthru
      _
    %p171 = scmp.lt.s32.totalorder %s9, 2
    // Predicated region
    $region21: #{decoder_forward.45} parent=5 // pred_check
      %p172 = pneg %p171
    $region22: #{decoder_forward.45} parent=5 // pred_check_branch
      %174 = sbr.rel (%p172) target = $region24
    $region23: #{decoder_forward.45} parent=5 // pred_region
      // Predicated region
      $region25: #{decoder_forward.45} parent=23 // pred_check
        %p175 = pneg %p50
      $region26: #{decoder_forward.45} parent=23 // pred_check_branch
        %177 = sbr.rel (%p175) target = $region28
      $region27: #{decoder_forward.45} parent=23 // pred_region
        %s178 = smul.u32 32, %s16
        %s179 = smul.u32 2, %s18
        %p180 = scmp.lt.s32.totalorder %s178, 63
        %s181 = scalar_select %p180, %s178, 63
        %p182 = scmp.lt.s32.totalorder %s179, 1
        %s183 = scalar_select %p182, %s179, 1
        %s184 = smul.addr %s181, 2
        %s185 = sadd.s32 %s183, %s184
        %s186 = smul.addr %s185, 4
        %s187 = scalar_lea.vmem %s0, %s186
        %s188 = smul.u32 32, %s16
        %s189 = smul.u32 2, %s18
      $region28: #{decoder_forward.45} parent=23 // pred_fallthru
        _
    $region24: #{decoder_forward.45} parent=5 // pred_fallthru
      _
    %p190 = scmp.le.s32.totalorder 1, %s9
    %p191 = scmp.lt.s32.totalorder %s9, 3
    %p192 = pnand %p190, %p191
    %p193 = pneg %p192
    // Predicated region
    $region29: #{decoder_forward.45} parent=5 // pred_check
      _
    $region30: #{decoder_forward.45} parent=5 // pred_check_branch
      %195 = sbr.rel (%p192) target = $region32
    $region31: #{decoder_forward.45} parent=5 // pred_region
      %s196 = ssub.s32 %s9, 1
      %s197 = smul.u32 32, %s19
      %s198 = smul.u32 2, %s21
      %p199 = scmp.lt.s32.totalorder %s197, 63
      %s200 = scalar_select %p199, %s197, 63
      %p201 = scmp.lt.s32.totalorder %s198, 1
      %s202 = scalar_select %p201, %s198, 1
      %s203 = smul.addr %s200, 2
      %s204 = sadd.s32 %s202, %s203
      %s205 = smul.addr %s204, 4
      %s206 = scalar_lea.vmem %s0, %s205
      %p207 = pneg %p56
      %p208 = pneg %p53
      %s209 = smul.u32 32, %s21
      %p210 = scmp.lt.s32.totalorder %s209, 31
      %s211 = scalar_select %p210, %s209, 31
      %p212 = scmp.lt.s32.totalorder %s20, 0
      %s213 = scalar_select %p212, %s20, 0
      %s214 = sadd.s32 %s213, %s211
      %s215 = smul.addr %s214, 4
      %s216 = scalar_lea.vmem %s1, %s215
      %p217 = pneg %p84
      %p218 = pneg %p81
      %p219 = scmp.lt.s32.totalorder %s20, 0
      %s220 = scalar_select %p219, %s20, 0
      %s221 = scalar_lea.vmem %s2, %s220
      %p222 = pneg %p110
      %p223 = pneg %p107
      %p224 = pneg %p138
      %p225 = pneg %p135
      %s226 = smul.u32 32, %s19
      %p227 = scmp.lt.s32.totalorder %s226, 63
      %s228 = scalar_select %p227, %s226, 63
      %p229 = scmp.lt.s32.totalorder %s20, 0
      %s230 = scalar_select %p229, %s20, 0
      %s231 = sadd.s32 %s230, %s228
      %s232 = smul.addr %s231, 8
      %s233 = scalar_lea.vmem %s3, %s232
      %s234 = smul.u32 32, %s19
      %s235 = smul.u32 2, %s21
      %p236 = scmp.lt.s32.totalorder %s234, 63
      %s237 = scalar_select %p236, %s234, 63
      %p238 = scmp.lt.s32.totalorder %s235, 1
      %s239 = scalar_select %p238, %s235, 1
      %s240 = smul.addr %s237, 2
      %s241 = sadd.s32 %s239, %s240
      %s242 = smul.addr %s241, 4
      %s243 = scalar_lea.vmem %s0, %s242
      %s244 = smul.u32 32, %s19
      %s245 = smul.u32 2, %s21
      %s246 = smul.u32 32, %s21
      %p247 = scmp.lt.s32.totalorder %s246, 31
      %s248 = scalar_select %p247, %s246, 31
      %p249 = scmp.lt.s32.totalorder %s20, 0
      %s250 = scalar_select %p249, %s20, 0
      %s251 = sadd.s32 %s250, %s248
      %s252 = smul.addr %s251, 4
      %s253 = scalar_lea.vmem %s1, %s252
      %s254 = smul.u32 32, %s21
      %p255 = scmp.lt.s32.totalorder %s20, 0
      %s256 = scalar_select %p255, %s20, 0
      %s257 = scalar_lea.vmem %s2, %s256
      %s258 = smul.u32 32, %s19
      %p259 = scmp.lt.s32.totalorder %s258, 63
      %s260 = scalar_select %p259, %s258, 63
      %p261 = scmp.lt.s32.totalorder %s20, 0
      %s262 = scalar_select %p261, %s20, 0
      %s263 = sadd.s32 %s262, %s260
      %s264 = smul.addr %s263, 8
      %s265 = scalar_lea.vmem %s3, %s264
      %s266 = smul.u32 32, %s19
      %p268 = scmp.eq.s32.totalorder %s21, 0
      // Predicated region
      $region33: #{decoder_forward.45} parent=31 // pred_check
        %p269 = pneg %p268
      $region34: #{decoder_forward.45} parent=31 // pred_check_branch
        %271 = sbr.rel (%p269) target = $region36
      $region35: #{decoder_forward.45} parent=31 // pred_region
        %272 = vst [vmem:[#allocation2] sm:$0xff] 0.0
        %273 = vst [vmem:[#allocation2 + $0x8] sm:$0xff] 0.0
        %274 = vst [vmem:[#allocation2 + $0x10] sm:$0xff] 0.0
        %275 = vst [vmem:[#allocation2 + $0x18] sm:$0xff] 0.0
        %276 = vst [vmem:[#allocation2 + $0x20] sm:$0xff] 0.0
        %277 = vst [vmem:[#allocation2 + $0x28] sm:$0xff] 0.0
        %278 = vst [vmem:[#allocation2 + $0x30] sm:$0xff] 0.0
        %279 = vst [vmem:[#allocation2 + $0x38] sm:$0xff] 0.0
        %280 = vst [vmem:[#allocation2 + $0x40] sm:$0xff] 0.0
        %281 = vst [vmem:[#allocation2 + $0x48] sm:$0xff] 0.0
        %282 = vst [vmem:[#allocation2 + $0x50] sm:$0xff] 0.0
        %283 = vst [vmem:[#allocation2 + $0x58] sm:$0xff] 0.0
        %284 = vst [vmem:[#allocation2 + $0x60] sm:$0xff] 0.0
        %285 = vst [vmem:[#allocation2 + $0x68] sm:$0xff] 0.0
        %286 = vst [vmem:[#allocation2 + $0x70] sm:$0xff] 0.0
        %287 = vst [vmem:[#allocation2 + $0x78] sm:$0xff] 0.0
        %288 = vst [vmem:[#allocation2 + $0x80] sm:$0xff] 0.0
        %289 = vst [vmem:[#allocation2 + $0x88] sm:$0xff] 0.0
        %290 = vst [vmem:[#allocation2 + $0x90] sm:$0xff] 0.0
        %291 = vst [vmem:[#allocation2 + $0x98] sm:$0xff] 0.0
        %292 = vst [vmem:[#allocation2 + $0xa0] sm:$0xff] 0.0
        %293 = vst [vmem:[#allocation2 + $0xa8] sm:$0xff] 0.0
        %294 = vst [vmem:[#allocation2 + $0xb0] sm:$0xff] 0.0
        %295 = vst [vmem:[#allocation2 + $0xb8] sm:$0xff] 0.0
        %296 = vst [vmem:[#allocation2 + $0xc0] sm:$0xff] 0.0
        %297 = vst [vmem:[#allocation2 + $0xc8] sm:$0xff] 0.0
        %298 = vst [vmem:[#allocation2 + $0xd0] sm:$0xff] 0.0
        %299 = vst [vmem:[#allocation2 + $0xd8] sm:$0xff] 0.0
        %300 = vst [vmem:[#allocation2 + $0xe0] sm:$0xff] 0.0
        %301 = vst [vmem:[#allocation2 + $0xe8] sm:$0xff] 0.0
        %302 = vst [vmem:[#allocation2 + $0xf0] sm:$0xff] 0.0
        %303 = vst [vmem:[#allocation2 + $0xf8] sm:$0xff] 0.0
      $region36: #{decoder_forward.45} parent=31 // pred_fallthru
        _
      %v304 = vld [vmem:[#allocation2] sm:$0xff]
      %v305 = vld [vmem:[#allocation2 + $0x8] sm:$0xff]
      %v306 = vld [vmem:[#allocation2 + $0x10] sm:$0xff]
      %v307 = vld [vmem:[#allocation2 + $0x18] sm:$0xff]
      %v308 = vld [vmem:[#allocation2 + $0x20] sm:$0xff]
      %v309 = vld [vmem:[#allocation2 + $0x28] sm:$0xff]
      %v310 = vld [vmem:[#allocation2 + $0x30] sm:$0xff]
      %v311 = vld [vmem:[#allocation2 + $0x38] sm:$0xff]
      %v312 = vld [vmem:[#allocation2 + $0x40] sm:$0xff]
      %v313 = vld [vmem:[#allocation2 + $0x48] sm:$0xff]
      %v314 = vld [vmem:[#allocation2 + $0x50] sm:$0xff]
      %v315 = vld [vmem:[#allocation2 + $0x58] sm:$0xff]
      %v316 = vld [vmem:[#allocation2 + $0x60] sm:$0xff]
      %v317 = vld [vmem:[#allocation2 + $0x68] sm:$0xff]
      %v318 = vld [vmem:[#allocation2 + $0x70] sm:$0xff]
      %v319 = vld [vmem:[#allocation2 + $0x78] sm:$0xff]
      %v320 = vld [vmem:[#allocation2 + $0x80] sm:$0xff]
      %v321 = vld [vmem:[#allocation2 + $0x88] sm:$0xff]
      %v322 = vld [vmem:[#allocation2 + $0x90] sm:$0xff]
      %v323 = vld [vmem:[#allocation2 + $0x98] sm:$0xff]
      %v324 = vld [vmem:[#allocation2 + $0xa0] sm:$0xff]
      %v325 = vld [vmem:[#allocation2 + $0xa8] sm:$0xff]
      %v326 = vld [vmem:[#allocation2 + $0xb0] sm:$0xff]
      %v327 = vld [vmem:[#allocation2 + $0xb8] sm:$0xff]
      %v328 = vld [vmem:[#allocation2 + $0xc0] sm:$0xff]
      %v329 = vld [vmem:[#allocation2 + $0xc8] sm:$0xff]
      %v330 = vld [vmem:[#allocation2 + $0xd0] sm:$0xff]
      %v331 = vld [vmem:[#allocation2 + $0xd8] sm:$0xff]
      %v332 = vld [vmem:[#allocation2 + $0xe0] sm:$0xff]
      %v333 = vld [vmem:[#allocation2 + $0xe8] sm:$0xff]
      %v334 = vld [vmem:[#allocation2 + $0xf0] sm:$0xff]
      %v335 = vld [vmem:[#allocation2 + $0xf8] sm:$0xff]
      %v336 = vld [vmem:[%s243] sm:$0xff]
      %v337 = vld [vmem:[%s243 + $0x8] sm:$0xff]
      %v338 = vld [vmem:[%s243 + $0x10] sm:$0xff]
      %v339 = vld [vmem:[%s243 + $0x18] sm:$0xff]
      %v340 = vld [vmem:[%s243 + $0x20] sm:$0xff]
      %v341 = vld [vmem:[%s243 + $0x28] sm:$0xff]
      %v342 = vld [vmem:[%s243 + $0x30] sm:$0xff]
      %v343 = vld [vmem:[%s243 + $0x38] sm:$0xff]
      %v344 = vld [vmem:[%s243 + $0x40] sm:$0xff]
      %v345 = vld [vmem:[%s243 + $0x48] sm:$0xff]
      %v346 = vld [vmem:[%s243 + $0x50] sm:$0xff]
      %v347 = vld [vmem:[%s243 + $0x58] sm:$0xff]
      %v348 = vld [vmem:[%s243 + $0x60] sm:$0xff]
      %v349 = vld [vmem:[%s243 + $0x68] sm:$0xff]
      %v350 = vld [vmem:[%s243 + $0x70] sm:$0xff]
      %v351 = vld [vmem:[%s243 + $0x78] sm:$0xff]
      %v352 = vld [vmem:[%s243 + $0x80] sm:$0xff]
      %v353 = vld [vmem:[%s243 + $0x88] sm:$0xff]
      %v354 = vld [vmem:[%s243 + $0x90] sm:$0xff]
      %v355 = vld [vmem:[%s243 + $0x98] sm:$0xff]
      %v356 = vld [vmem:[%s243 + $0xa0] sm:$0xff]
      %v357 = vld [vmem:[%s243 + $0xa8] sm:$0xff]
      %v358 = vld [vmem:[%s243 + $0xb0] sm:$0xff]
      %v359 = vld [vmem:[%s243 + $0xb8] sm:$0xff]
      %v360 = vld [vmem:[%s243 + $0xc0] sm:$0xff]
      %v361 = vld [vmem:[%s243 + $0xc8] sm:$0xff]
      %v362 = vld [vmem:[%s243 + $0xd0] sm:$0xff]
      %v363 = vld [vmem:[%s243 + $0xd8] sm:$0xff]
      %v364 = vld [vmem:[%s243 + $0xe0] sm:$0xff]
      %v365 = vld [vmem:[%s243 + $0xe8] sm:$0xff]
      %v366 = vld [vmem:[%s243 + $0xf0] sm:$0xff]
      %v367 = vld [vmem:[%s243 + $0xf8] sm:$0xff]
      %v368 = vld [vmem:[%s253] sm:$0xf]
      %v369 = vld [vmem:[%s253 + $0x4] sm:$0xf]
      %v370 = vld [vmem:[%s253 + $0x8] sm:$0xf]
      %v371 = vld [vmem:[%s253 + $0xc] sm:$0xf]
      %v372 = vld [vmem:[%s253 + $0x10] sm:$0xf]
      %v373 = vld [vmem:[%s253 + $0x14] sm:$0xf]
      %v374 = vld [vmem:[%s253 + $0x18] sm:$0xf]
      %v375 = vld [vmem:[%s253 + $0x1c] sm:$0xf]
      %v376 = vld [vmem:[%s253 + $0x20] sm:$0xf]
      %v377 = vld [vmem:[%s253 + $0x24] sm:$0xf]
      %v378 = vld [vmem:[%s253 + $0x28] sm:$0xf]
      %v379 = vld [vmem:[%s253 + $0x2c] sm:$0xf]
      %v380 = vld [vmem:[%s253 + $0x30] sm:$0xf]
      %v381 = vld [vmem:[%s253 + $0x34] sm:$0xf]
      %v382 = vld [vmem:[%s253 + $0x38] sm:$0xf]
      %v383 = vld [vmem:[%s253 + $0x3c] sm:$0xf]
      %v384 = vld [vmem:[%s253 + $0x40] sm:$0xf]
      %v385 = vld [vmem:[%s253 + $0x44] sm:$0xf]
      %v386 = vld [vmem:[%s253 + $0x48] sm:$0xf]
      %v387 = vld [vmem:[%s253 + $0x4c] sm:$0xf]
      %v388 = vld [vmem:[%s253 + $0x50] sm:$0xf]
      %v389 = vld [vmem:[%s253 + $0x54] sm:$0xf]
      %v390 = vld [vmem:[%s253 + $0x58] sm:$0xf]
      %v391 = vld [vmem:[%s253 + $0x5c] sm:$0xf]
      %v392 = vld [vmem:[%s253 + $0x60] sm:$0xf]
      %v393 = vld [vmem:[%s253 + $0x64] sm:$0xf]
      %v394 = vld [vmem:[%s253 + $0x68] sm:$0xf]
      %v395 = vld [vmem:[%s253 + $0x6c] sm:$0xf]
      %v396 = vld [vmem:[%s253 + $0x70] sm:$0xf]
      %v397 = vld [vmem:[%s253 + $0x74] sm:$0xf]
      %v398 = vld [vmem:[%s253 + $0x78] sm:$0xf]
      %v399 = vld [vmem:[%s253 + $0x7c] sm:$0xf]
      %v432 = vunpack.c.l.b16 %v336
      %v433 = vunpack.c.h.b16 %v336
      %v434 = vunpack.c.l.b16 %v337
      %v435 = vunpack.c.h.b16 %v337
      %v436 = vunpack.c.l.b16 %v338
      %v437 = vunpack.c.h.b16 %v338
      %v438 = vunpack.c.l.b16 %v339
      %v439 = vunpack.c.h.b16 %v339
      %v440 = vunpack.c.l.b16 %v340
      %v441 = vunpack.c.h.b16 %v340
      %v442 = vunpack.c.l.b16 %v341
      %v443 = vunpack.c.h.b16 %v341
      %v444 = vunpack.c.l.b16 %v342
      %v445 = vunpack.c.h.b16 %v342
      %v446 = vunpack.c.l.b16 %v343
      %v447 = vunpack.c.h.b16 %v343
      %v448 = vunpack.c.l.b16 %v344
      %v449 = vunpack.c.h.b16 %v344
      %v450 = vunpack.c.l.b16 %v345
      %v451 = vunpack.c.h.b16 %v345
      %v452 = vunpack.c.l.b16 %v346
      %v453 = vunpack.c.h.b16 %v346
      %v454 = vunpack.c.l.b16 %v347
      %v455 = vunpack.c.h.b16 %v347
      %v456 = vunpack.c.l.b16 %v348
      %v457 = vunpack.c.h.b16 %v348
      %v458 = vunpack.c.l.b16 %v349
      %v459 = vunpack.c.h.b16 %v349
      %v460 = vunpack.c.l.b16 %v350
      %v461 = vunpack.c.h.b16 %v350
      %v462 = vunpack.c.l.b16 %v351
      %v463 = vunpack.c.h.b16 %v351
      %v464 = vunpack.c.l.b16 %v352
      %v465 = vunpack.c.h.b16 %v352
      %v466 = vunpack.c.l.b16 %v353
      %v467 = vunpack.c.h.b16 %v353
      %v468 = vunpack.c.l.b16 %v354
      %v469 = vunpack.c.h.b16 %v354
      %v470 = vunpack.c.l.b16 %v355
      %v471 = vunpack.c.h.b16 %v355
      %v472 = vunpack.c.l.b16 %v356
      %v473 = vunpack.c.h.b16 %v356
      %v474 = vunpack.c.l.b16 %v357
      %v475 = vunpack.c.h.b16 %v357
      %v476 = vunpack.c.l.b16 %v358
      %v477 = vunpack.c.h.b16 %v358
      %v478 = vunpack.c.l.b16 %v359
      %v479 = vunpack.c.h.b16 %v359
      %v480 = vunpack.c.l.b16 %v360
      %v481 = vunpack.c.h.b16 %v360
      %v482 = vunpack.c.l.b16 %v361
      %v483 = vunpack.c.h.b16 %v361
      %v484 = vunpack.c.l.b16 %v362
      %v485 = vunpack.c.h.b16 %v362
      %v486 = vunpack.c.l.b16 %v363
      %v487 = vunpack.c.h.b16 %v363
      %v488 = vunpack.c.l.b16 %v364
      %v489 = vunpack.c.h.b16 %v364
      %v490 = vunpack.c.l.b16 %v365
      %v491 = vunpack.c.h.b16 %v365
      %v492 = vunpack.c.l.b16 %v366
      %v493 = vunpack.c.h.b16 %v366
      %v494 = vunpack.c.l.b16 %v367
      %v495 = vunpack.c.h.b16 %v367
      %v496 = vpack.c.b16 %v434, %v432
      %v497 = vpack.c.b16 %v435, %v433
      %v498 = vpack.c.b16 %v438, %v436
      %v499 = vpack.c.b16 %v439, %v437
      %v500 = vpack.c.b16 %v442, %v440
      %v501 = vpack.c.b16 %v443, %v441
      %v502 = vpack.c.b16 %v446, %v444
      %v503 = vpack.c.b16 %v447, %v445
      %v504 = vpack.c.b16 %v450, %v448
      %v505 = vpack.c.b16 %v451, %v449
      %v506 = vpack.c.b16 %v454, %v452
      %v507 = vpack.c.b16 %v455, %v453
      %v508 = vpack.c.b16 %v458, %v456
      %v509 = vpack.c.b16 %v459, %v457
      %v510 = vpack.c.b16 %v462, %v460
      %v511 = vpack.c.b16 %v463, %v461
      %v512 = vpack.c.b16 %v466, %v464
      %v513 = vpack.c.b16 %v467, %v465
      %v514 = vpack.c.b16 %v470, %v468
      %v515 = vpack.c.b16 %v471, %v469
      %v516 = vpack.c.b16 %v474, %v472
      %v517 = vpack.c.b16 %v475, %v473
      %v518 = vpack.c.b16 %v478, %v476
      %v519 = vpack.c.b16 %v479, %v477
      %v520 = vpack.c.b16 %v482, %v480
      %v521 = vpack.c.b16 %v483, %v481
      %v522 = vpack.c.b16 %v486, %v484
      %v523 = vpack.c.b16 %v487, %v485
      %v524 = vpack.c.b16 %v490, %v488
      %v525 = vpack.c.b16 %v491, %v489
      %v526 = vpack.c.b16 %v494, %v492
      %v527 = vpack.c.b16 %v495, %v493
      %v592 = vunpack.c.l.b16 %v368
      %v593 = vunpack.c.l.b16 %v369
      %v594 = vunpack.c.l.b16 %v370
      %v595 = vunpack.c.l.b16 %v371
      %v596 = vunpack.c.l.b16 %v372
      %v597 = vunpack.c.l.b16 %v373
      %v598 = vunpack.c.l.b16 %v374
      %v599 = vunpack.c.l.b16 %v375
      %v600 = vunpack.c.l.b16 %v376
      %v601 = vunpack.c.l.b16 %v377
      %v602 = vunpack.c.l.b16 %v378
      %v603 = vunpack.c.l.b16 %v379
      %v604 = vunpack.c.l.b16 %v380
      %v605 = vunpack.c.l.b16 %v381
      %v606 = vunpack.c.l.b16 %v382
      %v607 = vunpack.c.l.b16 %v383
      %v608 = vunpack.c.l.b16 %v384
      %v609 = vunpack.c.l.b16 %v385
      %v610 = vunpack.c.l.b16 %v386
      %v611 = vunpack.c.l.b16 %v387
      %v612 = vunpack.c.l.b16 %v388
      %v613 = vunpack.c.l.b16 %v389
      %v614 = vunpack.c.l.b16 %v390
      %v615 = vunpack.c.l.b16 %v391
      %v616 = vunpack.c.l.b16 %v392
      %v617 = vunpack.c.l.b16 %v393
      %v618 = vunpack.c.l.b16 %v394
      %v619 = vunpack.c.l.b16 %v395
      %v620 = vunpack.c.l.b16 %v396
      %v621 = vunpack.c.l.b16 %v397
      %v622 = vunpack.c.l.b16 %v398
      %v623 = vunpack.c.l.b16 %v399
      %v624 = vpack.c.b16 %v593, %v592
      %v625 = vpack.c.b16 %v595, %v594
      %v626 = vpack.c.b16 %v597, %v596
      %v627 = vpack.c.b16 %v599, %v598
      %v628 = vpack.c.b16 %v601, %v600
      %v629 = vpack.c.b16 %v603, %v602
      %v630 = vpack.c.b16 %v605, %v604
      %v631 = vpack.c.b16 %v607, %v606
      %v632 = vpack.c.b16 %v609, %v608
      %v633 = vpack.c.b16 %v611, %v610
      %v634 = vpack.c.b16 %v613, %v612
      %v635 = vpack.c.b16 %v615, %v614
      %v636 = vpack.c.b16 %v617, %v616
      %v637 = vpack.c.b16 %v619, %v618
      %v638 = vpack.c.b16 %v621, %v620
      %v639 = vpack.c.b16 %v623, %v622
      %656 = vmatprep.subr.bf16.mxu0 0
      %657 = vmatpush1.bf16.msra.mxu0 %v631
      %658 = vmatprep.subr.bf16.mxu0 0
      %659 = vmatpush1.bf16.msra.mxu0 %v630
      %660 = vmatprep.subr.bf16.mxu0 0
      %661 = vmatpush1.bf16.msra.mxu0 %v629
      %662 = vmatprep.subr.bf16.mxu0 0
      %663 = vmatpush1.bf16.msra.mxu0 %v628
      %664 = vmatprep.subr.bf16.mxu0 0
      %665 = vmatpush1.bf16.msra.mxu0 %v627
      %666 = vmatprep.subr.bf16.mxu0 0
      %667 = vmatpush1.bf16.msra.mxu0 %v626
      %668 = vmatprep.subr.bf16.mxu0 0
      %669 = vmatpush1.bf16.msra.mxu0 %v625
      %670 = vmatprep.subr.bf16.mxu0 0
      %671 = vmatpush1.bf16.msra.mxu0 %v624
      %672 = vmatprep.subr.bf16.mxu0 0
      %673 = vmatpush2.bf16.msra.mxu0 %v639
      %674 = vmatprep.subr.bf16.mxu0 0
      %675 = vmatpush2.bf16.msra.mxu0 %v638
      %676 = vmatprep.subr.bf16.mxu0 0
      %677 = vmatpush2.bf16.msra.mxu0 %v637
      %678 = vmatprep.subr.bf16.mxu0 0
      %679 = vmatpush2.bf16.msra.mxu0 %v636
      %680 = vmatprep.subr.bf16.mxu0 0
      %681 = vmatpush2.bf16.msra.mxu0 %v635
      %682 = vmatprep.subr.bf16.mxu0 0
      %683 = vmatpush2.bf16.msra.mxu0 %v634
      %684 = vmatprep.subr.bf16.mxu0 0
      %685 = vmatpush2.bf16.msra.mxu0 %v633
      %686 = vmatprep.subr.bf16.mxu0 0
      %687 = vmatpush2.bf16.msra.mxu0 %v632
      %688 = vmatprep.mubr.bf16.mxu0 %v497
      %689 = vmatmul.mubr.bf16.gmra.mxu0 %v496
      %v690 = vpop.f32.mrf.mxu0
      %v691 = vadd.f32 0.0, %v690
      %v692 = vpop.f32.mrf.mxu0
      %v693 = vpop.f32.mrf.mxu0
      %v694 = vadd.f32 0.0, %v693
      %v695 = vpop.f32.mrf.mxu0
      %696 = vmatprep.mubr.bf16.mxu0 %v499
      %697 = vmatmul.mubr.bf16.gmra.mxu0 %v498
      %v698 = vpop.f32.mrf.mxu0
      %v699 = vadd.f32 0.0, %v698
      %v700 = vpop.f32.mrf.mxu0
      %v701 = vpop.f32.mrf.mxu0
      %v702 = vadd.f32 0.0, %v701
      %v703 = vpop.f32.mrf.mxu0
      %704 = vmatprep.mubr.bf16.mxu0 %v501
      %705 = vmatmul.mubr.bf16.gmra.mxu0 %v500
      %v706 = vpop.f32.mrf.mxu0
      %v707 = vadd.f32 0.0, %v706
      %v708 = vpop.f32.mrf.mxu0
      %v709 = vpop.f32.mrf.mxu0
      %v710 = vadd.f32 0.0, %v709
      %v711 = vpop.f32.mrf.mxu0
      %712 = vmatprep.mubr.bf16.mxu0 %v503
      %713 = vmatmul.mubr.bf16.gmra.mxu0 %v502
      %v714 = vpop.f32.mrf.mxu0
      %v715 = vadd.f32 0.0, %v714
      %v716 = vpop.f32.mrf.mxu0
      %v717 = vpop.f32.mrf.mxu0
      %v718 = vadd.f32 0.0, %v717
      %v719 = vpop.f32.mrf.mxu0
      %720 = vmatprep.mubr.bf16.mxu0 %v505
      %721 = vmatmul.mubr.bf16.gmra.mxu0 %v504
      %v722 = vpop.f32.mrf.mxu0
      %v723 = vadd.f32 0.0, %v722
      %v724 = vpop.f32.mrf.mxu0
      %v725 = vpop.f32.mrf.mxu0
      %v726 = vadd.f32 0.0, %v725
      %v727 = vpop.f32.mrf.mxu0
      %728 = vmatprep.mubr.bf16.mxu0 %v507
      %729 = vmatmul.mubr.bf16.gmra.mxu0 %v506
      %v730 = vpop.f32.mrf.mxu0
      %v731 = vadd.f32 0.0, %v730
      %v732 = vpop.f32.mrf.mxu0
      %v733 = vpop.f32.mrf.mxu0
      %v734 = vadd.f32 0.0, %v733
      %v735 = vpop.f32.mrf.mxu0
      %736 = vmatprep.mubr.bf16.mxu0 %v509
      %737 = vmatmul.mubr.bf16.gmra.mxu0 %v508
      %v738 = vpop.f32.mrf.mxu0
      %v739 = vadd.f32 0.0, %v738
      %v740 = vpop.f32.mrf.mxu0
      %v741 = vpop.f32.mrf.mxu0
      %v742 = vadd.f32 0.0, %v741
      %v743 = vpop.f32.mrf.mxu0
      %744 = vmatprep.mubr.bf16.mxu0 %v511
      %745 = vmatmul.mubr.bf16.gmra.mxu0 %v510
      %v746 = vpop.f32.mrf.mxu0
      %v747 = vadd.f32 0.0, %v746
      %v748 = vpop.f32.mrf.mxu0
      %v749 = vpop.f32.mrf.mxu0
      %v750 = vadd.f32 0.0, %v749
      %v751 = vpop.f32.mrf.mxu0
      %752 = vmatprep.mubr.bf16.mxu0 %v513
      %753 = vmatmul.mubr.bf16.gmra.mxu0 %v512
      %v754 = vpop.f32.mrf.mxu0
      %v755 = vadd.f32 0.0, %v754
      %v756 = vpop.f32.mrf.mxu0
      %v757 = vpop.f32.mrf.mxu0
      %v758 = vadd.f32 0.0, %v757
      %v759 = vpop.f32.mrf.mxu0
      %760 = vmatprep.mubr.bf16.mxu0 %v515
      %761 = vmatmul.mubr.bf16.gmra.mxu0 %v514
      %v762 = vpop.f32.mrf.mxu0
      %v763 = vadd.f32 0.0, %v762
      %v764 = vpop.f32.mrf.mxu0
      %v765 = vpop.f32.mrf.mxu0
      %v766 = vadd.f32 0.0, %v765
      %v767 = vpop.f32.mrf.mxu0
      %768 = vmatprep.mubr.bf16.mxu0 %v517
      %769 = vmatmul.mubr.bf16.gmra.mxu0 %v516
      %v770 = vpop.f32.mrf.mxu0
      %v771 = vadd.f32 0.0, %v770
      %v772 = vpop.f32.mrf.mxu0
      %v773 = vpop.f32.mrf.mxu0
      %v774 = vadd.f32 0.0, %v773
      %v775 = vpop.f32.mrf.mxu0
      %776 = vmatprep.mubr.bf16.mxu0 %v519
      %777 = vmatmul.mubr.bf16.gmra.mxu0 %v518
      %v778 = vpop.f32.mrf.mxu0
      %v779 = vadd.f32 0.0, %v778
      %v780 = vpop.f32.mrf.mxu0
      %v781 = vpop.f32.mrf.mxu0
      %v782 = vadd.f32 0.0, %v781
      %v783 = vpop.f32.mrf.mxu0
      %784 = vmatprep.mubr.bf16.mxu0 %v521
      %785 = vmatmul.mubr.bf16.gmra.mxu0 %v520
      %v786 = vpop.f32.mrf.mxu0
      %v787 = vadd.f32 0.0, %v786
      %v788 = vpop.f32.mrf.mxu0
      %v789 = vpop.f32.mrf.mxu0
      %v790 = vadd.f32 0.0, %v789
      %v791 = vpop.f32.mrf.mxu0
      %792 = vmatprep.mubr.bf16.mxu0 %v523
      %793 = vmatmul.mubr.bf16.gmra.mxu0 %v522
      %v794 = vpop.f32.mrf.mxu0
      %v795 = vadd.f32 0.0, %v794
      %v796 = vpop.f32.mrf.mxu0
      %v797 = vpop.f32.mrf.mxu0
      %v798 = vadd.f32 0.0, %v797
      %v799 = vpop.f32.mrf.mxu0
      %800 = vmatprep.mubr.bf16.mxu0 %v525
      %801 = vmatmul.mubr.bf16.gmra.mxu0 %v524
      %v802 = vpop.f32.mrf.mxu0
      %v803 = vadd.f32 0.0, %v802
      %v804 = vpop.f32.mrf.mxu0
      %v805 = vpop.f32.mrf.mxu0
      %v806 = vadd.f32 0.0, %v805
      %v807 = vpop.f32.mrf.mxu0
      %808 = vmatprep.mubr.bf16.mxu0 %v527
      %809 = vmatmul.mubr.bf16.gmra.mxu0 %v526
      %v810 = vpop.f32.mrf.mxu0
      %v811 = vadd.f32 0.0, %v810
      %v812 = vpop.f32.mrf.mxu0
      %v813 = vpop.f32.mrf.mxu0
      %v814 = vadd.f32 0.0, %v813
      %v815 = vpop.f32.mrf.mxu0
      %816 = vdwg.mxu0
      %v817 = vadd.f32 %v304, %v691
      %v818 = vadd.f32 %v305, %v694
      %v819 = vadd.f32 %v306, %v699
      %v820 = vadd.f32 %v307, %v702
      %v821 = vadd.f32 %v308, %v707
      %v822 = vadd.f32 %v309, %v710
      %v823 = vadd.f32 %v310, %v715
      %v824 = vadd.f32 %v311, %v718
      %v825 = vadd.f32 %v312, %v723
      %v826 = vadd.f32 %v313, %v726
      %v827 = vadd.f32 %v314, %v731
      %v828 = vadd.f32 %v315, %v734
      %v829 = vadd.f32 %v316, %v739
      %v830 = vadd.f32 %v317, %v742
      %v831 = vadd.f32 %v318, %v747
      %v832 = vadd.f32 %v319, %v750
      %v833 = vadd.f32 %v320, %v755
      %v834 = vadd.f32 %v321, %v758
      %v835 = vadd.f32 %v322, %v763
      %v836 = vadd.f32 %v323, %v766
      %v837 = vadd.f32 %v324, %v771
      %v838 = vadd.f32 %v325, %v774
      %v839 = vadd.f32 %v326, %v779
      %v840 = vadd.f32 %v327, %v782
      %v841 = vadd.f32 %v328, %v787
      %v842 = vadd.f32 %v329, %v790
      %v843 = vadd.f32 %v330, %v795
      %v844 = vadd.f32 %v331, %v798
      %v845 = vadd.f32 %v332, %v803
      %v846 = vadd.f32 %v333, %v806
      %v847 = vadd.f32 %v334, %v811
      %v848 = vadd.f32 %v335, %v814
      %849 = vst [vmem:[#allocation2] sm:$0xff] %v817
      %850 = vst [vmem:[#allocation2 + $0x8] sm:$0xff] %v818
      %851 = vst [vmem:[#allocation2 + $0x10] sm:$0xff] %v819
      %852 = vst [vmem:[#allocation2 + $0x18] sm:$0xff] %v820
      %853 = vst [vmem:[#allocation2 + $0x20] sm:$0xff] %v821
      %854 = vst [vmem:[#allocation2 + $0x28] sm:$0xff] %v822
      %855 = vst [vmem:[#allocation2 + $0x30] sm:$0xff] %v823
      %856 = vst [vmem:[#allocation2 + $0x38] sm:$0xff] %v824
      %857 = vst [vmem:[#allocation2 + $0x40] sm:$0xff] %v825
      %858 = vst [vmem:[#allocation2 + $0x48] sm:$0xff] %v826
      %859 = vst [vmem:[#allocation2 + $0x50] sm:$0xff] %v827
      %860 = vst [vmem:[#allocation2 + $0x58] sm:$0xff] %v828
      %861 = vst [vmem:[#allocation2 + $0x60] sm:$0xff] %v829
      %862 = vst [vmem:[#allocation2 + $0x68] sm:$0xff] %v830
      %863 = vst [vmem:[#allocation2 + $0x70] sm:$0xff] %v831
      %864 = vst [vmem:[#allocation2 + $0x78] sm:$0xff] %v832
      %865 = vst [vmem:[#allocation2 + $0x80] sm:$0xff] %v833
      %866 = vst [vmem:[#allocation2 + $0x88] sm:$0xff] %v834
      %867 = vst [vmem:[#allocation2 + $0x90] sm:$0xff] %v835
      %868 = vst [vmem:[#allocation2 + $0x98] sm:$0xff] %v836
      %869 = vst [vmem:[#allocation2 + $0xa0] sm:$0xff] %v837
      %870 = vst [vmem:[#allocation2 + $0xa8] sm:$0xff] %v838
      %871 = vst [vmem:[#allocation2 + $0xb0] sm:$0xff] %v839
      %872 = vst [vmem:[#allocation2 + $0xb8] sm:$0xff] %v840
      %873 = vst [vmem:[#allocation2 + $0xc0] sm:$0xff] %v841
      %874 = vst [vmem:[#allocation2 + $0xc8] sm:$0xff] %v842
      %875 = vst [vmem:[#allocation2 + $0xd0] sm:$0xff] %v843
      %876 = vst [vmem:[#allocation2 + $0xd8] sm:$0xff] %v844
      %877 = vst [vmem:[#allocation2 + $0xe0] sm:$0xff] %v845
      %878 = vst [vmem:[#allocation2 + $0xe8] sm:$0xff] %v846
      %879 = vst [vmem:[#allocation2 + $0xf0] sm:$0xff] %v847
      %880 = vst [vmem:[#allocation2 + $0xf8] sm:$0xff] %v848
      // Predicated region
      $region37: #{decoder_forward.45} parent=31 // pred_check
        %p881 = pneg %p268
      $region38: #{decoder_forward.45} parent=31 // pred_check_branch
        %883 = sbr.rel (%p881) target = $region40
      $region39: #{decoder_forward.45} parent=31 // pred_region
        %v884 = vld [vmem:[#allocation2] sm:$0xff]
        %v885 = vld [vmem:[#allocation2 + $0x8] sm:$0xff]
        %v886 = vld [vmem:[#allocation2 + $0x10] sm:$0xff]
        %v887 = vld [vmem:[#allocation2 + $0x18] sm:$0xff]
        %v888 = vld [vmem:[#allocation2 + $0x20] sm:$0xff]
        %v889 = vld [vmem:[#allocation2 + $0x28] sm:$0xff]
        %v890 = vld [vmem:[#allocation2 + $0x30] sm:$0xff]
        %v891 = vld [vmem:[#allocation2 + $0x38] sm:$0xff]
        %v892 = vld [vmem:[#allocation2 + $0x40] sm:$0xff]
        %v893 = vld [vmem:[#allocation2 + $0x48] sm:$0xff]
        %v894 = vld [vmem:[#allocation2 + $0x50] sm:$0xff]
        %v895 = vld [vmem:[#allocation2 + $0x58] sm:$0xff]
        %v896 = vld [vmem:[#allocation2 + $0x60] sm:$0xff]
        %v897 = vld [vmem:[#allocation2 + $0x68] sm:$0xff]
        %v898 = vld [vmem:[#allocation2 + $0x70] sm:$0xff]
        %v899 = vld [vmem:[#allocation2 + $0x78] sm:$0xff]
        %v900 = vld [vmem:[#allocation2 + $0x80] sm:$0xff]
        %v901 = vld [vmem:[#allocation2 + $0x88] sm:$0xff]
        %v902 = vld [vmem:[#allocation2 + $0x90] sm:$0xff]
        %v903 = vld [vmem:[#allocation2 + $0x98] sm:$0xff]
        %v904 = vld [vmem:[#allocation2 + $0xa0] sm:$0xff]
        %v905 = vld [vmem:[#allocation2 + $0xa8] sm:$0xff]
        %v906 = vld [vmem:[#allocation2 + $0xb0] sm:$0xff]
        %v907 = vld [vmem:[#allocation2 + $0xb8] sm:$0xff]
        %v908 = vld [vmem:[#allocation2 + $0xc0] sm:$0xff]
        %v909 = vld [vmem:[#allocation2 + $0xc8] sm:$0xff]
        %v910 = vld [vmem:[#allocation2 + $0xd0] sm:$0xff]
        %v911 = vld [vmem:[#allocation2 + $0xd8] sm:$0xff]
        %v912 = vld [vmem:[#allocation2 + $0xe0] sm:$0xff]
        %v913 = vld [vmem:[#allocation2 + $0xe8] sm:$0xff]
        %v914 = vld [vmem:[#allocation2 + $0xf0] sm:$0xff]
        %v915 = vld [vmem:[#allocation2 + $0xf8] sm:$0xff]
        %v916 = vld [vmem:[%s257] sm:$0x1]
        %v918 = vlaneseq
        %v919 = vshrl.u32 %v918, 7
        %v920 = vsub.s32 0, %v919
        %v921 = vrot.slane %v916, %v920
        %v923 = vadd.f32 %v884, %v921
        %v924 = vadd.f32 %v885, %v921
        %v925 = vadd.f32 %v886, %v921
        %v926 = vadd.f32 %v887, %v921
        %v927 = vadd.f32 %v888, %v921
        %v928 = vadd.f32 %v889, %v921
        %v929 = vadd.f32 %v890, %v921
        %v930 = vadd.f32 %v891, %v921
        %v931 = vadd.f32 %v892, %v921
        %v932 = vadd.f32 %v893, %v921
        %v933 = vadd.f32 %v894, %v921
        %v934 = vadd.f32 %v895, %v921
        %v935 = vadd.f32 %v896, %v921
        %v936 = vadd.f32 %v897, %v921
        %v937 = vadd.f32 %v898, %v921
        %v938 = vadd.f32 %v899, %v921
        %v939 = vadd.f32 %v900, %v921
        %v940 = vadd.f32 %v901, %v921
        %v941 = vadd.f32 %v902, %v921
        %v942 = vadd.f32 %v903, %v921
        %v943 = vadd.f32 %v904, %v921
        %v944 = vadd.f32 %v905, %v921
        %v945 = vadd.f32 %v906, %v921
        %v946 = vadd.f32 %v907, %v921
        %v947 = vadd.f32 %v908, %v921
        %v948 = vadd.f32 %v909, %v921
        %v949 = vadd.f32 %v910, %v921
        %v950 = vadd.f32 %v911, %v921
        %v951 = vadd.f32 %v912, %v921
        %v952 = vadd.f32 %v913, %v921
        %v953 = vadd.f32 %v914, %v921
        %v954 = vadd.f32 %v915, %v921
        %v955 = vsub.f32 0.0, %v923
        %v956 = vsub.f32 0.0, %v924
        %v957 = vsub.f32 0.0, %v925
        %v958 = vsub.f32 0.0, %v926
        %v959 = vsub.f32 0.0, %v927
        %v960 = vsub.f32 0.0, %v928
        %v961 = vsub.f32 0.0, %v929
        %v962 = vsub.f32 0.0, %v930
        %v963 = vsub.f32 0.0, %v931
        %v964 = vsub.f32 0.0, %v932
        %v965 = vsub.f32 0.0, %v933
        %v966 = vsub.f32 0.0, %v934
        %v967 = vsub.f32 0.0, %v935
        %v968 = vsub.f32 0.0, %v936
        %v969 = vsub.f32 0.0, %v937
        %v970 = vsub.f32 0.0, %v938
        %v971 = vsub.f32 0.0, %v939
        %v972 = vsub.f32 0.0, %v940
        %v973 = vsub.f32 0.0, %v941
        %v974 = vsub.f32 0.0, %v942
        %v975 = vsub.f32 0.0, %v943
        %v976 = vsub.f32 0.0, %v944
        %v977 = vsub.f32 0.0, %v945
        %v978 = vsub.f32 0.0, %v946
        %v979 = vsub.f32 0.0, %v947
        %v980 = vsub.f32 0.0, %v948
        %v981 = vsub.f32 0.0, %v949
        %v982 = vsub.f32 0.0, %v950
        %v983 = vsub.f32 0.0, %v951
        %v984 = vsub.f32 0.0, %v952
        %v985 = vsub.f32 0.0, %v953
        %v986 = vsub.f32 0.0, %v954
        %v987 = vmul.f32 %v955, 1.442695
        %v988 = vpow.pop %v987
        %v989 = vmul.f32 %v956, 1.442695
        %v990 = vpow.pop %v989
        %v991 = vmul.f32 %v957, 1.442695
        %v992 = vpow.pop %v991
        %v993 = vmul.f32 %v958, 1.442695
        %v994 = vpow.pop %v993
        %v995 = vmul.f32 %v959, 1.442695
        %v996 = vpow.pop %v995
        %v997 = vmul.f32 %v960, 1.442695
        %v998 = vpow.pop %v997
        %v999 = vmul.f32 %v961, 1.442695
        %v1000 = vpow.pop %v999
        %v1001 = vmul.f32 %v962, 1.442695
        %v1002 = vpow.pop %v1001
        %v1003 = vmul.f32 %v963, 1.442695
        %v1004 = vpow.pop %v1003
        %v1005 = vmul.f32 %v964, 1.442695
        %v1006 = vpow.pop %v1005
        %v1007 = vmul.f32 %v965, 1.442695
        %v1008 = vpow.pop %v1007
        %v1009 = vmul.f32 %v966, 1.442695
        %v1010 = vpow.pop %v1009
        %v1011 = vmul.f32 %v967, 1.442695
        %v1012 = vpow.pop %v1011
        %v1013 = vmul.f32 %v968, 1.442695
        %v1014 = vpow.pop %v1013
        %v1015 = vmul.f32 %v969, 1.442695
        %v1016 = vpow.pop %v1015
        %v1017 = vmul.f32 %v970, 1.442695
        %v1018 = vpow.pop %v1017
        %v1019 = vmul.f32 %v971, 1.442695
        %v1020 = vpow.pop %v1019
        %v1021 = vmul.f32 %v972, 1.442695
        %v1022 = vpow.pop %v1021
        %v1023 = vmul.f32 %v973, 1.442695
        %v1024 = vpow.pop %v1023
        %v1025 = vmul.f32 %v974, 1.442695
        %v1026 = vpow.pop %v1025
        %v1027 = vmul.f32 %v975, 1.442695
        %v1028 = vpow.pop %v1027
        %v1029 = vmul.f32 %v976, 1.442695
        %v1030 = vpow.pop %v1029
        %v1031 = vmul.f32 %v977, 1.442695
        %v1032 = vpow.pop %v1031
        %v1033 = vmul.f32 %v978, 1.442695
        %v1034 = vpow.pop %v1033
        %v1035 = vmul.f32 %v979, 1.442695
        %v1036 = vpow.pop %v1035
        %v1037 = vmul.f32 %v980, 1.442695
        %v1038 = vpow.pop %v1037
        %v1039 = vmul.f32 %v981, 1.442695
        %v1040 = vpow.pop %v1039
        %v1041 = vmul.f32 %v982, 1.442695
        %v1042 = vpow.pop %v1041
        %v1043 = vmul.f32 %v983, 1.442695
        %v1044 = vpow.pop %v1043
        %v1045 = vmul.f32 %v984, 1.442695
        %v1046 = vpow.pop %v1045
        %v1047 = vmul.f32 %v985, 1.442695
        %v1048 = vpow.pop %v1047
        %v1049 = vmul.f32 %v986, 1.442695
        %v1050 = vpow.pop %v1049
        %v1051 = vadd.f32 %v988, 1.0
        %v1052 = vadd.f32 %v990, 1.0
        %v1053 = vadd.f32 %v992, 1.0
        %v1054 = vadd.f32 %v994, 1.0
        %v1055 = vadd.f32 %v996, 1.0
        %v1056 = vadd.f32 %v998, 1.0
        %v1057 = vadd.f32 %v1000, 1.0
        %v1058 = vadd.f32 %v1002, 1.0
        %v1059 = vadd.f32 %v1004, 1.0
        %v1060 = vadd.f32 %v1006, 1.0
        %v1061 = vadd.f32 %v1008, 1.0
        %v1062 = vadd.f32 %v1010, 1.0
        %v1063 = vadd.f32 %v1012, 1.0
        %v1064 = vadd.f32 %v1014, 1.0
        %v1065 = vadd.f32 %v1016, 1.0
        %v1066 = vadd.f32 %v1018, 1.0
        %v1067 = vadd.f32 %v1020, 1.0
        %v1068 = vadd.f32 %v1022, 1.0
        %v1069 = vadd.f32 %v1024, 1.0
        %v1070 = vadd.f32 %v1026, 1.0
        %v1071 = vadd.f32 %v1028, 1.0
        %v1072 = vadd.f32 %v1030, 1.0
        %v1073 = vadd.f32 %v1032, 1.0
        %v1074 = vadd.f32 %v1034, 1.0
        %v1075 = vadd.f32 %v1036, 1.0
        %v1076 = vadd.f32 %v1038, 1.0
        %v1077 = vadd.f32 %v1040, 1.0
        %v1078 = vadd.f32 %v1042, 1.0
        %v1079 = vadd.f32 %v1044, 1.0
        %v1080 = vadd.f32 %v1046, 1.0
        %v1081 = vadd.f32 %v1048, 1.0
        %v1082 = vadd.f32 %v1050, 1.0
        %v1083 = vrcp.pop %v1051
        %v1084 = vrcp.pop %v1052
        %v1085 = vrcp.pop %v1053
        %v1086 = vrcp.pop %v1054
        %v1087 = vrcp.pop %v1055
        %v1088 = vrcp.pop %v1056
        %v1089 = vrcp.pop %v1057
        %v1090 = vrcp.pop %v1058
        %v1091 = vrcp.pop %v1059
        %v1092 = vrcp.pop %v1060
        %v1093 = vrcp.pop %v1061
        %v1094 = vrcp.pop %v1062
        %v1095 = vrcp.pop %v1063
        %v1096 = vrcp.pop %v1064
        %v1097 = vrcp.pop %v1065
        %v1098 = vrcp.pop %v1066
        %v1099 = vrcp.pop %v1067
        %v1100 = vrcp.pop %v1068
        %v1101 = vrcp.pop %v1069
        %v1102 = vrcp.pop %v1070
        %v1103 = vrcp.pop %v1071
        %v1104 = vrcp.pop %v1072
        %v1105 = vrcp.pop %v1073
        %v1106 = vrcp.pop %v1074
        %v1107 = vrcp.pop %v1075
        %v1108 = vrcp.pop %v1076
        %v1109 = vrcp.pop %v1077
        %v1110 = vrcp.pop %v1078
        %v1111 = vrcp.pop %v1079
        %v1112 = vrcp.pop %v1080
        %v1113 = vrcp.pop %v1081
        %v1114 = vrcp.pop %v1082
        %1115 = vst [vmem:[%s265] sm:$0xff] %v1083
        %1116 = vst [vmem:[%s265 + $0x8] sm:$0xff] %v1084
        %1117 = vst [vmem:[%s265 + $0x10] sm:$0xff] %v1085
        %1118 = vst [vmem:[%s265 + $0x18] sm:$0xff] %v1086
        %1119 = vst [vmem:[%s265 + $0x20] sm:$0xff] %v1087
        %1120 = vst [vmem:[%s265 + $0x28] sm:$0xff] %v1088
        %1121 = vst [vmem:[%s265 + $0x30] sm:$0xff] %v1089
        %1122 = vst [vmem:[%s265 + $0x38] sm:$0xff] %v1090
        %1123 = vst [vmem:[%s265 + $0x40] sm:$0xff] %v1091
        %1124 = vst [vmem:[%s265 + $0x48] sm:$0xff] %v1092
        %1125 = vst [vmem:[%s265 + $0x50] sm:$0xff] %v1093
        %1126 = vst [vmem:[%s265 + $0x58] sm:$0xff] %v1094
        %1127 = vst [vmem:[%s265 + $0x60] sm:$0xff] %v1095
        %1128 = vst [vmem:[%s265 + $0x68] sm:$0xff] %v1096
        %1129 = vst [vmem:[%s265 + $0x70] sm:$0xff] %v1097
        %1130 = vst [vmem:[%s265 + $0x78] sm:$0xff] %v1098
        %1131 = vst [vmem:[%s265 + $0x80] sm:$0xff] %v1099
        %1132 = vst [vmem:[%s265 + $0x88] sm:$0xff] %v1100
        %1133 = vst [vmem:[%s265 + $0x90] sm:$0xff] %v1101
        %1134 = vst [vmem:[%s265 + $0x98] sm:$0xff] %v1102
        %1135 = vst [vmem:[%s265 + $0xa0] sm:$0xff] %v1103
        %1136 = vst [vmem:[%s265 + $0xa8] sm:$0xff] %v1104
        %1137 = vst [vmem:[%s265 + $0xb0] sm:$0xff] %v1105
        %1138 = vst [vmem:[%s265 + $0xb8] sm:$0xff] %v1106
        %1139 = vst [vmem:[%s265 + $0xc0] sm:$0xff] %v1107
        %1140 = vst [vmem:[%s265 + $0xc8] sm:$0xff] %v1108
        %1141 = vst [vmem:[%s265 + $0xd0] sm:$0xff] %v1109
        %1142 = vst [vmem:[%s265 + $0xd8] sm:$0xff] %v1110
        %1143 = vst [vmem:[%s265 + $0xe0] sm:$0xff] %v1111
        %1144 = vst [vmem:[%s265 + $0xe8] sm:$0xff] %v1112
        %1145 = vst [vmem:[%s265 + $0xf0] sm:$0xff] %v1113
        %1146 = vst [vmem:[%s265 + $0xf8] sm:$0xff] %v1114
      $region40: #{decoder_forward.45} parent=31 // pred_fallthru
        _
      %s1147 = smul.u32 32, %s19
      %p1148 = scmp.lt.s32.totalorder %s1147, 63
      %s1149 = scalar_select %p1148, %s1147, 63
      %p1150 = scmp.lt.s32.totalorder %s20, 0
      %s1151 = scalar_select %p1150, %s20, 0
      %s1152 = sadd.s32 %s1151, %s1149
      %s1153 = smul.addr %s1152, 8
      %s1154 = scalar_lea.vmem %s3, %s1153
      // Predicated region
      $region41: #{decoder_forward.45} parent=31 // pred_check
        %p1155 = pneg %p135
      $region42: #{decoder_forward.45} parent=31 // pred_check_branch
        %1157 = sbr.rel (%p1155) target = $region44
      $region43: #{decoder_forward.45} parent=31 // pred_region
        %s1158 = smul.u32 32, %s19
      $region44: #{decoder_forward.45} parent=31 // pred_fallthru
        _
    $region32: #{decoder_forward.45} parent=5 // pred_fallthru
      _
    %p1159 = scmp.le.s32.totalorder 2, %s9
    // Predicated region
    $region45: #{decoder_forward.45} parent=5 // pred_check
      %p1160 = pneg %p1159
    $region46: #{decoder_forward.45} parent=5 // pred_check_branch
      %1162 = sbr.rel (%p1160) target = $region48
    $region47: #{decoder_forward.45} parent=5 // pred_region
      %s1163 = ssub.s32 %s9, 2
      // Predicated region
      $region49: #{decoder_forward.45} parent=47 // pred_check
        %p1164 = pneg %p141
      $region50: #{decoder_forward.45} parent=47 // pred_check_branch
        %1166 = sbr.rel (%p1164) target = $region52
      $region51: #{decoder_forward.45} parent=47 // pred_region
        %s1167 = smul.u32 32, %s22
        %p1168 = scmp.lt.s32.totalorder %s1167, 63
        %s1169 = scalar_select %p1168, %s1167, 63
        %p1170 = scmp.lt.s32.totalorder %s23, 0
        %s1171 = scalar_select %p1170, %s23, 0
        %s1172 = sadd.s32 %s1171, %s1169
        %s1173 = smul.addr %s1172, 8
        %s1174 = scalar_lea.vmem %s3, %s1173
      $region52: #{decoder_forward.45} parent=47 // pred_fallthru
        _
    $region48: #{decoder_forward.45} parent=5 // pred_fallthru
      _
  $region6: #{decoder_forward.45} parent=0 // loop_footer
    %s13 = sadd.s32 1, %s9
  $region7: #{decoder_forward.45} parent=0 // loop_footer_branch
    %8 = sbr.rel target = $region3
  $region8: #{decoder_forward.45} parent=0 // loop_exit
    _

</llo_original>
